<compile_context>
chip_gen: v7x
topology: tpu7x:2x2x1
jax: 0.10.0
libtpu: 0.0.40
codegen_flags: <defaults>
</compile_context>

<pallas_src>
import functools

import numpy as np

import jax
import jax.numpy as jnp
from jax.experimental import pallas as pl
from jax.experimental.pallas import tpu as pltpu


# -----------------------------------------------------------------------------
# Kernels
# -----------------------------------------------------------------------------
def _stem_kernel(x_ref, band_ref, shift_ref, sw_ref, sr_ref, o_ref, *,
                 kh, stride, h_conv):
    """Fused conv7x7/s2 (BN scale folded into band) + shift + ReLU + maxpool3x3/s2.

    x_ref    : (1, stride, Hph, Win*Cin)  H-padded, H-phase-split input (f32)
    band_ref : (kh, Win*Cin, Wc*Cout)     per-kernel-row band matrices (bf16)
    shift_ref: (1, Wc*Cout)               BN shift tiled over W (f32)
    sw_ref   : (3, Wc*Cout, Wp*Cout)      maxpool W-tap 0/1 selection matrices (f32)
    sr_ref   : (3, Hp, Hc)                maxpool H-tap 0/1 selection matrices (f32)
    o_ref    : (1, Hp, Wp*Cout)
    """
    wc_c = band_ref.shape[2]
    acc = jnp.zeros((h_conv, wc_c), jnp.float32)
    for i in range(kh):                      # unrolled in-kernel im2col (per kernel row)
        xr = x_ref[0, i % stride, pl.ds(i // stride, h_conv), :].astype(jnp.bfloat16)
        acc = acc + jnp.dot(xr, band_ref[i], preferred_element_type=jnp.float32)
    y = jnp.maximum(acc + shift_ref[...], 0.0)          # BN shift + ReLU; y >= 0

    # maxpool, W direction: max over 3 stride-2 column-group selections.
    # (zero rows in the selection matrices act as the pad value; valid since y >= 0)
    pw = jnp.dot(y, sw_ref[0], preferred_element_type=jnp.float32)
    for d in range(1, 3):
        pw = jnp.maximum(pw, jnp.dot(y, sw_ref[d], preferred_element_type=jnp.float32))
    # maxpool, H direction: max over 3 stride-2 row selections.
    pooled = jnp.dot(sr_ref[0], pw, preferred_element_type=jnp.float32)
    for d in range(1, 3):
        pooled = jnp.maximum(pooled,
                             jnp.dot(sr_ref[d], pw, preferred_element_type=jnp.float32))
    o_ref[0] = pooled.astype(o_ref.dtype)


def _block_kernel(*refs, stride, pad, has_down, h_mid):
    """One full BasicBlock: conv1+BN+ReLU -> conv2+BN + residual + ReLU (+downsample)."""
    if has_down:
        (x_ref, band1_ref, shift1_ref, band2_ref, shift2_ref,
         bandd_ref, shiftd_ref, o_ref, hpad_ref) = refs
    else:
        (x_ref, band1_ref, shift1_ref, band2_ref, shift2_ref,
         o_ref, hpad_ref) = refs

    wmid_c = band1_ref.shape[2]
    wout_c = band2_ref.shape[2]

    # conv1 (3x3, stride s; W-pad folded into band1) + BN shift + ReLU
    acc1 = jnp.zeros((h_mid, wmid_c), jnp.float32)
    for i in range(3):
        xr = x_ref[0, i % stride, pl.ds(i // stride, h_mid), :].astype(jnp.bfloat16)
        acc1 = acc1 + jnp.dot(xr, band1_ref[i], preferred_element_type=jnp.float32)
    h = jnp.maximum(acc1 + shift1_ref[...], 0.0)        # kept in VMEM/regs, never hits HBM

    # identity path (no zero-residual DMA)
    if has_down:
        xd = x_ref[0, pad % stride, pl.ds(pad // stride, h_mid), :].astype(jnp.bfloat16)
        ident = (jnp.dot(xd, bandd_ref[0], preferred_element_type=jnp.float32)
                 + shiftd_ref[...])
    else:
        # stride == 1 here; the un-padded rows of x_ref are the identity (exact f32).
        ident = x_ref[0, 0, pl.ds(pad, h_mid), :]

    # conv2 (3x3, s1, pad 1): H-pad via zeroed VMEM scratch, W-pad folded into band2
    hpad_ref[...] = jnp.zeros(hpad_ref.shape, hpad_ref.dtype)
    hpad_ref[pl.ds(1, h_mid), :] = h
    acc2 = jnp.zeros((h_mid, wout_c), jnp.float32)
    for i in range(3):
        hr = hpad_ref[pl.ds(i, h_mid), :].astype(jnp.bfloat16)
        acc2 = acc2 + jnp.dot(hr, band2_ref[i], preferred_element_type=jnp.float32)

    o_ref[0] = jnp.maximum(acc2 + shift2_ref[...] + ident, 0.0).astype(o_ref.dtype)


# -----------------------------------------------------------------------------
# Wrapper helpers (layout plumbing only)
# -----------------------------------------------------------------------------
def _full_spec(arr):
    nd = arr.ndim
    return pl.BlockSpec(tuple(arr.shape), lambda b, _nd=nd: (0,) * _nd)


def _batched_spec(arr):
    nd = arr.ndim
    return pl.BlockSpec((1,) + tuple(arr.shape[1:]),
                        lambda b, _nd=nd: (b,) + (0,) * (_nd - 1))


def _pad_phase_split(x, pad, stride):
    """(N, H, L) -> (N, stride, Hph, L): zero-pad H by `pad`, split rows into stride phases."""
    n, h, l = x.shape
    xp = jnp.pad(x, ((0, 0), (pad, pad), (0, 0)))
    hp = h + 2 * pad
    if stride == 1:
        return xp[:, None, :, :]
    rem = (-hp) % stride
    if rem:
        xp = jnp.pad(xp, ((0, 0), (0, rem), (0, 0)))
        hp += rem
    return xp.reshape(n, hp // stride, stride, l).transpose(0, 2, 1, 3)


def _stem_forward(xph, sp, n):
    h_pool = sp["h_pool"]
    wp_c = sp["sw"].shape[2]
    kernel = functools.partial(_stem_kernel, kh=sp["band"].shape[0],
                               stride=xph.shape[1], h_conv=sp["h_conv"])
    return pl.pallas_call(
        kernel,
        out_shape=jax.ShapeDtypeStruct((n, h_pool, wp_c), jnp.float32),
        grid=(n,),
        in_specs=[_batched_spec(xph), _full_spec(sp["band"]), _full_spec(sp["shift"]),
                  _full_spec(sp["sw"]), _full_spec(sp["sr"])],
        out_specs=pl.BlockSpec((1, h_pool, wp_c), lambda b: (b, 0, 0)),
        compiler_params=pltpu.CompilerParams(dimension_semantics=("parallel",)),
    )(xph, sp["band"], sp["shift"], sp["sw"], sp["sr"])


def _block_forward(x, blk):
    n = x.shape[0]
    s, pad, h_out = blk["stride"], blk["pad"], blk["h_out"]
    wout_c = blk["band2"].shape[2]
    wmid_c = blk["band1"].shape[2]
    has_down = "bandd" in blk
    xph = _pad_phase_split(x, pad, s)

    names = ("band1", "shift1", "band2", "shift2")
    if has_down:
        names = names + ("bandd", "shiftd")
    args = [xph] + [blk[nm] for nm in names]
    specs = [_batched_spec(xph)] + [_full_spec(blk[nm]) for nm in names]

    kernel = functools.partial(_block_kernel, stride=s, pad=pad,
                               has_down=has_down, h_mid=h_out)
    return pl.pallas_call(
        kernel,
        out_shape=jax.ShapeDtypeStruct((n, h_out, wout_c), jnp.float32),
        grid=(n,),
        in_specs=specs,
        out_specs=pl.BlockSpec((1, h_out, wout_c), lambda b: (b, 0, 0)),
        scratch_shapes=[pltpu.VMEM((h_out + 2, wmid_c), jnp.float32)],
        compiler_params=pltpu.CompilerParams(dimension_semantics=("parallel",)),
    )(*args)


def intermediate_feature_extractor(x_nchw, kp):
    """Mirrors IntermediateFeatureExtractor.forward; returns dict of NCHW feature maps."""
    n, cin, h, w = x_nchw.shape
    x = jnp.transpose(x_nchw, (0, 2, 3, 1)).reshape(n, h, w * cin)   # lane-flat NHWC
    x = _stem_forward(_pad_phase_split(x, 3, 2), kp["stem"], n)       # conv+bn+relu+maxpool
    outputs = {}
    for name in ("layer1", "layer2", "layer3"):
        for blk in kp[name]:
            x = _block_forward(x, blk)
        hh, ww, cc = kp["shapes"][name]
        outputs[name] = jnp.transpose(x.reshape(n, hh, ww, cc), (0, 3, 1, 2))  # -> NCHW
    return outputs


# -----------------------------------------------------------------------------
# Host-side parameter preparation (one-time, numpy): band matrices + pool selectors
# -----------------------------------------------------------------------------
def _build_band_np(w, scale, w_in, stride, pad):
    """w: (kh,kw,cin,cout) -> (kh, w_in*cin, w_out*cout) band matrices over lane axis.

    Folds the BN scale into the weights and absorbs W-padding / W-stride, so a
    conv row-tap becomes a single matmul over the (W*C) lane-flattened axis."""
    kh, kw, cin, cout = w.shape
    w_out = (w_in + 2 * pad - kw) // stride + 1
    wf = w * scale[None, None, None, :]
    band = np.zeros((kh, w_in * cin, w_out * cout), np.float32)
    for i in range(kh):
        for j in range(kw):
            for wo in range(w_out):
                wi = wo * stride + j - pad
                if 0 <= wi < w_in:
                    band[i, wi * cin:(wi + 1) * cin, wo * cout:(wo + 1) * cout] = wf[i, j]
    return band


def _build_pool_mats_np(h_in, w_in, c):
    """0/1 selection matrices implementing maxpool(3,2,1) taps as matmuls."""
    h_out = (h_in + 2 - 3) // 2 + 1
    w_out = (w_in + 2 - 3) // 2 + 1
    sw = np.zeros((3, w_in * c, w_out * c), np.float32)
    for d in range(3):
        for wo in range(w_out):
            wi = 2 * wo + d - 1
            if 0 <= wi < w_in:
                sw[d, wi * c:(wi + 1) * c, wo * c:(wo + 1) * c] = np.eye(c, dtype=np.float32)
    sr = np.zeros((3, h_out, h_in), np.float32)
    for d in range(3):
        for ho in range(h_out):
            hi = 2 * ho + d - 1
            if 0 <= hi < h_in:
                sr[d, ho, hi] = 1.0
    return sw, sr, h_out, w_out


def prepare_params(raw, h_img, w_img):
    def to_np(p):
        return (np.asarray(p["w"], np.float32),
                np.asarray(p["scale"], np.float32),
                np.asarray(p["shift"], np.float32))

    P = {}
    # stem: conv7x7/s2/p3 (+ fused maxpool3x3/s2/p1)
    wst, scst, shst = to_np(raw["stem"])
    c0 = wst.shape[3]
    h_conv = (h_img + 6 - 7) // 2 + 1
    w_conv = (w_img + 6 - 7) // 2 + 1
    sw, sr, h_pool, w_pool = _build_pool_mats_np(h_conv, w_conv, c0)
    P["stem"] = dict(
        band=jnp.asarray(_build_band_np(wst, scst, w_img, 2, 3), jnp.bfloat16),
        shift=jnp.asarray(np.tile(shst, w_conv)[None, :], jnp.float32),
        sw=jnp.asarray(sw, jnp.float32),
        sr=jnp.asarray(sr, jnp.float32),
        h_conv=h_conv, h_pool=h_pool)

    h, wsp = h_pool, w_pool
    shapes = {}
    for name in ("layer1", "layer2", "layer3"):
        blocks = []
        c_out = c0
        for bp_raw, s in raw[name]:
            w1, sc1, sh1 = to_np(bp_raw["conv1"])
            w2, sc2, sh2 = to_np(bp_raw["conv2"])
            h_out = (h + 2 - 3) // s + 1
            w_out = (wsp + 2 - 3) // s + 1
            c_out = w1.shape[3]
            blk = dict(
                stride=s, pad=1, h_out=h_out,
                band1=jnp.asarray(_build_band_np(w1, sc1, wsp, s, 1), jnp.bfloat16),
                shift1=jnp.asarray(np.tile(sh1, w_out)[None, :], jnp.float32),
                band2=jnp.asarray(_build_band_np(w2, sc2, w_out, 1, 1), jnp.bfloat16),
                shift2=jnp.asarray(np.tile(sh2, w_out)[None, :], jnp.float32))
            if "down" in bp_raw:
                wd, scd, shd = to_np(bp_raw["down"])
                blk["bandd"] = jnp.asarray(_build_band_np(wd, scd, wsp, s, 0), jnp.bfloat16)
                blk["shiftd"] = jnp.asarray(np.tile(shd, w_out)[None, :], jnp.float32)
            blocks.append(blk)
            h, wsp = h_out, w_out
        P[name] = blocks
        shapes[name] = (h, wsp, c_out)
    P["shapes"] = shapes
    return P


# -----------------------------------------------------------------------------
# Deterministic parameter initialization (synthetic; no checkpoint loading)
# -----------------------------------------------------------------------------
def _init_conv_bn(key, kh, kw, cin, cout):
    k1, k2, k3, k4, k5 = jax.random.split(key, 5)
    fan_in = kh * kw * cin
    w = jax.random.normal(k1, (kh, kw, cin, cout), jnp.float32) / jnp.sqrt(fan_in)
    gamma = 1.0 + 0.1 * jax.random.normal(k2, (cout,), jnp.float32)
    beta = 0.1 * jax.random.normal(k3, (cout,), jnp.float32)
    mean = 0.1 * jax.random.normal(k4, (cout,), jnp.float32)
    var = 1.0 + 0.1 * jnp.abs(jax.random.normal(k5, (cout,), jnp.float32))
    eps = 1e-5
    scale = gamma / jnp.sqrt(var + eps)          # folded BN (eval-mode running stats)
    shift = beta - mean * scale
    return {"w": w, "scale": scale, "shift": shift}


def init_params(key, cin=3, c0=16):
    keys = iter(jax.random.split(key, 40))
    params = {"stem": _init_conv_bn(next(keys), 7, 7, cin, c0)}

    def make_layer(c_in, c_out, stride):
        blocks = []
        b1 = {"conv1": _init_conv_bn(next(keys), 3, 3, c_in, c_out),
              "conv2": _init_conv_bn(next(keys), 3, 3, c_out, c_out)}
        if stride != 1 or c_in != c_out:
            b1["down"] = _init_conv_bn(next(keys), 1, 1, c_in, c_out)
        blocks.append((b1, stride))
        b2 = {"conv1": _init_conv_bn(next(keys), 3, 3, c_out, c_out),
              "conv2": _init_conv_bn(next(keys), 3, 3, c_out, c_out)}
        blocks.append((b2, 1))
        return blocks

    params["layer1"] = make_layer(c0, c0, 1)
    params["layer2"] = make_layer(c0, 2 * c0, 2)
    params["layer3"] = make_layer(2 * c0, 4 * c0, 2)
    return params


# -----------------------------------------------------------------------------
if __name__ == "__main__":
    key = jax.random.PRNGKey(0)
    kx, kparam = jax.random.split(key)

    # Small shapes consistent with the module: NCHW image batch.
    x = jax.random.normal(kx, (2, 3, 32, 32), jnp.float32)
    raw_params = init_params(kparam, cin=3, c0=16)
    kparams = prepare_params(raw_params, h_img=32, w_img=32)

    forward = jax.jit(lambda xin: intermediate_feature_extractor(xin, kparams))
    outputs = forward(x)
    outputs = jax.block_until_ready(outputs)

    # Shape sanity (scaled-down widths: 16 / 32 / 64 channels).
    assert outputs["layer1"].shape == (2, 16, 8, 8)
    assert outputs["layer2"].shape == (2, 32, 4, 4)
    assert outputs["layer3"].shape == (2, 64, 2, 2)

    print("KERNEL_OK")
</pallas_src>

<mosaic_0001>
module attributes {stable_mosaic.version = 11 : i64} {
  func.func @_block_kernel(%arg0: i32, %arg1: memref<1x1x10x128xf32, #tpu.memory_space<vmem>>, %arg2: memref<3x128x128xbf16, #tpu.memory_space<vmem>>, %arg3: memref<1x128xf32, #tpu.memory_space<vmem>>, %arg4: memref<3x128x128xbf16, #tpu.memory_space<vmem>>, %arg5: memref<1x128xf32, #tpu.memory_space<vmem>>, %arg6: memref<1x8x128xf32, #tpu.memory_space<vmem>>, %arg7: memref<10x128xf32, #tpu.memory_space<vmem>>) attributes {dimension_semantics = [#tpu.dimension_semantics<parallel>], iteration_bounds = array<i64: 2>, scalar_prefetch = 0 : i64, scratch_operands = 1 : i64, tpu.core_type = #tpu.core_type<tc>, window_params = [{transform_indices = @transform_0, window_bounds = array<i64: 1, 1, 10, 128>}, {pipeline_mode = #tpu.pipeline_mode<synchronous>, transform_indices = @transform_1, window_bounds = array<i64: 3, 128, 128>}, {pipeline_mode = #tpu.pipeline_mode<synchronous>, transform_indices = @transform_2, window_bounds = array<i64: 1, 128>}, {pipeline_mode = #tpu.pipeline_mode<synchronous>, transform_indices = @transform_3, window_bounds = array<i64: 3, 128, 128>}, {pipeline_mode = #tpu.pipeline_mode<synchronous>, transform_indices = @transform_4, window_bounds = array<i64: 1, 128>}, {transform_indices = @transform_5, window_bounds = array<i64: 1, 8, 128>}]} {
    %cst = arith.constant 0.000000e+00 : f32
    %0 = vector.broadcast %cst : f32 to vector<8x128xf32>
    %c0 = arith.constant 0 : index
    %c0_0 = arith.constant 0 : index
    %c0_1 = arith.constant 0 : index
    %c0_2 = arith.constant 0 : index
    %1 = vector.load %arg1[%c0, %c0_0, %c0_1, %c0_2] : memref<1x1x10x128xf32, #tpu.memory_space<vmem>>, vector<1x1x8x128xf32>
    %2 = vector.shape_cast %1 : vector<1x1x8x128xf32> to vector<8x128xf32>
    %3 = arith.truncf %2 : vector<8x128xf32> to vector<8x128xbf16>
    %c0_3 = arith.constant 0 : index
    %c0_4 = arith.constant 0 : index
    %c0_5 = arith.constant 0 : index
    %4 = vector.load %arg2[%c0_3, %c0_4, %c0_5] : memref<3x128x128xbf16, #tpu.memory_space<vmem>>, vector<1x128x128xbf16>
    %5 = vector.shape_cast %4 : vector<1x128x128xbf16> to vector<128x128xbf16>
    %cst_6 = arith.constant dense<0.000000e+00> : vector<8x128xf32>
    %6 = tpu.matmul %3, %5, %cst_6 {dimension_numbers = #tpu.dot_dimension_numbers<[1], [0], [0], [1], [0, 0, 1, 1], [], []>} : vector<8x128xbf16>, vector<128x128xbf16>, vector<8x128xf32> -> vector<8x128xf32>
    %7 = arith.addf %0, %6 : vector<8x128xf32>
    %c0_7 = arith.constant 0 : index
    %c0_8 = arith.constant 0 : index
    %c1 = arith.constant 1 : index
    %c0_9 = arith.constant 0 : index
    %8 = vector.load %arg1[%c0_7, %c0_8, %c1, %c0_9] : memref<1x1x10x128xf32, #tpu.memory_space<vmem>>, vector<1x1x8x128xf32>
    %9 = vector.shape_cast %8 : vector<1x1x8x128xf32> to vector<8x128xf32>
    %10 = arith.truncf %9 : vector<8x128xf32> to vector<8x128xbf16>
    %c1_10 = arith.constant 1 : index
    %c0_11 = arith.constant 0 : index
    %c0_12 = arith.constant 0 : index
    %11 = vector.load %arg2[%c1_10, %c0_11, %c0_12] : memref<3x128x128xbf16, #tpu.memory_space<vmem>>, vector<1x128x128xbf16>
    %12 = vector.shape_cast %11 : vector<1x128x128xbf16> to vector<128x128xbf16>
    %cst_13 = arith.constant dense<0.000000e+00> : vector<8x128xf32>
    %13 = tpu.matmul %10, %12, %cst_13 {dimension_numbers = #tpu.dot_dimension_numbers<[1], [0], [0], [1], [0, 0, 1, 1], [], []>} : vector<8x128xbf16>, vector<128x128xbf16>, vector<8x128xf32> -> vector<8x128xf32>
    %14 = arith.addf %7, %13 : vector<8x128xf32>
    %c0_14 = arith.constant 0 : index
    %c0_15 = arith.constant 0 : index
    %c2 = arith.constant 2 : index
    %c0_16 = arith.constant 0 : index
    %15 = vector.load %arg1[%c0_14, %c0_15, %c2, %c0_16] : memref<1x1x10x128xf32, #tpu.memory_space<vmem>>, vector<1x1x8x128xf32>
    %16 = vector.shape_cast %15 : vector<1x1x8x128xf32> to vector<8x128xf32>
    %17 = arith.truncf %16 : vector<8x128xf32> to vector<8x128xbf16>
    %c2_17 = arith.constant 2 : index
    %c0_18 = arith.constant 0 : index
    %c0_19 = arith.constant 0 : index
    %18 = vector.load %arg2[%c2_17, %c0_18, %c0_19] : memref<3x128x128xbf16, #tpu.memory_space<vmem>>, vector<1x128x128xbf16>
    %19 = vector.shape_cast %18 : vector<1x128x128xbf16> to vector<128x128xbf16>
    %cst_20 = arith.constant dense<0.000000e+00> : vector<8x128xf32>
    %20 = tpu.matmul %17, %19, %cst_20 {dimension_numbers = #tpu.dot_dimension_numbers<[1], [0], [0], [1], [0, 0, 1, 1], [], []>} : vector<8x128xbf16>, vector<128x128xbf16>, vector<8x128xf32> -> vector<8x128xf32>
    %21 = arith.addf %14, %20 : vector<8x128xf32>
    %c0_21 = arith.constant 0 : index
    %c0_22 = arith.constant 0 : index
    %22 = vector.load %arg3[%c0_21, %c0_22] : memref<1x128xf32, #tpu.memory_space<vmem>>, vector<1x128xf32>
    %23 = vector.broadcast %22 : vector<1x128xf32> to vector<8x128xf32>
    %24 = arith.addf %21, %23 : vector<8x128xf32>
    %cst_23 = arith.constant 0.000000e+00 : f32
    %25 = vector.broadcast %cst_23 : f32 to vector<8x128xf32>
    %26 = arith.maximumf %24, %25 : vector<8x128xf32>
    %c0_24 = arith.constant 0 : index
    %c0_25 = arith.constant 0 : index
    %c1_26 = arith.constant 1 : index
    %c0_27 = arith.constant 0 : index
    %27 = vector.load %arg1[%c0_24, %c0_25, %c1_26, %c0_27] : memref<1x1x10x128xf32, #tpu.memory_space<vmem>>, vector<1x1x8x128xf32>
    %28 = vector.shape_cast %27 : vector<1x1x8x128xf32> to vector<8x128xf32>
    %cst_28 = arith.constant 0.000000e+00 : f32
    %29 = vector.broadcast %cst_28 : f32 to vector<10x128xf32>
    %c0_29 = arith.constant 0 : index
    %c0_30 = arith.constant 0 : index
    %30 = vector.load %arg7[%c0_29, %c0_30] : memref<10x128xf32, #tpu.memory_space<vmem>>, vector<10x128xf32>
    tpu.vector_store %arg7[%c0_29, %c0_30], %29 {strides = array<i32>} : memref<10x128xf32, #tpu.memory_space<vmem>>, vector<10x128xf32>,
    %c1_31 = arith.constant 1 : index
    %c0_32 = arith.constant 0 : index
    %31 = vector.load %arg7[%c1_31, %c0_32] : memref<10x128xf32, #tpu.memory_space<vmem>>, vector<8x128xf32>
    tpu.vector_store %arg7[%c1_31, %c0_32], %26 {strides = array<i32>} : memref<10x128xf32, #tpu.memory_space<vmem>>, vector<8x128xf32>,
    %cst_33 = arith.constant 0.000000e+00 : f32
    %32 = vector.broadcast %cst_33 : f32 to vector<8x128xf32>
    %c0_34 = arith.constant 0 : index
    %c0_35 = arith.constant 0 : index
    %33 = vector.load %arg7[%c0_34, %c0_35] : memref<10x128xf32, #tpu.memory_space<vmem>>, vector<8x128xf32>
    %34 = arith.truncf %33 : vector<8x128xf32> to vector<8x128xbf16>
    %c0_36 = arith.constant 0 : index
    %c0_37 = arith.constant 0 : index
    %c0_38 = arith.constant 0 : index
    %35 = vector.load %arg4[%c0_36, %c0_37, %c0_38] : memref<3x128x128xbf16, #tpu.memory_space<vmem>>, vector<1x128x128xbf16>
    %36 = vector.shape_cast %35 : vector<1x128x128xbf16> to vector<128x128xbf16>
    %cst_39 = arith.constant dense<0.000000e+00> : vector<8x128xf32>
    %37 = tpu.matmul %34, %36, %cst_39 {dimension_numbers = #tpu.dot_dimension_numbers<[1], [0], [0], [1], [0, 0, 1, 1], [], []>} : vector<8x128xbf16>, vector<128x128xbf16>, vector<8x128xf32> -> vector<8x128xf32>
    %38 = arith.addf %32, %37 : vector<8x128xf32>
    %c1_40 = arith.constant 1 : index
    %c0_41 = arith.constant 0 : index
    %39 = vector.load %arg7[%c1_40, %c0_41] : memref<10x128xf32, #tpu.memory_space<vmem>>, vector<8x128xf32>
    %40 = arith.truncf %39 : vector<8x128xf32> to vector<8x128xbf16>
    %c1_42 = arith.constant 1 : index
    %c0_43 = arith.constant 0 : index
    %c0_44 = arith.constant 0 : index
    %41 = vector.load %arg4[%c1_42, %c0_43, %c0_44] : memref<3x128x128xbf16, #tpu.memory_space<vmem>>, vector<1x128x128xbf16>
    %42 = vector.shape_cast %41 : vector<1x128x128xbf16> to vector<128x128xbf16>
    %cst_45 = arith.constant dense<0.000000e+00> : vector<8x128xf32>
    %43 = tpu.matmul %40, %42, %cst_45 {dimension_numbers = #tpu.dot_dimension_numbers<[1], [0], [0], [1], [0, 0, 1, 1], [], []>} : vector<8x128xbf16>, vector<128x128xbf16>, vector<8x128xf32> -> vector<8x128xf32>
    %44 = arith.addf %38, %43 : vector<8x128xf32>
    %c2_46 = arith.constant 2 : index
    %c0_47 = arith.constant 0 : index
    %45 = vector.load %arg7[%c2_46, %c0_47] : memref<10x128xf32, #tpu.memory_space<vmem>>, vector<8x128xf32>
    %46 = arith.truncf %45 : vector<8x128xf32> to vector<8x128xbf16>
    %c2_48 = arith.constant 2 : index
    %c0_49 = arith.constant 0 : index
    %c0_50 = arith.constant 0 : index
    %47 = vector.load %arg4[%c2_48, %c0_49, %c0_50] : memref<3x128x128xbf16, #tpu.memory_space<vmem>>, vector<1x128x128xbf16>
    %48 = vector.shape_cast %47 : vector<1x128x128xbf16> to vector<128x128xbf16>
    %cst_51 = arith.constant dense<0.000000e+00> : vector<8x128xf32>
    %49 = tpu.matmul %46, %48, %cst_51 {dimension_numbers = #tpu.dot_dimension_numbers<[1], [0], [0], [1], [0, 0, 1, 1], [], []>} : vector<8x128xbf16>, vector<128x128xbf16>, vector<8x128xf32> -> vector<8x128xf32>
    %50 = arith.addf %44, %49 : vector<8x128xf32>
    %c0_52 = arith.constant 0 : index
    %c0_53 = arith.constant 0 : index
    %51 = vector.load %arg5[%c0_52, %c0_53] : memref<1x128xf32, #tpu.memory_space<vmem>>, vector<1x128xf32>
    %52 = vector.broadcast %51 : vector<1x128xf32> to vector<8x128xf32>
    %53 = arith.addf %50, %52 : vector<8x128xf32>
    %54 = arith.addf %53, %28 : vector<8x128xf32>
    %cst_54 = arith.constant 0.000000e+00 : f32
    %55 = vector.broadcast %cst_54 : f32 to vector<8x128xf32>
    %56 = arith.maximumf %54, %55 : vector<8x128xf32>
    %c0_55 = arith.constant 0 : index
    %c0_56 = arith.constant 0 : index
    %c0_57 = arith.constant 0 : index
    %57 = vector.load %arg6[%c0_55, %c0_56, %c0_57] : memref<1x8x128xf32, #tpu.memory_space<vmem>>, vector<1x8x128xf32>
    %58 = vector.shape_cast %57 : vector<1x8x128xf32> to vector<8x128xf32>
    %59 = vector.shape_cast %56 : vector<8x128xf32> to vector<1x8x128xf32>
    tpu.vector_store %arg6[%c0_55, %c0_56, %c0_57], %59 {strides = array<i32>} : memref<1x8x128xf32, #tpu.memory_space<vmem>>, vector<1x8x128xf32>,
    return
  }
  func.func @transform_0(%arg0: i32) -> (i32, i32, i32, i32) {
    %c0_i32 = arith.constant 0 : i32
    %c0_i32_0 = arith.constant 0 : i32
    %c0_i32_1 = arith.constant 0 : i32
    %c0_i32_2 = arith.constant 0 : i32
    return %arg0, %c0_i32, %c0_i32_0, %c0_i32_1 : i32, i32, i32, i32
  }
  func.func @transform_1(%arg0: i32) -> (i32, i32, i32) {
    %c0_i32 = arith.constant 0 : i32
    %c0_i32_0 = arith.constant 0 : i32
    %c0_i32_1 = arith.constant 0 : i32
    %c0_i32_2 = arith.constant 0 : i32
    return %c0_i32, %c0_i32_0, %c0_i32_1 : i32, i32, i32
  }
  func.func @transform_2(%arg0: i32) -> (i32, i32) {
    %c0_i32 = arith.constant 0 : i32
    %c0_i32_0 = arith.constant 0 : i32
    %c0_i32_1 = arith.constant 0 : i32
    return %c0_i32, %c0_i32_0 : i32, i32
  }
  func.func @transform_3(%arg0: i32) -> (i32, i32, i32) {
    %c0_i32 = arith.constant 0 : i32
    %c0_i32_0 = arith.constant 0 : i32
    %c0_i32_1 = arith.constant 0 : i32
    %c0_i32_2 = arith.constant 0 : i32
    return %c0_i32, %c0_i32_0, %c0_i32_1 : i32, i32, i32
  }
  func.func @transform_4(%arg0: i32) -> (i32, i32) {
    %c0_i32 = arith.constant 0 : i32
    %c0_i32_0 = arith.constant 0 : i32
    %c0_i32_1 = arith.constant 0 : i32
    return %c0_i32, %c0_i32_0 : i32, i32
  }
  func.func @transform_5(%arg0: i32) -> (i32, i32, i32) {
    %c0_i32 = arith.constant 0 : i32
    %c0_i32_0 = arith.constant 0 : i32
    %c0_i32_1 = arith.constant 0 : i32
    return %arg0, %c0_i32, %c0_i32_0 : i32, i32, i32
  }
}

module attributes {stable_mosaic.version = 11 : i64} {
  func.func @_stem_kernel(%arg0: i32, %arg1: memref<1x2x19x96xf32, #tpu.memory_space<vmem>>, %arg2: memref<7x96x256xbf16, #tpu.memory_space<vmem>>, %arg3: memref<1x256xf32, #tpu.memory_space<vmem>>, %arg4: memref<3x256x128xf32, #tpu.memory_space<vmem>>, %arg5: memref<3x8x16xf32, #tpu.memory_space<vmem>>, %arg6: memref<1x8x128xf32, #tpu.memory_space<vmem>>) attributes {dimension_semantics = [#tpu.dimension_semantics<parallel>], iteration_bounds = array<i64: 2>, scalar_prefetch = 0 : i64, scratch_operands = 0 : i64, tpu.core_type = #tpu.core_type<tc>, window_params = [{transform_indices = @transform_0, window_bounds = array<i64: 1, 2, 19, 96>}, {pipeline_mode = #tpu.pipeline_mode<synchronous>, transform_indices = @transform_1, window_bounds = array<i64: 7, 96, 256>}, {pipeline_mode = #tpu.pipeline_mode<synchronous>, transform_indices = @transform_2, window_bounds = array<i64: 1, 256>}, {pipeline_mode = #tpu.pipeline_mode<synchronous>, transform_indices = @transform_3, window_bounds = array<i64: 3, 256, 128>}, {pipeline_mode = #tpu.pipeline_mode<synchronous>, transform_indices = @transform_4, window_bounds = array<i64: 3, 8, 16>}, {transform_indices = @transform_5, window_bounds = array<i64: 1, 8, 128>}]} {
    %cst = arith.constant 0.000000e+00 : f32
    %0 = vector.broadcast %cst : f32 to vector<16x256xf32>
    %c0 = arith.constant 0 : index
    %c0_0 = arith.constant 0 : index
    %c0_1 = arith.constant 0 : index
    %c0_2 = arith.constant 0 : index
    %1 = vector.load %arg1[%c0, %c0_0, %c0_1, %c0_2] : memref<1x2x19x96xf32, #tpu.memory_space<vmem>>, vector<1x1x16x96xf32>
    %2 = vector.shape_cast %1 : vector<1x1x16x96xf32> to vector<16x96xf32>
    %3 = arith.truncf %2 : vector<16x96xf32> to vector<16x96xbf16>
    %c0_3 = arith.constant 0 : index
    %c0_4 = arith.constant 0 : index
    %c0_5 = arith.constant 0 : index
    %4 = vector.load %arg2[%c0_3, %c0_4, %c0_5] : memref<7x96x256xbf16, #tpu.memory_space<vmem>>, vector<1x96x256xbf16>
    %5 = vector.shape_cast %4 : vector<1x96x256xbf16> to vector<96x256xbf16>
    %cst_6 = arith.constant dense<0.000000e+00> : vector<16x256xf32>
    %6 = tpu.matmul %3, %5, %cst_6 {dimension_numbers = #tpu.dot_dimension_numbers<[1], [0], [0], [1], [0, 0, 1, 1], [], []>} : vector<16x96xbf16>, vector<96x256xbf16>, vector<16x256xf32> -> vector<16x256xf32>
    %7 = arith.addf %0, %6 : vector<16x256xf32>
    %c0_7 = arith.constant 0 : index
    %c1 = arith.constant 1 : index
    %c0_8 = arith.constant 0 : index
    %c0_9 = arith.constant 0 : index
    %8 = vector.load %arg1[%c0_7, %c1, %c0_8, %c0_9] : memref<1x2x19x96xf32, #tpu.memory_space<vmem>>, vector<1x1x16x96xf32>
    %9 = vector.shape_cast %8 : vector<1x1x16x96xf32> to vector<16x96xf32>
    %10 = arith.truncf %9 : vector<16x96xf32> to vector<16x96xbf16>
    %c1_10 = arith.constant 1 : index
    %c0_11 = arith.constant 0 : index
    %c0_12 = arith.constant 0 : index
    %11 = vector.load %arg2[%c1_10, %c0_11, %c0_12] : memref<7x96x256xbf16, #tpu.memory_space<vmem>>, vector<1x96x256xbf16>
    %12 = vector.shape_cast %11 : vector<1x96x256xbf16> to vector<96x256xbf16>
    %cst_13 = arith.constant dense<0.000000e+00> : vector<16x256xf32>
    %13 = tpu.matmul %10, %12, %cst_13 {dimension_numbers = #tpu.dot_dimension_numbers<[1], [0], [0], [1], [0, 0, 1, 1], [], []>} : vector<16x96xbf16>, vector<96x256xbf16>, vector<16x256xf32> -> vector<16x256xf32>
    %14 = arith.addf %7, %13 : vector<16x256xf32>
    %c0_14 = arith.constant 0 : index
    %c0_15 = arith.constant 0 : index
    %c1_16 = arith.constant 1 : index
    %c0_17 = arith.constant 0 : index
    %15 = vector.load %arg1[%c0_14, %c0_15, %c1_16, %c0_17] : memref<1x2x19x96xf32, #tpu.memory_space<vmem>>, vector<1x1x16x96xf32>
    %16 = vector.shape_cast %15 : vector<1x1x16x96xf32> to vector<16x96xf32>
    %17 = arith.truncf %16 : vector<16x96xf32> to vector<16x96xbf16>
    %c2 = arith.constant 2 : index
    %c0_18 = arith.constant 0 : index
    %c0_19 = arith.constant 0 : index
    %18 = vector.load %arg2[%c2, %c0_18, %c0_19] : memref<7x96x256xbf16, #tpu.memory_space<vmem>>, vector<1x96x256xbf16>
    %19 = vector.shape_cast %18 : vector<1x96x256xbf16> to vector<96x256xbf16>
    %cst_20 = arith.constant dense<0.000000e+00> : vector<16x256xf32>
    %20 = tpu.matmul %17, %19, %cst_20 {dimension_numbers = #tpu.dot_dimension_numbers<[1], [0], [0], [1], [0, 0, 1, 1], [], []>} : vector<16x96xbf16>, vector<96x256xbf16>, vector<16x256xf32> -> vector<16x256xf32>
    %21 = arith.addf %14, %20 : vector<16x256xf32>
    %c0_21 = arith.constant 0 : index
    %c1_22 = arith.constant 1 : index
    %c1_23 = arith.constant 1 : index
    %c0_24 = arith.constant 0 : index
    %22 = vector.load %arg1[%c0_21, %c1_22, %c1_23, %c0_24] : memref<1x2x19x96xf32, #tpu.memory_space<vmem>>, vector<1x1x16x96xf32>
    %23 = vector.shape_cast %22 : vector<1x1x16x96xf32> to vector<16x96xf32>
    %24 = arith.truncf %23 : vector<16x96xf32> to vector<16x96xbf16>
    %c3 = arith.constant 3 : index
    %c0_25 = arith.constant 0 : index
    %c0_26 = arith.constant 0 : index
    %25 = vector.load %arg2[%c3, %c0_25, %c0_26] : memref<7x96x256xbf16, #tpu.memory_space<vmem>>, vector<1x96x256xbf16>
    %26 = vector.shape_cast %25 : vector<1x96x256xbf16> to vector<96x256xbf16>
    %cst_27 = arith.constant dense<0.000000e+00> : vector<16x256xf32>
    %27 = tpu.matmul %24, %26, %cst_27 {dimension_numbers = #tpu.dot_dimension_numbers<[1], [0], [0], [1], [0, 0, 1, 1], [], []>} : vector<16x96xbf16>, vector<96x256xbf16>, vector<16x256xf32> -> vector<16x256xf32>
    %28 = arith.addf %21, %27 : vector<16x256xf32>
    %c0_28 = arith.constant 0 : index
    %c0_29 = arith.constant 0 : index
    %c2_30 = arith.constant 2 : index
    %c0_31 = arith.constant 0 : index
    %29 = vector.load %arg1[%c0_28, %c0_29, %c2_30, %c0_31] : memref<1x2x19x96xf32, #tpu.memory_space<vmem>>, vector<1x1x16x96xf32>
    %30 = vector.shape_cast %29 : vector<1x1x16x96xf32> to vector<16x96xf32>
    %31 = arith.truncf %30 : vector<16x96xf32> to vector<16x96xbf16>
    %c4 = arith.constant 4 : index
    %c0_32 = arith.constant 0 : index
    %c0_33 = arith.constant 0 : index
    %32 = vector.load %arg2[%c4, %c0_32, %c0_33] : memref<7x96x256xbf16, #tpu.memory_space<vmem>>, vector<1x96x256xbf16>
    %33 = vector.shape_cast %32 : vector<1x96x256xbf16> to vector<96x256xbf16>
    %cst_34 = arith.constant dense<0.000000e+00> : vector<16x256xf32>
    %34 = tpu.matmul %31, %33, %cst_34 {dimension_numbers = #tpu.dot_dimension_numbers<[1], [0], [0], [1], [0, 0, 1, 1], [], []>} : vector<16x96xbf16>, vector<96x256xbf16>, vector<16x256xf32> -> vector<16x256xf32>
    %35 = arith.addf %28, %34 : vector<16x256xf32>
    %c0_35 = arith.constant 0 : index
    %c1_36 = arith.constant 1 : index
    %c2_37 = arith.constant 2 : index
    %c0_38 = arith.constant 0 : index
    %36 = vector.load %arg1[%c0_35, %c1_36, %c2_37, %c0_38] : memref<1x2x19x96xf32, #tpu.memory_space<vmem>>, vector<1x1x16x96xf32>
    %37 = vector.shape_cast %36 : vector<1x1x16x96xf32> to vector<16x96xf32>
    %38 = arith.truncf %37 : vector<16x96xf32> to vector<16x96xbf16>
    %c5 = arith.constant 5 : index
    %c0_39 = arith.constant 0 : index
    %c0_40 = arith.constant 0 : index
    %39 = vector.load %arg2[%c5, %c0_39, %c0_40] : memref<7x96x256xbf16, #tpu.memory_space<vmem>>, vector<1x96x256xbf16>
    %40 = vector.shape_cast %39 : vector<1x96x256xbf16> to vector<96x256xbf16>
    %cst_41 = arith.constant dense<0.000000e+00> : vector<16x256xf32>
    %41 = tpu.matmul %38, %40, %cst_41 {dimension_numbers = #tpu.dot_dimension_numbers<[1], [0], [0], [1], [0, 0, 1, 1], [], []>} : vector<16x96xbf16>, vector<96x256xbf16>, vector<16x256xf32> -> vector<16x256xf32>
    %42 = arith.addf %35, %41 : vector<16x256xf32>
    %c0_42 = arith.constant 0 : index
    %c0_43 = arith.constant 0 : index
    %c3_44 = arith.constant 3 : index
    %c0_45 = arith.constant 0 : index
    %43 = vector.load %arg1[%c0_42, %c0_43, %c3_44, %c0_45] : memref<1x2x19x96xf32, #tpu.memory_space<vmem>>, vector<1x1x16x96xf32>
    %44 = vector.shape_cast %43 : vector<1x1x16x96xf32> to vector<16x96xf32>
    %45 = arith.truncf %44 : vector<16x96xf32> to vector<16x96xbf16>
    %c6 = arith.constant 6 : index
    %c0_46 = arith.constant 0 : index
    %c0_47 = arith.constant 0 : index
    %46 = vector.load %arg2[%c6, %c0_46, %c0_47] : memref<7x96x256xbf16, #tpu.memory_space<vmem>>, vector<1x96x256xbf16>
    %47 = vector.shape_cast %46 : vector<1x96x256xbf16> to vector<96x256xbf16>
    %cst_48 = arith.constant dense<0.000000e+00> : vector<16x256xf32>
    %48 = tpu.matmul %45, %47, %cst_48 {dimension_numbers = #tpu.dot_dimension_numbers<[1], [0], [0], [1], [0, 0, 1, 1], [], []>} : vector<16x96xbf16>, vector<96x256xbf16>, vector<16x256xf32> -> vector<16x256xf32>
    %49 = arith.addf %42, %48 : vector<16x256xf32>
    %c0_49 = arith.constant 0 : index
    %c0_50 = arith.constant 0 : index
    %50 = vector.load %arg3[%c0_49, %c0_50] : memref<1x256xf32, #tpu.memory_space<vmem>>, vector<1x256xf32>
    %51 = vector.broadcast %50 : vector<1x256xf32> to vector<16x256xf32>
    %52 = arith.addf %49, %51 : vector<16x256xf32>
    %cst_51 = arith.constant 0.000000e+00 : f32
    %53 = vector.broadcast %cst_51 : f32 to vector<16x256xf32>
    %54 = arith.maximumf %52, %53 : vector<16x256xf32>
    %c0_52 = arith.constant 0 : index
    %c0_53 = arith.constant 0 : index
    %c0_54 = arith.constant 0 : index
    %55 = vector.load %arg4[%c0_52, %c0_53, %c0_54] : memref<3x256x128xf32, #tpu.memory_space<vmem>>, vector<1x256x128xf32>
    %56 = vector.shape_cast %55 : vector<1x256x128xf32> to vector<256x128xf32>
    %cst_55 = arith.constant dense<0.000000e+00> : vector<16x128xf32>
    %57 = tpu.matmul %54, %56, %cst_55 {dimension_numbers = #tpu.dot_dimension_numbers<[1], [0], [0], [1], [0, 0, 1, 1], [], []>} : vector<16x256xf32>, vector<256x128xf32>, vector<16x128xf32> -> vector<16x128xf32>
    %c1_56 = arith.constant 1 : index
    %c0_57 = arith.constant 0 : index
    %c0_58 = arith.constant 0 : index
    %58 = vector.load %arg4[%c1_56, %c0_57, %c0_58] : memref<3x256x128xf32, #tpu.memory_space<vmem>>, vector<1x256x128xf32>
    %59 = vector.shape_cast %58 : vector<1x256x128xf32> to vector<256x128xf32>
    %cst_59 = arith.constant dense<0.000000e+00> : vector<16x128xf32>
    %60 = tpu.matmul %54, %59, %cst_59 {dimension_numbers = #tpu.dot_dimension_numbers<[1], [0], [0], [1], [0, 0, 1, 1], [], []>} : vector<16x256xf32>, vector<256x128xf32>, vector<16x128xf32> -> vector<16x128xf32>
    %61 = arith.maximumf %57, %60 : vector<16x128xf32>
    %c2_60 = arith.constant 2 : index
    %c0_61 = arith.constant 0 : index
    %c0_62 = arith.constant 0 : index
    %62 = vector.load %arg4[%c2_60, %c0_61, %c0_62] : memref<3x256x128xf32, #tpu.memory_space<vmem>>, vector<1x256x128xf32>
    %63 = vector.shape_cast %62 : vector<1x256x128xf32> to vector<256x128xf32>
    %cst_63 = arith.constant dense<0.000000e+00> : vector<16x128xf32>
    %64 = tpu.matmul %54, %63, %cst_63 {dimension_numbers = #tpu.dot_dimension_numbers<[1], [0], [0], [1], [0, 0, 1, 1], [], []>} : vector<16x256xf32>, vector<256x128xf32>, vector<16x128xf32> -> vector<16x128xf32>
    %65 = arith.maximumf %61, %64 : vector<16x128xf32>
    %c0_64 = arith.constant 0 : index
    %c0_65 = arith.constant 0 : index
    %c0_66 = arith.constant 0 : index
    %66 = vector.load %arg5[%c0_64, %c0_65, %c0_66] : memref<3x8x16xf32, #tpu.memory_space<vmem>>, vector<1x8x16xf32>
    %67 = vector.shape_cast %66 : vector<1x8x16xf32> to vector<8x16xf32>
    %cst_67 = arith.constant dense<0.000000e+00> : vector<8x128xf32>
    %68 = tpu.matmul %67, %65, %cst_67 {dimension_numbers = #tpu.dot_dimension_numbers<[1], [0], [0], [1], [0, 0, 1, 1], [], []>} : vector<8x16xf32>, vector<16x128xf32>, vector<8x128xf32> -> vector<8x128xf32>
    %c1_68 = arith.constant 1 : index
    %c0_69 = arith.constant 0 : index
    %c0_70 = arith.constant 0 : index
    %69 = vector.load %arg5[%c1_68, %c0_69, %c0_70] : memref<3x8x16xf32, #tpu.memory_space<vmem>>, vector<1x8x16xf32>
    %70 = vector.shape_cast %69 : vector<1x8x16xf32> to vector<8x16xf32>
    %cst_71 = arith.constant dense<0.000000e+00> : vector<8x128xf32>
    %71 = tpu.matmul %70, %65, %cst_71 {dimension_numbers = #tpu.dot_dimension_numbers<[1], [0], [0], [1], [0, 0, 1, 1], [], []>} : vector<8x16xf32>, vector<16x128xf32>, vector<8x128xf32> -> vector<8x128xf32>
    %72 = arith.maximumf %68, %71 : vector<8x128xf32>
    %c2_72 = arith.constant 2 : index
    %c0_73 = arith.constant 0 : index
    %c0_74 = arith.constant 0 : index
    %73 = vector.load %arg5[%c2_72, %c0_73, %c0_74] : memref<3x8x16xf32, #tpu.memory_space<vmem>>, vector<1x8x16xf32>
    %74 = vector.shape_cast %73 : vector<1x8x16xf32> to vector<8x16xf32>
    %cst_75 = arith.constant dense<0.000000e+00> : vector<8x128xf32>
    %75 = tpu.matmul %74, %65, %cst_75 {dimension_numbers = #tpu.dot_dimension_numbers<[1], [0], [0], [1], [0, 0, 1, 1], [], []>} : vector<8x16xf32>, vector<16x128xf32>, vector<8x128xf32> -> vector<8x128xf32>
    %76 = arith.maximumf %72, %75 : vector<8x128xf32>
    %c0_76 = arith.constant 0 : index
    %c0_77 = arith.constant 0 : index
    %c0_78 = arith.constant 0 : index
    %77 = vector.load %arg6[%c0_76, %c0_77, %c0_78] : memref<1x8x128xf32, #tpu.memory_space<vmem>>, vector<1x8x128xf32>
    %78 = vector.shape_cast %77 : vector<1x8x128xf32> to vector<8x128xf32>
    %79 = vector.shape_cast %76 : vector<8x128xf32> to vector<1x8x128xf32>
    tpu.vector_store %arg6[%c0_76, %c0_77, %c0_78], %79 {strides = array<i32>} : memref<1x8x128xf32, #tpu.memory_space<vmem>>, vector<1x8x128xf32>,
    return
  }
  func.func @transform_0(%arg0: i32) -> (i32, i32, i32, i32) {
    %c0_i32 = arith.constant 0 : i32
    %c0_i32_0 = arith.constant 0 : i32
    %c0_i32_1 = arith.constant 0 : i32
    %c0_i32_2 = arith.constant 0 : i32
    return %arg0, %c0_i32, %c0_i32_0, %c0_i32_1 : i32, i32, i32, i32
  }
  func.func @transform_1(%arg0: i32) -> (i32, i32, i32) {
    %c0_i32 = arith.constant 0 : i32
    %c0_i32_0 = arith.constant 0 : i32
    %c0_i32_1 = arith.constant 0 : i32
    %c0_i32_2 = arith.constant 0 : i32
    return %c0_i32, %c0_i32_0, %c0_i32_1 : i32, i32, i32
  }
  func.func @transform_2(%arg0: i32) -> (i32, i32) {
    %c0_i32 = arith.constant 0 : i32
    %c0_i32_0 = arith.constant 0 : i32
    %c0_i32_1 = arith.constant 0 : i32
    return %c0_i32, %c0_i32_0 : i32, i32
  }
  func.func @transform_3(%arg0: i32) -> (i32, i32, i32) {
    %c0_i32 = arith.constant 0 : i32
    %c0_i32_0 = arith.constant 0 : i32
    %c0_i32_1 = arith.constant 0 : i32
    %c0_i32_2 = arith.constant 0 : i32
    return %c0_i32, %c0_i32_0, %c0_i32_1 : i32, i32, i32
  }
  func.func @transform_4(%arg0: i32) -> (i32, i32, i32) {
    %c0_i32 = arith.constant 0 : i32
    %c0_i32_0 = arith.constant 0 : i32
    %c0_i32_1 = arith.constant 0 : i32
    %c0_i32_2 = arith.constant 0 : i32
    return %c0_i32, %c0_i32_0, %c0_i32_1 : i32, i32, i32
  }
  func.func @transform_5(%arg0: i32) -> (i32, i32, i32) {
    %c0_i32 = arith.constant 0 : i32
    %c0_i32_0 = arith.constant 0 : i32
    %c0_i32_1 = arith.constant 0 : i32
    return %arg0, %c0_i32, %c0_i32_0 : i32, i32, i32
  }
}

module attributes {stable_mosaic.version = 11 : i64} {
  func.func @_block_kernel(%arg0: i32, %arg1: memref<1x2x5x128xf32, #tpu.memory_space<vmem>>, %arg2: memref<3x128x128xbf16, #tpu.memory_space<vmem>>, %arg3: memref<1x128xf32, #tpu.memory_space<vmem>>, %arg4: memref<3x128x128xbf16, #tpu.memory_space<vmem>>, %arg5: memref<1x128xf32, #tpu.memory_space<vmem>>, %arg6: memref<1x128x128xbf16, #tpu.memory_space<vmem>>, %arg7: memref<1x128xf32, #tpu.memory_space<vmem>>, %arg8: memref<1x4x128xf32, #tpu.memory_space<vmem>>, %arg9: memref<6x128xf32, #tpu.memory_space<vmem>>) attributes {dimension_semantics = [#tpu.dimension_semantics<parallel>], iteration_bounds = array<i64: 2>, scalar_prefetch = 0 : i64, scratch_operands = 1 : i64, tpu.core_type = #tpu.core_type<tc>, window_params = [{transform_indices = @transform_0, window_bounds = array<i64: 1, 2, 5, 128>}, {pipeline_mode = #tpu.pipeline_mode<synchronous>, transform_indices = @transform_1, window_bounds = array<i64: 3, 128, 128>}, {pipeline_mode = #tpu.pipeline_mode<synchronous>, transform_indices = @transform_2, window_bounds = array<i64: 1, 128>}, {pipeline_mode = #tpu.pipeline_mode<synchronous>, transform_indices = @transform_3, window_bounds = array<i64: 3, 128, 128>}, {pipeline_mode = #tpu.pipeline_mode<synchronous>, transform_indices = @transform_4, window_bounds = array<i64: 1, 128>}, {pipeline_mode = #tpu.pipeline_mode<synchronous>, transform_indices = @transform_5, window_bounds = array<i64: 1, 128, 128>}, {pipeline_mode = #tpu.pipeline_mode<synchronous>, transform_indices = @transform_6, window_bounds = array<i64: 1, 128>}, {transform_indices = @transform_7, window_bounds = array<i64: 1, 4, 128>}]} {
    %cst = arith.constant 0.000000e+00 : f32
    %0 = vector.broadcast %cst : f32 to vector<4x128xf32>
    %c0 = arith.constant 0 : index
    %c0_0 = arith.constant 0 : index
    %c0_1 = arith.constant 0 : index
    %c0_2 = arith.constant 0 : index
    %1 = vector.load %arg1[%c0, %c0_0, %c0_1, %c0_2] : memref<1x2x5x128xf32, #tpu.memory_space<vmem>>, vector<1x1x4x128xf32>
    %2 = vector.shape_cast %1 : vector<1x1x4x128xf32> to vector<4x128xf32>
    %3 = arith.truncf %2 : vector<4x128xf32> to vector<4x128xbf16>
    %c0_3 = arith.constant 0 : index
    %c0_4 = arith.constant 0 : index
    %c0_5 = arith.constant 0 : index
    %4 = vector.load %arg2[%c0_3, %c0_4, %c0_5] : memref<3x128x128xbf16, #tpu.memory_space<vmem>>, vector<1x128x128xbf16>
    %5 = vector.shape_cast %4 : vector<1x128x128xbf16> to vector<128x128xbf16>
    %cst_6 = arith.constant dense<0.000000e+00> : vector<4x128xf32>
    %6 = tpu.matmul %3, %5, %cst_6 {dimension_numbers = #tpu.dot_dimension_numbers<[1], [0], [0], [1], [0, 0, 1, 1], [], []>} : vector<4x128xbf16>, vector<128x128xbf16>, vector<4x128xf32> -> vector<4x128xf32>
    %7 = arith.addf %0, %6 : vector<4x128xf32>
    %c0_7 = arith.constant 0 : index
    %c1 = arith.constant 1 : index
    %c0_8 = arith.constant 0 : index
    %c0_9 = arith.constant 0 : index
    %8 = vector.load %arg1[%c0_7, %c1, %c0_8, %c0_9] : memref<1x2x5x128xf32, #tpu.memory_space<vmem>>, vector<1x1x4x128xf32>
    %9 = vector.shape_cast %8 : vector<1x1x4x128xf32> to vector<4x128xf32>
    %10 = arith.truncf %9 : vector<4x128xf32> to vector<4x128xbf16>
    %c1_10 = arith.constant 1 : index
    %c0_11 = arith.constant 0 : index
    %c0_12 = arith.constant 0 : index
    %11 = vector.load %arg2[%c1_10, %c0_11, %c0_12] : memref<3x128x128xbf16, #tpu.memory_space<vmem>>, vector<1x128x128xbf16>
    %12 = vector.shape_cast %11 : vector<1x128x128xbf16> to vector<128x128xbf16>
    %cst_13 = arith.constant dense<0.000000e+00> : vector<4x128xf32>
    %13 = tpu.matmul %10, %12, %cst_13 {dimension_numbers = #tpu.dot_dimension_numbers<[1], [0], [0], [1], [0, 0, 1, 1], [], []>} : vector<4x128xbf16>, vector<128x128xbf16>, vector<4x128xf32> -> vector<4x128xf32>
    %14 = arith.addf %7, %13 : vector<4x128xf32>
    %c0_14 = arith.constant 0 : index
    %c0_15 = arith.constant 0 : index
    %c1_16 = arith.constant 1 : index
    %c0_17 = arith.constant 0 : index
    %15 = vector.load %arg1[%c0_14, %c0_15, %c1_16, %c0_17] : memref<1x2x5x128xf32, #tpu.memory_space<vmem>>, vector<1x1x4x128xf32>
    %16 = vector.shape_cast %15 : vector<1x1x4x128xf32> to vector<4x128xf32>
    %17 = arith.truncf %16 : vector<4x128xf32> to vector<4x128xbf16>
    %c2 = arith.constant 2 : index
    %c0_18 = arith.constant 0 : index
    %c0_19 = arith.constant 0 : index
    %18 = vector.load %arg2[%c2, %c0_18, %c0_19] : memref<3x128x128xbf16, #tpu.memory_space<vmem>>, vector<1x128x128xbf16>
    %19 = vector.shape_cast %18 : vector<1x128x128xbf16> to vector<128x128xbf16>
    %cst_20 = arith.constant dense<0.000000e+00> : vector<4x128xf32>
    %20 = tpu.matmul %17, %19, %cst_20 {dimension_numbers = #tpu.dot_dimension_numbers<[1], [0], [0], [1], [0, 0, 1, 1], [], []>} : vector<4x128xbf16>, vector<128x128xbf16>, vector<4x128xf32> -> vector<4x128xf32>
    %21 = arith.addf %14, %20 : vector<4x128xf32>
    %c0_21 = arith.constant 0 : index
    %c0_22 = arith.constant 0 : index
    %22 = vector.load %arg3[%c0_21, %c0_22] : memref<1x128xf32, #tpu.memory_space<vmem>>, vector<1x128xf32>
    %23 = vector.broadcast %22 : vector<1x128xf32> to vector<4x128xf32>
    %24 = arith.addf %21, %23 : vector<4x128xf32>
    %cst_23 = arith.constant 0.000000e+00 : f32
    %25 = vector.broadcast %cst_23 : f32 to vector<4x128xf32>
    %26 = arith.maximumf %24, %25 : vector<4x128xf32>
    %c0_24 = arith.constant 0 : index
    %c1_25 = arith.constant 1 : index
    %c0_26 = arith.constant 0 : index
    %c0_27 = arith.constant 0 : index
    %27 = vector.load %arg1[%c0_24, %c1_25, %c0_26, %c0_27] : memref<1x2x5x128xf32, #tpu.memory_space<vmem>>, vector<1x1x4x128xf32>
    %28 = vector.shape_cast %27 : vector<1x1x4x128xf32> to vector<4x128xf32>
    %29 = arith.truncf %28 : vector<4x128xf32> to vector<4x128xbf16>
    %c0_28 = arith.constant 0 : index
    %c0_29 = arith.constant 0 : index
    %c0_30 = arith.constant 0 : index
    %30 = vector.load %arg6[%c0_28, %c0_29, %c0_30] : memref<1x128x128xbf16, #tpu.memory_space<vmem>>, vector<1x128x128xbf16>
    %31 = vector.shape_cast %30 : vector<1x128x128xbf16> to vector<128x128xbf16>
    %cst_31 = arith.constant dense<0.000000e+00> : vector<4x128xf32>
    %32 = tpu.matmul %29, %31, %cst_31 {dimension_numbers = #tpu.dot_dimension_numbers<[1], [0], [0], [1], [0, 0, 1, 1], [], []>} : vector<4x128xbf16>, vector<128x128xbf16>, vector<4x128xf32> -> vector<4x128xf32>
    %c0_32 = arith.constant 0 : index
    %c0_33 = arith.constant 0 : index
    %33 = vector.load %arg7[%c0_32, %c0_33] : memref<1x128xf32, #tpu.memory_space<vmem>>, vector<1x128xf32>
    %34 = vector.broadcast %33 : vector<1x128xf32> to vector<4x128xf32>
    %35 = arith.addf %32, %34 : vector<4x128xf32>
    %cst_34 = arith.constant 0.000000e+00 : f32
    %36 = vector.broadcast %cst_34 : f32 to vector<6x128xf32>
    %c0_35 = arith.constant 0 : index
    %c0_36 = arith.constant 0 : index
    %37 = vector.load %arg9[%c0_35, %c0_36] : memref<6x128xf32, #tpu.memory_space<vmem>>, vector<6x128xf32>
    tpu.vector_store %arg9[%c0_35, %c0_36], %36 {strides = array<i32>} : memref<6x128xf32, #tpu.memory_space<vmem>>, vector<6x128xf32>,
    %c1_37 = arith.constant 1 : index
    %c0_38 = arith.constant 0 : index
    %38 = vector.load %arg9[%c1_37, %c0_38] : memref<6x128xf32, #tpu.memory_space<vmem>>, vector<4x128xf32>
    tpu.vector_store %arg9[%c1_37, %c0_38], %26 {strides = array<i32>} : memref<6x128xf32, #tpu.memory_space<vmem>>, vector<4x128xf32>,
    %cst_39 = arith.constant 0.000000e+00 : f32
    %39 = vector.broadcast %cst_39 : f32 to vector<4x128xf32>
    %c0_40 = arith.constant 0 : index
    %c0_41 = arith.constant 0 : index
    %40 = vector.load %arg9[%c0_40, %c0_41] : memref<6x128xf32, #tpu.memory_space<vmem>>, vector<4x128xf32>
    %41 = arith.truncf %40 : vector<4x128xf32> to vector<4x128xbf16>
    %c0_42 = arith.constant 0 : index
    %c0_43 = arith.constant 0 : index
    %c0_44 = arith.constant 0 : index
    %42 = vector.load %arg4[%c0_42, %c0_43, %c0_44] : memref<3x128x128xbf16, #tpu.memory_space<vmem>>, vector<1x128x128xbf16>
    %43 = vector.shape_cast %42 : vector<1x128x128xbf16> to vector<128x128xbf16>
    %cst_45 = arith.constant dense<0.000000e+00> : vector<4x128xf32>
    %44 = tpu.matmul %41, %43, %cst_45 {dimension_numbers = #tpu.dot_dimension_numbers<[1], [0], [0], [1], [0, 0, 1, 1], [], []>} : vector<4x128xbf16>, vector<128x128xbf16>, vector<4x128xf32> -> vector<4x128xf32>
    %45 = arith.addf %39, %44 : vector<4x128xf32>
    %c1_46 = arith.constant 1 : index
    %c0_47 = arith.constant 0 : index
    %46 = vector.load %arg9[%c1_46, %c0_47] : memref<6x128xf32, #tpu.memory_space<vmem>>, vector<4x128xf32>
    %47 = arith.truncf %46 : vector<4x128xf32> to vector<4x128xbf16>
    %c1_48 = arith.constant 1 : index
    %c0_49 = arith.constant 0 : index
    %c0_50 = arith.constant 0 : index
    %48 = vector.load %arg4[%c1_48, %c0_49, %c0_50] : memref<3x128x128xbf16, #tpu.memory_space<vmem>>, vector<1x128x128xbf16>
    %49 = vector.shape_cast %48 : vector<1x128x128xbf16> to vector<128x128xbf16>
    %cst_51 = arith.constant dense<0.000000e+00> : vector<4x128xf32>
    %50 = tpu.matmul %47, %49, %cst_51 {dimension_numbers = #tpu.dot_dimension_numbers<[1], [0], [0], [1], [0, 0, 1, 1], [], []>} : vector<4x128xbf16>, vector<128x128xbf16>, vector<4x128xf32> -> vector<4x128xf32>
    %51 = arith.addf %45, %50 : vector<4x128xf32>
    %c2_52 = arith.constant 2 : index
    %c0_53 = arith.constant 0 : index
    %52 = vector.load %arg9[%c2_52, %c0_53] : memref<6x128xf32, #tpu.memory_space<vmem>>, vector<4x128xf32>
    %53 = arith.truncf %52 : vector<4x128xf32> to vector<4x128xbf16>
    %c2_54 = arith.constant 2 : index
    %c0_55 = arith.constant 0 : index
    %c0_56 = arith.constant 0 : index
    %54 = vector.load %arg4[%c2_54, %c0_55, %c0_56] : memref<3x128x128xbf16, #tpu.memory_space<vmem>>, vector<1x128x128xbf16>
    %55 = vector.shape_cast %54 : vector<1x128x128xbf16> to vector<128x128xbf16>
    %cst_57 = arith.constant dense<0.000000e+00> : vector<4x128xf32>
    %56 = tpu.matmul %53, %55, %cst_57 {dimension_numbers = #tpu.dot_dimension_numbers<[1], [0], [0], [1], [0, 0, 1, 1], [], []>} : vector<4x128xbf16>, vector<128x128xbf16>, vector<4x128xf32> -> vector<4x128xf32>
    %57 = arith.addf %51, %56 : vector<4x128xf32>
    %c0_58 = arith.constant 0 : index
    %c0_59 = arith.constant 0 : index
    %58 = vector.load %arg5[%c0_58, %c0_59] : memref<1x128xf32, #tpu.memory_space<vmem>>, vector<1x128xf32>
    %59 = vector.broadcast %58 : vector<1x128xf32> to vector<4x128xf32>
    %60 = arith.addf %57, %59 : vector<4x128xf32>
    %61 = arith.addf %60, %35 : vector<4x128xf32>
    %cst_60 = arith.constant 0.000000e+00 : f32
    %62 = vector.broadcast %cst_60 : f32 to vector<4x128xf32>
    %63 = arith.maximumf %61, %62 : vector<4x128xf32>
    %c0_61 = arith.constant 0 : index
    %c0_62 = arith.constant 0 : index
    %c0_63 = arith.constant 0 : index
    %64 = vector.load %arg8[%c0_61, %c0_62, %c0_63] : memref<1x4x128xf32, #tpu.memory_space<vmem>>, vector<1x4x128xf32>
    %65 = vector.shape_cast %64 : vector<1x4x128xf32> to vector<4x128xf32>
    %66 = vector.shape_cast %63 : vector<4x128xf32> to vector<1x4x128xf32>
    tpu.vector_store %arg8[%c0_61, %c0_62, %c0_63], %66 {strides = array<i32>} : memref<1x4x128xf32, #tpu.memory_space<vmem>>, vector<1x4x128xf32>,
    return
  }
  func.func @transform_0(%arg0: i32) -> (i32, i32, i32, i32) {
    %c0_i32 = arith.constant 0 : i32
    %c0_i32_0 = arith.constant 0 : i32
    %c0_i32_1 = arith.constant 0 : i32
    %c0_i32_2 = arith.constant 0 : i32
    return %arg0, %c0_i32, %c0_i32_0, %c0_i32_1 : i32, i32, i32, i32
  }
  func.func @transform_1(%arg0: i32) -> (i32, i32, i32) {
    %c0_i32 = arith.constant 0 : i32
    %c0_i32_0 = arith.constant 0 : i32
    %c0_i32_1 = arith.constant 0 : i32
    %c0_i32_2 = arith.constant 0 : i32
    return %c0_i32, %c0_i32_0, %c0_i32_1 : i32, i32, i32
  }
  func.func @transform_2(%arg0: i32) -> (i32, i32) {
    %c0_i32 = arith.constant 0 : i32
    %c0_i32_0 = arith.constant 0 : i32
    %c0_i32_1 = arith.constant 0 : i32
    return %c0_i32, %c0_i32_0 : i32, i32
  }
  func.func @transform_3(%arg0: i32) -> (i32, i32, i32) {
    %c0_i32 = arith.constant 0 : i32
    %c0_i32_0 = arith.constant 0 : i32
    %c0_i32_1 = arith.constant 0 : i32
    %c0_i32_2 = arith.constant 0 : i32
    return %c0_i32, %c0_i32_0, %c0_i32_1 : i32, i32, i32
  }
  func.func @transform_4(%arg0: i32) -> (i32, i32) {
    %c0_i32 = arith.constant 0 : i32
    %c0_i32_0 = arith.constant 0 : i32
    %c0_i32_1 = arith.constant 0 : i32
    return %c0_i32, %c0_i32_0 : i32, i32
  }
  func.func @transform_5(%arg0: i32) -> (i32, i32, i32) {
    %c0_i32 = arith.constant 0 : i32
    %c0_i32_0 = arith.constant 0 : i32
    %c0_i32_1 = arith.constant 0 : i32
    %c0_i32_2 = arith.constant 0 : i32
    return %c0_i32, %c0_i32_0, %c0_i32_1 : i32, i32, i32
  }
  func.func @transform_6(%arg0: i32) -> (i32, i32) {
    %c0_i32 = arith.constant 0 : i32
    %c0_i32_0 = arith.constant 0 : i32
    %c0_i32_1 = arith.constant 0 : i32
    return %c0_i32, %c0_i32_0 : i32, i32
  }
  func.func @transform_7(%arg0: i32) -> (i32, i32, i32) {
    %c0_i32 = arith.constant 0 : i32
    %c0_i32_0 = arith.constant 0 : i32
    %c0_i32_1 = arith.constant 0 : i32
    return %arg0, %c0_i32, %c0_i32_0 : i32, i32, i32
  }
}

module attributes {stable_mosaic.version = 11 : i64} {
  func.func @_block_kernel(%arg0: i32, %arg1: memref<1x1x6x128xf32, #tpu.memory_space<vmem>>, %arg2: memref<3x128x128xbf16, #tpu.memory_space<vmem>>, %arg3: memref<1x128xf32, #tpu.memory_space<vmem>>, %arg4: memref<3x128x128xbf16, #tpu.memory_space<vmem>>, %arg5: memref<1x128xf32, #tpu.memory_space<vmem>>, %arg6: memref<1x4x128xf32, #tpu.memory_space<vmem>>, %arg7: memref<6x128xf32, #tpu.memory_space<vmem>>) attributes {dimension_semantics = [#tpu.dimension_semantics<parallel>], iteration_bounds = array<i64: 2>, scalar_prefetch = 0 : i64, scratch_operands = 1 : i64, tpu.core_type = #tpu.core_type<tc>, window_params = [{transform_indices = @transform_0, window_bounds = array<i64: 1, 1, 6, 128>}, {pipeline_mode = #tpu.pipeline_mode<synchronous>, transform_indices = @transform_1, window_bounds = array<i64: 3, 128, 128>}, {pipeline_mode = #tpu.pipeline_mode<synchronous>, transform_indices = @transform_2, window_bounds = array<i64: 1, 128>}, {pipeline_mode = #tpu.pipeline_mode<synchronous>, transform_indices = @transform_3, window_bounds = array<i64: 3, 128, 128>}, {pipeline_mode = #tpu.pipeline_mode<synchronous>, transform_indices = @transform_4, window_bounds = array<i64: 1, 128>}, {transform_indices = @transform_5, window_bounds = array<i64: 1, 4, 128>}]} {
    %cst = arith.constant 0.000000e+00 : f32
    %0 = vector.broadcast %cst : f32 to vector<4x128xf32>
    %c0 = arith.constant 0 : index
    %c0_0 = arith.constant 0 : index
    %c0_1 = arith.constant 0 : index
    %c0_2 = arith.constant 0 : index
    %1 = vector.load %arg1[%c0, %c0_0, %c0_1, %c0_2] : memref<1x1x6x128xf32, #tpu.memory_space<vmem>>, vector<1x1x4x128xf32>
    %2 = vector.shape_cast %1 : vector<1x1x4x128xf32> to vector<4x128xf32>
    %3 = arith.truncf %2 : vector<4x128xf32> to vector<4x128xbf16>
    %c0_3 = arith.constant 0 : index
    %c0_4 = arith.constant 0 : index
    %c0_5 = arith.constant 0 : index
    %4 = vector.load %arg2[%c0_3, %c0_4, %c0_5] : memref<3x128x128xbf16, #tpu.memory_space<vmem>>, vector<1x128x128xbf16>
    %5 = vector.shape_cast %4 : vector<1x128x128xbf16> to vector<128x128xbf16>
    %cst_6 = arith.constant dense<0.000000e+00> : vector<4x128xf32>
    %6 = tpu.matmul %3, %5, %cst_6 {dimension_numbers = #tpu.dot_dimension_numbers<[1], [0], [0], [1], [0, 0, 1, 1], [], []>} : vector<4x128xbf16>, vector<128x128xbf16>, vector<4x128xf32> -> vector<4x128xf32>
    %7 = arith.addf %0, %6 : vector<4x128xf32>
    %c0_7 = arith.constant 0 : index
    %c0_8 = arith.constant 0 : index
    %c1 = arith.constant 1 : index
    %c0_9 = arith.constant 0 : index
    %8 = vector.load %arg1[%c0_7, %c0_8, %c1, %c0_9] : memref<1x1x6x128xf32, #tpu.memory_space<vmem>>, vector<1x1x4x128xf32>
    %9 = vector.shape_cast %8 : vector<1x1x4x128xf32> to vector<4x128xf32>
    %10 = arith.truncf %9 : vector<4x128xf32> to vector<4x128xbf16>
    %c1_10 = arith.constant 1 : index
    %c0_11 = arith.constant 0 : index
    %c0_12 = arith.constant 0 : index
    %11 = vector.load %arg2[%c1_10, %c0_11, %c0_12] : memref<3x128x128xbf16, #tpu.memory_space<vmem>>, vector<1x128x128xbf16>
    %12 = vector.shape_cast %11 : vector<1x128x128xbf16> to vector<128x128xbf16>
    %cst_13 = arith.constant dense<0.000000e+00> : vector<4x128xf32>
    %13 = tpu.matmul %10, %12, %cst_13 {dimension_numbers = #tpu.dot_dimension_numbers<[1], [0], [0], [1], [0, 0, 1, 1], [], []>} : vector<4x128xbf16>, vector<128x128xbf16>, vector<4x128xf32> -> vector<4x128xf32>
    %14 = arith.addf %7, %13 : vector<4x128xf32>
    %c0_14 = arith.constant 0 : index
    %c0_15 = arith.constant 0 : index
    %c2 = arith.constant 2 : index
    %c0_16 = arith.constant 0 : index
    %15 = vector.load %arg1[%c0_14, %c0_15, %c2, %c0_16] : memref<1x1x6x128xf32, #tpu.memory_space<vmem>>, vector<1x1x4x128xf32>
    %16 = vector.shape_cast %15 : vector<1x1x4x128xf32> to vector<4x128xf32>
    %17 = arith.truncf %16 : vector<4x128xf32> to vector<4x128xbf16>
    %c2_17 = arith.constant 2 : index
    %c0_18 = arith.constant 0 : index
    %c0_19 = arith.constant 0 : index
    %18 = vector.load %arg2[%c2_17, %c0_18, %c0_19] : memref<3x128x128xbf16, #tpu.memory_space<vmem>>, vector<1x128x128xbf16>
    %19 = vector.shape_cast %18 : vector<1x128x128xbf16> to vector<128x128xbf16>
    %cst_20 = arith.constant dense<0.000000e+00> : vector<4x128xf32>
    %20 = tpu.matmul %17, %19, %cst_20 {dimension_numbers = #tpu.dot_dimension_numbers<[1], [0], [0], [1], [0, 0, 1, 1], [], []>} : vector<4x128xbf16>, vector<128x128xbf16>, vector<4x128xf32> -> vector<4x128xf32>
    %21 = arith.addf %14, %20 : vector<4x128xf32>
    %c0_21 = arith.constant 0 : index
    %c0_22 = arith.constant 0 : index
    %22 = vector.load %arg3[%c0_21, %c0_22] : memref<1x128xf32, #tpu.memory_space<vmem>>, vector<1x128xf32>
    %23 = vector.broadcast %22 : vector<1x128xf32> to vector<4x128xf32>
    %24 = arith.addf %21, %23 : vector<4x128xf32>
    %cst_23 = arith.constant 0.000000e+00 : f32
    %25 = vector.broadcast %cst_23 : f32 to vector<4x128xf32>
    %26 = arith.maximumf %24, %25 : vector<4x128xf32>
    %c0_24 = arith.constant 0 : index
    %c0_25 = arith.constant 0 : index
    %c1_26 = arith.constant 1 : index
    %c0_27 = arith.constant 0 : index
    %27 = vector.load %arg1[%c0_24, %c0_25, %c1_26, %c0_27] : memref<1x1x6x128xf32, #tpu.memory_space<vmem>>, vector<1x1x4x128xf32>
    %28 = vector.shape_cast %27 : vector<1x1x4x128xf32> to vector<4x128xf32>
    %cst_28 = arith.constant 0.000000e+00 : f32
    %29 = vector.broadcast %cst_28 : f32 to vector<6x128xf32>
    %c0_29 = arith.constant 0 : index
    %c0_30 = arith.constant 0 : index
    %30 = vector.load %arg7[%c0_29, %c0_30] : memref<6x128xf32, #tpu.memory_space<vmem>>, vector<6x128xf32>
    tpu.vector_store %arg7[%c0_29, %c0_30], %29 {strides = array<i32>} : memref<6x128xf32, #tpu.memory_space<vmem>>, vector<6x128xf32>,
    %c1_31 = arith.constant 1 : index
    %c0_32 = arith.constant 0 : index
    %31 = vector.load %arg7[%c1_31, %c0_32] : memref<6x128xf32, #tpu.memory_space<vmem>>, vector<4x128xf32>
    tpu.vector_store %arg7[%c1_31, %c0_32], %26 {strides = array<i32>} : memref<6x128xf32, #tpu.memory_space<vmem>>, vector<4x128xf32>,
    %cst_33 = arith.constant 0.000000e+00 : f32
    %32 = vector.broadcast %cst_33 : f32 to vector<4x128xf32>
    %c0_34 = arith.constant 0 : index
    %c0_35 = arith.constant 0 : index
    %33 = vector.load %arg7[%c0_34, %c0_35] : memref<6x128xf32, #tpu.memory_space<vmem>>, vector<4x128xf32>
    %34 = arith.truncf %33 : vector<4x128xf32> to vector<4x128xbf16>
    %c0_36 = arith.constant 0 : index
    %c0_37 = arith.constant 0 : index
    %c0_38 = arith.constant 0 : index
    %35 = vector.load %arg4[%c0_36, %c0_37, %c0_38] : memref<3x128x128xbf16, #tpu.memory_space<vmem>>, vector<1x128x128xbf16>
    %36 = vector.shape_cast %35 : vector<1x128x128xbf16> to vector<128x128xbf16>
    %cst_39 = arith.constant dense<0.000000e+00> : vector<4x128xf32>
    %37 = tpu.matmul %34, %36, %cst_39 {dimension_numbers = #tpu.dot_dimension_numbers<[1], [0], [0], [1], [0, 0, 1, 1], [], []>} : vector<4x128xbf16>, vector<128x128xbf16>, vector<4x128xf32> -> vector<4x128xf32>
    %38 = arith.addf %32, %37 : vector<4x128xf32>
    %c1_40 = arith.constant 1 : index
    %c0_41 = arith.constant 0 : index
    %39 = vector.load %arg7[%c1_40, %c0_41] : memref<6x128xf32, #tpu.memory_space<vmem>>, vector<4x128xf32>
    %40 = arith.truncf %39 : vector<4x128xf32> to vector<4x128xbf16>
    %c1_42 = arith.constant 1 : index
    %c0_43 = arith.constant 0 : index
    %c0_44 = arith.constant 0 : index
    %41 = vector.load %arg4[%c1_42, %c0_43, %c0_44] : memref<3x128x128xbf16, #tpu.memory_space<vmem>>, vector<1x128x128xbf16>
    %42 = vector.shape_cast %41 : vector<1x128x128xbf16> to vector<128x128xbf16>
    %cst_45 = arith.constant dense<0.000000e+00> : vector<4x128xf32>
    %43 = tpu.matmul %40, %42, %cst_45 {dimension_numbers = #tpu.dot_dimension_numbers<[1], [0], [0], [1], [0, 0, 1, 1], [], []>} : vector<4x128xbf16>, vector<128x128xbf16>, vector<4x128xf32> -> vector<4x128xf32>
    %44 = arith.addf %38, %43 : vector<4x128xf32>
    %c2_46 = arith.constant 2 : index
    %c0_47 = arith.constant 0 : index
    %45 = vector.load %arg7[%c2_46, %c0_47] : memref<6x128xf32, #tpu.memory_space<vmem>>, vector<4x128xf32>
    %46 = arith.truncf %45 : vector<4x128xf32> to vector<4x128xbf16>
    %c2_48 = arith.constant 2 : index
    %c0_49 = arith.constant 0 : index
    %c0_50 = arith.constant 0 : index
    %47 = vector.load %arg4[%c2_48, %c0_49, %c0_50] : memref<3x128x128xbf16, #tpu.memory_space<vmem>>, vector<1x128x128xbf16>
    %48 = vector.shape_cast %47 : vector<1x128x128xbf16> to vector<128x128xbf16>
    %cst_51 = arith.constant dense<0.000000e+00> : vector<4x128xf32>
    %49 = tpu.matmul %46, %48, %cst_51 {dimension_numbers = #tpu.dot_dimension_numbers<[1], [0], [0], [1], [0, 0, 1, 1], [], []>} : vector<4x128xbf16>, vector<128x128xbf16>, vector<4x128xf32> -> vector<4x128xf32>
    %50 = arith.addf %44, %49 : vector<4x128xf32>
    %c0_52 = arith.constant 0 : index
    %c0_53 = arith.constant 0 : index
    %51 = vector.load %arg5[%c0_52, %c0_53] : memref<1x128xf32, #tpu.memory_space<vmem>>, vector<1x128xf32>
    %52 = vector.broadcast %51 : vector<1x128xf32> to vector<4x128xf32>
    %53 = arith.addf %50, %52 : vector<4x128xf32>
    %54 = arith.addf %53, %28 : vector<4x128xf32>
    %cst_54 = arith.constant 0.000000e+00 : f32
    %55 = vector.broadcast %cst_54 : f32 to vector<4x128xf32>
    %56 = arith.maximumf %54, %55 : vector<4x128xf32>
    %c0_55 = arith.constant 0 : index
    %c0_56 = arith.constant 0 : index
    %c0_57 = arith.constant 0 : index
    %57 = vector.load %arg6[%c0_55, %c0_56, %c0_57] : memref<1x4x128xf32, #tpu.memory_space<vmem>>, vector<1x4x128xf32>
    %58 = vector.shape_cast %57 : vector<1x4x128xf32> to vector<4x128xf32>
    %59 = vector.shape_cast %56 : vector<4x128xf32> to vector<1x4x128xf32>
    tpu.vector_store %arg6[%c0_55, %c0_56, %c0_57], %59 {strides = array<i32>} : memref<1x4x128xf32, #tpu.memory_space<vmem>>, vector<1x4x128xf32>,
    return
  }
  func.func @transform_0(%arg0: i32) -> (i32, i32, i32, i32) {
    %c0_i32 = arith.constant 0 : i32
    %c0_i32_0 = arith.constant 0 : i32
    %c0_i32_1 = arith.constant 0 : i32
    %c0_i32_2 = arith.constant 0 : i32
    return %arg0, %c0_i32, %c0_i32_0, %c0_i32_1 : i32, i32, i32, i32
  }
  func.func @transform_1(%arg0: i32) -> (i32, i32, i32) {
    %c0_i32 = arith.constant 0 : i32
    %c0_i32_0 = arith.constant 0 : i32
    %c0_i32_1 = arith.constant 0 : i32
    %c0_i32_2 = arith.constant 0 : i32
    return %c0_i32, %c0_i32_0, %c0_i32_1 : i32, i32, i32
  }
  func.func @transform_2(%arg0: i32) -> (i32, i32) {
    %c0_i32 = arith.constant 0 : i32
    %c0_i32_0 = arith.constant 0 : i32
    %c0_i32_1 = arith.constant 0 : i32
    return %c0_i32, %c0_i32_0 : i32, i32
  }
  func.func @transform_3(%arg0: i32) -> (i32, i32, i32) {
    %c0_i32 = arith.constant 0 : i32
    %c0_i32_0 = arith.constant 0 : i32
    %c0_i32_1 = arith.constant 0 : i32
    %c0_i32_2 = arith.constant 0 : i32
    return %c0_i32, %c0_i32_0, %c0_i32_1 : i32, i32, i32
  }
  func.func @transform_4(%arg0: i32) -> (i32, i32) {
    %c0_i32 = arith.constant 0 : i32
    %c0_i32_0 = arith.constant 0 : i32
    %c0_i32_1 = arith.constant 0 : i32
    return %c0_i32, %c0_i32_0 : i32, i32
  }
  func.func @transform_5(%arg0: i32) -> (i32, i32, i32) {
    %c0_i32 = arith.constant 0 : i32
    %c0_i32_0 = arith.constant 0 : i32
    %c0_i32_1 = arith.constant 0 : i32
    return %arg0, %c0_i32, %c0_i32_0 : i32, i32, i32
  }
}

module attributes {stable_mosaic.version = 11 : i64} {
  func.func @_block_kernel(%arg0: i32, %arg1: memref<1x2x3x128xf32, #tpu.memory_space<vmem>>, %arg2: memref<3x128x128xbf16, #tpu.memory_space<vmem>>, %arg3: memref<1x128xf32, #tpu.memory_space<vmem>>, %arg4: memref<3x128x128xbf16, #tpu.memory_space<vmem>>, %arg5: memref<1x128xf32, #tpu.memory_space<vmem>>, %arg6: memref<1x128x128xbf16, #tpu.memory_space<vmem>>, %arg7: memref<1x128xf32, #tpu.memory_space<vmem>>, %arg8: memref<1x2x128xf32, #tpu.memory_space<vmem>>, %arg9: memref<4x128xf32, #tpu.memory_space<vmem>>) attributes {dimension_semantics = [#tpu.dimension_semantics<parallel>], iteration_bounds = array<i64: 2>, scalar_prefetch = 0 : i64, scratch_operands = 1 : i64, tpu.core_type = #tpu.core_type<tc>, window_params = [{transform_indices = @transform_0, window_bounds = array<i64: 1, 2, 3, 128>}, {pipeline_mode = #tpu.pipeline_mode<synchronous>, transform_indices = @transform_1, window_bounds = array<i64: 3, 128, 128>}, {pipeline_mode = #tpu.pipeline_mode<synchronous>, transform_indices = @transform_2, window_bounds = array<i64: 1, 128>}, {pipeline_mode = #tpu.pipeline_mode<synchronous>, transform_indices = @transform_3, window_bounds = array<i64: 3, 128, 128>}, {pipeline_mode = #tpu.pipeline_mode<synchronous>, transform_indices = @transform_4, window_bounds = array<i64: 1, 128>}, {pipeline_mode = #tpu.pipeline_mode<synchronous>, transform_indices = @transform_5, window_bounds = array<i64: 1, 128, 128>}, {pipeline_mode = #tpu.pipeline_mode<synchronous>, transform_indices = @transform_6, window_bounds = array<i64: 1, 128>}, {transform_indices = @transform_7, window_bounds = array<i64: 1, 2, 128>}]} {
    %cst = arith.constant 0.000000e+00 : f32
    %0 = vector.broadcast %cst : f32 to vector<2x128xf32>
    %c0 = arith.constant 0 : index
    %c0_0 = arith.constant 0 : index
    %c0_1 = arith.constant 0 : index
    %c0_2 = arith.constant 0 : index
    %1 = vector.load %arg1[%c0, %c0_0, %c0_1, %c0_2] : memref<1x2x3x128xf32, #tpu.memory_space<vmem>>, vector<1x1x2x128xf32>
    %2 = vector.shape_cast %1 : vector<1x1x2x128xf32> to vector<2x128xf32>
    %3 = arith.truncf %2 : vector<2x128xf32> to vector<2x128xbf16>
    %c0_3 = arith.constant 0 : index
    %c0_4 = arith.constant 0 : index
    %c0_5 = arith.constant 0 : index
    %4 = vector.load %arg2[%c0_3, %c0_4, %c0_5] : memref<3x128x128xbf16, #tpu.memory_space<vmem>>, vector<1x128x128xbf16>
    %5 = vector.shape_cast %4 : vector<1x128x128xbf16> to vector<128x128xbf16>
    %cst_6 = arith.constant dense<0.000000e+00> : vector<2x128xf32>
    %6 = tpu.matmul %3, %5, %cst_6 {dimension_numbers = #tpu.dot_dimension_numbers<[1], [0], [0], [1], [0, 0, 1, 1], [], []>} : vector<2x128xbf16>, vector<128x128xbf16>, vector<2x128xf32> -> vector<2x128xf32>
    %7 = arith.addf %0, %6 : vector<2x128xf32>
    %c0_7 = arith.constant 0 : index
    %c1 = arith.constant 1 : index
    %c0_8 = arith.constant 0 : index
    %c0_9 = arith.constant 0 : index
    %8 = vector.load %arg1[%c0_7, %c1, %c0_8, %c0_9] : memref<1x2x3x128xf32, #tpu.memory_space<vmem>>, vector<1x1x2x128xf32>
    %9 = vector.shape_cast %8 : vector<1x1x2x128xf32> to vector<2x128xf32>
    %10 = arith.truncf %9 : vector<2x128xf32> to vector<2x128xbf16>
    %c1_10 = arith.constant 1 : index
    %c0_11 = arith.constant 0 : index
    %c0_12 = arith.constant 0 : index
    %11 = vector.load %arg2[%c1_10, %c0_11, %c0_12] : memref<3x128x128xbf16, #tpu.memory_space<vmem>>, vector<1x128x128xbf16>
    %12 = vector.shape_cast %11 : vector<1x128x128xbf16> to vector<128x128xbf16>
    %cst_13 = arith.constant dense<0.000000e+00> : vector<2x128xf32>
    %13 = tpu.matmul %10, %12, %cst_13 {dimension_numbers = #tpu.dot_dimension_numbers<[1], [0], [0], [1], [0, 0, 1, 1], [], []>} : vector<2x128xbf16>, vector<128x128xbf16>, vector<2x128xf32> -> vector<2x128xf32>
    %14 = arith.addf %7, %13 : vector<2x128xf32>
    %c0_14 = arith.constant 0 : index
    %c0_15 = arith.constant 0 : index
    %c1_16 = arith.constant 1 : index
    %c0_17 = arith.constant 0 : index
    %15 = vector.load %arg1[%c0_14, %c0_15, %c1_16, %c0_17] : memref<1x2x3x128xf32, #tpu.memory_space<vmem>>, vector<1x1x2x128xf32>
    %16 = vector.shape_cast %15 : vector<1x1x2x128xf32> to vector<2x128xf32>
    %17 = arith.truncf %16 : vector<2x128xf32> to vector<2x128xbf16>
    %c2 = arith.constant 2 : index
    %c0_18 = arith.constant 0 : index
    %c0_19 = arith.constant 0 : index
    %18 = vector.load %arg2[%c2, %c0_18, %c0_19] : memref<3x128x128xbf16, #tpu.memory_space<vmem>>, vector<1x128x128xbf16>
    %19 = vector.shape_cast %18 : vector<1x128x128xbf16> to vector<128x128xbf16>
    %cst_20 = arith.constant dense<0.000000e+00> : vector<2x128xf32>
    %20 = tpu.matmul %17, %19, %cst_20 {dimension_numbers = #tpu.dot_dimension_numbers<[1], [0], [0], [1], [0, 0, 1, 1], [], []>} : vector<2x128xbf16>, vector<128x128xbf16>, vector<2x128xf32> -> vector<2x128xf32>
    %21 = arith.addf %14, %20 : vector<2x128xf32>
    %c0_21 = arith.constant 0 : index
    %c0_22 = arith.constant 0 : index
    %22 = vector.load %arg3[%c0_21, %c0_22] : memref<1x128xf32, #tpu.memory_space<vmem>>, vector<1x128xf32>
    %23 = vector.broadcast %22 : vector<1x128xf32> to vector<2x128xf32>
    %24 = arith.addf %21, %23 : vector<2x128xf32>
    %cst_23 = arith.constant 0.000000e+00 : f32
    %25 = vector.broadcast %cst_23 : f32 to vector<2x128xf32>
    %26 = arith.maximumf %24, %25 : vector<2x128xf32>
    %c0_24 = arith.constant 0 : index
    %c1_25 = arith.constant 1 : index
    %c0_26 = arith.constant 0 : index
    %c0_27 = arith.constant 0 : index
    %27 = vector.load %arg1[%c0_24, %c1_25, %c0_26, %c0_27] : memref<1x2x3x128xf32, #tpu.memory_space<vmem>>, vector<1x1x2x128xf32>
    %28 = vector.shape_cast %27 : vector<1x1x2x128xf32> to vector<2x128xf32>
    %29 = arith.truncf %28 : vector<2x128xf32> to vector<2x128xbf16>
    %c0_28 = arith.constant 0 : index
    %c0_29 = arith.constant 0 : index
    %c0_30 = arith.constant 0 : index
    %30 = vector.load %arg6[%c0_28, %c0_29, %c0_30] : memref<1x128x128xbf16, #tpu.memory_space<vmem>>, vector<1x128x128xbf16>
    %31 = vector.shape_cast %30 : vector<1x128x128xbf16> to vector<128x128xbf16>
    %cst_31 = arith.constant dense<0.000000e+00> : vector<2x128xf32>
    %32 = tpu.matmul %29, %31, %cst_31 {dimension_numbers = #tpu.dot_dimension_numbers<[1], [0], [0], [1], [0, 0, 1, 1], [], []>} : vector<2x128xbf16>, vector<128x128xbf16>, vector<2x128xf32> -> vector<2x128xf32>
    %c0_32 = arith.constant 0 : index
    %c0_33 = arith.constant 0 : index
    %33 = vector.load %arg7[%c0_32, %c0_33] : memref<1x128xf32, #tpu.memory_space<vmem>>, vector<1x128xf32>
    %34 = vector.broadcast %33 : vector<1x128xf32> to vector<2x128xf32>
    %35 = arith.addf %32, %34 : vector<2x128xf32>
    %cst_34 = arith.constant 0.000000e+00 : f32
    %36 = vector.broadcast %cst_34 : f32 to vector<4x128xf32>
    %c0_35 = arith.constant 0 : index
    %c0_36 = arith.constant 0 : index
    %37 = vector.load %arg9[%c0_35, %c0_36] : memref<4x128xf32, #tpu.memory_space<vmem>>, vector<4x128xf32>
    tpu.vector_store %arg9[%c0_35, %c0_36], %36 {strides = array<i32>} : memref<4x128xf32, #tpu.memory_space<vmem>>, vector<4x128xf32>,
    %c1_37 = arith.constant 1 : index
    %c0_38 = arith.constant 0 : index
    %38 = vector.load %arg9[%c1_37, %c0_38] : memref<4x128xf32, #tpu.memory_space<vmem>>, vector<2x128xf32>
    tpu.vector_store %arg9[%c1_37, %c0_38], %26 {strides = array<i32>} : memref<4x128xf32, #tpu.memory_space<vmem>>, vector<2x128xf32>,
    %cst_39 = arith.constant 0.000000e+00 : f32
    %39 = vector.broadcast %cst_39 : f32 to vector<2x128xf32>
    %c0_40 = arith.constant 0 : index
    %c0_41 = arith.constant 0 : index
    %40 = vector.load %arg9[%c0_40, %c0_41] : memref<4x128xf32, #tpu.memory_space<vmem>>, vector<2x128xf32>
    %41 = arith.truncf %40 : vector<2x128xf32> to vector<2x128xbf16>
    %c0_42 = arith.constant 0 : index
    %c0_43 = arith.constant 0 : index
    %c0_44 = arith.constant 0 : index
    %42 = vector.load %arg4[%c0_42, %c0_43, %c0_44] : memref<3x128x128xbf16, #tpu.memory_space<vmem>>, vector<1x128x128xbf16>
    %43 = vector.shape_cast %42 : vector<1x128x128xbf16> to vector<128x128xbf16>
    %cst_45 = arith.constant dense<0.000000e+00> : vector<2x128xf32>
    %44 = tpu.matmul %41, %43, %cst_45 {dimension_numbers = #tpu.dot_dimension_numbers<[1], [0], [0], [1], [0, 0, 1, 1], [], []>} : vector<2x128xbf16>, vector<128x128xbf16>, vector<2x128xf32> -> vector<2x128xf32>
    %45 = arith.addf %39, %44 : vector<2x128xf32>
    %c1_46 = arith.constant 1 : index
    %c0_47 = arith.constant 0 : index
    %46 = vector.load %arg9[%c1_46, %c0_47] : memref<4x128xf32, #tpu.memory_space<vmem>>, vector<2x128xf32>
    %47 = arith.truncf %46 : vector<2x128xf32> to vector<2x128xbf16>
    %c1_48 = arith.constant 1 : index
    %c0_49 = arith.constant 0 : index
    %c0_50 = arith.constant 0 : index
    %48 = vector.load %arg4[%c1_48, %c0_49, %c0_50] : memref<3x128x128xbf16, #tpu.memory_space<vmem>>, vector<1x128x128xbf16>
    %49 = vector.shape_cast %48 : vector<1x128x128xbf16> to vector<128x128xbf16>
    %cst_51 = arith.constant dense<0.000000e+00> : vector<2x128xf32>
    %50 = tpu.matmul %47, %49, %cst_51 {dimension_numbers = #tpu.dot_dimension_numbers<[1], [0], [0], [1], [0, 0, 1, 1], [], []>} : vector<2x128xbf16>, vector<128x128xbf16>, vector<2x128xf32> -> vector<2x128xf32>
    %51 = arith.addf %45, %50 : vector<2x128xf32>
    %c2_52 = arith.constant 2 : index
    %c0_53 = arith.constant 0 : index
    %52 = vector.load %arg9[%c2_52, %c0_53] : memref<4x128xf32, #tpu.memory_space<vmem>>, vector<2x128xf32>
    %53 = arith.truncf %52 : vector<2x128xf32> to vector<2x128xbf16>
    %c2_54 = arith.constant 2 : index
    %c0_55 = arith.constant 0 : index
    %c0_56 = arith.constant 0 : index
    %54 = vector.load %arg4[%c2_54, %c0_55, %c0_56] : memref<3x128x128xbf16, #tpu.memory_space<vmem>>, vector<1x128x128xbf16>
    %55 = vector.shape_cast %54 : vector<1x128x128xbf16> to vector<128x128xbf16>
    %cst_57 = arith.constant dense<0.000000e+00> : vector<2x128xf32>
    %56 = tpu.matmul %53, %55, %cst_57 {dimension_numbers = #tpu.dot_dimension_numbers<[1], [0], [0], [1], [0, 0, 1, 1], [], []>} : vector<2x128xbf16>, vector<128x128xbf16>, vector<2x128xf32> -> vector<2x128xf32>
    %57 = arith.addf %51, %56 : vector<2x128xf32>
    %c0_58 = arith.constant 0 : index
    %c0_59 = arith.constant 0 : index
    %58 = vector.load %arg5[%c0_58, %c0_59] : memref<1x128xf32, #tpu.memory_space<vmem>>, vector<1x128xf32>
    %59 = vector.broadcast %58 : vector<1x128xf32> to vector<2x128xf32>
    %60 = arith.addf %57, %59 : vector<2x128xf32>
    %61 = arith.addf %60, %35 : vector<2x128xf32>
    %cst_60 = arith.constant 0.000000e+00 : f32
    %62 = vector.broadcast %cst_60 : f32 to vector<2x128xf32>
    %63 = arith.maximumf %61, %62 : vector<2x128xf32>
    %c0_61 = arith.constant 0 : index
    %c0_62 = arith.constant 0 : index
    %c0_63 = arith.constant 0 : index
    %64 = vector.load %arg8[%c0_61, %c0_62, %c0_63] : memref<1x2x128xf32, #tpu.memory_space<vmem>>, vector<1x2x128xf32>
    %65 = vector.shape_cast %64 : vector<1x2x128xf32> to vector<2x128xf32>
    %66 = vector.shape_cast %63 : vector<2x128xf32> to vector<1x2x128xf32>
    tpu.vector_store %arg8[%c0_61, %c0_62, %c0_63], %66 {strides = array<i32>} : memref<1x2x128xf32, #tpu.memory_space<vmem>>, vector<1x2x128xf32>,
    return
  }
  func.func @transform_0(%arg0: i32) -> (i32, i32, i32, i32) {
    %c0_i32 = arith.constant 0 : i32
    %c0_i32_0 = arith.constant 0 : i32
    %c0_i32_1 = arith.constant 0 : i32
    %c0_i32_2 = arith.constant 0 : i32
    return %arg0, %c0_i32, %c0_i32_0, %c0_i32_1 : i32, i32, i32, i32
  }
  func.func @transform_1(%arg0: i32) -> (i32, i32, i32) {
    %c0_i32 = arith.constant 0 : i32
    %c0_i32_0 = arith.constant 0 : i32
    %c0_i32_1 = arith.constant 0 : i32
    %c0_i32_2 = arith.constant 0 : i32
    return %c0_i32, %c0_i32_0, %c0_i32_1 : i32, i32, i32
  }
  func.func @transform_2(%arg0: i32) -> (i32, i32) {
    %c0_i32 = arith.constant 0 : i32
    %c0_i32_0 = arith.constant 0 : i32
    %c0_i32_1 = arith.constant 0 : i32
    return %c0_i32, %c0_i32_0 : i32, i32
  }
  func.func @transform_3(%arg0: i32) -> (i32, i32, i32) {
    %c0_i32 = arith.constant 0 : i32
    %c0_i32_0 = arith.constant 0 : i32
    %c0_i32_1 = arith.constant 0 : i32
    %c0_i32_2 = arith.constant 0 : i32
    return %c0_i32, %c0_i32_0, %c0_i32_1 : i32, i32, i32
  }
  func.func @transform_4(%arg0: i32) -> (i32, i32) {
    %c0_i32 = arith.constant 0 : i32
    %c0_i32_0 = arith.constant 0 : i32
    %c0_i32_1 = arith.constant 0 : i32
    return %c0_i32, %c0_i32_0 : i32, i32
  }
  func.func @transform_5(%arg0: i32) -> (i32, i32, i32) {
    %c0_i32 = arith.constant 0 : i32
    %c0_i32_0 = arith.constant 0 : i32
    %c0_i32_1 = arith.constant 0 : i32
    %c0_i32_2 = arith.constant 0 : i32
    return %c0_i32, %c0_i32_0, %c0_i32_1 : i32, i32, i32
  }
  func.func @transform_6(%arg0: i32) -> (i32, i32) {
    %c0_i32 = arith.constant 0 : i32
    %c0_i32_0 = arith.constant 0 : i32
    %c0_i32_1 = arith.constant 0 : i32
    return %c0_i32, %c0_i32_0 : i32, i32
  }
  func.func @transform_7(%arg0: i32) -> (i32, i32, i32) {
    %c0_i32 = arith.constant 0 : i32
    %c0_i32_0 = arith.constant 0 : i32
    %c0_i32_1 = arith.constant 0 : i32
    return %arg0, %c0_i32, %c0_i32_0 : i32, i32, i32
  }
}

module attributes {stable_mosaic.version = 11 : i64} {
  func.func @_block_kernel(%arg0: i32, %arg1: memref<1x1x4x128xf32, #tpu.memory_space<vmem>>, %arg2: memref<3x128x128xbf16, #tpu.memory_space<vmem>>, %arg3: memref<1x128xf32, #tpu.memory_space<vmem>>, %arg4: memref<3x128x128xbf16, #tpu.memory_space<vmem>>, %arg5: memref<1x128xf32, #tpu.memory_space<vmem>>, %arg6: memref<1x2x128xf32, #tpu.memory_space<vmem>>, %arg7: memref<4x128xf32, #tpu.memory_space<vmem>>) attributes {dimension_semantics = [#tpu.dimension_semantics<parallel>], iteration_bounds = array<i64: 2>, scalar_prefetch = 0 : i64, scratch_operands = 1 : i64, tpu.core_type = #tpu.core_type<tc>, window_params = [{transform_indices = @transform_0, window_bounds = array<i64: 1, 1, 4, 128>}, {pipeline_mode = #tpu.pipeline_mode<synchronous>, transform_indices = @transform_1, window_bounds = array<i64: 3, 128, 128>}, {pipeline_mode = #tpu.pipeline_mode<synchronous>, transform_indices = @transform_2, window_bounds = array<i64: 1, 128>}, {pipeline_mode = #tpu.pipeline_mode<synchronous>, transform_indices = @transform_3, window_bounds = array<i64: 3, 128, 128>}, {pipeline_mode = #tpu.pipeline_mode<synchronous>, transform_indices = @transform_4, window_bounds = array<i64: 1, 128>}, {transform_indices = @transform_5, window_bounds = array<i64: 1, 2, 128>}]} {
    %cst = arith.constant 0.000000e+00 : f32
    %0 = vector.broadcast %cst : f32 to vector<2x128xf32>
    %c0 = arith.constant 0 : index
    %c0_0 = arith.constant 0 : index
    %c0_1 = arith.constant 0 : index
    %c0_2 = arith.constant 0 : index
    %1 = vector.load %arg1[%c0, %c0_0, %c0_1, %c0_2] : memref<1x1x4x128xf32, #tpu.memory_space<vmem>>, vector<1x1x2x128xf32>
    %2 = vector.shape_cast %1 : vector<1x1x2x128xf32> to vector<2x128xf32>
    %3 = arith.truncf %2 : vector<2x128xf32> to vector<2x128xbf16>
    %c0_3 = arith.constant 0 : index
    %c0_4 = arith.constant 0 : index
    %c0_5 = arith.constant 0 : index
    %4 = vector.load %arg2[%c0_3, %c0_4, %c0_5] : memref<3x128x128xbf16, #tpu.memory_space<vmem>>, vector<1x128x128xbf16>
    %5 = vector.shape_cast %4 : vector<1x128x128xbf16> to vector<128x128xbf16>
    %cst_6 = arith.constant dense<0.000000e+00> : vector<2x128xf32>
    %6 = tpu.matmul %3, %5, %cst_6 {dimension_numbers = #tpu.dot_dimension_numbers<[1], [0], [0], [1], [0, 0, 1, 1], [], []>} : vector<2x128xbf16>, vector<128x128xbf16>, vector<2x128xf32> -> vector<2x128xf32>
    %7 = arith.addf %0, %6 : vector<2x128xf32>
    %c0_7 = arith.constant 0 : index
    %c0_8 = arith.constant 0 : index
    %c1 = arith.constant 1 : index
    %c0_9 = arith.constant 0 : index
    %8 = vector.load %arg1[%c0_7, %c0_8, %c1, %c0_9] : memref<1x1x4x128xf32, #tpu.memory_space<vmem>>, vector<1x1x2x128xf32>
    %9 = vector.shape_cast %8 : vector<1x1x2x128xf32> to vector<2x128xf32>
    %10 = arith.truncf %9 : vector<2x128xf32> to vector<2x128xbf16>
    %c1_10 = arith.constant 1 : index
    %c0_11 = arith.constant 0 : index
    %c0_12 = arith.constant 0 : index
    %11 = vector.load %arg2[%c1_10, %c0_11, %c0_12] : memref<3x128x128xbf16, #tpu.memory_space<vmem>>, vector<1x128x128xbf16>
    %12 = vector.shape_cast %11 : vector<1x128x128xbf16> to vector<128x128xbf16>
    %cst_13 = arith.constant dense<0.000000e+00> : vector<2x128xf32>
    %13 = tpu.matmul %10, %12, %cst_13 {dimension_numbers = #tpu.dot_dimension_numbers<[1], [0], [0], [1], [0, 0, 1, 1], [], []>} : vector<2x128xbf16>, vector<128x128xbf16>, vector<2x128xf32> -> vector<2x128xf32>
    %14 = arith.addf %7, %13 : vector<2x128xf32>
    %c0_14 = arith.constant 0 : index
    %c0_15 = arith.constant 0 : index
    %c2 = arith.constant 2 : index
    %c0_16 = arith.constant 0 : index
    %15 = vector.load %arg1[%c0_14, %c0_15, %c2, %c0_16] : memref<1x1x4x128xf32, #tpu.memory_space<vmem>>, vector<1x1x2x128xf32>
    %16 = vector.shape_cast %15 : vector<1x1x2x128xf32> to vector<2x128xf32>
    %17 = arith.truncf %16 : vector<2x128xf32> to vector<2x128xbf16>
    %c2_17 = arith.constant 2 : index
    %c0_18 = arith.constant 0 : index
    %c0_19 = arith.constant 0 : index
    %18 = vector.load %arg2[%c2_17, %c0_18, %c0_19] : memref<3x128x128xbf16, #tpu.memory_space<vmem>>, vector<1x128x128xbf16>
    %19 = vector.shape_cast %18 : vector<1x128x128xbf16> to vector<128x128xbf16>
    %cst_20 = arith.constant dense<0.000000e+00> : vector<2x128xf32>
    %20 = tpu.matmul %17, %19, %cst_20 {dimension_numbers = #tpu.dot_dimension_numbers<[1], [0], [0], [1], [0, 0, 1, 1], [], []>} : vector<2x128xbf16>, vector<128x128xbf16>, vector<2x128xf32> -> vector<2x128xf32>
    %21 = arith.addf %14, %20 : vector<2x128xf32>
    %c0_21 = arith.constant 0 : index
    %c0_22 = arith.constant 0 : index
    %22 = vector.load %arg3[%c0_21, %c0_22] : memref<1x128xf32, #tpu.memory_space<vmem>>, vector<1x128xf32>
    %23 = vector.broadcast %22 : vector<1x128xf32> to vector<2x128xf32>
    %24 = arith.addf %21, %23 : vector<2x128xf32>
    %cst_23 = arith.constant 0.000000e+00 : f32
    %25 = vector.broadcast %cst_23 : f32 to vector<2x128xf32>
    %26 = arith.maximumf %24, %25 : vector<2x128xf32>
    %c0_24 = arith.constant 0 : index
    %c0_25 = arith.constant 0 : index
    %c1_26 = arith.constant 1 : index
    %c0_27 = arith.constant 0 : index
    %27 = vector.load %arg1[%c0_24, %c0_25, %c1_26, %c0_27] : memref<1x1x4x128xf32, #tpu.memory_space<vmem>>, vector<1x1x2x128xf32>
    %28 = vector.shape_cast %27 : vector<1x1x2x128xf32> to vector<2x128xf32>
    %cst_28 = arith.constant 0.000000e+00 : f32
    %29 = vector.broadcast %cst_28 : f32 to vector<4x128xf32>
    %c0_29 = arith.constant 0 : index
    %c0_30 = arith.constant 0 : index
    %30 = vector.load %arg7[%c0_29, %c0_30] : memref<4x128xf32, #tpu.memory_space<vmem>>, vector<4x128xf32>
    tpu.vector_store %arg7[%c0_29, %c0_30], %29 {strides = array<i32>} : memref<4x128xf32, #tpu.memory_space<vmem>>, vector<4x128xf32>,
    %c1_31 = arith.constant 1 : index
    %c0_32 = arith.constant 0 : index
    %31 = vector.load %arg7[%c1_31, %c0_32] : memref<4x128xf32, #tpu.memory_space<vmem>>, vector<2x128xf32>
    tpu.vector_store %arg7[%c1_31, %c0_32], %26 {strides = array<i32>} : memref<4x128xf32, #tpu.memory_space<vmem>>, vector<2x128xf32>,
    %cst_33 = arith.constant 0.000000e+00 : f32
    %32 = vector.broadcast %cst_33 : f32 to vector<2x128xf32>
    %c0_34 = arith.constant 0 : index
    %c0_35 = arith.constant 0 : index
    %33 = vector.load %arg7[%c0_34, %c0_35] : memref<4x128xf32, #tpu.memory_space<vmem>>, vector<2x128xf32>
    %34 = arith.truncf %33 : vector<2x128xf32> to vector<2x128xbf16>
    %c0_36 = arith.constant 0 : index
    %c0_37 = arith.constant 0 : index
    %c0_38 = arith.constant 0 : index
    %35 = vector.load %arg4[%c0_36, %c0_37, %c0_38] : memref<3x128x128xbf16, #tpu.memory_space<vmem>>, vector<1x128x128xbf16>
    %36 = vector.shape_cast %35 : vector<1x128x128xbf16> to vector<128x128xbf16>
    %cst_39 = arith.constant dense<0.000000e+00> : vector<2x128xf32>
    %37 = tpu.matmul %34, %36, %cst_39 {dimension_numbers = #tpu.dot_dimension_numbers<[1], [0], [0], [1], [0, 0, 1, 1], [], []>} : vector<2x128xbf16>, vector<128x128xbf16>, vector<2x128xf32> -> vector<2x128xf32>
    %38 = arith.addf %32, %37 : vector<2x128xf32>
    %c1_40 = arith.constant 1 : index
    %c0_41 = arith.constant 0 : index
    %39 = vector.load %arg7[%c1_40, %c0_41] : memref<4x128xf32, #tpu.memory_space<vmem>>, vector<2x128xf32>
    %40 = arith.truncf %39 : vector<2x128xf32> to vector<2x128xbf16>
    %c1_42 = arith.constant 1 : index
    %c0_43 = arith.constant 0 : index
    %c0_44 = arith.constant 0 : index
    %41 = vector.load %arg4[%c1_42, %c0_43, %c0_44] : memref<3x128x128xbf16, #tpu.memory_space<vmem>>, vector<1x128x128xbf16>
    %42 = vector.shape_cast %41 : vector<1x128x128xbf16> to vector<128x128xbf16>
    %cst_45 = arith.constant dense<0.000000e+00> : vector<2x128xf32>
    %43 = tpu.matmul %40, %42, %cst_45 {dimension_numbers = #tpu.dot_dimension_numbers<[1], [0], [0], [1], [0, 0, 1, 1], [], []>} : vector<2x128xbf16>, vector<128x128xbf16>, vector<2x128xf32> -> vector<2x128xf32>
    %44 = arith.addf %38, %43 : vector<2x128xf32>
    %c2_46 = arith.constant 2 : index
    %c0_47 = arith.constant 0 : index
    %45 = vector.load %arg7[%c2_46, %c0_47] : memref<4x128xf32, #tpu.memory_space<vmem>>, vector<2x128xf32>
    %46 = arith.truncf %45 : vector<2x128xf32> to vector<2x128xbf16>
    %c2_48 = arith.constant 2 : index
    %c0_49 = arith.constant 0 : index
    %c0_50 = arith.constant 0 : index
    %47 = vector.load %arg4[%c2_48, %c0_49, %c0_50] : memref<3x128x128xbf16, #tpu.memory_space<vmem>>, vector<1x128x128xbf16>
    %48 = vector.shape_cast %47 : vector<1x128x128xbf16> to vector<128x128xbf16>
    %cst_51 = arith.constant dense<0.000000e+00> : vector<2x128xf32>
    %49 = tpu.matmul %46, %48, %cst_51 {dimension_numbers = #tpu.dot_dimension_numbers<[1], [0], [0], [1], [0, 0, 1, 1], [], []>} : vector<2x128xbf16>, vector<128x128xbf16>, vector<2x128xf32> -> vector<2x128xf32>
    %50 = arith.addf %44, %49 : vector<2x128xf32>
    %c0_52 = arith.constant 0 : index
    %c0_53 = arith.constant 0 : index
    %51 = vector.load %arg5[%c0_52, %c0_53] : memref<1x128xf32, #tpu.memory_space<vmem>>, vector<1x128xf32>
    %52 = vector.broadcast %51 : vector<1x128xf32> to vector<2x128xf32>
    %53 = arith.addf %50, %52 : vector<2x128xf32>
    %54 = arith.addf %53, %28 : vector<2x128xf32>
    %cst_54 = arith.constant 0.000000e+00 : f32
    %55 = vector.broadcast %cst_54 : f32 to vector<2x128xf32>
    %56 = arith.maximumf %54, %55 : vector<2x128xf32>
    %c0_55 = arith.constant 0 : index
    %c0_56 = arith.constant 0 : index
    %c0_57 = arith.constant 0 : index
    %57 = vector.load %arg6[%c0_55, %c0_56, %c0_57] : memref<1x2x128xf32, #tpu.memory_space<vmem>>, vector<1x2x128xf32>
    %58 = vector.shape_cast %57 : vector<1x2x128xf32> to vector<2x128xf32>
    %59 = vector.shape_cast %56 : vector<2x128xf32> to vector<1x2x128xf32>
    tpu.vector_store %arg6[%c0_55, %c0_56, %c0_57], %59 {strides = array<i32>} : memref<1x2x128xf32, #tpu.memory_space<vmem>>, vector<1x2x128xf32>,
    return
  }
  func.func @transform_0(%arg0: i32) -> (i32, i32, i32, i32) {
    %c0_i32 = arith.constant 0 : i32
    %c0_i32_0 = arith.constant 0 : i32
    %c0_i32_1 = arith.constant 0 : i32
    %c0_i32_2 = arith.constant 0 : i32
    return %arg0, %c0_i32, %c0_i32_0, %c0_i32_1 : i32, i32, i32, i32
  }
  func.func @transform_1(%arg0: i32) -> (i32, i32, i32) {
    %c0_i32 = arith.constant 0 : i32
    %c0_i32_0 = arith.constant 0 : i32
    %c0_i32_1 = arith.constant 0 : i32
    %c0_i32_2 = arith.constant 0 : i32
    return %c0_i32, %c0_i32_0, %c0_i32_1 : i32, i32, i32
  }
  func.func @transform_2(%arg0: i32) -> (i32, i32) {
    %c0_i32 = arith.constant 0 : i32
    %c0_i32_0 = arith.constant 0 : i32
    %c0_i32_1 = arith.constant 0 : i32
    return %c0_i32, %c0_i32_0 : i32, i32
  }
  func.func @transform_3(%arg0: i32) -> (i32, i32, i32) {
    %c0_i32 = arith.constant 0 : i32
    %c0_i32_0 = arith.constant 0 : i32
    %c0_i32_1 = arith.constant 0 : i32
    %c0_i32_2 = arith.constant 0 : i32
    return %c0_i32, %c0_i32_0, %c0_i32_1 : i32, i32, i32
  }
  func.func @transform_4(%arg0: i32) -> (i32, i32) {
    %c0_i32 = arith.constant 0 : i32
    %c0_i32_0 = arith.constant 0 : i32
    %c0_i32_1 = arith.constant 0 : i32
    return %c0_i32, %c0_i32_0 : i32, i32
  }
  func.func @transform_5(%arg0: i32) -> (i32, i32, i32) {
    %c0_i32 = arith.constant 0 : i32
    %c0_i32_0 = arith.constant 0 : i32
    %c0_i32_1 = arith.constant 0 : i32
    return %arg0, %c0_i32, %c0_i32_0 : i32, i32, i32
  }
}

</mosaic_0001>

<llo_original>
// kernel: _lambda_.11
$region0: #{_lambda_.11}
  #allocation0 [shape = 'u32[]', space=smem, size = 0x4, offset = 0x4, fixed_abs, tag = 'smem constant byte address 0x4 - core index']
  #allocation1 [shape = 'u32[144,128]{1,0:T(1,128)}', space=vmem, size = 0x12000, scoped, tag = 'internal scratch']
  #allocation2 [shape = 'f32[6,128]{1,0:T(8,128)}', space=vmem, size = 0x1000, scoped, tag = 'scratch operand']
  %s0 = inlined_call_operand.vmem [shape: f32[2,1,6,128], index: 0, kind: input, shape index: {}]
  %s1 = inlined_call_operand.vmem [shape: bf16[3,128,128], index: 1, kind: input, shape index: {}]
  %s2 = inlined_call_operand.vmem [shape: f32[1,128], index: 2, kind: input, shape index: {}]
  %s3 = inlined_call_operand.vmem [shape: bf16[3,128,128], index: 3, kind: input, shape index: {}]
  %s4 = inlined_call_operand.vmem [shape: f32[1,128], index: 4, kind: input, shape index: {}]
  %s5 = inlined_call_operand.vmem [shape: f32[2,4,128], index: 5, kind: output, shape index: {}]
  %s6 = sld [smem:[#allocation0]]
  $region53: #{_lambda_.11} parent=0
    _
  %s8 = ssub.s32 1, %s6
  %s9 = scalar_select 0, %s8, %s6
  loop: start=0, step=1, limit=4
  $region2: #{_lambda_.11} parent=0 // loop_pre_header
    _
  $region3: #{_lambda_.11} parent=0 // loop_header
    %s11 = sphi 0, %s15
    %p12 = scmp.ge.s32.totalorder %s11, 4
    %s21 = sphi 0, %s23
    %s24 = sphi 0, %s21
    %s25 = sphi 0, %s24
    %s41 = sphi 0, %s25
    %s45 = sphi 0, %s45
    %s47 = sphi 0, %s45
    %s48 = sphi 0, %s47
    %s62 = sphi 0, %s48
    %s66 = sphi 0, %s66
    %s68 = sphi 0, %s66
    %s69 = sphi 0, %s68
    %s83 = sphi 0, %s69
    %s87 = sphi 0, %s87
    %s89 = sphi 0, %s87
    %s90 = sphi 0, %s89
    %s104 = sphi 0, %s90
    %s108 = sphi 0, %s108
    %s110 = sphi 0, %s108
    %s111 = sphi 0, %s110
    %s125 = sphi 0, %s111
    %s131 = sphi 0, %s133
    %s134 = sphi 0, %s131
    %s135 = sphi 0, %s134
    %s151 = sphi 0, %s135
  $region4: #{_lambda_.11} parent=0 // loop_header_branch
    %14 = sbr.rel (%p12) target = $region8
  $region5: #{_lambda_.11} parent=0 // loop_body
    %s16 = ssub.s32 %s11, 1
    %s17 = ssub.s32 %s11, 2
    %s18 = sadd.s32 %s11, 1
    %s19 = ssub.s32 %s11, %s18
    %p20 = scmp.eq.s32.totalorder %s19, 0
    %s22 = sadd.s32 %s21, 1
    %s23 = scalar_select %p20, %s21, %s22
    %p26 = pneg %p20
    %p27 = scmp.eq.s32.totalorder %s11, 1
    %p28 = por %p26, %p27
    %p29 = scmp.ne.s32.totalorder %s21, %s24
    %p30 = scmp.eq.s32.totalorder %s11, 0
    %p31 = por %p29, %p30
    %p32 = scmp.ne.s32.totalorder %s21, %s24
    %p33 = scmp.eq.s32.totalorder %s16, 1
    %p34 = por %p32, %p33
    %p35 = scmp.ne.s32.totalorder %s24, %s25
    %p36 = scmp.eq.s32.totalorder %s16, 0
    %p37 = por %p35, %p36
    %p38 = scmp.ne.s32.totalorder %s24, %s25
    %p39 = scmp.eq.s32.totalorder %s17, 1
    %p40 = por %p38, %p39
    %p42 = scmp.ne.s32.totalorder %s25, %s41
    %p43 = scmp.eq.s32.totalorder %s17, 0
    %p44 = por %p42, %p43
    %s46 = sadd.s32 %s45, 1
    %p49 = scmp.eq.s32.totalorder %s11, 1
    %p50 = scmp.ne.s32.totalorder %s45, %s47
    %p51 = scmp.eq.s32.totalorder %s11, 0
    %p52 = por %p50, %p51
    %p53 = scmp.ne.s32.totalorder %s45, %s47
    %p54 = scmp.eq.s32.totalorder %s16, 1
    %p55 = por %p53, %p54
    %p56 = scmp.ne.s32.totalorder %s47, %s48
    %p57 = scmp.eq.s32.totalorder %s16, 0
    %p58 = por %p56, %p57
    %p59 = scmp.ne.s32.totalorder %s47, %s48
    %p60 = scmp.eq.s32.totalorder %s17, 1
    %p61 = por %p59, %p60
    %p63 = scmp.ne.s32.totalorder %s48, %s62
    %p64 = scmp.eq.s32.totalorder %s17, 0
    %p65 = por %p63, %p64
    %s67 = sadd.s32 %s66, 1
    %p70 = scmp.eq.s32.totalorder %s11, 1
    %p71 = scmp.ne.s32.totalorder %s66, %s68
    %p72 = scmp.eq.s32.totalorder %s11, 0
    %p73 = por %p71, %p72
    %p74 = scmp.ne.s32.totalorder %s66, %s68
    %p75 = scmp.eq.s32.totalorder %s16, 1
    %p76 = por %p74, %p75
    %p77 = scmp.ne.s32.totalorder %s68, %s69
    %p78 = scmp.eq.s32.totalorder %s16, 0
    %p79 = por %p77, %p78
    %p80 = scmp.ne.s32.totalorder %s68, %s69
    %p81 = scmp.eq.s32.totalorder %s17, 1
    %p82 = por %p80, %p81
    %p84 = scmp.ne.s32.totalorder %s69, %s83
    %p85 = scmp.eq.s32.totalorder %s17, 0
    %p86 = por %p84, %p85
    %s88 = sadd.s32 %s87, 1
    %p91 = scmp.eq.s32.totalorder %s11, 1
    %p92 = scmp.ne.s32.totalorder %s87, %s89
    %p93 = scmp.eq.s32.totalorder %s11, 0
    %p94 = por %p92, %p93
    %p95 = scmp.ne.s32.totalorder %s87, %s89
    %p96 = scmp.eq.s32.totalorder %s16, 1
    %p97 = por %p95, %p96
    %p98 = scmp.ne.s32.totalorder %s89, %s90
    %p99 = scmp.eq.s32.totalorder %s16, 0
    %p100 = por %p98, %p99
    %p101 = scmp.ne.s32.totalorder %s89, %s90
    %p102 = scmp.eq.s32.totalorder %s17, 1
    %p103 = por %p101, %p102
    %p105 = scmp.ne.s32.totalorder %s90, %s104
    %p106 = scmp.eq.s32.totalorder %s17, 0
    %p107 = por %p105, %p106
    %s109 = sadd.s32 %s108, 1
    %p112 = scmp.eq.s32.totalorder %s11, 1
    %p113 = scmp.ne.s32.totalorder %s108, %s110
    %p114 = scmp.eq.s32.totalorder %s11, 0
    %p115 = por %p113, %p114
    %p116 = scmp.ne.s32.totalorder %s108, %s110
    %p117 = scmp.eq.s32.totalorder %s16, 1
    %p118 = por %p116, %p117
    %p119 = scmp.ne.s32.totalorder %s110, %s111
    %p120 = scmp.eq.s32.totalorder %s16, 0
    %p121 = por %p119, %p120
    %p122 = scmp.ne.s32.totalorder %s110, %s111
    %p123 = scmp.eq.s32.totalorder %s17, 1
    %p124 = por %p122, %p123
    %p126 = scmp.ne.s32.totalorder %s111, %s125
    %p127 = scmp.eq.s32.totalorder %s17, 0
    %p128 = por %p126, %p127
    %s129 = ssub.s32 %s11, %s18
    %p130 = scmp.eq.s32.totalorder %s129, 0
    %s132 = sadd.s32 %s131, 1
    %s133 = scalar_select %p130, %s131, %s132
    %p136 = pneg %p130
    %p137 = scmp.eq.s32.totalorder %s11, 1
    %p138 = por %p136, %p137
    %p139 = scmp.ne.s32.totalorder %s131, %s134
    %p140 = scmp.eq.s32.totalorder %s11, 0
    %p141 = por %p139, %p140
    %p142 = scmp.ne.s32.totalorder %s131, %s134
    %p143 = scmp.eq.s32.totalorder %s16, 1
    %p144 = por %p142, %p143
    %p145 = scmp.ne.s32.totalorder %s134, %s135
    %p146 = scmp.eq.s32.totalorder %s16, 0
    %p147 = por %p145, %p146
    %p148 = scmp.ne.s32.totalorder %s134, %s135
    %p149 = scmp.eq.s32.totalorder %s17, 1
    %p150 = por %p148, %p149
    %p152 = scmp.ne.s32.totalorder %s135, %s151
    %p153 = scmp.eq.s32.totalorder %s17, 0
    %p154 = por %p152, %p153
    %p155 = scmp.le.s32.totalorder 1, %s11
    %p156 = scmp.lt.s32.totalorder %s11, 3
    %p157 = pnand %p155, %p156
    %p158 = pneg %p157
    // Predicated region
    $region9: #{_lambda_.11} parent=5 // pred_check
      _
    $region10: #{_lambda_.11} parent=5 // pred_check_branch
      %160 = sbr.rel (%p157) target = $region12
    $region11: #{_lambda_.11} parent=5 // pred_region
      %s161 = ssub.s32 %s11, 1
      // Predicated region
      $region13: #{_lambda_.11} parent=11 // pred_check
        %p162 = pneg %p58
      $region14: #{_lambda_.11} parent=11 // pred_check_branch
        %164 = sbr.rel (%p162) target = $region16
      $region15: #{_lambda_.11} parent=11 // pred_region
        _
      $region16: #{_lambda_.11} parent=11 // pred_fallthru
        _
      // Predicated region
      $region17: #{_lambda_.11} parent=11 // pred_check
        %p165 = pneg %p79
      $region18: #{_lambda_.11} parent=11 // pred_check_branch
        %167 = sbr.rel (%p165) target = $region20
      $region19: #{_lambda_.11} parent=11 // pred_region
        _
      $region20: #{_lambda_.11} parent=11 // pred_fallthru
        _
      // Predicated region
      $region21: #{_lambda_.11} parent=11 // pred_check
        %p168 = pneg %p100
      $region22: #{_lambda_.11} parent=11 // pred_check_branch
        %170 = sbr.rel (%p168) target = $region24
      $region23: #{_lambda_.11} parent=11 // pred_region
        _
      $region24: #{_lambda_.11} parent=11 // pred_fallthru
        _
      // Predicated region
      $region25: #{_lambda_.11} parent=11 // pred_check
        %p171 = pneg %p121
      $region26: #{_lambda_.11} parent=11 // pred_check_branch
        %173 = sbr.rel (%p171) target = $region28
      $region27: #{_lambda_.11} parent=11 // pred_region
        _
      $region28: #{_lambda_.11} parent=11 // pred_fallthru
        _
    $region12: #{_lambda_.11} parent=5 // pred_fallthru
      _
    %p174 = scmp.lt.s32.totalorder %s11, 2
    // Predicated region
    $region29: #{_lambda_.11} parent=5 // pred_check
      %p175 = pneg %p174
    $region30: #{_lambda_.11} parent=5 // pred_check_branch
      %177 = sbr.rel (%p175) target = $region32
    $region31: #{_lambda_.11} parent=5 // pred_region
      // Predicated region
      $region33: #{_lambda_.11} parent=31 // pred_check
        %p178 = pneg %p31
      $region34: #{_lambda_.11} parent=31 // pred_check_branch
        %180 = sbr.rel (%p178) target = $region36
      $region35: #{_lambda_.11} parent=31 // pred_region
        %p181 = scmp.lt.s32.totalorder %s11, 1
        %s182 = scalar_select %p181, %s11, 1
        %s183 = smul.addr %s182, 8
        %s184 = scalar_lea.vmem %s0, %s183
      $region36: #{_lambda_.11} parent=31 // pred_fallthru
        _
    $region32: #{_lambda_.11} parent=5 // pred_fallthru
      _
    %p185 = scmp.le.s32.totalorder 1, %s11
    %p186 = scmp.lt.s32.totalorder %s11, 3
    %p187 = pnand %p185, %p186
    %p188 = pneg %p187
    // Predicated region
    $region37: #{_lambda_.11} parent=5 // pred_check
      _
    $region38: #{_lambda_.11} parent=5 // pred_check_branch
      %190 = sbr.rel (%p187) target = $region40
    $region39: #{_lambda_.11} parent=5 // pred_region
      %s191 = ssub.s32 %s11, 1
      %p192 = scmp.lt.s32.totalorder %s16, 1
      %s193 = scalar_select %p192, %s16, 1
      %s194 = smul.addr %s193, 8
      %s195 = scalar_lea.vmem %s0, %s194
      %p196 = pneg %p37
      %p197 = pneg %p34
      %p198 = pneg %p58
      %p199 = pneg %p55
      %p200 = pneg %p79
      %p201 = pneg %p76
      %p202 = pneg %p100
      %p203 = pneg %p97
      %p204 = pneg %p121
      %p205 = pneg %p118
      %p206 = pneg %p147
      %p207 = pneg %p144
      %p208 = scmp.lt.s32.totalorder %s16, 1
      %s209 = scalar_select %p208, %s16, 1
      %s210 = smul.addr %s209, 4
      %s211 = scalar_lea.vmem %s5, %s210
      %p212 = scmp.lt.s32.totalorder %s16, 1
      %s213 = scalar_select %p212, %s16, 1
      %s214 = smul.addr %s213, 8
      %s215 = scalar_lea.vmem %s0, %s214
      %p216 = scmp.lt.s32.totalorder %s16, 1
      %s217 = scalar_select %p216, %s16, 1
      %s218 = smul.addr %s217, 4
      %s219 = scalar_lea.vmem %s5, %s218
      %v221 = vld [vmem:[%s215] sm:$0xf]
      %v222 = vpack.c.bf16 %v221, %v221
      %v223 = vld [vmem:[%s1] sm:$0xf]
      %v224 = vld [vmem:[%s1 + $0x4] sm:$0xf]
      %v225 = vld [vmem:[%s1 + $0x8] sm:$0xf]
      %v226 = vld [vmem:[%s1 + $0xc] sm:$0xf]
      %v227 = vld [vmem:[%s1 + $0x10] sm:$0xf]
      %v228 = vld [vmem:[%s1 + $0x14] sm:$0xf]
      %v229 = vld [vmem:[%s1 + $0x18] sm:$0xf]
      %v230 = vld [vmem:[%s1 + $0x1c] sm:$0xf]
      %v231 = vld [vmem:[%s1 + $0x20] sm:$0xf]
      %v232 = vld [vmem:[%s1 + $0x24] sm:$0xf]
      %v233 = vld [vmem:[%s1 + $0x28] sm:$0xf]
      %v234 = vld [vmem:[%s1 + $0x2c] sm:$0xf]
      %v235 = vld [vmem:[%s1 + $0x30] sm:$0xf]
      %v236 = vld [vmem:[%s1 + $0x34] sm:$0xf]
      %v237 = vld [vmem:[%s1 + $0x38] sm:$0xf]
      %v238 = vld [vmem:[%s1 + $0x3c] sm:$0xf]
      %v239 = vld [vmem:[%s215 + $0x1] sm:$0xf]
      %v240 = vpack.c.bf16 %v239, %v239
      %s241 = scalar_lea.vmem %s1, 64
      %v242 = vld [vmem:[%s241] sm:$0xf]
      %v243 = vld [vmem:[%s241 + $0x4] sm:$0xf]
      %v244 = vld [vmem:[%s241 + $0x8] sm:$0xf]
      %v245 = vld [vmem:[%s241 + $0xc] sm:$0xf]
      %v246 = vld [vmem:[%s241 + $0x10] sm:$0xf]
      %v247 = vld [vmem:[%s241 + $0x14] sm:$0xf]
      %v248 = vld [vmem:[%s241 + $0x18] sm:$0xf]
      %v249 = vld [vmem:[%s241 + $0x1c] sm:$0xf]
      %v250 = vld [vmem:[%s241 + $0x20] sm:$0xf]
      %v251 = vld [vmem:[%s241 + $0x24] sm:$0xf]
      %v252 = vld [vmem:[%s241 + $0x28] sm:$0xf]
      %v253 = vld [vmem:[%s241 + $0x2c] sm:$0xf]
      %v254 = vld [vmem:[%s241 + $0x30] sm:$0xf]
      %v255 = vld [vmem:[%s241 + $0x34] sm:$0xf]
      %v256 = vld [vmem:[%s241 + $0x38] sm:$0xf]
      %v257 = vld [vmem:[%s241 + $0x3c] sm:$0xf]
      %v274 = vunpack.c.l.b16 %v242
      %v275 = vunpack.c.l.b16 %v243
      %v276 = vunpack.c.l.b16 %v244
      %v277 = vunpack.c.l.b16 %v245
      %v278 = vunpack.c.l.b16 %v246
      %v279 = vunpack.c.l.b16 %v247
      %v280 = vunpack.c.l.b16 %v248
      %v281 = vunpack.c.l.b16 %v249
      %v282 = vunpack.c.l.b16 %v250
      %v283 = vunpack.c.l.b16 %v251
      %v284 = vunpack.c.l.b16 %v252
      %v285 = vunpack.c.l.b16 %v253
      %v286 = vunpack.c.l.b16 %v254
      %v287 = vunpack.c.l.b16 %v255
      %v288 = vunpack.c.l.b16 %v256
      %v289 = vunpack.c.l.b16 %v257
      %v290 = vpack.c.b16 %v275, %v274
      %v291 = vpack.c.b16 %v277, %v276
      %v292 = vpack.c.b16 %v279, %v278
      %v293 = vpack.c.b16 %v281, %v280
      %v294 = vpack.c.b16 %v283, %v282
      %v295 = vpack.c.b16 %v285, %v284
      %v296 = vpack.c.b16 %v287, %v286
      %v297 = vpack.c.b16 %v289, %v288
      %306 = vmatprep.subr.bf16.mxu0 0
      %307 = vmatpush1.bf16.msra.mxu0 %v290
      %308 = vmatprep.subr.bf16.mxu0 0
      %309 = vmatpush1.bf16.msra.mxu0 %v291
      %310 = vmatprep.subr.bf16.mxu0 0
      %311 = vmatpush1.bf16.msra.mxu0 %v292
      %312 = vmatprep.subr.bf16.mxu0 0
      %313 = vmatpush1.bf16.msra.mxu0 %v293
      %314 = vmatprep.subr.bf16.mxu0 0
      %315 = vmatpush1.bf16.msra.mxu0 %v294
      %316 = vmatprep.subr.bf16.mxu0 0
      %317 = vmatpush1.bf16.msra.mxu0 %v295
      %318 = vmatprep.subr.bf16.mxu0 0
      %319 = vmatpush1.bf16.msra.mxu0 %v296
      %320 = vmatprep.subr.bf16.mxu0 0
      %321 = vmatpush1.bf16.msra.mxu0 %v297
      %322 = vmatprep.subr.bf16.mxu0 0
      %323 = vmatpush1.bf16.msra.mxu0 0
      %324 = vmatprep.subr.bf16.mxu0 0
      %325 = vmatpush1.bf16.msra.mxu0 0
      %326 = vmatprep.subr.bf16.mxu0 0
      %327 = vmatpush1.bf16.msra.mxu0 0
      %328 = vmatprep.subr.bf16.mxu0 0
      %329 = vmatpush1.bf16.msra.mxu0 0
      %330 = vmatprep.subr.bf16.mxu0 0
      %331 = vmatpush1.bf16.msra.mxu0 0
      %332 = vmatprep.subr.bf16.mxu0 0
      %333 = vmatpush1.bf16.msra.mxu0 0
      %334 = vmatprep.subr.bf16.mxu0 0
      %335 = vmatpush1.bf16.msra.mxu0 0
      %336 = vmatprep.subr.bf16.mxu0 0
      %337 = vmatpush1.bf16.msra.mxu0 0
      %338 = vmatprep.mubr.bf16.mxu0 0
      %339 = vmatmul.mubr.bf16.gmra.mrb[0].mxu0 %v240
      %v340 = vpop.f32.mrb[0].mxu0
      %v341 = vadd.f32 0.0, %v340
      %v342 = vpop.f32.mrb[0].mxu0
      %v343 = vpop.f32.mrb[0].mxu0
      %v344 = vpop.f32.mrb[0].mxu0
      %345 = vdwg.mxu0
      %v362 = vunpack.c.l.b16 %v223
      %v363 = vunpack.c.l.b16 %v224
      %v364 = vunpack.c.l.b16 %v225
      %v365 = vunpack.c.l.b16 %v226
      %v366 = vunpack.c.l.b16 %v227
      %v367 = vunpack.c.l.b16 %v228
      %v368 = vunpack.c.l.b16 %v229
      %v369 = vunpack.c.l.b16 %v230
      %v370 = vunpack.c.l.b16 %v231
      %v371 = vunpack.c.l.b16 %v232
      %v372 = vunpack.c.l.b16 %v233
      %v373 = vunpack.c.l.b16 %v234
      %v374 = vunpack.c.l.b16 %v235
      %v375 = vunpack.c.l.b16 %v236
      %v376 = vunpack.c.l.b16 %v237
      %v377 = vunpack.c.l.b16 %v238
      %v378 = vpack.c.b16 %v363, %v362
      %v379 = vpack.c.b16 %v365, %v364
      %v380 = vpack.c.b16 %v367, %v366
      %v381 = vpack.c.b16 %v369, %v368
      %v382 = vpack.c.b16 %v371, %v370
      %v383 = vpack.c.b16 %v373, %v372
      %v384 = vpack.c.b16 %v375, %v374
      %v385 = vpack.c.b16 %v377, %v376
      %394 = vmatprep.subr.bf16.mxu0 0
      %395 = vmatpush1.bf16.msra.mxu0 %v378
      %396 = vmatprep.subr.bf16.mxu0 0
      %397 = vmatpush1.bf16.msra.mxu0 %v379
      %398 = vmatprep.subr.bf16.mxu0 0
      %399 = vmatpush1.bf16.msra.mxu0 %v380
      %400 = vmatprep.subr.bf16.mxu0 0
      %401 = vmatpush1.bf16.msra.mxu0 %v381
      %402 = vmatprep.subr.bf16.mxu0 0
      %403 = vmatpush1.bf16.msra.mxu0 %v382
      %404 = vmatprep.subr.bf16.mxu0 0
      %405 = vmatpush1.bf16.msra.mxu0 %v383
      %406 = vmatprep.subr.bf16.mxu0 0
      %407 = vmatpush1.bf16.msra.mxu0 %v384
      %408 = vmatprep.subr.bf16.mxu0 0
      %409 = vmatpush1.bf16.msra.mxu0 %v385
      %410 = vmatprep.subr.bf16.mxu0 0
      %411 = vmatpush1.bf16.msra.mxu0 0
      %412 = vmatprep.subr.bf16.mxu0 0
      %413 = vmatpush1.bf16.msra.mxu0 0
      %414 = vmatprep.subr.bf16.mxu0 0
      %415 = vmatpush1.bf16.msra.mxu0 0
      %416 = vmatprep.subr.bf16.mxu0 0
      %417 = vmatpush1.bf16.msra.mxu0 0
      %418 = vmatprep.subr.bf16.mxu0 0
      %419 = vmatpush1.bf16.msra.mxu0 0
      %420 = vmatprep.subr.bf16.mxu0 0
      %421 = vmatpush1.bf16.msra.mxu0 0
      %422 = vmatprep.subr.bf16.mxu0 0
      %423 = vmatpush1.bf16.msra.mxu0 0
      %424 = vmatprep.subr.bf16.mxu0 0
      %425 = vmatpush1.bf16.msra.mxu0 0
      %426 = vmatprep.mubr.bf16.mxu0 0
      %427 = vmatmul.mubr.bf16.gmra.mrb[0].mxu0 %v222
      %v428 = vpop.f32.mrb[0].mxu0
      %v429 = vadd.f32 %v341, %v428
      %v430 = vpop.f32.mrb[0].mxu0
      %v431 = vpop.f32.mrb[0].mxu0
      %v432 = vpop.f32.mrb[0].mxu0
      %433 = vdwg.mxu0
      %v434 = vld [vmem:[%s215 + $0x2] sm:$0xf]
      %v435 = vpack.c.bf16 %v434, %v434
      %s436 = scalar_lea.vmem %s1, 128
      %v437 = vld [vmem:[%s436] sm:$0xf]
      %v438 = vld [vmem:[%s436 + $0x4] sm:$0xf]
      %v439 = vld [vmem:[%s436 + $0x8] sm:$0xf]
      %v440 = vld [vmem:[%s436 + $0xc] sm:$0xf]
      %v441 = vld [vmem:[%s436 + $0x10] sm:$0xf]
      %v442 = vld [vmem:[%s436 + $0x14] sm:$0xf]
      %v443 = vld [vmem:[%s436 + $0x18] sm:$0xf]
      %v444 = vld [vmem:[%s436 + $0x1c] sm:$0xf]
      %v445 = vld [vmem:[%s436 + $0x20] sm:$0xf]
      %v446 = vld [vmem:[%s436 + $0x24] sm:$0xf]
      %v447 = vld [vmem:[%s436 + $0x28] sm:$0xf]
      %v448 = vld [vmem:[%s436 + $0x2c] sm:$0xf]
      %v449 = vld [vmem:[%s436 + $0x30] sm:$0xf]
      %v450 = vld [vmem:[%s436 + $0x34] sm:$0xf]
      %v451 = vld [vmem:[%s436 + $0x38] sm:$0xf]
      %v452 = vld [vmem:[%s436 + $0x3c] sm:$0xf]
      %v469 = vunpack.c.l.b16 %v437
      %v470 = vunpack.c.l.b16 %v438
      %v471 = vunpack.c.l.b16 %v439
      %v472 = vunpack.c.l.b16 %v440
      %v473 = vunpack.c.l.b16 %v441
      %v474 = vunpack.c.l.b16 %v442
      %v475 = vunpack.c.l.b16 %v443
      %v476 = vunpack.c.l.b16 %v444
      %v477 = vunpack.c.l.b16 %v445
      %v478 = vunpack.c.l.b16 %v446
      %v479 = vunpack.c.l.b16 %v447
      %v480 = vunpack.c.l.b16 %v448
      %v481 = vunpack.c.l.b16 %v449
      %v482 = vunpack.c.l.b16 %v450
      %v483 = vunpack.c.l.b16 %v451
      %v484 = vunpack.c.l.b16 %v452
      %v485 = vpack.c.b16 %v470, %v469
      %v486 = vpack.c.b16 %v472, %v471
      %v487 = vpack.c.b16 %v474, %v473
      %v488 = vpack.c.b16 %v476, %v475
      %v489 = vpack.c.b16 %v478, %v477
      %v490 = vpack.c.b16 %v480, %v479
      %v491 = vpack.c.b16 %v482, %v481
      %v492 = vpack.c.b16 %v484, %v483
      %501 = vmatprep.subr.bf16.mxu0 0
      %502 = vmatpush1.bf16.msra.mxu0 %v485
      %503 = vmatprep.subr.bf16.mxu0 0
      %504 = vmatpush1.bf16.msra.mxu0 %v486
      %505 = vmatprep.subr.bf16.mxu0 0
      %506 = vmatpush1.bf16.msra.mxu0 %v487
      %507 = vmatprep.subr.bf16.mxu0 0
      %508 = vmatpush1.bf16.msra.mxu0 %v488
      %509 = vmatprep.subr.bf16.mxu0 0
      %510 = vmatpush1.bf16.msra.mxu0 %v489
      %511 = vmatprep.subr.bf16.mxu0 0
      %512 = vmatpush1.bf16.msra.mxu0 %v490
      %513 = vmatprep.subr.bf16.mxu0 0
      %514 = vmatpush1.bf16.msra.mxu0 %v491
      %515 = vmatprep.subr.bf16.mxu0 0
      %516 = vmatpush1.bf16.msra.mxu0 %v492
      %517 = vmatprep.subr.bf16.mxu0 0
      %518 = vmatpush1.bf16.msra.mxu0 0
      %519 = vmatprep.subr.bf16.mxu0 0
      %520 = vmatpush1.bf16.msra.mxu0 0
      %521 = vmatprep.subr.bf16.mxu0 0
      %522 = vmatpush1.bf16.msra.mxu0 0
      %523 = vmatprep.subr.bf16.mxu0 0
      %524 = vmatpush1.bf16.msra.mxu0 0
      %525 = vmatprep.subr.bf16.mxu0 0
      %526 = vmatpush1.bf16.msra.mxu0 0
      %527 = vmatprep.subr.bf16.mxu0 0
      %528 = vmatpush1.bf16.msra.mxu0 0
      %529 = vmatprep.subr.bf16.mxu0 0
      %530 = vmatpush1.bf16.msra.mxu0 0
      %531 = vmatprep.subr.bf16.mxu0 0
      %532 = vmatpush1.bf16.msra.mxu0 0
      %533 = vmatprep.mubr.bf16.mxu0 0
      %534 = vmatmul.mubr.bf16.gmra.mrb[0].mxu0 %v435
      %v535 = vpop.f32.mrb[0].mxu0
      %v536 = vadd.f32 0.0, %v535
      %v537 = vpop.f32.mrb[0].mxu0
      %v538 = vpop.f32.mrb[0].mxu0
      %v539 = vpop.f32.mrb[0].mxu0
      %540 = vdwg.mxu0
      %v541 = vadd.f32 %v429, %v536
      %v542 = vld [vmem:[%s2] sm:$0x1]
      %v544 = vlaneseq
      %v545 = vshrl.u32 %v544, 7
      %v546 = vsub.s32 0, %v545
      %v547 = vrot.slane %v542, %v546
      %v549 = vadd.f32 %v541, %v547
      %v550 = vmax.f32 %v549, 0.0
      %551 = vst [vmem:[#allocation2] sm:$0x3f] 0.0
      %552 = vst [vmem:[#allocation2 + $0x1] sm:$0xf] %v550
      %v553 = vld [vmem:[#allocation2] sm:$0xf]
      %v554 = vpack.c.bf16 %v553, %v553
      %v555 = vld [vmem:[%s3] sm:$0xf]
      %v556 = vld [vmem:[%s3 + $0x4] sm:$0xf]
      %v557 = vld [vmem:[%s3 + $0x8] sm:$0xf]
      %v558 = vld [vmem:[%s3 + $0xc] sm:$0xf]
      %v559 = vld [vmem:[%s3 + $0x10] sm:$0xf]
      %v560 = vld [vmem:[%s3 + $0x14] sm:$0xf]
      %v561 = vld [vmem:[%s3 + $0x18] sm:$0xf]
      %v562 = vld [vmem:[%s3 + $0x1c] sm:$0xf]
      %v563 = vld [vmem:[%s3 + $0x20] sm:$0xf]
      %v564 = vld [vmem:[%s3 + $0x24] sm:$0xf]
      %v565 = vld [vmem:[%s3 + $0x28] sm:$0xf]
      %v566 = vld [vmem:[%s3 + $0x2c] sm:$0xf]
      %v567 = vld [vmem:[%s3 + $0x30] sm:$0xf]
      %v568 = vld [vmem:[%s3 + $0x34] sm:$0xf]
      %v569 = vld [vmem:[%s3 + $0x38] sm:$0xf]
      %v570 = vld [vmem:[%s3 + $0x3c] sm:$0xf]
      %v571 = vld [vmem:[#allocation2 + $0x1] sm:$0xf]
      %v572 = vpack.c.bf16 %v571, %v571
      %s573 = scalar_lea.vmem %s3, 64
      %v574 = vld [vmem:[%s573] sm:$0xf]
      %v575 = vld [vmem:[%s573 + $0x4] sm:$0xf]
      %v576 = vld [vmem:[%s573 + $0x8] sm:$0xf]
      %v577 = vld [vmem:[%s573 + $0xc] sm:$0xf]
      %v578 = vld [vmem:[%s573 + $0x10] sm:$0xf]
      %v579 = vld [vmem:[%s573 + $0x14] sm:$0xf]
      %v580 = vld [vmem:[%s573 + $0x18] sm:$0xf]
      %v581 = vld [vmem:[%s573 + $0x1c] sm:$0xf]
      %v582 = vld [vmem:[%s573 + $0x20] sm:$0xf]
      %v583 = vld [vmem:[%s573 + $0x24] sm:$0xf]
      %v584 = vld [vmem:[%s573 + $0x28] sm:$0xf]
      %v585 = vld [vmem:[%s573 + $0x2c] sm:$0xf]
      %v586 = vld [vmem:[%s573 + $0x30] sm:$0xf]
      %v587 = vld [vmem:[%s573 + $0x34] sm:$0xf]
      %v588 = vld [vmem:[%s573 + $0x38] sm:$0xf]
      %v589 = vld [vmem:[%s573 + $0x3c] sm:$0xf]
      %v606 = vunpack.c.l.b16 %v574
      %v607 = vunpack.c.l.b16 %v575
      %v608 = vunpack.c.l.b16 %v576
      %v609 = vunpack.c.l.b16 %v577
      %v610 = vunpack.c.l.b16 %v578
      %v611 = vunpack.c.l.b16 %v579
      %v612 = vunpack.c.l.b16 %v580
      %v613 = vunpack.c.l.b16 %v581
      %v614 = vunpack.c.l.b16 %v582
      %v615 = vunpack.c.l.b16 %v583
      %v616 = vunpack.c.l.b16 %v584
      %v617 = vunpack.c.l.b16 %v585
      %v618 = vunpack.c.l.b16 %v586
      %v619 = vunpack.c.l.b16 %v587
      %v620 = vunpack.c.l.b16 %v588
      %v621 = vunpack.c.l.b16 %v589
      %v622 = vpack.c.b16 %v607, %v606
      %v623 = vpack.c.b16 %v609, %v608
      %v624 = vpack.c.b16 %v611, %v610
      %v625 = vpack.c.b16 %v613, %v612
      %v626 = vpack.c.b16 %v615, %v614
      %v627 = vpack.c.b16 %v617, %v616
      %v628 = vpack.c.b16 %v619, %v618
      %v629 = vpack.c.b16 %v621, %v620
      %638 = vmatprep.subr.bf16.mxu0 0
      %639 = vmatpush1.bf16.msra.mxu0 %v622
      %640 = vmatprep.subr.bf16.mxu0 0
      %641 = vmatpush1.bf16.msra.mxu0 %v623
      %642 = vmatprep.subr.bf16.mxu0 0
      %643 = vmatpush1.bf16.msra.mxu0 %v624
      %644 = vmatprep.subr.bf16.mxu0 0
      %645 = vmatpush1.bf16.msra.mxu0 %v625
      %646 = vmatprep.subr.bf16.mxu0 0
      %647 = vmatpush1.bf16.msra.mxu0 %v626
      %648 = vmatprep.subr.bf16.mxu0 0
      %649 = vmatpush1.bf16.msra.mxu0 %v627
      %650 = vmatprep.subr.bf16.mxu0 0
      %651 = vmatpush1.bf16.msra.mxu0 %v628
      %652 = vmatprep.subr.bf16.mxu0 0
      %653 = vmatpush1.bf16.msra.mxu0 %v629
      %654 = vmatprep.subr.bf16.mxu0 0
      %655 = vmatpush1.bf16.msra.mxu0 0
      %656 = vmatprep.subr.bf16.mxu0 0
      %657 = vmatpush1.bf16.msra.mxu0 0
      %658 = vmatprep.subr.bf16.mxu0 0
      %659 = vmatpush1.bf16.msra.mxu0 0
      %660 = vmatprep.subr.bf16.mxu0 0
      %661 = vmatpush1.bf16.msra.mxu0 0
      %662 = vmatprep.subr.bf16.mxu0 0
      %663 = vmatpush1.bf16.msra.mxu0 0
      %664 = vmatprep.subr.bf16.mxu0 0
      %665 = vmatpush1.bf16.msra.mxu0 0
      %666 = vmatprep.subr.bf16.mxu0 0
      %667 = vmatpush1.bf16.msra.mxu0 0
      %668 = vmatprep.subr.bf16.mxu0 0
      %669 = vmatpush1.bf16.msra.mxu0 0
      %670 = vmatprep.mubr.bf16.mxu0 0
      %671 = vmatmul.mubr.bf16.gmra.mrb[0].mxu0 %v572
      %v672 = vpop.f32.mrb[0].mxu0
      %v673 = vadd.f32 0.0, %v672
      %v674 = vpop.f32.mrb[0].mxu0
      %v675 = vpop.f32.mrb[0].mxu0
      %v676 = vpop.f32.mrb[0].mxu0
      %677 = vdwg.mxu0
      %v694 = vunpack.c.l.b16 %v555
      %v695 = vunpack.c.l.b16 %v556
      %v696 = vunpack.c.l.b16 %v557
      %v697 = vunpack.c.l.b16 %v558
      %v698 = vunpack.c.l.b16 %v559
      %v699 = vunpack.c.l.b16 %v560
      %v700 = vunpack.c.l.b16 %v561
      %v701 = vunpack.c.l.b16 %v562
      %v702 = vunpack.c.l.b16 %v563
      %v703 = vunpack.c.l.b16 %v564
      %v704 = vunpack.c.l.b16 %v565
      %v705 = vunpack.c.l.b16 %v566
      %v706 = vunpack.c.l.b16 %v567
      %v707 = vunpack.c.l.b16 %v568
      %v708 = vunpack.c.l.b16 %v569
      %v709 = vunpack.c.l.b16 %v570
      %v710 = vpack.c.b16 %v695, %v694
      %v711 = vpack.c.b16 %v697, %v696
      %v712 = vpack.c.b16 %v699, %v698
      %v713 = vpack.c.b16 %v701, %v700
      %v714 = vpack.c.b16 %v703, %v702
      %v715 = vpack.c.b16 %v705, %v704
      %v716 = vpack.c.b16 %v707, %v706
      %v717 = vpack.c.b16 %v709, %v708
      %726 = vmatprep.subr.bf16.mxu0 0
      %727 = vmatpush1.bf16.msra.mxu0 %v710
      %728 = vmatprep.subr.bf16.mxu0 0
      %729 = vmatpush1.bf16.msra.mxu0 %v711
      %730 = vmatprep.subr.bf16.mxu0 0
      %731 = vmatpush1.bf16.msra.mxu0 %v712
      %732 = vmatprep.subr.bf16.mxu0 0
      %733 = vmatpush1.bf16.msra.mxu0 %v713
      %734 = vmatprep.subr.bf16.mxu0 0
      %735 = vmatpush1.bf16.msra.mxu0 %v714
      %736 = vmatprep.subr.bf16.mxu0 0
      %737 = vmatpush1.bf16.msra.mxu0 %v715
      %738 = vmatprep.subr.bf16.mxu0 0
      %739 = vmatpush1.bf16.msra.mxu0 %v716
      %740 = vmatprep.subr.bf16.mxu0 0
      %741 = vmatpush1.bf16.msra.mxu0 %v717
      %742 = vmatprep.subr.bf16.mxu0 0
      %743 = vmatpush1.bf16.msra.mxu0 0
      %744 = vmatprep.subr.bf16.mxu0 0
      %745 = vmatpush1.bf16.msra.mxu0 0
      %746 = vmatprep.subr.bf16.mxu0 0
      %747 = vmatpush1.bf16.msra.mxu0 0
      %748 = vmatprep.subr.bf16.mxu0 0
      %749 = vmatpush1.bf16.msra.mxu0 0
      %750 = vmatprep.subr.bf16.mxu0 0
      %751 = vmatpush1.bf16.msra.mxu0 0
      %752 = vmatprep.subr.bf16.mxu0 0
      %753 = vmatpush1.bf16.msra.mxu0 0
      %754 = vmatprep.subr.bf16.mxu0 0
      %755 = vmatpush1.bf16.msra.mxu0 0
      %756 = vmatprep.subr.bf16.mxu0 0
      %757 = vmatpush1.bf16.msra.mxu0 0
      %758 = vmatprep.mubr.bf16.mxu0 0
      %759 = vmatmul.mubr.bf16.gmra.mrb[0].mxu0 %v554
      %v760 = vpop.f32.mrb[0].mxu0
      %v761 = vadd.f32 %v673, %v760
      %v762 = vpop.f32.mrb[0].mxu0
      %v763 = vpop.f32.mrb[0].mxu0
      %v764 = vpop.f32.mrb[0].mxu0
      %765 = vdwg.mxu0
      %v766 = vld [vmem:[#allocation2 + $0x2] sm:$0xf]
      %v767 = vpack.c.bf16 %v766, %v766
      %s768 = scalar_lea.vmem %s3, 128
      %v769 = vld [vmem:[%s768] sm:$0xf]
      %v770 = vld [vmem:[%s768 + $0x4] sm:$0xf]
      %v771 = vld [vmem:[%s768 + $0x8] sm:$0xf]
      %v772 = vld [vmem:[%s768 + $0xc] sm:$0xf]
      %v773 = vld [vmem:[%s768 + $0x10] sm:$0xf]
      %v774 = vld [vmem:[%s768 + $0x14] sm:$0xf]
      %v775 = vld [vmem:[%s768 + $0x18] sm:$0xf]
      %v776 = vld [vmem:[%s768 + $0x1c] sm:$0xf]
      %v777 = vld [vmem:[%s768 + $0x20] sm:$0xf]
      %v778 = vld [vmem:[%s768 + $0x24] sm:$0xf]
      %v779 = vld [vmem:[%s768 + $0x28] sm:$0xf]
      %v780 = vld [vmem:[%s768 + $0x2c] sm:$0xf]
      %v781 = vld [vmem:[%s768 + $0x30] sm:$0xf]
      %v782 = vld [vmem:[%s768 + $0x34] sm:$0xf]
      %v783 = vld [vmem:[%s768 + $0x38] sm:$0xf]
      %v784 = vld [vmem:[%s768 + $0x3c] sm:$0xf]
      %v801 = vunpack.c.l.b16 %v769
      %v802 = vunpack.c.l.b16 %v770
      %v803 = vunpack.c.l.b16 %v771
      %v804 = vunpack.c.l.b16 %v772
      %v805 = vunpack.c.l.b16 %v773
      %v806 = vunpack.c.l.b16 %v774
      %v807 = vunpack.c.l.b16 %v775
      %v808 = vunpack.c.l.b16 %v776
      %v809 = vunpack.c.l.b16 %v777
      %v810 = vunpack.c.l.b16 %v778
      %v811 = vunpack.c.l.b16 %v779
      %v812 = vunpack.c.l.b16 %v780
      %v813 = vunpack.c.l.b16 %v781
      %v814 = vunpack.c.l.b16 %v782
      %v815 = vunpack.c.l.b16 %v783
      %v816 = vunpack.c.l.b16 %v784
      %v817 = vpack.c.b16 %v802, %v801
      %v818 = vpack.c.b16 %v804, %v803
      %v819 = vpack.c.b16 %v806, %v805
      %v820 = vpack.c.b16 %v808, %v807
      %v821 = vpack.c.b16 %v810, %v809
      %v822 = vpack.c.b16 %v812, %v811
      %v823 = vpack.c.b16 %v814, %v813
      %v824 = vpack.c.b16 %v816, %v815
      %833 = vmatprep.subr.bf16.mxu0 0
      %834 = vmatpush1.bf16.msra.mxu0 %v817
      %835 = vmatprep.subr.bf16.mxu0 0
      %836 = vmatpush1.bf16.msra.mxu0 %v818
      %837 = vmatprep.subr.bf16.mxu0 0
      %838 = vmatpush1.bf16.msra.mxu0 %v819
      %839 = vmatprep.subr.bf16.mxu0 0
      %840 = vmatpush1.bf16.msra.mxu0 %v820
      %841 = vmatprep.subr.bf16.mxu0 0
      %842 = vmatpush1.bf16.msra.mxu0 %v821
      %843 = vmatprep.subr.bf16.mxu0 0
      %844 = vmatpush1.bf16.msra.mxu0 %v822
      %845 = vmatprep.subr.bf16.mxu0 0
      %846 = vmatpush1.bf16.msra.mxu0 %v823
      %847 = vmatprep.subr.bf16.mxu0 0
      %848 = vmatpush1.bf16.msra.mxu0 %v824
      %849 = vmatprep.subr.bf16.mxu0 0
      %850 = vmatpush1.bf16.msra.mxu0 0
      %851 = vmatprep.subr.bf16.mxu0 0
      %852 = vmatpush1.bf16.msra.mxu0 0
      %853 = vmatprep.subr.bf16.mxu0 0
      %854 = vmatpush1.bf16.msra.mxu0 0
      %855 = vmatprep.subr.bf16.mxu0 0
      %856 = vmatpush1.bf16.msra.mxu0 0
      %857 = vmatprep.subr.bf16.mxu0 0
      %858 = vmatpush1.bf16.msra.mxu0 0
      %859 = vmatprep.subr.bf16.mxu0 0
      %860 = vmatpush1.bf16.msra.mxu0 0
      %861 = vmatprep.subr.bf16.mxu0 0
      %862 = vmatpush1.bf16.msra.mxu0 0
      %863 = vmatprep.subr.bf16.mxu0 0
      %864 = vmatpush1.bf16.msra.mxu0 0
      %865 = vmatprep.mubr.bf16.mxu0 0
      %866 = vmatmul.mubr.bf16.gmra.mrb[0].mxu0 %v767
      %v867 = vpop.f32.mrb[0].mxu0
      %v868 = vadd.f32 0.0, %v867
      %v869 = vpop.f32.mrb[0].mxu0
      %v870 = vpop.f32.mrb[0].mxu0
      %v871 = vpop.f32.mrb[0].mxu0
      %872 = vdwg.mxu0
      %v873 = vadd.f32 %v761, %v868
      %v874 = vld [vmem:[%s4] sm:$0x1]
      %v876 = vlaneseq
      %v877 = vshrl.u32 %v876, 7
      %v878 = vsub.s32 0, %v877
      %v879 = vrot.slane %v874, %v878
      %v881 = vadd.f32 %v873, %v879
      %v882 = vadd.f32 %v881, %v239
      %v883 = vmax.f32 %v882, 0.0
      %884 = vst [vmem:[%s219] sm:$0xf] %v883
      %p885 = scmp.lt.s32.totalorder %s16, 1
      %s886 = scalar_select %p885, %s16, 1
      %s887 = smul.addr %s886, 4
      %s888 = scalar_lea.vmem %s5, %s887
      // Predicated region
      $region41: #{_lambda_.11} parent=39 // pred_check
        %p889 = pneg %p144
      $region42: #{_lambda_.11} parent=39 // pred_check_branch
        %891 = sbr.rel (%p889) target = $region44
      $region43: #{_lambda_.11} parent=39 // pred_region
        _
      $region44: #{_lambda_.11} parent=39 // pred_fallthru
        _
    $region40: #{_lambda_.11} parent=5 // pred_fallthru
      _
    %p892 = scmp.le.s32.totalorder 2, %s11
    // Predicated region
    $region45: #{_lambda_.11} parent=5 // pred_check
      %p893 = pneg %p892
    $region46: #{_lambda_.11} parent=5 // pred_check_branch
      %895 = sbr.rel (%p893) target = $region48
    $region47: #{_lambda_.11} parent=5 // pred_region
      %s896 = ssub.s32 %s11, 2
      // Predicated region
      $region49: #{_lambda_.11} parent=47 // pred_check
        %p897 = pneg %p150
      $region50: #{_lambda_.11} parent=47 // pred_check_branch
        %899 = sbr.rel (%p897) target = $region52
      $region51: #{_lambda_.11} parent=47 // pred_region
        %p900 = scmp.lt.s32.totalorder %s17, 1
        %s901 = scalar_select %p900, %s17, 1
        %s902 = smul.addr %s901, 4
        %s903 = scalar_lea.vmem %s5, %s902
      $region52: #{_lambda_.11} parent=47 // pred_fallthru
        _
    $region48: #{_lambda_.11} parent=5 // pred_fallthru
      _
  $region6: #{_lambda_.11} parent=0 // loop_footer
    %s15 = sadd.s32 1, %s11
  $region7: #{_lambda_.11} parent=0 // loop_footer_branch
    %10 = sbr.rel target = $region3
  $region8: #{_lambda_.11} parent=0 // loop_exit
    _

// kernel: _lambda_.10
$region0: #{_lambda_.10}
  #allocation0 [shape = 'u32[]', space=smem, size = 0x4, offset = 0x4, fixed_abs, tag = 'smem constant byte address 0x4 - core index']
  #allocation1 [shape = 'u32[144,128]{1,0:T(1,128)}', space=vmem, size = 0x12000, scoped, tag = 'internal scratch']
  #allocation2 [shape = 'f32[6,128]{1,0:T(8,128)}', space=vmem, size = 0x1000, scoped, tag = 'scratch operand']
  %s0 = inlined_call_operand.vmem [shape: f32[2,2,5,128], index: 0, kind: input, shape index: {}]
  %s1 = inlined_call_operand.vmem [shape: bf16[3,128,128], index: 1, kind: input, shape index: {}]
  %s2 = inlined_call_operand.vmem [shape: f32[1,128], index: 2, kind: input, shape index: {}]
  %s3 = inlined_call_operand.vmem [shape: bf16[3,128,128], index: 3, kind: input, shape index: {}]
  %s4 = inlined_call_operand.vmem [shape: f32[1,128], index: 4, kind: input, shape index: {}]
  %s5 = inlined_call_operand.vmem [shape: bf16[1,128,128], index: 5, kind: input, shape index: {}]
  %s6 = inlined_call_operand.vmem [shape: f32[1,128], index: 6, kind: input, shape index: {}]
  %s7 = inlined_call_operand.vmem [shape: f32[2,4,128], index: 7, kind: output, shape index: {}]
  %s8 = sld [smem:[#allocation0]]
  $region61: #{_lambda_.10} parent=0
    _
  %s10 = ssub.s32 1, %s8
  %s11 = scalar_select 0, %s10, %s8
  loop: start=0, step=1, limit=4
  $region2: #{_lambda_.10} parent=0 // loop_pre_header
    _
  $region3: #{_lambda_.10} parent=0 // loop_header
    %s13 = sphi 0, %s17
    %p14 = scmp.ge.s32.totalorder %s13, 4
    %s23 = sphi 0, %s25
    %s26 = sphi 0, %s23
    %s27 = sphi 0, %s26
    %s43 = sphi 0, %s27
    %s47 = sphi 0, %s47
    %s49 = sphi 0, %s47
    %s50 = sphi 0, %s49
    %s64 = sphi 0, %s50
    %s68 = sphi 0, %s68
    %s70 = sphi 0, %s68
    %s71 = sphi 0, %s70
    %s85 = sphi 0, %s71
    %s89 = sphi 0, %s89
    %s91 = sphi 0, %s89
    %s92 = sphi 0, %s91
    %s106 = sphi 0, %s92
    %s110 = sphi 0, %s110
    %s112 = sphi 0, %s110
    %s113 = sphi 0, %s112
    %s127 = sphi 0, %s113
    %s131 = sphi 0, %s131
    %s133 = sphi 0, %s131
    %s134 = sphi 0, %s133
    %s148 = sphi 0, %s134
    %s152 = sphi 0, %s152
    %s154 = sphi 0, %s152
    %s155 = sphi 0, %s154
    %s169 = sphi 0, %s155
    %s175 = sphi 0, %s177
    %s178 = sphi 0, %s175
    %s179 = sphi 0, %s178
    %s195 = sphi 0, %s179
  $region4: #{_lambda_.10} parent=0 // loop_header_branch
    %16 = sbr.rel (%p14) target = $region8
  $region5: #{_lambda_.10} parent=0 // loop_body
    %s18 = ssub.s32 %s13, 1
    %s19 = ssub.s32 %s13, 2
    %s20 = sadd.s32 %s13, 1
    %s21 = ssub.s32 %s13, %s20
    %p22 = scmp.eq.s32.totalorder %s21, 0
    %s24 = sadd.s32 %s23, 1
    %s25 = scalar_select %p22, %s23, %s24
    %p28 = pneg %p22
    %p29 = scmp.eq.s32.totalorder %s13, 1
    %p30 = por %p28, %p29
    %p31 = scmp.ne.s32.totalorder %s23, %s26
    %p32 = scmp.eq.s32.totalorder %s13, 0
    %p33 = por %p31, %p32
    %p34 = scmp.ne.s32.totalorder %s23, %s26
    %p35 = scmp.eq.s32.totalorder %s18, 1
    %p36 = por %p34, %p35
    %p37 = scmp.ne.s32.totalorder %s26, %s27
    %p38 = scmp.eq.s32.totalorder %s18, 0
    %p39 = por %p37, %p38
    %p40 = scmp.ne.s32.totalorder %s26, %s27
    %p41 = scmp.eq.s32.totalorder %s19, 1
    %p42 = por %p40, %p41
    %p44 = scmp.ne.s32.totalorder %s27, %s43
    %p45 = scmp.eq.s32.totalorder %s19, 0
    %p46 = por %p44, %p45
    %s48 = sadd.s32 %s47, 1
    %p51 = scmp.eq.s32.totalorder %s13, 1
    %p52 = scmp.ne.s32.totalorder %s47, %s49
    %p53 = scmp.eq.s32.totalorder %s13, 0
    %p54 = por %p52, %p53
    %p55 = scmp.ne.s32.totalorder %s47, %s49
    %p56 = scmp.eq.s32.totalorder %s18, 1
    %p57 = por %p55, %p56
    %p58 = scmp.ne.s32.totalorder %s49, %s50
    %p59 = scmp.eq.s32.totalorder %s18, 0
    %p60 = por %p58, %p59
    %p61 = scmp.ne.s32.totalorder %s49, %s50
    %p62 = scmp.eq.s32.totalorder %s19, 1
    %p63 = por %p61, %p62
    %p65 = scmp.ne.s32.totalorder %s50, %s64
    %p66 = scmp.eq.s32.totalorder %s19, 0
    %p67 = por %p65, %p66
    %s69 = sadd.s32 %s68, 1
    %p72 = scmp.eq.s32.totalorder %s13, 1
    %p73 = scmp.ne.s32.totalorder %s68, %s70
    %p74 = scmp.eq.s32.totalorder %s13, 0
    %p75 = por %p73, %p74
    %p76 = scmp.ne.s32.totalorder %s68, %s70
    %p77 = scmp.eq.s32.totalorder %s18, 1
    %p78 = por %p76, %p77
    %p79 = scmp.ne.s32.totalorder %s70, %s71
    %p80 = scmp.eq.s32.totalorder %s18, 0
    %p81 = por %p79, %p80
    %p82 = scmp.ne.s32.totalorder %s70, %s71
    %p83 = scmp.eq.s32.totalorder %s19, 1
    %p84 = por %p82, %p83
    %p86 = scmp.ne.s32.totalorder %s71, %s85
    %p87 = scmp.eq.s32.totalorder %s19, 0
    %p88 = por %p86, %p87
    %s90 = sadd.s32 %s89, 1
    %p93 = scmp.eq.s32.totalorder %s13, 1
    %p94 = scmp.ne.s32.totalorder %s89, %s91
    %p95 = scmp.eq.s32.totalorder %s13, 0
    %p96 = por %p94, %p95
    %p97 = scmp.ne.s32.totalorder %s89, %s91
    %p98 = scmp.eq.s32.totalorder %s18, 1
    %p99 = por %p97, %p98
    %p100 = scmp.ne.s32.totalorder %s91, %s92
    %p101 = scmp.eq.s32.totalorder %s18, 0
    %p102 = por %p100, %p101
    %p103 = scmp.ne.s32.totalorder %s91, %s92
    %p104 = scmp.eq.s32.totalorder %s19, 1
    %p105 = por %p103, %p104
    %p107 = scmp.ne.s32.totalorder %s92, %s106
    %p108 = scmp.eq.s32.totalorder %s19, 0
    %p109 = por %p107, %p108
    %s111 = sadd.s32 %s110, 1
    %p114 = scmp.eq.s32.totalorder %s13, 1
    %p115 = scmp.ne.s32.totalorder %s110, %s112
    %p116 = scmp.eq.s32.totalorder %s13, 0
    %p117 = por %p115, %p116
    %p118 = scmp.ne.s32.totalorder %s110, %s112
    %p119 = scmp.eq.s32.totalorder %s18, 1
    %p120 = por %p118, %p119
    %p121 = scmp.ne.s32.totalorder %s112, %s113
    %p122 = scmp.eq.s32.totalorder %s18, 0
    %p123 = por %p121, %p122
    %p124 = scmp.ne.s32.totalorder %s112, %s113
    %p125 = scmp.eq.s32.totalorder %s19, 1
    %p126 = por %p124, %p125
    %p128 = scmp.ne.s32.totalorder %s113, %s127
    %p129 = scmp.eq.s32.totalorder %s19, 0
    %p130 = por %p128, %p129
    %s132 = sadd.s32 %s131, 1
    %p135 = scmp.eq.s32.totalorder %s13, 1
    %p136 = scmp.ne.s32.totalorder %s131, %s133
    %p137 = scmp.eq.s32.totalorder %s13, 0
    %p138 = por %p136, %p137
    %p139 = scmp.ne.s32.totalorder %s131, %s133
    %p140 = scmp.eq.s32.totalorder %s18, 1
    %p141 = por %p139, %p140
    %p142 = scmp.ne.s32.totalorder %s133, %s134
    %p143 = scmp.eq.s32.totalorder %s18, 0
    %p144 = por %p142, %p143
    %p145 = scmp.ne.s32.totalorder %s133, %s134
    %p146 = scmp.eq.s32.totalorder %s19, 1
    %p147 = por %p145, %p146
    %p149 = scmp.ne.s32.totalorder %s134, %s148
    %p150 = scmp.eq.s32.totalorder %s19, 0
    %p151 = por %p149, %p150
    %s153 = sadd.s32 %s152, 1
    %p156 = scmp.eq.s32.totalorder %s13, 1
    %p157 = scmp.ne.s32.totalorder %s152, %s154
    %p158 = scmp.eq.s32.totalorder %s13, 0
    %p159 = por %p157, %p158
    %p160 = scmp.ne.s32.totalorder %s152, %s154
    %p161 = scmp.eq.s32.totalorder %s18, 1
    %p162 = por %p160, %p161
    %p163 = scmp.ne.s32.totalorder %s154, %s155
    %p164 = scmp.eq.s32.totalorder %s18, 0
    %p165 = por %p163, %p164
    %p166 = scmp.ne.s32.totalorder %s154, %s155
    %p167 = scmp.eq.s32.totalorder %s19, 1
    %p168 = por %p166, %p167
    %p170 = scmp.ne.s32.totalorder %s155, %s169
    %p171 = scmp.eq.s32.totalorder %s19, 0
    %p172 = por %p170, %p171
    %s173 = ssub.s32 %s13, %s20
    %p174 = scmp.eq.s32.totalorder %s173, 0
    %s176 = sadd.s32 %s175, 1
    %s177 = scalar_select %p174, %s175, %s176
    %p180 = pneg %p174
    %p181 = scmp.eq.s32.totalorder %s13, 1
    %p182 = por %p180, %p181
    %p183 = scmp.ne.s32.totalorder %s175, %s178
    %p184 = scmp.eq.s32.totalorder %s13, 0
    %p185 = por %p183, %p184
    %p186 = scmp.ne.s32.totalorder %s175, %s178
    %p187 = scmp.eq.s32.totalorder %s18, 1
    %p188 = por %p186, %p187
    %p189 = scmp.ne.s32.totalorder %s178, %s179
    %p190 = scmp.eq.s32.totalorder %s18, 0
    %p191 = por %p189, %p190
    %p192 = scmp.ne.s32.totalorder %s178, %s179
    %p193 = scmp.eq.s32.totalorder %s19, 1
    %p194 = por %p192, %p193
    %p196 = scmp.ne.s32.totalorder %s179, %s195
    %p197 = scmp.eq.s32.totalorder %s19, 0
    %p198 = por %p196, %p197
    %p199 = scmp.le.s32.totalorder 1, %s13
    %p200 = scmp.lt.s32.totalorder %s13, 3
    %p201 = pnand %p199, %p200
    %p202 = pneg %p201
    // Predicated region
    $region9: #{_lambda_.10} parent=5 // pred_check
      _
    $region10: #{_lambda_.10} parent=5 // pred_check_branch
      %204 = sbr.rel (%p201) target = $region12
    $region11: #{_lambda_.10} parent=5 // pred_region
      %s205 = ssub.s32 %s13, 1
      // Predicated region
      $region13: #{_lambda_.10} parent=11 // pred_check
        %p206 = pneg %p60
      $region14: #{_lambda_.10} parent=11 // pred_check_branch
        %208 = sbr.rel (%p206) target = $region16
      $region15: #{_lambda_.10} parent=11 // pred_region
        _
      $region16: #{_lambda_.10} parent=11 // pred_fallthru
        _
      // Predicated region
      $region17: #{_lambda_.10} parent=11 // pred_check
        %p209 = pneg %p81
      $region18: #{_lambda_.10} parent=11 // pred_check_branch
        %211 = sbr.rel (%p209) target = $region20
      $region19: #{_lambda_.10} parent=11 // pred_region
        _
      $region20: #{_lambda_.10} parent=11 // pred_fallthru
        _
      // Predicated region
      $region21: #{_lambda_.10} parent=11 // pred_check
        %p212 = pneg %p102
      $region22: #{_lambda_.10} parent=11 // pred_check_branch
        %214 = sbr.rel (%p212) target = $region24
      $region23: #{_lambda_.10} parent=11 // pred_region
        _
      $region24: #{_lambda_.10} parent=11 // pred_fallthru
        _
      // Predicated region
      $region25: #{_lambda_.10} parent=11 // pred_check
        %p215 = pneg %p123
      $region26: #{_lambda_.10} parent=11 // pred_check_branch
        %217 = sbr.rel (%p215) target = $region28
      $region27: #{_lambda_.10} parent=11 // pred_region
        _
      $region28: #{_lambda_.10} parent=11 // pred_fallthru
        _
      // Predicated region
      $region29: #{_lambda_.10} parent=11 // pred_check
        %p218 = pneg %p144
      $region30: #{_lambda_.10} parent=11 // pred_check_branch
        %220 = sbr.rel (%p218) target = $region32
      $region31: #{_lambda_.10} parent=11 // pred_region
        _
      $region32: #{_lambda_.10} parent=11 // pred_fallthru
        _
      // Predicated region
      $region33: #{_lambda_.10} parent=11 // pred_check
        %p221 = pneg %p165
      $region34: #{_lambda_.10} parent=11 // pred_check_branch
        %223 = sbr.rel (%p221) target = $region36
      $region35: #{_lambda_.10} parent=11 // pred_region
        _
      $region36: #{_lambda_.10} parent=11 // pred_fallthru
        _
    $region12: #{_lambda_.10} parent=5 // pred_fallthru
      _
    %p224 = scmp.lt.s32.totalorder %s13, 2
    // Predicated region
    $region37: #{_lambda_.10} parent=5 // pred_check
      %p225 = pneg %p224
    $region38: #{_lambda_.10} parent=5 // pred_check_branch
      %227 = sbr.rel (%p225) target = $region40
    $region39: #{_lambda_.10} parent=5 // pred_region
      // Predicated region
      $region41: #{_lambda_.10} parent=39 // pred_check
        %p228 = pneg %p33
      $region42: #{_lambda_.10} parent=39 // pred_check_branch
        %230 = sbr.rel (%p228) target = $region44
      $region43: #{_lambda_.10} parent=39 // pred_region
        %p231 = scmp.lt.s32.totalorder %s13, 1
        %s232 = scalar_select %p231, %s13, 1
        %s233 = smul.addr %s232, 2
        %s234 = smul.addr %s233, 8
        %s235 = scalar_lea.vmem %s0, %s234
      $region44: #{_lambda_.10} parent=39 // pred_fallthru
        _
    $region40: #{_lambda_.10} parent=5 // pred_fallthru
      _
    %p236 = scmp.le.s32.totalorder 1, %s13
    %p237 = scmp.lt.s32.totalorder %s13, 3
    %p238 = pnand %p236, %p237
    %p239 = pneg %p238
    // Predicated region
    $region45: #{_lambda_.10} parent=5 // pred_check
      _
    $region46: #{_lambda_.10} parent=5 // pred_check_branch
      %241 = sbr.rel (%p238) target = $region48
    $region47: #{_lambda_.10} parent=5 // pred_region
      %s242 = ssub.s32 %s13, 1
      %p243 = scmp.lt.s32.totalorder %s18, 1
      %s244 = scalar_select %p243, %s18, 1
      %s245 = smul.addr %s244, 2
      %s246 = smul.addr %s245, 8
      %s247 = scalar_lea.vmem %s0, %s246
      %p248 = pneg %p39
      %p249 = pneg %p36
      %p250 = pneg %p60
      %p251 = pneg %p57
      %p252 = pneg %p81
      %p253 = pneg %p78
      %p254 = pneg %p102
      %p255 = pneg %p99
      %p256 = pneg %p123
      %p257 = pneg %p120
      %p258 = pneg %p144
      %p259 = pneg %p141
      %p260 = pneg %p165
      %p261 = pneg %p162
      %p262 = pneg %p191
      %p263 = pneg %p188
      %p264 = scmp.lt.s32.totalorder %s18, 1
      %s265 = scalar_select %p264, %s18, 1
      %s266 = smul.addr %s265, 4
      %s267 = scalar_lea.vmem %s7, %s266
      %p268 = scmp.lt.s32.totalorder %s18, 1
      %s269 = scalar_select %p268, %s18, 1
      %s270 = smul.addr %s269, 2
      %s271 = smul.addr %s270, 8
      %s272 = scalar_lea.vmem %s0, %s271
      %p273 = scmp.lt.s32.totalorder %s18, 1
      %s274 = scalar_select %p273, %s18, 1
      %s275 = smul.addr %s274, 4
      %s276 = scalar_lea.vmem %s7, %s275
      %v278 = vld [vmem:[%s272] sm:$0xf]
      %v279 = vpack.c.bf16 %v278, %v278
      %v280 = vld [vmem:[%s1] sm:$0xf]
      %v281 = vld [vmem:[%s1 + $0x4] sm:$0xf]
      %v282 = vld [vmem:[%s1 + $0x8] sm:$0xf]
      %v283 = vld [vmem:[%s1 + $0xc] sm:$0xf]
      %v284 = vld [vmem:[%s1 + $0x10] sm:$0xf]
      %v285 = vld [vmem:[%s1 + $0x14] sm:$0xf]
      %v286 = vld [vmem:[%s1 + $0x18] sm:$0xf]
      %v287 = vld [vmem:[%s1 + $0x1c] sm:$0xf]
      %v288 = vld [vmem:[%s1 + $0x20] sm:$0xf]
      %v289 = vld [vmem:[%s1 + $0x24] sm:$0xf]
      %v290 = vld [vmem:[%s1 + $0x28] sm:$0xf]
      %v291 = vld [vmem:[%s1 + $0x2c] sm:$0xf]
      %v292 = vld [vmem:[%s1 + $0x30] sm:$0xf]
      %v293 = vld [vmem:[%s1 + $0x34] sm:$0xf]
      %v294 = vld [vmem:[%s1 + $0x38] sm:$0xf]
      %v295 = vld [vmem:[%s1 + $0x3c] sm:$0xf]
      %s296 = scalar_lea.vmem %s272, 8
      %v297 = vld [vmem:[%s296] sm:$0xf]
      %v298 = vpack.c.bf16 %v297, %v297
      %s299 = scalar_lea.vmem %s1, 64
      %v300 = vld [vmem:[%s299] sm:$0xf]
      %v301 = vld [vmem:[%s299 + $0x4] sm:$0xf]
      %v302 = vld [vmem:[%s299 + $0x8] sm:$0xf]
      %v303 = vld [vmem:[%s299 + $0xc] sm:$0xf]
      %v304 = vld [vmem:[%s299 + $0x10] sm:$0xf]
      %v305 = vld [vmem:[%s299 + $0x14] sm:$0xf]
      %v306 = vld [vmem:[%s299 + $0x18] sm:$0xf]
      %v307 = vld [vmem:[%s299 + $0x1c] sm:$0xf]
      %v308 = vld [vmem:[%s299 + $0x20] sm:$0xf]
      %v309 = vld [vmem:[%s299 + $0x24] sm:$0xf]
      %v310 = vld [vmem:[%s299 + $0x28] sm:$0xf]
      %v311 = vld [vmem:[%s299 + $0x2c] sm:$0xf]
      %v312 = vld [vmem:[%s299 + $0x30] sm:$0xf]
      %v313 = vld [vmem:[%s299 + $0x34] sm:$0xf]
      %v314 = vld [vmem:[%s299 + $0x38] sm:$0xf]
      %v315 = vld [vmem:[%s299 + $0x3c] sm:$0xf]
      %v332 = vunpack.c.l.b16 %v300
      %v333 = vunpack.c.l.b16 %v301
      %v334 = vunpack.c.l.b16 %v302
      %v335 = vunpack.c.l.b16 %v303
      %v336 = vunpack.c.l.b16 %v304
      %v337 = vunpack.c.l.b16 %v305
      %v338 = vunpack.c.l.b16 %v306
      %v339 = vunpack.c.l.b16 %v307
      %v340 = vunpack.c.l.b16 %v308
      %v341 = vunpack.c.l.b16 %v309
      %v342 = vunpack.c.l.b16 %v310
      %v343 = vunpack.c.l.b16 %v311
      %v344 = vunpack.c.l.b16 %v312
      %v345 = vunpack.c.l.b16 %v313
      %v346 = vunpack.c.l.b16 %v314
      %v347 = vunpack.c.l.b16 %v315
      %v348 = vpack.c.b16 %v333, %v332
      %v349 = vpack.c.b16 %v335, %v334
      %v350 = vpack.c.b16 %v337, %v336
      %v351 = vpack.c.b16 %v339, %v338
      %v352 = vpack.c.b16 %v341, %v340
      %v353 = vpack.c.b16 %v343, %v342
      %v354 = vpack.c.b16 %v345, %v344
      %v355 = vpack.c.b16 %v347, %v346
      %364 = vmatprep.subr.bf16.mxu0 0
      %365 = vmatpush1.bf16.msra.mxu0 %v348
      %366 = vmatprep.subr.bf16.mxu0 0
      %367 = vmatpush1.bf16.msra.mxu0 %v349
      %368 = vmatprep.subr.bf16.mxu0 0
      %369 = vmatpush1.bf16.msra.mxu0 %v350
      %370 = vmatprep.subr.bf16.mxu0 0
      %371 = vmatpush1.bf16.msra.mxu0 %v351
      %372 = vmatprep.subr.bf16.mxu0 0
      %373 = vmatpush1.bf16.msra.mxu0 %v352
      %374 = vmatprep.subr.bf16.mxu0 0
      %375 = vmatpush1.bf16.msra.mxu0 %v353
      %376 = vmatprep.subr.bf16.mxu0 0
      %377 = vmatpush1.bf16.msra.mxu0 %v354
      %378 = vmatprep.subr.bf16.mxu0 0
      %379 = vmatpush1.bf16.msra.mxu0 %v355
      %380 = vmatprep.subr.bf16.mxu0 0
      %381 = vmatpush1.bf16.msra.mxu0 0
      %382 = vmatprep.subr.bf16.mxu0 0
      %383 = vmatpush1.bf16.msra.mxu0 0
      %384 = vmatprep.subr.bf16.mxu0 0
      %385 = vmatpush1.bf16.msra.mxu0 0
      %386 = vmatprep.subr.bf16.mxu0 0
      %387 = vmatpush1.bf16.msra.mxu0 0
      %388 = vmatprep.subr.bf16.mxu0 0
      %389 = vmatpush1.bf16.msra.mxu0 0
      %390 = vmatprep.subr.bf16.mxu0 0
      %391 = vmatpush1.bf16.msra.mxu0 0
      %392 = vmatprep.subr.bf16.mxu0 0
      %393 = vmatpush1.bf16.msra.mxu0 0
      %394 = vmatprep.subr.bf16.mxu0 0
      %395 = vmatpush1.bf16.msra.mxu0 0
      %396 = vmatprep.mubr.bf16.mxu0 0
      %397 = vmatmul.mubr.bf16.gmra.mrb[0].mxu0 %v298
      %v398 = vpop.f32.mrb[0].mxu0
      %v399 = vadd.f32 0.0, %v398
      %v400 = vpop.f32.mrb[0].mxu0
      %v401 = vpop.f32.mrb[0].mxu0
      %v402 = vpop.f32.mrb[0].mxu0
      %403 = vdwg.mxu0
      %v420 = vunpack.c.l.b16 %v280
      %v421 = vunpack.c.l.b16 %v281
      %v422 = vunpack.c.l.b16 %v282
      %v423 = vunpack.c.l.b16 %v283
      %v424 = vunpack.c.l.b16 %v284
      %v425 = vunpack.c.l.b16 %v285
      %v426 = vunpack.c.l.b16 %v286
      %v427 = vunpack.c.l.b16 %v287
      %v428 = vunpack.c.l.b16 %v288
      %v429 = vunpack.c.l.b16 %v289
      %v430 = vunpack.c.l.b16 %v290
      %v431 = vunpack.c.l.b16 %v291
      %v432 = vunpack.c.l.b16 %v292
      %v433 = vunpack.c.l.b16 %v293
      %v434 = vunpack.c.l.b16 %v294
      %v435 = vunpack.c.l.b16 %v295
      %v436 = vpack.c.b16 %v421, %v420
      %v437 = vpack.c.b16 %v423, %v422
      %v438 = vpack.c.b16 %v425, %v424
      %v439 = vpack.c.b16 %v427, %v426
      %v440 = vpack.c.b16 %v429, %v428
      %v441 = vpack.c.b16 %v431, %v430
      %v442 = vpack.c.b16 %v433, %v432
      %v443 = vpack.c.b16 %v435, %v434
      %452 = vmatprep.subr.bf16.mxu0 0
      %453 = vmatpush1.bf16.msra.mxu0 %v436
      %454 = vmatprep.subr.bf16.mxu0 0
      %455 = vmatpush1.bf16.msra.mxu0 %v437
      %456 = vmatprep.subr.bf16.mxu0 0
      %457 = vmatpush1.bf16.msra.mxu0 %v438
      %458 = vmatprep.subr.bf16.mxu0 0
      %459 = vmatpush1.bf16.msra.mxu0 %v439
      %460 = vmatprep.subr.bf16.mxu0 0
      %461 = vmatpush1.bf16.msra.mxu0 %v440
      %462 = vmatprep.subr.bf16.mxu0 0
      %463 = vmatpush1.bf16.msra.mxu0 %v441
      %464 = vmatprep.subr.bf16.mxu0 0
      %465 = vmatpush1.bf16.msra.mxu0 %v442
      %466 = vmatprep.subr.bf16.mxu0 0
      %467 = vmatpush1.bf16.msra.mxu0 %v443
      %468 = vmatprep.subr.bf16.mxu0 0
      %469 = vmatpush1.bf16.msra.mxu0 0
      %470 = vmatprep.subr.bf16.mxu0 0
      %471 = vmatpush1.bf16.msra.mxu0 0
      %472 = vmatprep.subr.bf16.mxu0 0
      %473 = vmatpush1.bf16.msra.mxu0 0
      %474 = vmatprep.subr.bf16.mxu0 0
      %475 = vmatpush1.bf16.msra.mxu0 0
      %476 = vmatprep.subr.bf16.mxu0 0
      %477 = vmatpush1.bf16.msra.mxu0 0
      %478 = vmatprep.subr.bf16.mxu0 0
      %479 = vmatpush1.bf16.msra.mxu0 0
      %480 = vmatprep.subr.bf16.mxu0 0
      %481 = vmatpush1.bf16.msra.mxu0 0
      %482 = vmatprep.subr.bf16.mxu0 0
      %483 = vmatpush1.bf16.msra.mxu0 0
      %484 = vmatprep.mubr.bf16.mxu0 0
      %485 = vmatmul.mubr.bf16.gmra.mrb[0].mxu0 %v279
      %v486 = vpop.f32.mrb[0].mxu0
      %v487 = vadd.f32 %v399, %v486
      %v488 = vpop.f32.mrb[0].mxu0
      %v489 = vpop.f32.mrb[0].mxu0
      %v490 = vpop.f32.mrb[0].mxu0
      %491 = vdwg.mxu0
      %v492 = vld [vmem:[%s272 + $0x1] sm:$0xf]
      %v493 = vpack.c.bf16 %v492, %v492
      %s494 = scalar_lea.vmem %s1, 128
      %v495 = vld [vmem:[%s494] sm:$0xf]
      %v496 = vld [vmem:[%s494 + $0x4] sm:$0xf]
      %v497 = vld [vmem:[%s494 + $0x8] sm:$0xf]
      %v498 = vld [vmem:[%s494 + $0xc] sm:$0xf]
      %v499 = vld [vmem:[%s494 + $0x10] sm:$0xf]
      %v500 = vld [vmem:[%s494 + $0x14] sm:$0xf]
      %v501 = vld [vmem:[%s494 + $0x18] sm:$0xf]
      %v502 = vld [vmem:[%s494 + $0x1c] sm:$0xf]
      %v503 = vld [vmem:[%s494 + $0x20] sm:$0xf]
      %v504 = vld [vmem:[%s494 + $0x24] sm:$0xf]
      %v505 = vld [vmem:[%s494 + $0x28] sm:$0xf]
      %v506 = vld [vmem:[%s494 + $0x2c] sm:$0xf]
      %v507 = vld [vmem:[%s494 + $0x30] sm:$0xf]
      %v508 = vld [vmem:[%s494 + $0x34] sm:$0xf]
      %v509 = vld [vmem:[%s494 + $0x38] sm:$0xf]
      %v510 = vld [vmem:[%s494 + $0x3c] sm:$0xf]
      %v527 = vunpack.c.l.b16 %v495
      %v528 = vunpack.c.l.b16 %v496
      %v529 = vunpack.c.l.b16 %v497
      %v530 = vunpack.c.l.b16 %v498
      %v531 = vunpack.c.l.b16 %v499
      %v532 = vunpack.c.l.b16 %v500
      %v533 = vunpack.c.l.b16 %v501
      %v534 = vunpack.c.l.b16 %v502
      %v535 = vunpack.c.l.b16 %v503
      %v536 = vunpack.c.l.b16 %v504
      %v537 = vunpack.c.l.b16 %v505
      %v538 = vunpack.c.l.b16 %v506
      %v539 = vunpack.c.l.b16 %v507
      %v540 = vunpack.c.l.b16 %v508
      %v541 = vunpack.c.l.b16 %v509
      %v542 = vunpack.c.l.b16 %v510
      %v543 = vpack.c.b16 %v528, %v527
      %v544 = vpack.c.b16 %v530, %v529
      %v545 = vpack.c.b16 %v532, %v531
      %v546 = vpack.c.b16 %v534, %v533
      %v547 = vpack.c.b16 %v536, %v535
      %v548 = vpack.c.b16 %v538, %v537
      %v549 = vpack.c.b16 %v540, %v539
      %v550 = vpack.c.b16 %v542, %v541
      %559 = vmatprep.subr.bf16.mxu0 0
      %560 = vmatpush1.bf16.msra.mxu0 %v543
      %561 = vmatprep.subr.bf16.mxu0 0
      %562 = vmatpush1.bf16.msra.mxu0 %v544
      %563 = vmatprep.subr.bf16.mxu0 0
      %564 = vmatpush1.bf16.msra.mxu0 %v545
      %565 = vmatprep.subr.bf16.mxu0 0
      %566 = vmatpush1.bf16.msra.mxu0 %v546
      %567 = vmatprep.subr.bf16.mxu0 0
      %568 = vmatpush1.bf16.msra.mxu0 %v547
      %569 = vmatprep.subr.bf16.mxu0 0
      %570 = vmatpush1.bf16.msra.mxu0 %v548
      %571 = vmatprep.subr.bf16.mxu0 0
      %572 = vmatpush1.bf16.msra.mxu0 %v549
      %573 = vmatprep.subr.bf16.mxu0 0
      %574 = vmatpush1.bf16.msra.mxu0 %v550
      %575 = vmatprep.subr.bf16.mxu0 0
      %576 = vmatpush1.bf16.msra.mxu0 0
      %577 = vmatprep.subr.bf16.mxu0 0
      %578 = vmatpush1.bf16.msra.mxu0 0
      %579 = vmatprep.subr.bf16.mxu0 0
      %580 = vmatpush1.bf16.msra.mxu0 0
      %581 = vmatprep.subr.bf16.mxu0 0
      %582 = vmatpush1.bf16.msra.mxu0 0
      %583 = vmatprep.subr.bf16.mxu0 0
      %584 = vmatpush1.bf16.msra.mxu0 0
      %585 = vmatprep.subr.bf16.mxu0 0
      %586 = vmatpush1.bf16.msra.mxu0 0
      %587 = vmatprep.subr.bf16.mxu0 0
      %588 = vmatpush1.bf16.msra.mxu0 0
      %589 = vmatprep.subr.bf16.mxu0 0
      %590 = vmatpush1.bf16.msra.mxu0 0
      %591 = vmatprep.mubr.bf16.mxu0 0
      %592 = vmatmul.mubr.bf16.gmra.mrb[0].mxu0 %v493
      %v593 = vpop.f32.mrb[0].mxu0
      %v594 = vadd.f32 0.0, %v593
      %v595 = vpop.f32.mrb[0].mxu0
      %v596 = vpop.f32.mrb[0].mxu0
      %v597 = vpop.f32.mrb[0].mxu0
      %598 = vdwg.mxu0
      %v599 = vadd.f32 %v487, %v594
      %v600 = vld [vmem:[%s2] sm:$0x1]
      %v602 = vlaneseq
      %v603 = vshrl.u32 %v602, 7
      %v604 = vsub.s32 0, %v603
      %v605 = vrot.slane %v600, %v604
      %v607 = vadd.f32 %v599, %v605
      %v608 = vmax.f32 %v607, 0.0
      %v609 = vld [vmem:[%s5] sm:$0xf]
      %v610 = vld [vmem:[%s5 + $0x4] sm:$0xf]
      %v611 = vld [vmem:[%s5 + $0x8] sm:$0xf]
      %v612 = vld [vmem:[%s5 + $0xc] sm:$0xf]
      %v613 = vld [vmem:[%s5 + $0x10] sm:$0xf]
      %v614 = vld [vmem:[%s5 + $0x14] sm:$0xf]
      %v615 = vld [vmem:[%s5 + $0x18] sm:$0xf]
      %v616 = vld [vmem:[%s5 + $0x1c] sm:$0xf]
      %v617 = vld [vmem:[%s5 + $0x20] sm:$0xf]
      %v618 = vld [vmem:[%s5 + $0x24] sm:$0xf]
      %v619 = vld [vmem:[%s5 + $0x28] sm:$0xf]
      %v620 = vld [vmem:[%s5 + $0x2c] sm:$0xf]
      %v621 = vld [vmem:[%s5 + $0x30] sm:$0xf]
      %v622 = vld [vmem:[%s5 + $0x34] sm:$0xf]
      %v623 = vld [vmem:[%s5 + $0x38] sm:$0xf]
      %v624 = vld [vmem:[%s5 + $0x3c] sm:$0xf]
      %v625 = vld [vmem:[%s6] sm:$0x1]
      %v627 = vlaneseq
      %v628 = vshrl.u32 %v627, 7
      %v629 = vsub.s32 0, %v628
      %v630 = vrot.slane %v625, %v629
      %v648 = vunpack.c.l.b16 %v609
      %v649 = vunpack.c.l.b16 %v610
      %v650 = vunpack.c.l.b16 %v611
      %v651 = vunpack.c.l.b16 %v612
      %v652 = vunpack.c.l.b16 %v613
      %v653 = vunpack.c.l.b16 %v614
      %v654 = vunpack.c.l.b16 %v615
      %v655 = vunpack.c.l.b16 %v616
      %v656 = vunpack.c.l.b16 %v617
      %v657 = vunpack.c.l.b16 %v618
      %v658 = vunpack.c.l.b16 %v619
      %v659 = vunpack.c.l.b16 %v620
      %v660 = vunpack.c.l.b16 %v621
      %v661 = vunpack.c.l.b16 %v622
      %v662 = vunpack.c.l.b16 %v623
      %v663 = vunpack.c.l.b16 %v624
      %v664 = vpack.c.b16 %v649, %v648
      %v665 = vpack.c.b16 %v651, %v650
      %v666 = vpack.c.b16 %v653, %v652
      %v667 = vpack.c.b16 %v655, %v654
      %v668 = vpack.c.b16 %v657, %v656
      %v669 = vpack.c.b16 %v659, %v658
      %v670 = vpack.c.b16 %v661, %v660
      %v671 = vpack.c.b16 %v663, %v662
      %680 = vmatprep.subr.bf16.mxu0 0
      %681 = vmatpush1.bf16.msra.mxu0 %v664
      %682 = vmatprep.subr.bf16.mxu0 0
      %683 = vmatpush1.bf16.msra.mxu0 %v665
      %684 = vmatprep.subr.bf16.mxu0 0
      %685 = vmatpush1.bf16.msra.mxu0 %v666
      %686 = vmatprep.subr.bf16.mxu0 0
      %687 = vmatpush1.bf16.msra.mxu0 %v667
      %688 = vmatprep.subr.bf16.mxu0 0
      %689 = vmatpush1.bf16.msra.mxu0 %v668
      %690 = vmatprep.subr.bf16.mxu0 0
      %691 = vmatpush1.bf16.msra.mxu0 %v669
      %692 = vmatprep.subr.bf16.mxu0 0
      %693 = vmatpush1.bf16.msra.mxu0 %v670
      %694 = vmatprep.subr.bf16.mxu0 0
      %695 = vmatpush1.bf16.msra.mxu0 %v671
      %696 = vmatprep.subr.bf16.mxu0 0
      %697 = vmatpush1.bf16.msra.mxu0 0
      %698 = vmatprep.subr.bf16.mxu0 0
      %699 = vmatpush1.bf16.msra.mxu0 0
      %700 = vmatprep.subr.bf16.mxu0 0
      %701 = vmatpush1.bf16.msra.mxu0 0
      %702 = vmatprep.subr.bf16.mxu0 0
      %703 = vmatpush1.bf16.msra.mxu0 0
      %704 = vmatprep.subr.bf16.mxu0 0
      %705 = vmatpush1.bf16.msra.mxu0 0
      %706 = vmatprep.subr.bf16.mxu0 0
      %707 = vmatpush1.bf16.msra.mxu0 0
      %708 = vmatprep.subr.bf16.mxu0 0
      %709 = vmatpush1.bf16.msra.mxu0 0
      %710 = vmatprep.subr.bf16.mxu0 0
      %711 = vmatpush1.bf16.msra.mxu0 0
      %712 = vmatprep.mubr.bf16.mxu0 0
      %713 = vmatmul.mubr.bf16.gmra.mrb[0].mxu0 %v298
      %v714 = vpop.f32.mrb[0].mxu0
      %v715 = vadd.f32 %v630, %v714
      %v716 = vpop.f32.mrb[0].mxu0
      %v717 = vpop.f32.mrb[0].mxu0
      %v718 = vpop.f32.mrb[0].mxu0
      %719 = vdwg.mxu0
      %720 = vst [vmem:[#allocation2] sm:$0x3f] 0.0
      %721 = vst [vmem:[#allocation2 + $0x1] sm:$0xf] %v608
      %v722 = vld [vmem:[#allocation2] sm:$0xf]
      %v723 = vpack.c.bf16 %v722, %v722
      %v724 = vld [vmem:[%s3] sm:$0xf]
      %v725 = vld [vmem:[%s3 + $0x4] sm:$0xf]
      %v726 = vld [vmem:[%s3 + $0x8] sm:$0xf]
      %v727 = vld [vmem:[%s3 + $0xc] sm:$0xf]
      %v728 = vld [vmem:[%s3 + $0x10] sm:$0xf]
      %v729 = vld [vmem:[%s3 + $0x14] sm:$0xf]
      %v730 = vld [vmem:[%s3 + $0x18] sm:$0xf]
      %v731 = vld [vmem:[%s3 + $0x1c] sm:$0xf]
      %v732 = vld [vmem:[%s3 + $0x20] sm:$0xf]
      %v733 = vld [vmem:[%s3 + $0x24] sm:$0xf]
      %v734 = vld [vmem:[%s3 + $0x28] sm:$0xf]
      %v735 = vld [vmem:[%s3 + $0x2c] sm:$0xf]
      %v736 = vld [vmem:[%s3 + $0x30] sm:$0xf]
      %v737 = vld [vmem:[%s3 + $0x34] sm:$0xf]
      %v738 = vld [vmem:[%s3 + $0x38] sm:$0xf]
      %v739 = vld [vmem:[%s3 + $0x3c] sm:$0xf]
      %v740 = vld [vmem:[#allocation2 + $0x1] sm:$0xf]
      %v741 = vpack.c.bf16 %v740, %v740
      %s742 = scalar_lea.vmem %s3, 64
      %v743 = vld [vmem:[%s742] sm:$0xf]
      %v744 = vld [vmem:[%s742 + $0x4] sm:$0xf]
      %v745 = vld [vmem:[%s742 + $0x8] sm:$0xf]
      %v746 = vld [vmem:[%s742 + $0xc] sm:$0xf]
      %v747 = vld [vmem:[%s742 + $0x10] sm:$0xf]
      %v748 = vld [vmem:[%s742 + $0x14] sm:$0xf]
      %v749 = vld [vmem:[%s742 + $0x18] sm:$0xf]
      %v750 = vld [vmem:[%s742 + $0x1c] sm:$0xf]
      %v751 = vld [vmem:[%s742 + $0x20] sm:$0xf]
      %v752 = vld [vmem:[%s742 + $0x24] sm:$0xf]
      %v753 = vld [vmem:[%s742 + $0x28] sm:$0xf]
      %v754 = vld [vmem:[%s742 + $0x2c] sm:$0xf]
      %v755 = vld [vmem:[%s742 + $0x30] sm:$0xf]
      %v756 = vld [vmem:[%s742 + $0x34] sm:$0xf]
      %v757 = vld [vmem:[%s742 + $0x38] sm:$0xf]
      %v758 = vld [vmem:[%s742 + $0x3c] sm:$0xf]
      %v775 = vunpack.c.l.b16 %v743
      %v776 = vunpack.c.l.b16 %v744
      %v777 = vunpack.c.l.b16 %v745
      %v778 = vunpack.c.l.b16 %v746
      %v779 = vunpack.c.l.b16 %v747
      %v780 = vunpack.c.l.b16 %v748
      %v781 = vunpack.c.l.b16 %v749
      %v782 = vunpack.c.l.b16 %v750
      %v783 = vunpack.c.l.b16 %v751
      %v784 = vunpack.c.l.b16 %v752
      %v785 = vunpack.c.l.b16 %v753
      %v786 = vunpack.c.l.b16 %v754
      %v787 = vunpack.c.l.b16 %v755
      %v788 = vunpack.c.l.b16 %v756
      %v789 = vunpack.c.l.b16 %v757
      %v790 = vunpack.c.l.b16 %v758
      %v791 = vpack.c.b16 %v776, %v775
      %v792 = vpack.c.b16 %v778, %v777
      %v793 = vpack.c.b16 %v780, %v779
      %v794 = vpack.c.b16 %v782, %v781
      %v795 = vpack.c.b16 %v784, %v783
      %v796 = vpack.c.b16 %v786, %v785
      %v797 = vpack.c.b16 %v788, %v787
      %v798 = vpack.c.b16 %v790, %v789
      %807 = vmatprep.subr.bf16.mxu0 0
      %808 = vmatpush1.bf16.msra.mxu0 %v791
      %809 = vmatprep.subr.bf16.mxu0 0
      %810 = vmatpush1.bf16.msra.mxu0 %v792
      %811 = vmatprep.subr.bf16.mxu0 0
      %812 = vmatpush1.bf16.msra.mxu0 %v793
      %813 = vmatprep.subr.bf16.mxu0 0
      %814 = vmatpush1.bf16.msra.mxu0 %v794
      %815 = vmatprep.subr.bf16.mxu0 0
      %816 = vmatpush1.bf16.msra.mxu0 %v795
      %817 = vmatprep.subr.bf16.mxu0 0
      %818 = vmatpush1.bf16.msra.mxu0 %v796
      %819 = vmatprep.subr.bf16.mxu0 0
      %820 = vmatpush1.bf16.msra.mxu0 %v797
      %821 = vmatprep.subr.bf16.mxu0 0
      %822 = vmatpush1.bf16.msra.mxu0 %v798
      %823 = vmatprep.subr.bf16.mxu0 0
      %824 = vmatpush1.bf16.msra.mxu0 0
      %825 = vmatprep.subr.bf16.mxu0 0
      %826 = vmatpush1.bf16.msra.mxu0 0
      %827 = vmatprep.subr.bf16.mxu0 0
      %828 = vmatpush1.bf16.msra.mxu0 0
      %829 = vmatprep.subr.bf16.mxu0 0
      %830 = vmatpush1.bf16.msra.mxu0 0
      %831 = vmatprep.subr.bf16.mxu0 0
      %832 = vmatpush1.bf16.msra.mxu0 0
      %833 = vmatprep.subr.bf16.mxu0 0
      %834 = vmatpush1.bf16.msra.mxu0 0
      %835 = vmatprep.subr.bf16.mxu0 0
      %836 = vmatpush1.bf16.msra.mxu0 0
      %837 = vmatprep.subr.bf16.mxu0 0
      %838 = vmatpush1.bf16.msra.mxu0 0
      %839 = vmatprep.mubr.bf16.mxu0 0
      %840 = vmatmul.mubr.bf16.gmra.mrb[0].mxu0 %v741
      %v841 = vpop.f32.mrb[0].mxu0
      %v842 = vadd.f32 0.0, %v841
      %v843 = vpop.f32.mrb[0].mxu0
      %v844 = vpop.f32.mrb[0].mxu0
      %v845 = vpop.f32.mrb[0].mxu0
      %846 = vdwg.mxu0
      %v863 = vunpack.c.l.b16 %v724
      %v864 = vunpack.c.l.b16 %v725
      %v865 = vunpack.c.l.b16 %v726
      %v866 = vunpack.c.l.b16 %v727
      %v867 = vunpack.c.l.b16 %v728
      %v868 = vunpack.c.l.b16 %v729
      %v869 = vunpack.c.l.b16 %v730
      %v870 = vunpack.c.l.b16 %v731
      %v871 = vunpack.c.l.b16 %v732
      %v872 = vunpack.c.l.b16 %v733
      %v873 = vunpack.c.l.b16 %v734
      %v874 = vunpack.c.l.b16 %v735
      %v875 = vunpack.c.l.b16 %v736
      %v876 = vunpack.c.l.b16 %v737
      %v877 = vunpack.c.l.b16 %v738
      %v878 = vunpack.c.l.b16 %v739
      %v879 = vpack.c.b16 %v864, %v863
      %v880 = vpack.c.b16 %v866, %v865
      %v881 = vpack.c.b16 %v868, %v867
      %v882 = vpack.c.b16 %v870, %v869
      %v883 = vpack.c.b16 %v872, %v871
      %v884 = vpack.c.b16 %v874, %v873
      %v885 = vpack.c.b16 %v876, %v875
      %v886 = vpack.c.b16 %v878, %v877
      %895 = vmatprep.subr.bf16.mxu0 0
      %896 = vmatpush1.bf16.msra.mxu0 %v879
      %897 = vmatprep.subr.bf16.mxu0 0
      %898 = vmatpush1.bf16.msra.mxu0 %v880
      %899 = vmatprep.subr.bf16.mxu0 0
      %900 = vmatpush1.bf16.msra.mxu0 %v881
      %901 = vmatprep.subr.bf16.mxu0 0
      %902 = vmatpush1.bf16.msra.mxu0 %v882
      %903 = vmatprep.subr.bf16.mxu0 0
      %904 = vmatpush1.bf16.msra.mxu0 %v883
      %905 = vmatprep.subr.bf16.mxu0 0
      %906 = vmatpush1.bf16.msra.mxu0 %v884
      %907 = vmatprep.subr.bf16.mxu0 0
      %908 = vmatpush1.bf16.msra.mxu0 %v885
      %909 = vmatprep.subr.bf16.mxu0 0
      %910 = vmatpush1.bf16.msra.mxu0 %v886
      %911 = vmatprep.subr.bf16.mxu0 0
      %912 = vmatpush1.bf16.msra.mxu0 0
      %913 = vmatprep.subr.bf16.mxu0 0
      %914 = vmatpush1.bf16.msra.mxu0 0
      %915 = vmatprep.subr.bf16.mxu0 0
      %916 = vmatpush1.bf16.msra.mxu0 0
      %917 = vmatprep.subr.bf16.mxu0 0
      %918 = vmatpush1.bf16.msra.mxu0 0
      %919 = vmatprep.subr.bf16.mxu0 0
      %920 = vmatpush1.bf16.msra.mxu0 0
      %921 = vmatprep.subr.bf16.mxu0 0
      %922 = vmatpush1.bf16.msra.mxu0 0
      %923 = vmatprep.subr.bf16.mxu0 0
      %924 = vmatpush1.bf16.msra.mxu0 0
      %925 = vmatprep.subr.bf16.mxu0 0
      %926 = vmatpush1.bf16.msra.mxu0 0
      %927 = vmatprep.mubr.bf16.mxu0 0
      %928 = vmatmul.mubr.bf16.gmra.mrb[0].mxu0 %v723
      %v929 = vpop.f32.mrb[0].mxu0
      %v930 = vadd.f32 %v842, %v929
      %v931 = vpop.f32.mrb[0].mxu0
      %v932 = vpop.f32.mrb[0].mxu0
      %v933 = vpop.f32.mrb[0].mxu0
      %934 = vdwg.mxu0
      %v935 = vld [vmem:[#allocation2 + $0x2] sm:$0xf]
      %v936 = vpack.c.bf16 %v935, %v935
      %s937 = scalar_lea.vmem %s3, 128
      %v938 = vld [vmem:[%s937] sm:$0xf]
      %v939 = vld [vmem:[%s937 + $0x4] sm:$0xf]
      %v940 = vld [vmem:[%s937 + $0x8] sm:$0xf]
      %v941 = vld [vmem:[%s937 + $0xc] sm:$0xf]
      %v942 = vld [vmem:[%s937 + $0x10] sm:$0xf]
      %v943 = vld [vmem:[%s937 + $0x14] sm:$0xf]
      %v944 = vld [vmem:[%s937 + $0x18] sm:$0xf]
      %v945 = vld [vmem:[%s937 + $0x1c] sm:$0xf]
      %v946 = vld [vmem:[%s937 + $0x20] sm:$0xf]
      %v947 = vld [vmem:[%s937 + $0x24] sm:$0xf]
      %v948 = vld [vmem:[%s937 + $0x28] sm:$0xf]
      %v949 = vld [vmem:[%s937 + $0x2c] sm:$0xf]
      %v950 = vld [vmem:[%s937 + $0x30] sm:$0xf]
      %v951 = vld [vmem:[%s937 + $0x34] sm:$0xf]
      %v952 = vld [vmem:[%s937 + $0x38] sm:$0xf]
      %v953 = vld [vmem:[%s937 + $0x3c] sm:$0xf]
      %v970 = vunpack.c.l.b16 %v938
      %v971 = vunpack.c.l.b16 %v939
      %v972 = vunpack.c.l.b16 %v940
      %v973 = vunpack.c.l.b16 %v941
      %v974 = vunpack.c.l.b16 %v942
      %v975 = vunpack.c.l.b16 %v943
      %v976 = vunpack.c.l.b16 %v944
      %v977 = vunpack.c.l.b16 %v945
      %v978 = vunpack.c.l.b16 %v946
      %v979 = vunpack.c.l.b16 %v947
      %v980 = vunpack.c.l.b16 %v948
      %v981 = vunpack.c.l.b16 %v949
      %v982 = vunpack.c.l.b16 %v950
      %v983 = vunpack.c.l.b16 %v951
      %v984 = vunpack.c.l.b16 %v952
      %v985 = vunpack.c.l.b16 %v953
      %v986 = vpack.c.b16 %v971, %v970
      %v987 = vpack.c.b16 %v973, %v972
      %v988 = vpack.c.b16 %v975, %v974
      %v989 = vpack.c.b16 %v977, %v976
      %v990 = vpack.c.b16 %v979, %v978
      %v991 = vpack.c.b16 %v981, %v980
      %v992 = vpack.c.b16 %v983, %v982
      %v993 = vpack.c.b16 %v985, %v984
      %1002 = vmatprep.subr.bf16.mxu0 0
      %1003 = vmatpush1.bf16.msra.mxu0 %v986
      %1004 = vmatprep.subr.bf16.mxu0 0
      %1005 = vmatpush1.bf16.msra.mxu0 %v987
      %1006 = vmatprep.subr.bf16.mxu0 0
      %1007 = vmatpush1.bf16.msra.mxu0 %v988
      %1008 = vmatprep.subr.bf16.mxu0 0
      %1009 = vmatpush1.bf16.msra.mxu0 %v989
      %1010 = vmatprep.subr.bf16.mxu0 0
      %1011 = vmatpush1.bf16.msra.mxu0 %v990
      %1012 = vmatprep.subr.bf16.mxu0 0
      %1013 = vmatpush1.bf16.msra.mxu0 %v991
      %1014 = vmatprep.subr.bf16.mxu0 0
      %1015 = vmatpush1.bf16.msra.mxu0 %v992
      %1016 = vmatprep.subr.bf16.mxu0 0
      %1017 = vmatpush1.bf16.msra.mxu0 %v993
      %1018 = vmatprep.subr.bf16.mxu0 0
      %1019 = vmatpush1.bf16.msra.mxu0 0
      %1020 = vmatprep.subr.bf16.mxu0 0
      %1021 = vmatpush1.bf16.msra.mxu0 0
      %1022 = vmatprep.subr.bf16.mxu0 0
      %1023 = vmatpush1.bf16.msra.mxu0 0
      %1024 = vmatprep.subr.bf16.mxu0 0
      %1025 = vmatpush1.bf16.msra.mxu0 0
      %1026 = vmatprep.subr.bf16.mxu0 0
      %1027 = vmatpush1.bf16.msra.mxu0 0
      %1028 = vmatprep.subr.bf16.mxu0 0
      %1029 = vmatpush1.bf16.msra.mxu0 0
      %1030 = vmatprep.subr.bf16.mxu0 0
      %1031 = vmatpush1.bf16.msra.mxu0 0
      %1032 = vmatprep.subr.bf16.mxu0 0
      %1033 = vmatpush1.bf16.msra.mxu0 0
      %1034 = vmatprep.mubr.bf16.mxu0 0
      %1035 = vmatmul.mubr.bf16.gmra.mrb[0].mxu0 %v936
      %v1036 = vpop.f32.mrb[0].mxu0
      %v1037 = vadd.f32 0.0, %v1036
      %v1038 = vpop.f32.mrb[0].mxu0
      %v1039 = vpop.f32.mrb[0].mxu0
      %v1040 = vpop.f32.mrb[0].mxu0
      %1041 = vdwg.mxu0
      %v1042 = vadd.f32 %v930, %v1037
      %v1043 = vld [vmem:[%s4] sm:$0x1]
      %v1045 = vlaneseq
      %v1046 = vshrl.u32 %v1045, 7
      %v1047 = vsub.s32 0, %v1046
      %v1048 = vrot.slane %v1043, %v1047
      %v1050 = vadd.f32 %v1042, %v1048
      %v1051 = vadd.f32 %v1050, %v715
      %v1052 = vmax.f32 %v1051, 0.0
      %1053 = vst [vmem:[%s276] sm:$0xf] %v1052
      %p1054 = scmp.lt.s32.totalorder %s18, 1
      %s1055 = scalar_select %p1054, %s18, 1
      %s1056 = smul.addr %s1055, 4
      %s1057 = scalar_lea.vmem %s7, %s1056
      // Predicated region
      $region49: #{_lambda_.10} parent=47 // pred_check
        %p1058 = pneg %p188
      $region50: #{_lambda_.10} parent=47 // pred_check_branch
        %1060 = sbr.rel (%p1058) target = $region52
      $region51: #{_lambda_.10} parent=47 // pred_region
        _
      $region52: #{_lambda_.10} parent=47 // pred_fallthru
        _
    $region48: #{_lambda_.10} parent=5 // pred_fallthru
      _
    %p1061 = scmp.le.s32.totalorder 2, %s13
    // Predicated region
    $region53: #{_lambda_.10} parent=5 // pred_check
      %p1062 = pneg %p1061
    $region54: #{_lambda_.10} parent=5 // pred_check_branch
      %1064 = sbr.rel (%p1062) target = $region56
    $region55: #{_lambda_.10} parent=5 // pred_region
      %s1065 = ssub.s32 %s13, 2
      // Predicated region
      $region57: #{_lambda_.10} parent=55 // pred_check
        %p1066 = pneg %p194
      $region58: #{_lambda_.10} parent=55 // pred_check_branch
        %1068 = sbr.rel (%p1066) target = $region60
      $region59: #{_lambda_.10} parent=55 // pred_region
        %p1069 = scmp.lt.s32.totalorder %s19, 1
        %s1070 = scalar_select %p1069, %s19, 1
        %s1071 = smul.addr %s1070, 4
        %s1072 = scalar_lea.vmem %s7, %s1071
      $region60: #{_lambda_.10} parent=55 // pred_fallthru
        _
    $region56: #{_lambda_.10} parent=5 // pred_fallthru
      _
  $region6: #{_lambda_.10} parent=0 // loop_footer
    %s17 = sadd.s32 1, %s13
  $region7: #{_lambda_.10} parent=0 // loop_footer_branch
    %12 = sbr.rel target = $region3
  $region8: #{_lambda_.10} parent=0 // loop_exit
    _

// kernel: _lambda_.8
$region0: #{_lambda_.8}
  #allocation0 [shape = 'u32[]', space=smem, size = 0x4, offset = 0x4, fixed_abs, tag = 'smem constant byte address 0x4 - core index']
  #allocation1 [shape = 'u32[144,128]{1,0:T(1,128)}', space=vmem, size = 0x12000, scoped, tag = 'internal scratch']
  #allocation2 [shape = 'f32[10,128]{1,0:T(8,128)}', space=vmem, size = 0x2000, scoped, tag = 'scratch operand']
  %s0 = inlined_call_operand.vmem [shape: f32[2,1,10,128], index: 0, kind: input, shape index: {}]
  %s1 = inlined_call_operand.vmem [shape: bf16[3,128,128], index: 1, kind: input, shape index: {}]
  %s2 = inlined_call_operand.vmem [shape: f32[1,128], index: 2, kind: input, shape index: {}]
  %s3 = inlined_call_operand.vmem [shape: bf16[3,128,128], index: 3, kind: input, shape index: {}]
  %s4 = inlined_call_operand.vmem [shape: f32[1,128], index: 4, kind: input, shape index: {}]
  %s5 = inlined_call_operand.vmem [shape: f32[2,8,128], index: 5, kind: output, shape index: {}]
  %s6 = sld [smem:[#allocation0]]
  $region53: #{_lambda_.8} parent=0
    _
  %s8 = ssub.s32 1, %s6
  %s9 = scalar_select 0, %s8, %s6
  loop: start=0, step=1, limit=4
  $region2: #{_lambda_.8} parent=0 // loop_pre_header
    _
  $region3: #{_lambda_.8} parent=0 // loop_header
    %s11 = sphi 0, %s15
    %p12 = scmp.ge.s32.totalorder %s11, 4
    %s21 = sphi 0, %s23
    %s24 = sphi 0, %s21
    %s25 = sphi 0, %s24
    %s41 = sphi 0, %s25
    %s45 = sphi 0, %s45
    %s47 = sphi 0, %s45
    %s48 = sphi 0, %s47
    %s62 = sphi 0, %s48
    %s66 = sphi 0, %s66
    %s68 = sphi 0, %s66
    %s69 = sphi 0, %s68
    %s83 = sphi 0, %s69
    %s87 = sphi 0, %s87
    %s89 = sphi 0, %s87
    %s90 = sphi 0, %s89
    %s104 = sphi 0, %s90
    %s108 = sphi 0, %s108
    %s110 = sphi 0, %s108
    %s111 = sphi 0, %s110
    %s125 = sphi 0, %s111
    %s131 = sphi 0, %s133
    %s134 = sphi 0, %s131
    %s135 = sphi 0, %s134
    %s151 = sphi 0, %s135
  $region4: #{_lambda_.8} parent=0 // loop_header_branch
    %14 = sbr.rel (%p12) target = $region8
  $region5: #{_lambda_.8} parent=0 // loop_body
    %s16 = ssub.s32 %s11, 1
    %s17 = ssub.s32 %s11, 2
    %s18 = sadd.s32 %s11, 1
    %s19 = ssub.s32 %s11, %s18
    %p20 = scmp.eq.s32.totalorder %s19, 0
    %s22 = sadd.s32 %s21, 1
    %s23 = scalar_select %p20, %s21, %s22
    %p26 = pneg %p20
    %p27 = scmp.eq.s32.totalorder %s11, 1
    %p28 = por %p26, %p27
    %p29 = scmp.ne.s32.totalorder %s21, %s24
    %p30 = scmp.eq.s32.totalorder %s11, 0
    %p31 = por %p29, %p30
    %p32 = scmp.ne.s32.totalorder %s21, %s24
    %p33 = scmp.eq.s32.totalorder %s16, 1
    %p34 = por %p32, %p33
    %p35 = scmp.ne.s32.totalorder %s24, %s25
    %p36 = scmp.eq.s32.totalorder %s16, 0
    %p37 = por %p35, %p36
    %p38 = scmp.ne.s32.totalorder %s24, %s25
    %p39 = scmp.eq.s32.totalorder %s17, 1
    %p40 = por %p38, %p39
    %p42 = scmp.ne.s32.totalorder %s25, %s41
    %p43 = scmp.eq.s32.totalorder %s17, 0
    %p44 = por %p42, %p43
    %s46 = sadd.s32 %s45, 1
    %p49 = scmp.eq.s32.totalorder %s11, 1
    %p50 = scmp.ne.s32.totalorder %s45, %s47
    %p51 = scmp.eq.s32.totalorder %s11, 0
    %p52 = por %p50, %p51
    %p53 = scmp.ne.s32.totalorder %s45, %s47
    %p54 = scmp.eq.s32.totalorder %s16, 1
    %p55 = por %p53, %p54
    %p56 = scmp.ne.s32.totalorder %s47, %s48
    %p57 = scmp.eq.s32.totalorder %s16, 0
    %p58 = por %p56, %p57
    %p59 = scmp.ne.s32.totalorder %s47, %s48
    %p60 = scmp.eq.s32.totalorder %s17, 1
    %p61 = por %p59, %p60
    %p63 = scmp.ne.s32.totalorder %s48, %s62
    %p64 = scmp.eq.s32.totalorder %s17, 0
    %p65 = por %p63, %p64
    %s67 = sadd.s32 %s66, 1
    %p70 = scmp.eq.s32.totalorder %s11, 1
    %p71 = scmp.ne.s32.totalorder %s66, %s68
    %p72 = scmp.eq.s32.totalorder %s11, 0
    %p73 = por %p71, %p72
    %p74 = scmp.ne.s32.totalorder %s66, %s68
    %p75 = scmp.eq.s32.totalorder %s16, 1
    %p76 = por %p74, %p75
    %p77 = scmp.ne.s32.totalorder %s68, %s69
    %p78 = scmp.eq.s32.totalorder %s16, 0
    %p79 = por %p77, %p78
    %p80 = scmp.ne.s32.totalorder %s68, %s69
    %p81 = scmp.eq.s32.totalorder %s17, 1
    %p82 = por %p80, %p81
    %p84 = scmp.ne.s32.totalorder %s69, %s83
    %p85 = scmp.eq.s32.totalorder %s17, 0
    %p86 = por %p84, %p85
    %s88 = sadd.s32 %s87, 1
    %p91 = scmp.eq.s32.totalorder %s11, 1
    %p92 = scmp.ne.s32.totalorder %s87, %s89
    %p93 = scmp.eq.s32.totalorder %s11, 0
    %p94 = por %p92, %p93
    %p95 = scmp.ne.s32.totalorder %s87, %s89
    %p96 = scmp.eq.s32.totalorder %s16, 1
    %p97 = por %p95, %p96
    %p98 = scmp.ne.s32.totalorder %s89, %s90
    %p99 = scmp.eq.s32.totalorder %s16, 0
    %p100 = por %p98, %p99
    %p101 = scmp.ne.s32.totalorder %s89, %s90
    %p102 = scmp.eq.s32.totalorder %s17, 1
    %p103 = por %p101, %p102
    %p105 = scmp.ne.s32.totalorder %s90, %s104
    %p106 = scmp.eq.s32.totalorder %s17, 0
    %p107 = por %p105, %p106
    %s109 = sadd.s32 %s108, 1
    %p112 = scmp.eq.s32.totalorder %s11, 1
    %p113 = scmp.ne.s32.totalorder %s108, %s110
    %p114 = scmp.eq.s32.totalorder %s11, 0
    %p115 = por %p113, %p114
    %p116 = scmp.ne.s32.totalorder %s108, %s110
    %p117 = scmp.eq.s32.totalorder %s16, 1
    %p118 = por %p116, %p117
    %p119 = scmp.ne.s32.totalorder %s110, %s111
    %p120 = scmp.eq.s32.totalorder %s16, 0
    %p121 = por %p119, %p120
    %p122 = scmp.ne.s32.totalorder %s110, %s111
    %p123 = scmp.eq.s32.totalorder %s17, 1
    %p124 = por %p122, %p123
    %p126 = scmp.ne.s32.totalorder %s111, %s125
    %p127 = scmp.eq.s32.totalorder %s17, 0
    %p128 = por %p126, %p127
    %s129 = ssub.s32 %s11, %s18
    %p130 = scmp.eq.s32.totalorder %s129, 0
    %s132 = sadd.s32 %s131, 1
    %s133 = scalar_select %p130, %s131, %s132
    %p136 = pneg %p130
    %p137 = scmp.eq.s32.totalorder %s11, 1
    %p138 = por %p136, %p137
    %p139 = scmp.ne.s32.totalorder %s131, %s134
    %p140 = scmp.eq.s32.totalorder %s11, 0
    %p141 = por %p139, %p140
    %p142 = scmp.ne.s32.totalorder %s131, %s134
    %p143 = scmp.eq.s32.totalorder %s16, 1
    %p144 = por %p142, %p143
    %p145 = scmp.ne.s32.totalorder %s134, %s135
    %p146 = scmp.eq.s32.totalorder %s16, 0
    %p147 = por %p145, %p146
    %p148 = scmp.ne.s32.totalorder %s134, %s135
    %p149 = scmp.eq.s32.totalorder %s17, 1
    %p150 = por %p148, %p149
    %p152 = scmp.ne.s32.totalorder %s135, %s151
    %p153 = scmp.eq.s32.totalorder %s17, 0
    %p154 = por %p152, %p153
    %p155 = scmp.le.s32.totalorder 1, %s11
    %p156 = scmp.lt.s32.totalorder %s11, 3
    %p157 = pnand %p155, %p156
    %p158 = pneg %p157
    // Predicated region
    $region9: #{_lambda_.8} parent=5 // pred_check
      _
    $region10: #{_lambda_.8} parent=5 // pred_check_branch
      %160 = sbr.rel (%p157) target = $region12
    $region11: #{_lambda_.8} parent=5 // pred_region
      %s161 = ssub.s32 %s11, 1
      // Predicated region
      $region13: #{_lambda_.8} parent=11 // pred_check
        %p162 = pneg %p58
      $region14: #{_lambda_.8} parent=11 // pred_check_branch
        %164 = sbr.rel (%p162) target = $region16
      $region15: #{_lambda_.8} parent=11 // pred_region
        _
      $region16: #{_lambda_.8} parent=11 // pred_fallthru
        _
      // Predicated region
      $region17: #{_lambda_.8} parent=11 // pred_check
        %p165 = pneg %p79
      $region18: #{_lambda_.8} parent=11 // pred_check_branch
        %167 = sbr.rel (%p165) target = $region20
      $region19: #{_lambda_.8} parent=11 // pred_region
        _
      $region20: #{_lambda_.8} parent=11 // pred_fallthru
        _
      // Predicated region
      $region21: #{_lambda_.8} parent=11 // pred_check
        %p168 = pneg %p100
      $region22: #{_lambda_.8} parent=11 // pred_check_branch
        %170 = sbr.rel (%p168) target = $region24
      $region23: #{_lambda_.8} parent=11 // pred_region
        _
      $region24: #{_lambda_.8} parent=11 // pred_fallthru
        _
      // Predicated region
      $region25: #{_lambda_.8} parent=11 // pred_check
        %p171 = pneg %p121
      $region26: #{_lambda_.8} parent=11 // pred_check_branch
        %173 = sbr.rel (%p171) target = $region28
      $region27: #{_lambda_.8} parent=11 // pred_region
        _
      $region28: #{_lambda_.8} parent=11 // pred_fallthru
        _
    $region12: #{_lambda_.8} parent=5 // pred_fallthru
      _
    %p174 = scmp.lt.s32.totalorder %s11, 2
    // Predicated region
    $region29: #{_lambda_.8} parent=5 // pred_check
      %p175 = pneg %p174
    $region30: #{_lambda_.8} parent=5 // pred_check_branch
      %177 = sbr.rel (%p175) target = $region32
    $region31: #{_lambda_.8} parent=5 // pred_region
      // Predicated region
      $region33: #{_lambda_.8} parent=31 // pred_check
        %p178 = pneg %p31
      $region34: #{_lambda_.8} parent=31 // pred_check_branch
        %180 = sbr.rel (%p178) target = $region36
      $region35: #{_lambda_.8} parent=31 // pred_region
        %p181 = scmp.lt.s32.totalorder %s11, 1
        %s182 = scalar_select %p181, %s11, 1
        %s183 = smul.addr %s182, 2
        %s184 = smul.addr %s183, 8
        %s185 = scalar_lea.vmem %s0, %s184
      $region36: #{_lambda_.8} parent=31 // pred_fallthru
        _
    $region32: #{_lambda_.8} parent=5 // pred_fallthru
      _
    %p186 = scmp.le.s32.totalorder 1, %s11
    %p187 = scmp.lt.s32.totalorder %s11, 3
    %p188 = pnand %p186, %p187
    %p189 = pneg %p188
    // Predicated region
    $region37: #{_lambda_.8} parent=5 // pred_check
      _
    $region38: #{_lambda_.8} parent=5 // pred_check_branch
      %191 = sbr.rel (%p188) target = $region40
    $region39: #{_lambda_.8} parent=5 // pred_region
      %s192 = ssub.s32 %s11, 1
      %p193 = scmp.lt.s32.totalorder %s16, 1
      %s194 = scalar_select %p193, %s16, 1
      %s195 = smul.addr %s194, 2
      %s196 = smul.addr %s195, 8
      %s197 = scalar_lea.vmem %s0, %s196
      %p198 = pneg %p37
      %p199 = pneg %p34
      %p200 = pneg %p58
      %p201 = pneg %p55
      %p202 = pneg %p79
      %p203 = pneg %p76
      %p204 = pneg %p100
      %p205 = pneg %p97
      %p206 = pneg %p121
      %p207 = pneg %p118
      %p208 = pneg %p147
      %p209 = pneg %p144
      %p210 = scmp.lt.s32.totalorder %s16, 1
      %s211 = scalar_select %p210, %s16, 1
      %s212 = smul.addr %s211, 8
      %s213 = scalar_lea.vmem %s5, %s212
      %p214 = scmp.lt.s32.totalorder %s16, 1
      %s215 = scalar_select %p214, %s16, 1
      %s216 = smul.addr %s215, 2
      %s217 = smul.addr %s216, 8
      %s218 = scalar_lea.vmem %s0, %s217
      %p219 = scmp.lt.s32.totalorder %s16, 1
      %s220 = scalar_select %p219, %s16, 1
      %s221 = smul.addr %s220, 8
      %s222 = scalar_lea.vmem %s5, %s221
      %v224 = vld [vmem:[%s218] sm:$0xff]
      %v225 = vpack.c.bf16 %v224, %v224
      %v226 = vld [vmem:[%s1] sm:$0xf]
      %v227 = vld [vmem:[%s1 + $0x4] sm:$0xf]
      %v228 = vld [vmem:[%s1 + $0x8] sm:$0xf]
      %v229 = vld [vmem:[%s1 + $0xc] sm:$0xf]
      %v230 = vld [vmem:[%s1 + $0x10] sm:$0xf]
      %v231 = vld [vmem:[%s1 + $0x14] sm:$0xf]
      %v232 = vld [vmem:[%s1 + $0x18] sm:$0xf]
      %v233 = vld [vmem:[%s1 + $0x1c] sm:$0xf]
      %v234 = vld [vmem:[%s1 + $0x20] sm:$0xf]
      %v235 = vld [vmem:[%s1 + $0x24] sm:$0xf]
      %v236 = vld [vmem:[%s1 + $0x28] sm:$0xf]
      %v237 = vld [vmem:[%s1 + $0x2c] sm:$0xf]
      %v238 = vld [vmem:[%s1 + $0x30] sm:$0xf]
      %v239 = vld [vmem:[%s1 + $0x34] sm:$0xf]
      %v240 = vld [vmem:[%s1 + $0x38] sm:$0xf]
      %v241 = vld [vmem:[%s1 + $0x3c] sm:$0xf]
      %v242 = vld [vmem:[%s218 + $0x1] sm:$0xff]
      %v243 = vpack.c.bf16 %v242, %v242
      %s244 = scalar_lea.vmem %s1, 64
      %v245 = vld [vmem:[%s244] sm:$0xf]
      %v246 = vld [vmem:[%s244 + $0x4] sm:$0xf]
      %v247 = vld [vmem:[%s244 + $0x8] sm:$0xf]
      %v248 = vld [vmem:[%s244 + $0xc] sm:$0xf]
      %v249 = vld [vmem:[%s244 + $0x10] sm:$0xf]
      %v250 = vld [vmem:[%s244 + $0x14] sm:$0xf]
      %v251 = vld [vmem:[%s244 + $0x18] sm:$0xf]
      %v252 = vld [vmem:[%s244 + $0x1c] sm:$0xf]
      %v253 = vld [vmem:[%s244 + $0x20] sm:$0xf]
      %v254 = vld [vmem:[%s244 + $0x24] sm:$0xf]
      %v255 = vld [vmem:[%s244 + $0x28] sm:$0xf]
      %v256 = vld [vmem:[%s244 + $0x2c] sm:$0xf]
      %v257 = vld [vmem:[%s244 + $0x30] sm:$0xf]
      %v258 = vld [vmem:[%s244 + $0x34] sm:$0xf]
      %v259 = vld [vmem:[%s244 + $0x38] sm:$0xf]
      %v260 = vld [vmem:[%s244 + $0x3c] sm:$0xf]
      %v277 = vunpack.c.l.b16 %v245
      %v278 = vunpack.c.l.b16 %v246
      %v279 = vunpack.c.l.b16 %v247
      %v280 = vunpack.c.l.b16 %v248
      %v281 = vunpack.c.l.b16 %v249
      %v282 = vunpack.c.l.b16 %v250
      %v283 = vunpack.c.l.b16 %v251
      %v284 = vunpack.c.l.b16 %v252
      %v285 = vunpack.c.l.b16 %v253
      %v286 = vunpack.c.l.b16 %v254
      %v287 = vunpack.c.l.b16 %v255
      %v288 = vunpack.c.l.b16 %v256
      %v289 = vunpack.c.l.b16 %v257
      %v290 = vunpack.c.l.b16 %v258
      %v291 = vunpack.c.l.b16 %v259
      %v292 = vunpack.c.l.b16 %v260
      %v293 = vpack.c.b16 %v278, %v277
      %v294 = vpack.c.b16 %v280, %v279
      %v295 = vpack.c.b16 %v282, %v281
      %v296 = vpack.c.b16 %v284, %v283
      %v297 = vpack.c.b16 %v286, %v285
      %v298 = vpack.c.b16 %v288, %v287
      %v299 = vpack.c.b16 %v290, %v289
      %v300 = vpack.c.b16 %v292, %v291
      %309 = vmatprep.subr.bf16.mxu0 0
      %310 = vmatpush1.bf16.msra.mxu0 %v293
      %311 = vmatprep.subr.bf16.mxu0 0
      %312 = vmatpush1.bf16.msra.mxu0 %v294
      %313 = vmatprep.subr.bf16.mxu0 0
      %314 = vmatpush1.bf16.msra.mxu0 %v295
      %315 = vmatprep.subr.bf16.mxu0 0
      %316 = vmatpush1.bf16.msra.mxu0 %v296
      %317 = vmatprep.subr.bf16.mxu0 0
      %318 = vmatpush1.bf16.msra.mxu0 %v297
      %319 = vmatprep.subr.bf16.mxu0 0
      %320 = vmatpush1.bf16.msra.mxu0 %v298
      %321 = vmatprep.subr.bf16.mxu0 0
      %322 = vmatpush1.bf16.msra.mxu0 %v299
      %323 = vmatprep.subr.bf16.mxu0 0
      %324 = vmatpush1.bf16.msra.mxu0 %v300
      %325 = vmatprep.subr.bf16.mxu0 0
      %326 = vmatpush1.bf16.msra.mxu0 0
      %327 = vmatprep.subr.bf16.mxu0 0
      %328 = vmatpush1.bf16.msra.mxu0 0
      %329 = vmatprep.subr.bf16.mxu0 0
      %330 = vmatpush1.bf16.msra.mxu0 0
      %331 = vmatprep.subr.bf16.mxu0 0
      %332 = vmatpush1.bf16.msra.mxu0 0
      %333 = vmatprep.subr.bf16.mxu0 0
      %334 = vmatpush1.bf16.msra.mxu0 0
      %335 = vmatprep.subr.bf16.mxu0 0
      %336 = vmatpush1.bf16.msra.mxu0 0
      %337 = vmatprep.subr.bf16.mxu0 0
      %338 = vmatpush1.bf16.msra.mxu0 0
      %339 = vmatprep.subr.bf16.mxu0 0
      %340 = vmatpush1.bf16.msra.mxu0 0
      %341 = vmatprep.mubr.bf16.mxu0 0
      %342 = vmatmul.mubr.bf16.gmra.mrb[0].mxu0 %v243
      %v343 = vpop.f32.mrb[0].mxu0
      %v344 = vadd.f32 0.0, %v343
      %v345 = vpop.f32.mrb[0].mxu0
      %v346 = vpop.f32.mrb[0].mxu0
      %v347 = vpop.f32.mrb[0].mxu0
      %348 = vdwg.mxu0
      %v365 = vunpack.c.l.b16 %v226
      %v366 = vunpack.c.l.b16 %v227
      %v367 = vunpack.c.l.b16 %v228
      %v368 = vunpack.c.l.b16 %v229
      %v369 = vunpack.c.l.b16 %v230
      %v370 = vunpack.c.l.b16 %v231
      %v371 = vunpack.c.l.b16 %v232
      %v372 = vunpack.c.l.b16 %v233
      %v373 = vunpack.c.l.b16 %v234
      %v374 = vunpack.c.l.b16 %v235
      %v375 = vunpack.c.l.b16 %v236
      %v376 = vunpack.c.l.b16 %v237
      %v377 = vunpack.c.l.b16 %v238
      %v378 = vunpack.c.l.b16 %v239
      %v379 = vunpack.c.l.b16 %v240
      %v380 = vunpack.c.l.b16 %v241
      %v381 = vpack.c.b16 %v366, %v365
      %v382 = vpack.c.b16 %v368, %v367
      %v383 = vpack.c.b16 %v370, %v369
      %v384 = vpack.c.b16 %v372, %v371
      %v385 = vpack.c.b16 %v374, %v373
      %v386 = vpack.c.b16 %v376, %v375
      %v387 = vpack.c.b16 %v378, %v377
      %v388 = vpack.c.b16 %v380, %v379
      %397 = vmatprep.subr.bf16.mxu0 0
      %398 = vmatpush1.bf16.msra.mxu0 %v381
      %399 = vmatprep.subr.bf16.mxu0 0
      %400 = vmatpush1.bf16.msra.mxu0 %v382
      %401 = vmatprep.subr.bf16.mxu0 0
      %402 = vmatpush1.bf16.msra.mxu0 %v383
      %403 = vmatprep.subr.bf16.mxu0 0
      %404 = vmatpush1.bf16.msra.mxu0 %v384
      %405 = vmatprep.subr.bf16.mxu0 0
      %406 = vmatpush1.bf16.msra.mxu0 %v385
      %407 = vmatprep.subr.bf16.mxu0 0
      %408 = vmatpush1.bf16.msra.mxu0 %v386
      %409 = vmatprep.subr.bf16.mxu0 0
      %410 = vmatpush1.bf16.msra.mxu0 %v387
      %411 = vmatprep.subr.bf16.mxu0 0
      %412 = vmatpush1.bf16.msra.mxu0 %v388
      %413 = vmatprep.subr.bf16.mxu0 0
      %414 = vmatpush1.bf16.msra.mxu0 0
      %415 = vmatprep.subr.bf16.mxu0 0
      %416 = vmatpush1.bf16.msra.mxu0 0
      %417 = vmatprep.subr.bf16.mxu0 0
      %418 = vmatpush1.bf16.msra.mxu0 0
      %419 = vmatprep.subr.bf16.mxu0 0
      %420 = vmatpush1.bf16.msra.mxu0 0
      %421 = vmatprep.subr.bf16.mxu0 0
      %422 = vmatpush1.bf16.msra.mxu0 0
      %423 = vmatprep.subr.bf16.mxu0 0
      %424 = vmatpush1.bf16.msra.mxu0 0
      %425 = vmatprep.subr.bf16.mxu0 0
      %426 = vmatpush1.bf16.msra.mxu0 0
      %427 = vmatprep.subr.bf16.mxu0 0
      %428 = vmatpush1.bf16.msra.mxu0 0
      %429 = vmatprep.mubr.bf16.mxu0 0
      %430 = vmatmul.mubr.bf16.gmra.mrb[0].mxu0 %v225
      %v431 = vpop.f32.mrb[0].mxu0
      %v432 = vadd.f32 %v344, %v431
      %v433 = vpop.f32.mrb[0].mxu0
      %v434 = vpop.f32.mrb[0].mxu0
      %v435 = vpop.f32.mrb[0].mxu0
      %436 = vdwg.mxu0
      %v437 = vld [vmem:[%s218 + $0x2] sm:$0xff]
      %v438 = vpack.c.bf16 %v437, %v437
      %s439 = scalar_lea.vmem %s1, 128
      %v440 = vld [vmem:[%s439] sm:$0xf]
      %v441 = vld [vmem:[%s439 + $0x4] sm:$0xf]
      %v442 = vld [vmem:[%s439 + $0x8] sm:$0xf]
      %v443 = vld [vmem:[%s439 + $0xc] sm:$0xf]
      %v444 = vld [vmem:[%s439 + $0x10] sm:$0xf]
      %v445 = vld [vmem:[%s439 + $0x14] sm:$0xf]
      %v446 = vld [vmem:[%s439 + $0x18] sm:$0xf]
      %v447 = vld [vmem:[%s439 + $0x1c] sm:$0xf]
      %v448 = vld [vmem:[%s439 + $0x20] sm:$0xf]
      %v449 = vld [vmem:[%s439 + $0x24] sm:$0xf]
      %v450 = vld [vmem:[%s439 + $0x28] sm:$0xf]
      %v451 = vld [vmem:[%s439 + $0x2c] sm:$0xf]
      %v452 = vld [vmem:[%s439 + $0x30] sm:$0xf]
      %v453 = vld [vmem:[%s439 + $0x34] sm:$0xf]
      %v454 = vld [vmem:[%s439 + $0x38] sm:$0xf]
      %v455 = vld [vmem:[%s439 + $0x3c] sm:$0xf]
      %v472 = vunpack.c.l.b16 %v440
      %v473 = vunpack.c.l.b16 %v441
      %v474 = vunpack.c.l.b16 %v442
      %v475 = vunpack.c.l.b16 %v443
      %v476 = vunpack.c.l.b16 %v444
      %v477 = vunpack.c.l.b16 %v445
      %v478 = vunpack.c.l.b16 %v446
      %v479 = vunpack.c.l.b16 %v447
      %v480 = vunpack.c.l.b16 %v448
      %v481 = vunpack.c.l.b16 %v449
      %v482 = vunpack.c.l.b16 %v450
      %v483 = vunpack.c.l.b16 %v451
      %v484 = vunpack.c.l.b16 %v452
      %v485 = vunpack.c.l.b16 %v453
      %v486 = vunpack.c.l.b16 %v454
      %v487 = vunpack.c.l.b16 %v455
      %v488 = vpack.c.b16 %v473, %v472
      %v489 = vpack.c.b16 %v475, %v474
      %v490 = vpack.c.b16 %v477, %v476
      %v491 = vpack.c.b16 %v479, %v478
      %v492 = vpack.c.b16 %v481, %v480
      %v493 = vpack.c.b16 %v483, %v482
      %v494 = vpack.c.b16 %v485, %v484
      %v495 = vpack.c.b16 %v487, %v486
      %504 = vmatprep.subr.bf16.mxu0 0
      %505 = vmatpush1.bf16.msra.mxu0 %v488
      %506 = vmatprep.subr.bf16.mxu0 0
      %507 = vmatpush1.bf16.msra.mxu0 %v489
      %508 = vmatprep.subr.bf16.mxu0 0
      %509 = vmatpush1.bf16.msra.mxu0 %v490
      %510 = vmatprep.subr.bf16.mxu0 0
      %511 = vmatpush1.bf16.msra.mxu0 %v491
      %512 = vmatprep.subr.bf16.mxu0 0
      %513 = vmatpush1.bf16.msra.mxu0 %v492
      %514 = vmatprep.subr.bf16.mxu0 0
      %515 = vmatpush1.bf16.msra.mxu0 %v493
      %516 = vmatprep.subr.bf16.mxu0 0
      %517 = vmatpush1.bf16.msra.mxu0 %v494
      %518 = vmatprep.subr.bf16.mxu0 0
      %519 = vmatpush1.bf16.msra.mxu0 %v495
      %520 = vmatprep.subr.bf16.mxu0 0
      %521 = vmatpush1.bf16.msra.mxu0 0
      %522 = vmatprep.subr.bf16.mxu0 0
      %523 = vmatpush1.bf16.msra.mxu0 0
      %524 = vmatprep.subr.bf16.mxu0 0
      %525 = vmatpush1.bf16.msra.mxu0 0
      %526 = vmatprep.subr.bf16.mxu0 0
      %527 = vmatpush1.bf16.msra.mxu0 0
      %528 = vmatprep.subr.bf16.mxu0 0
      %529 = vmatpush1.bf16.msra.mxu0 0
      %530 = vmatprep.subr.bf16.mxu0 0
      %531 = vmatpush1.bf16.msra.mxu0 0
      %532 = vmatprep.subr.bf16.mxu0 0
      %533 = vmatpush1.bf16.msra.mxu0 0
      %534 = vmatprep.subr.bf16.mxu0 0
      %535 = vmatpush1.bf16.msra.mxu0 0
      %536 = vmatprep.mubr.bf16.mxu0 0
      %537 = vmatmul.mubr.bf16.gmra.mrb[0].mxu0 %v438
      %v538 = vpop.f32.mrb[0].mxu0
      %v539 = vadd.f32 0.0, %v538
      %v540 = vpop.f32.mrb[0].mxu0
      %v541 = vpop.f32.mrb[0].mxu0
      %v542 = vpop.f32.mrb[0].mxu0
      %543 = vdwg.mxu0
      %v544 = vadd.f32 %v432, %v539
      %v545 = vld [vmem:[%s2] sm:$0x1]
      %v547 = vlaneseq
      %v548 = vshrl.u32 %v547, 7
      %v549 = vsub.s32 0, %v548
      %v550 = vrot.slane %v545, %v549
      %v552 = vadd.f32 %v544, %v550
      %v553 = vmax.f32 %v552, 0.0
      %554 = vst [vmem:[#allocation2] sm:$0xff] 0.0
      %555 = vst [vmem:[#allocation2 + $0x8] sm:$0x3] 0.0
      %556 = vst [vmem:[#allocation2 + $0x1] sm:$0xff] %v553
      %v557 = vld [vmem:[#allocation2] sm:$0xff]
      %v558 = vpack.c.bf16 %v557, %v557
      %v559 = vld [vmem:[%s3] sm:$0xf]
      %v560 = vld [vmem:[%s3 + $0x4] sm:$0xf]
      %v561 = vld [vmem:[%s3 + $0x8] sm:$0xf]
      %v562 = vld [vmem:[%s3 + $0xc] sm:$0xf]
      %v563 = vld [vmem:[%s3 + $0x10] sm:$0xf]
      %v564 = vld [vmem:[%s3 + $0x14] sm:$0xf]
      %v565 = vld [vmem:[%s3 + $0x18] sm:$0xf]
      %v566 = vld [vmem:[%s3 + $0x1c] sm:$0xf]
      %v567 = vld [vmem:[%s3 + $0x20] sm:$0xf]
      %v568 = vld [vmem:[%s3 + $0x24] sm:$0xf]
      %v569 = vld [vmem:[%s3 + $0x28] sm:$0xf]
      %v570 = vld [vmem:[%s3 + $0x2c] sm:$0xf]
      %v571 = vld [vmem:[%s3 + $0x30] sm:$0xf]
      %v572 = vld [vmem:[%s3 + $0x34] sm:$0xf]
      %v573 = vld [vmem:[%s3 + $0x38] sm:$0xf]
      %v574 = vld [vmem:[%s3 + $0x3c] sm:$0xf]
      %v575 = vld [vmem:[#allocation2 + $0x1] sm:$0xff]
      %v576 = vpack.c.bf16 %v575, %v575
      %s577 = scalar_lea.vmem %s3, 64
      %v578 = vld [vmem:[%s577] sm:$0xf]
      %v579 = vld [vmem:[%s577 + $0x4] sm:$0xf]
      %v580 = vld [vmem:[%s577 + $0x8] sm:$0xf]
      %v581 = vld [vmem:[%s577 + $0xc] sm:$0xf]
      %v582 = vld [vmem:[%s577 + $0x10] sm:$0xf]
      %v583 = vld [vmem:[%s577 + $0x14] sm:$0xf]
      %v584 = vld [vmem:[%s577 + $0x18] sm:$0xf]
      %v585 = vld [vmem:[%s577 + $0x1c] sm:$0xf]
      %v586 = vld [vmem:[%s577 + $0x20] sm:$0xf]
      %v587 = vld [vmem:[%s577 + $0x24] sm:$0xf]
      %v588 = vld [vmem:[%s577 + $0x28] sm:$0xf]
      %v589 = vld [vmem:[%s577 + $0x2c] sm:$0xf]
      %v590 = vld [vmem:[%s577 + $0x30] sm:$0xf]
      %v591 = vld [vmem:[%s577 + $0x34] sm:$0xf]
      %v592 = vld [vmem:[%s577 + $0x38] sm:$0xf]
      %v593 = vld [vmem:[%s577 + $0x3c] sm:$0xf]
      %v610 = vunpack.c.l.b16 %v578
      %v611 = vunpack.c.l.b16 %v579
      %v612 = vunpack.c.l.b16 %v580
      %v613 = vunpack.c.l.b16 %v581
      %v614 = vunpack.c.l.b16 %v582
      %v615 = vunpack.c.l.b16 %v583
      %v616 = vunpack.c.l.b16 %v584
      %v617 = vunpack.c.l.b16 %v585
      %v618 = vunpack.c.l.b16 %v586
      %v619 = vunpack.c.l.b16 %v587
      %v620 = vunpack.c.l.b16 %v588
      %v621 = vunpack.c.l.b16 %v589
      %v622 = vunpack.c.l.b16 %v590
      %v623 = vunpack.c.l.b16 %v591
      %v624 = vunpack.c.l.b16 %v592
      %v625 = vunpack.c.l.b16 %v593
      %v626 = vpack.c.b16 %v611, %v610
      %v627 = vpack.c.b16 %v613, %v612
      %v628 = vpack.c.b16 %v615, %v614
      %v629 = vpack.c.b16 %v617, %v616
      %v630 = vpack.c.b16 %v619, %v618
      %v631 = vpack.c.b16 %v621, %v620
      %v632 = vpack.c.b16 %v623, %v622
      %v633 = vpack.c.b16 %v625, %v624
      %642 = vmatprep.subr.bf16.mxu0 0
      %643 = vmatpush1.bf16.msra.mxu0 %v626
      %644 = vmatprep.subr.bf16.mxu0 0
      %645 = vmatpush1.bf16.msra.mxu0 %v627
      %646 = vmatprep.subr.bf16.mxu0 0
      %647 = vmatpush1.bf16.msra.mxu0 %v628
      %648 = vmatprep.subr.bf16.mxu0 0
      %649 = vmatpush1.bf16.msra.mxu0 %v629
      %650 = vmatprep.subr.bf16.mxu0 0
      %651 = vmatpush1.bf16.msra.mxu0 %v630
      %652 = vmatprep.subr.bf16.mxu0 0
      %653 = vmatpush1.bf16.msra.mxu0 %v631
      %654 = vmatprep.subr.bf16.mxu0 0
      %655 = vmatpush1.bf16.msra.mxu0 %v632
      %656 = vmatprep.subr.bf16.mxu0 0
      %657 = vmatpush1.bf16.msra.mxu0 %v633
      %658 = vmatprep.subr.bf16.mxu0 0
      %659 = vmatpush1.bf16.msra.mxu0 0
      %660 = vmatprep.subr.bf16.mxu0 0
      %661 = vmatpush1.bf16.msra.mxu0 0
      %662 = vmatprep.subr.bf16.mxu0 0
      %663 = vmatpush1.bf16.msra.mxu0 0
      %664 = vmatprep.subr.bf16.mxu0 0
      %665 = vmatpush1.bf16.msra.mxu0 0
      %666 = vmatprep.subr.bf16.mxu0 0
      %667 = vmatpush1.bf16.msra.mxu0 0
      %668 = vmatprep.subr.bf16.mxu0 0
      %669 = vmatpush1.bf16.msra.mxu0 0
      %670 = vmatprep.subr.bf16.mxu0 0
      %671 = vmatpush1.bf16.msra.mxu0 0
      %672 = vmatprep.subr.bf16.mxu0 0
      %673 = vmatpush1.bf16.msra.mxu0 0
      %674 = vmatprep.mubr.bf16.mxu0 0
      %675 = vmatmul.mubr.bf16.gmra.mrb[0].mxu0 %v576
      %v676 = vpop.f32.mrb[0].mxu0
      %v677 = vadd.f32 0.0, %v676
      %v678 = vpop.f32.mrb[0].mxu0
      %v679 = vpop.f32.mrb[0].mxu0
      %v680 = vpop.f32.mrb[0].mxu0
      %681 = vdwg.mxu0
      %v698 = vunpack.c.l.b16 %v559
      %v699 = vunpack.c.l.b16 %v560
      %v700 = vunpack.c.l.b16 %v561
      %v701 = vunpack.c.l.b16 %v562
      %v702 = vunpack.c.l.b16 %v563
      %v703 = vunpack.c.l.b16 %v564
      %v704 = vunpack.c.l.b16 %v565
      %v705 = vunpack.c.l.b16 %v566
      %v706 = vunpack.c.l.b16 %v567
      %v707 = vunpack.c.l.b16 %v568
      %v708 = vunpack.c.l.b16 %v569
      %v709 = vunpack.c.l.b16 %v570
      %v710 = vunpack.c.l.b16 %v571
      %v711 = vunpack.c.l.b16 %v572
      %v712 = vunpack.c.l.b16 %v573
      %v713 = vunpack.c.l.b16 %v574
      %v714 = vpack.c.b16 %v699, %v698
      %v715 = vpack.c.b16 %v701, %v700
      %v716 = vpack.c.b16 %v703, %v702
      %v717 = vpack.c.b16 %v705, %v704
      %v718 = vpack.c.b16 %v707, %v706
      %v719 = vpack.c.b16 %v709, %v708
      %v720 = vpack.c.b16 %v711, %v710
      %v721 = vpack.c.b16 %v713, %v712
      %730 = vmatprep.subr.bf16.mxu0 0
      %731 = vmatpush1.bf16.msra.mxu0 %v714
      %732 = vmatprep.subr.bf16.mxu0 0
      %733 = vmatpush1.bf16.msra.mxu0 %v715
      %734 = vmatprep.subr.bf16.mxu0 0
      %735 = vmatpush1.bf16.msra.mxu0 %v716
      %736 = vmatprep.subr.bf16.mxu0 0
      %737 = vmatpush1.bf16.msra.mxu0 %v717
      %738 = vmatprep.subr.bf16.mxu0 0
      %739 = vmatpush1.bf16.msra.mxu0 %v718
      %740 = vmatprep.subr.bf16.mxu0 0
      %741 = vmatpush1.bf16.msra.mxu0 %v719
      %742 = vmatprep.subr.bf16.mxu0 0
      %743 = vmatpush1.bf16.msra.mxu0 %v720
      %744 = vmatprep.subr.bf16.mxu0 0
      %745 = vmatpush1.bf16.msra.mxu0 %v721
      %746 = vmatprep.subr.bf16.mxu0 0
      %747 = vmatpush1.bf16.msra.mxu0 0
      %748 = vmatprep.subr.bf16.mxu0 0
      %749 = vmatpush1.bf16.msra.mxu0 0
      %750 = vmatprep.subr.bf16.mxu0 0
      %751 = vmatpush1.bf16.msra.mxu0 0
      %752 = vmatprep.subr.bf16.mxu0 0
      %753 = vmatpush1.bf16.msra.mxu0 0
      %754 = vmatprep.subr.bf16.mxu0 0
      %755 = vmatpush1.bf16.msra.mxu0 0
      %756 = vmatprep.subr.bf16.mxu0 0
      %757 = vmatpush1.bf16.msra.mxu0 0
      %758 = vmatprep.subr.bf16.mxu0 0
      %759 = vmatpush1.bf16.msra.mxu0 0
      %760 = vmatprep.subr.bf16.mxu0 0
      %761 = vmatpush1.bf16.msra.mxu0 0
      %762 = vmatprep.mubr.bf16.mxu0 0
      %763 = vmatmul.mubr.bf16.gmra.mrb[0].mxu0 %v558
      %v764 = vpop.f32.mrb[0].mxu0
      %v765 = vadd.f32 %v677, %v764
      %v766 = vpop.f32.mrb[0].mxu0
      %v767 = vpop.f32.mrb[0].mxu0
      %v768 = vpop.f32.mrb[0].mxu0
      %769 = vdwg.mxu0
      %v770 = vld [vmem:[#allocation2 + $0x2] sm:$0xff]
      %v771 = vpack.c.bf16 %v770, %v770
      %s772 = scalar_lea.vmem %s3, 128
      %v773 = vld [vmem:[%s772] sm:$0xf]
      %v774 = vld [vmem:[%s772 + $0x4] sm:$0xf]
      %v775 = vld [vmem:[%s772 + $0x8] sm:$0xf]
      %v776 = vld [vmem:[%s772 + $0xc] sm:$0xf]
      %v777 = vld [vmem:[%s772 + $0x10] sm:$0xf]
      %v778 = vld [vmem:[%s772 + $0x14] sm:$0xf]
      %v779 = vld [vmem:[%s772 + $0x18] sm:$0xf]
      %v780 = vld [vmem:[%s772 + $0x1c] sm:$0xf]
      %v781 = vld [vmem:[%s772 + $0x20] sm:$0xf]
      %v782 = vld [vmem:[%s772 + $0x24] sm:$0xf]
      %v783 = vld [vmem:[%s772 + $0x28] sm:$0xf]
      %v784 = vld [vmem:[%s772 + $0x2c] sm:$0xf]
      %v785 = vld [vmem:[%s772 + $0x30] sm:$0xf]
      %v786 = vld [vmem:[%s772 + $0x34] sm:$0xf]
      %v787 = vld [vmem:[%s772 + $0x38] sm:$0xf]
      %v788 = vld [vmem:[%s772 + $0x3c] sm:$0xf]
      %v805 = vunpack.c.l.b16 %v773
      %v806 = vunpack.c.l.b16 %v774
      %v807 = vunpack.c.l.b16 %v775
      %v808 = vunpack.c.l.b16 %v776
      %v809 = vunpack.c.l.b16 %v777
      %v810 = vunpack.c.l.b16 %v778
      %v811 = vunpack.c.l.b16 %v779
      %v812 = vunpack.c.l.b16 %v780
      %v813 = vunpack.c.l.b16 %v781
      %v814 = vunpack.c.l.b16 %v782
      %v815 = vunpack.c.l.b16 %v783
      %v816 = vunpack.c.l.b16 %v784
      %v817 = vunpack.c.l.b16 %v785
      %v818 = vunpack.c.l.b16 %v786
      %v819 = vunpack.c.l.b16 %v787
      %v820 = vunpack.c.l.b16 %v788
      %v821 = vpack.c.b16 %v806, %v805
      %v822 = vpack.c.b16 %v808, %v807
      %v823 = vpack.c.b16 %v810, %v809
      %v824 = vpack.c.b16 %v812, %v811
      %v825 = vpack.c.b16 %v814, %v813
      %v826 = vpack.c.b16 %v816, %v815
      %v827 = vpack.c.b16 %v818, %v817
      %v828 = vpack.c.b16 %v820, %v819
      %837 = vmatprep.subr.bf16.mxu0 0
      %838 = vmatpush1.bf16.msra.mxu0 %v821
      %839 = vmatprep.subr.bf16.mxu0 0
      %840 = vmatpush1.bf16.msra.mxu0 %v822
      %841 = vmatprep.subr.bf16.mxu0 0
      %842 = vmatpush1.bf16.msra.mxu0 %v823
      %843 = vmatprep.subr.bf16.mxu0 0
      %844 = vmatpush1.bf16.msra.mxu0 %v824
      %845 = vmatprep.subr.bf16.mxu0 0
      %846 = vmatpush1.bf16.msra.mxu0 %v825
      %847 = vmatprep.subr.bf16.mxu0 0
      %848 = vmatpush1.bf16.msra.mxu0 %v826
      %849 = vmatprep.subr.bf16.mxu0 0
      %850 = vmatpush1.bf16.msra.mxu0 %v827
      %851 = vmatprep.subr.bf16.mxu0 0
      %852 = vmatpush1.bf16.msra.mxu0 %v828
      %853 = vmatprep.subr.bf16.mxu0 0
      %854 = vmatpush1.bf16.msra.mxu0 0
      %855 = vmatprep.subr.bf16.mxu0 0
      %856 = vmatpush1.bf16.msra.mxu0 0
      %857 = vmatprep.subr.bf16.mxu0 0
      %858 = vmatpush1.bf16.msra.mxu0 0
      %859 = vmatprep.subr.bf16.mxu0 0
      %860 = vmatpush1.bf16.msra.mxu0 0
      %861 = vmatprep.subr.bf16.mxu0 0
      %862 = vmatpush1.bf16.msra.mxu0 0
      %863 = vmatprep.subr.bf16.mxu0 0
      %864 = vmatpush1.bf16.msra.mxu0 0
      %865 = vmatprep.subr.bf16.mxu0 0
      %866 = vmatpush1.bf16.msra.mxu0 0
      %867 = vmatprep.subr.bf16.mxu0 0
      %868 = vmatpush1.bf16.msra.mxu0 0
      %869 = vmatprep.mubr.bf16.mxu0 0
      %870 = vmatmul.mubr.bf16.gmra.mrb[0].mxu0 %v771
      %v871 = vpop.f32.mrb[0].mxu0
      %v872 = vadd.f32 0.0, %v871
      %v873 = vpop.f32.mrb[0].mxu0
      %v874 = vpop.f32.mrb[0].mxu0
      %v875 = vpop.f32.mrb[0].mxu0
      %876 = vdwg.mxu0
      %v877 = vadd.f32 %v765, %v872
      %v878 = vld [vmem:[%s4] sm:$0x1]
      %v880 = vlaneseq
      %v881 = vshrl.u32 %v880, 7
      %v882 = vsub.s32 0, %v881
      %v883 = vrot.slane %v878, %v882
      %v885 = vadd.f32 %v877, %v883
      %v886 = vadd.f32 %v885, %v242
      %v887 = vmax.f32 %v886, 0.0
      %888 = vst [vmem:[%s222] sm:$0xff] %v887
      %p889 = scmp.lt.s32.totalorder %s16, 1
      %s890 = scalar_select %p889, %s16, 1
      %s891 = smul.addr %s890, 8
      %s892 = scalar_lea.vmem %s5, %s891
      // Predicated region
      $region41: #{_lambda_.8} parent=39 // pred_check
        %p893 = pneg %p144
      $region42: #{_lambda_.8} parent=39 // pred_check_branch
        %895 = sbr.rel (%p893) target = $region44
      $region43: #{_lambda_.8} parent=39 // pred_region
        _
      $region44: #{_lambda_.8} parent=39 // pred_fallthru
        _
    $region40: #{_lambda_.8} parent=5 // pred_fallthru
      _
    %p896 = scmp.le.s32.totalorder 2, %s11
    // Predicated region
    $region45: #{_lambda_.8} parent=5 // pred_check
      %p897 = pneg %p896
    $region46: #{_lambda_.8} parent=5 // pred_check_branch
      %899 = sbr.rel (%p897) target = $region48
    $region47: #{_lambda_.8} parent=5 // pred_region
      %s900 = ssub.s32 %s11, 2
      // Predicated region
      $region49: #{_lambda_.8} parent=47 // pred_check
        %p901 = pneg %p150
      $region50: #{_lambda_.8} parent=47 // pred_check_branch
        %903 = sbr.rel (%p901) target = $region52
      $region51: #{_lambda_.8} parent=47 // pred_region
        %p904 = scmp.lt.s32.totalorder %s17, 1
        %s905 = scalar_select %p904, %s17, 1
        %s906 = smul.addr %s905, 8
        %s907 = scalar_lea.vmem %s5, %s906
      $region52: #{_lambda_.8} parent=47 // pred_fallthru
        _
    $region48: #{_lambda_.8} parent=5 // pred_fallthru
      _
  $region6: #{_lambda_.8} parent=0 // loop_footer
    %s15 = sadd.s32 1, %s11
  $region7: #{_lambda_.8} parent=0 // loop_footer_branch
    %10 = sbr.rel target = $region3
  $region8: #{_lambda_.8} parent=0 // loop_exit
    _

// kernel: _lambda_.7
$region0: #{_lambda_.7}
  #allocation0 [shape = 'u32[]', space=smem, size = 0x4, offset = 0x4, fixed_abs, tag = 'smem constant byte address 0x4 - core index']
  #allocation1 [shape = 'u32[144,128]{1,0:T(1,128)}', space=vmem, size = 0x12000, scoped, tag = 'internal scratch']
  %s0 = inlined_call_operand.vmem [shape: f32[2,2,19,96], index: 0, kind: input, shape index: {}]
  %s1 = inlined_call_operand.vmem [shape: bf16[7,96,256], index: 1, kind: input, shape index: {}]
  %s2 = inlined_call_operand.vmem [shape: f32[1,256], index: 2, kind: input, shape index: {}]
  %s3 = inlined_call_operand.vmem [shape: f32[3,256,128], index: 3, kind: input, shape index: {}]
  %s4 = inlined_call_operand.vmem [shape: f32[3,8,16], index: 4, kind: input, shape index: {}]
  %s5 = inlined_call_operand.vmem [shape: f32[2,8,128], index: 5, kind: output, shape index: {}]
  %s6 = sld [smem:[#allocation0]]
  $region53: #{_lambda_.7} parent=0
    _
  %s8 = ssub.s32 1, %s6
  %s9 = scalar_select 0, %s8, %s6
  loop: start=0, step=1, limit=4
  $region2: #{_lambda_.7} parent=0 // loop_pre_header
    _
  $region3: #{_lambda_.7} parent=0 // loop_header
    %s11 = sphi 0, %s15
    %p12 = scmp.ge.s32.totalorder %s11, 4
    %s21 = sphi 0, %s23
    %s24 = sphi 0, %s21
    %s25 = sphi 0, %s24
    %s41 = sphi 0, %s25
    %s45 = sphi 0, %s45
    %s47 = sphi 0, %s45
    %s48 = sphi 0, %s47
    %s62 = sphi 0, %s48
    %s66 = sphi 0, %s66
    %s68 = sphi 0, %s66
    %s69 = sphi 0, %s68
    %s83 = sphi 0, %s69
    %s87 = sphi 0, %s87
    %s89 = sphi 0, %s87
    %s90 = sphi 0, %s89
    %s104 = sphi 0, %s90
    %s108 = sphi 0, %s108
    %s110 = sphi 0, %s108
    %s111 = sphi 0, %s110
    %s125 = sphi 0, %s111
    %s131 = sphi 0, %s133
    %s134 = sphi 0, %s131
    %s135 = sphi 0, %s134
    %s151 = sphi 0, %s135
  $region4: #{_lambda_.7} parent=0 // loop_header_branch
    %14 = sbr.rel (%p12) target = $region8
  $region5: #{_lambda_.7} parent=0 // loop_body
    %s16 = ssub.s32 %s11, 1
    %s17 = ssub.s32 %s11, 2
    %s18 = sadd.s32 %s11, 1
    %s19 = ssub.s32 %s11, %s18
    %p20 = scmp.eq.s32.totalorder %s19, 0
    %s22 = sadd.s32 %s21, 1
    %s23 = scalar_select %p20, %s21, %s22
    %p26 = pneg %p20
    %p27 = scmp.eq.s32.totalorder %s11, 1
    %p28 = por %p26, %p27
    %p29 = scmp.ne.s32.totalorder %s21, %s24
    %p30 = scmp.eq.s32.totalorder %s11, 0
    %p31 = por %p29, %p30
    %p32 = scmp.ne.s32.totalorder %s21, %s24
    %p33 = scmp.eq.s32.totalorder %s16, 1
    %p34 = por %p32, %p33
    %p35 = scmp.ne.s32.totalorder %s24, %s25
    %p36 = scmp.eq.s32.totalorder %s16, 0
    %p37 = por %p35, %p36
    %p38 = scmp.ne.s32.totalorder %s24, %s25
    %p39 = scmp.eq.s32.totalorder %s17, 1
    %p40 = por %p38, %p39
    %p42 = scmp.ne.s32.totalorder %s25, %s41
    %p43 = scmp.eq.s32.totalorder %s17, 0
    %p44 = por %p42, %p43
    %s46 = sadd.s32 %s45, 1
    %p49 = scmp.eq.s32.totalorder %s11, 1
    %p50 = scmp.ne.s32.totalorder %s45, %s47
    %p51 = scmp.eq.s32.totalorder %s11, 0
    %p52 = por %p50, %p51
    %p53 = scmp.ne.s32.totalorder %s45, %s47
    %p54 = scmp.eq.s32.totalorder %s16, 1
    %p55 = por %p53, %p54
    %p56 = scmp.ne.s32.totalorder %s47, %s48
    %p57 = scmp.eq.s32.totalorder %s16, 0
    %p58 = por %p56, %p57
    %p59 = scmp.ne.s32.totalorder %s47, %s48
    %p60 = scmp.eq.s32.totalorder %s17, 1
    %p61 = por %p59, %p60
    %p63 = scmp.ne.s32.totalorder %s48, %s62
    %p64 = scmp.eq.s32.totalorder %s17, 0
    %p65 = por %p63, %p64
    %s67 = sadd.s32 %s66, 1
    %p70 = scmp.eq.s32.totalorder %s11, 1
    %p71 = scmp.ne.s32.totalorder %s66, %s68
    %p72 = scmp.eq.s32.totalorder %s11, 0
    %p73 = por %p71, %p72
    %p74 = scmp.ne.s32.totalorder %s66, %s68
    %p75 = scmp.eq.s32.totalorder %s16, 1
    %p76 = por %p74, %p75
    %p77 = scmp.ne.s32.totalorder %s68, %s69
    %p78 = scmp.eq.s32.totalorder %s16, 0
    %p79 = por %p77, %p78
    %p80 = scmp.ne.s32.totalorder %s68, %s69
    %p81 = scmp.eq.s32.totalorder %s17, 1
    %p82 = por %p80, %p81
    %p84 = scmp.ne.s32.totalorder %s69, %s83
    %p85 = scmp.eq.s32.totalorder %s17, 0
    %p86 = por %p84, %p85
    %s88 = sadd.s32 %s87, 1
    %p91 = scmp.eq.s32.totalorder %s11, 1
    %p92 = scmp.ne.s32.totalorder %s87, %s89
    %p93 = scmp.eq.s32.totalorder %s11, 0
    %p94 = por %p92, %p93
    %p95 = scmp.ne.s32.totalorder %s87, %s89
    %p96 = scmp.eq.s32.totalorder %s16, 1
    %p97 = por %p95, %p96
    %p98 = scmp.ne.s32.totalorder %s89, %s90
    %p99 = scmp.eq.s32.totalorder %s16, 0
    %p100 = por %p98, %p99
    %p101 = scmp.ne.s32.totalorder %s89, %s90
    %p102 = scmp.eq.s32.totalorder %s17, 1
    %p103 = por %p101, %p102
    %p105 = scmp.ne.s32.totalorder %s90, %s104
    %p106 = scmp.eq.s32.totalorder %s17, 0
    %p107 = por %p105, %p106
    %s109 = sadd.s32 %s108, 1
    %p112 = scmp.eq.s32.totalorder %s11, 1
    %p113 = scmp.ne.s32.totalorder %s108, %s110
    %p114 = scmp.eq.s32.totalorder %s11, 0
    %p115 = por %p113, %p114
    %p116 = scmp.ne.s32.totalorder %s108, %s110
    %p117 = scmp.eq.s32.totalorder %s16, 1
    %p118 = por %p116, %p117
    %p119 = scmp.ne.s32.totalorder %s110, %s111
    %p120 = scmp.eq.s32.totalorder %s16, 0
    %p121 = por %p119, %p120
    %p122 = scmp.ne.s32.totalorder %s110, %s111
    %p123 = scmp.eq.s32.totalorder %s17, 1
    %p124 = por %p122, %p123
    %p126 = scmp.ne.s32.totalorder %s111, %s125
    %p127 = scmp.eq.s32.totalorder %s17, 0
    %p128 = por %p126, %p127
    %s129 = ssub.s32 %s11, %s18
    %p130 = scmp.eq.s32.totalorder %s129, 0
    %s132 = sadd.s32 %s131, 1
    %s133 = scalar_select %p130, %s131, %s132
    %p136 = pneg %p130
    %p137 = scmp.eq.s32.totalorder %s11, 1
    %p138 = por %p136, %p137
    %p139 = scmp.ne.s32.totalorder %s131, %s134
    %p140 = scmp.eq.s32.totalorder %s11, 0
    %p141 = por %p139, %p140
    %p142 = scmp.ne.s32.totalorder %s131, %s134
    %p143 = scmp.eq.s32.totalorder %s16, 1
    %p144 = por %p142, %p143
    %p145 = scmp.ne.s32.totalorder %s134, %s135
    %p146 = scmp.eq.s32.totalorder %s16, 0
    %p147 = por %p145, %p146
    %p148 = scmp.ne.s32.totalorder %s134, %s135
    %p149 = scmp.eq.s32.totalorder %s17, 1
    %p150 = por %p148, %p149
    %p152 = scmp.ne.s32.totalorder %s135, %s151
    %p153 = scmp.eq.s32.totalorder %s17, 0
    %p154 = por %p152, %p153
    %p155 = scmp.le.s32.totalorder 1, %s11
    %p156 = scmp.lt.s32.totalorder %s11, 3
    %p157 = pnand %p155, %p156
    %p158 = pneg %p157
    // Predicated region
    $region9: #{_lambda_.7} parent=5 // pred_check
      _
    $region10: #{_lambda_.7} parent=5 // pred_check_branch
      %160 = sbr.rel (%p157) target = $region12
    $region11: #{_lambda_.7} parent=5 // pred_region
      %s161 = ssub.s32 %s11, 1
      // Predicated region
      $region13: #{_lambda_.7} parent=11 // pred_check
        %p162 = pneg %p58
      $region14: #{_lambda_.7} parent=11 // pred_check_branch
        %164 = sbr.rel (%p162) target = $region16
      $region15: #{_lambda_.7} parent=11 // pred_region
        _
      $region16: #{_lambda_.7} parent=11 // pred_fallthru
        _
      // Predicated region
      $region17: #{_lambda_.7} parent=11 // pred_check
        %p165 = pneg %p79
      $region18: #{_lambda_.7} parent=11 // pred_check_branch
        %167 = sbr.rel (%p165) target = $region20
      $region19: #{_lambda_.7} parent=11 // pred_region
        _
      $region20: #{_lambda_.7} parent=11 // pred_fallthru
        _
      // Predicated region
      $region21: #{_lambda_.7} parent=11 // pred_check
        %p168 = pneg %p100
      $region22: #{_lambda_.7} parent=11 // pred_check_branch
        %170 = sbr.rel (%p168) target = $region24
      $region23: #{_lambda_.7} parent=11 // pred_region
        _
      $region24: #{_lambda_.7} parent=11 // pred_fallthru
        _
      // Predicated region
      $region25: #{_lambda_.7} parent=11 // pred_check
        %p171 = pneg %p121
      $region26: #{_lambda_.7} parent=11 // pred_check_branch
        %173 = sbr.rel (%p171) target = $region28
      $region27: #{_lambda_.7} parent=11 // pred_region
        _
      $region28: #{_lambda_.7} parent=11 // pred_fallthru
        _
    $region12: #{_lambda_.7} parent=5 // pred_fallthru
      _
    %p174 = scmp.lt.s32.totalorder %s11, 2
    // Predicated region
    $region29: #{_lambda_.7} parent=5 // pred_check
      %p175 = pneg %p174
    $region30: #{_lambda_.7} parent=5 // pred_check_branch
      %177 = sbr.rel (%p175) target = $region32
    $region31: #{_lambda_.7} parent=5 // pred_region
      // Predicated region
      $region33: #{_lambda_.7} parent=31 // pred_check
        %p178 = pneg %p31
      $region34: #{_lambda_.7} parent=31 // pred_check_branch
        %180 = sbr.rel (%p178) target = $region36
      $region35: #{_lambda_.7} parent=31 // pred_region
        %p181 = scmp.lt.s32.totalorder %s11, 1
        %s182 = scalar_select %p181, %s11, 1
        %s183 = smul.addr %s182, 6
        %s184 = smul.addr %s183, 8
        %s185 = scalar_lea.vmem %s0, %s184
      $region36: #{_lambda_.7} parent=31 // pred_fallthru
        _
    $region32: #{_lambda_.7} parent=5 // pred_fallthru
      _
    %p186 = scmp.le.s32.totalorder 1, %s11
    %p187 = scmp.lt.s32.totalorder %s11, 3
    %p188 = pnand %p186, %p187
    %p189 = pneg %p188
    // Predicated region
    $region37: #{_lambda_.7} parent=5 // pred_check
      _
    $region38: #{_lambda_.7} parent=5 // pred_check_branch
      %191 = sbr.rel (%p188) target = $region40
    $region39: #{_lambda_.7} parent=5 // pred_region
      %s192 = ssub.s32 %s11, 1
      %p193 = scmp.lt.s32.totalorder %s16, 1
      %s194 = scalar_select %p193, %s16, 1
      %s195 = smul.addr %s194, 6
      %s196 = smul.addr %s195, 8
      %s197 = scalar_lea.vmem %s0, %s196
      %p198 = pneg %p37
      %p199 = pneg %p34
      %p200 = pneg %p58
      %p201 = pneg %p55
      %p202 = pneg %p79
      %p203 = pneg %p76
      %p204 = pneg %p100
      %p205 = pneg %p97
      %p206 = pneg %p121
      %p207 = pneg %p118
      %p208 = pneg %p147
      %p209 = pneg %p144
      %p210 = scmp.lt.s32.totalorder %s16, 1
      %s211 = scalar_select %p210, %s16, 1
      %s212 = smul.addr %s211, 8
      %s213 = scalar_lea.vmem %s5, %s212
      %p214 = scmp.lt.s32.totalorder %s16, 1
      %s215 = scalar_select %p214, %s16, 1
      %s216 = smul.addr %s215, 6
      %s217 = smul.addr %s216, 8
      %s218 = scalar_lea.vmem %s0, %s217
      %p219 = scmp.lt.s32.totalorder %s16, 1
      %s220 = scalar_select %p219, %s16, 1
      %s221 = smul.addr %s220, 8
      %s222 = scalar_lea.vmem %s5, %s221
      %v224 = vld [vmem:[%s218] sm:$0xff]
      %v225 = vld [vmem:[%s218 + $0x8] sm:$0xff]
      %v226 = vpack.c.bf16 %v225, %v224
      %v227 = vld [vmem:[%s1] sm:$0xff]
      %v228 = vld [vmem:[%s1 + $0x8] sm:$0xff]
      %v229 = vld [vmem:[%s1 + $0x10] sm:$0xff]
      %v230 = vld [vmem:[%s1 + $0x18] sm:$0xff]
      %v231 = vld [vmem:[%s1 + $0x20] sm:$0xff]
      %v232 = vld [vmem:[%s1 + $0x28] sm:$0xff]
      %v233 = vld [vmem:[%s1 + $0x30] sm:$0xff]
      %v234 = vld [vmem:[%s1 + $0x38] sm:$0xff]
      %v235 = vld [vmem:[%s1 + $0x40] sm:$0xff]
      %v236 = vld [vmem:[%s1 + $0x48] sm:$0xff]
      %v237 = vld [vmem:[%s1 + $0x50] sm:$0xff]
      %v238 = vld [vmem:[%s1 + $0x58] sm:$0xff]
      %s239 = scalar_lea.vmem %s218, 24
      %v240 = vld [vmem:[%s239] sm:$0xff]
      %v241 = vld [vmem:[%s239 + $0x8] sm:$0xff]
      %v242 = vpack.c.bf16 %v241, %v240
      %s243 = scalar_lea.vmem %s1, 96
      %v244 = vld [vmem:[%s243] sm:$0xff]
      %v245 = vld [vmem:[%s243 + $0x8] sm:$0xff]
      %v246 = vld [vmem:[%s243 + $0x10] sm:$0xff]
      %v247 = vld [vmem:[%s243 + $0x18] sm:$0xff]
      %v248 = vld [vmem:[%s243 + $0x20] sm:$0xff]
      %v249 = vld [vmem:[%s243 + $0x28] sm:$0xff]
      %v250 = vld [vmem:[%s243 + $0x30] sm:$0xff]
      %v251 = vld [vmem:[%s243 + $0x38] sm:$0xff]
      %v252 = vld [vmem:[%s243 + $0x40] sm:$0xff]
      %v253 = vld [vmem:[%s243 + $0x48] sm:$0xff]
      %v254 = vld [vmem:[%s243 + $0x50] sm:$0xff]
      %v255 = vld [vmem:[%s243 + $0x58] sm:$0xff]
      %v268 = vunpack.c.l.b16 %v244
      %v269 = vunpack.c.h.b16 %v244
      %v270 = vunpack.c.l.b16 %v245
      %v271 = vunpack.c.h.b16 %v245
      %v272 = vunpack.c.l.b16 %v246
      %v273 = vunpack.c.h.b16 %v246
      %v274 = vunpack.c.l.b16 %v247
      %v275 = vunpack.c.h.b16 %v247
      %v276 = vunpack.c.l.b16 %v248
      %v277 = vunpack.c.h.b16 %v248
      %v278 = vunpack.c.l.b16 %v249
      %v279 = vunpack.c.h.b16 %v249
      %v280 = vunpack.c.l.b16 %v250
      %v281 = vunpack.c.h.b16 %v250
      %v282 = vunpack.c.l.b16 %v251
      %v283 = vunpack.c.h.b16 %v251
      %v284 = vunpack.c.l.b16 %v252
      %v285 = vunpack.c.h.b16 %v252
      %v286 = vunpack.c.l.b16 %v253
      %v287 = vunpack.c.h.b16 %v253
      %v288 = vunpack.c.l.b16 %v254
      %v289 = vunpack.c.h.b16 %v254
      %v290 = vunpack.c.l.b16 %v255
      %v291 = vunpack.c.h.b16 %v255
      %v292 = vpack.c.b16 %v270, %v268
      %v293 = vpack.c.b16 %v271, %v269
      %v294 = vpack.c.b16 %v274, %v272
      %v295 = vpack.c.b16 %v275, %v273
      %v296 = vpack.c.b16 %v278, %v276
      %v297 = vpack.c.b16 %v279, %v277
      %v298 = vpack.c.b16 %v282, %v280
      %v299 = vpack.c.b16 %v283, %v281
      %v300 = vpack.c.b16 %v286, %v284
      %v301 = vpack.c.b16 %v287, %v285
      %v302 = vpack.c.b16 %v290, %v288
      %v303 = vpack.c.b16 %v291, %v289
      %vm316 = vcmask 785408
      %v318 = vsel %vm316, %v242, 0
      %320 = vmatprep.subr.bf16.mxu0 %v293
      %321 = vmatpush1.bf16.msra.mxu0 %v292
      %322 = vmatprep.subr.bf16.mxu0 %v295
      %323 = vmatpush1.bf16.msra.mxu0 %v294
      %324 = vmatprep.subr.bf16.mxu0 %v297
      %325 = vmatpush1.bf16.msra.mxu0 %v296
      %326 = vmatprep.subr.bf16.mxu0 %v299
      %327 = vmatpush1.bf16.msra.mxu0 %v298
      %328 = vmatprep.subr.bf16.mxu0 %v301
      %329 = vmatpush1.bf16.msra.mxu0 %v300
      %330 = vmatprep.subr.bf16.mxu0 %v303
      %331 = vmatpush1.bf16.msra.mxu0 %v302
      %332 = vmatprep.subr.bf16.mxu0 0
      %333 = vmatpush1.bf16.msra.mxu0 0
      %334 = vmatprep.subr.bf16.mxu0 0
      %335 = vmatpush1.bf16.msra.mxu0 0
      %336 = vmatprep.subr.bf16.mxu0 0
      %337 = vmatpush1.bf16.msra.mxu0 0
      %338 = vmatprep.subr.bf16.mxu0 0
      %339 = vmatpush1.bf16.msra.mxu0 0
      %340 = vmatprep.subr.bf16.mxu0 0
      %341 = vmatpush1.bf16.msra.mxu0 0
      %342 = vmatprep.subr.bf16.mxu0 0
      %343 = vmatpush1.bf16.msra.mxu0 0
      %344 = vmatprep.subr.bf16.mxu0 0
      %345 = vmatpush1.bf16.msra.mxu0 0
      %346 = vmatprep.subr.bf16.mxu0 0
      %347 = vmatpush1.bf16.msra.mxu0 0
      %348 = vmatprep.subr.bf16.mxu0 0
      %349 = vmatpush1.bf16.msra.mxu0 0
      %350 = vmatprep.subr.bf16.mxu0 0
      %351 = vmatpush1.bf16.msra.mxu0 0
      %352 = vmatprep.mubr.bf16.mxu0 0
      %353 = vmatmul.mubr.bf16.gmra.mrb[0].mxu0 %v318
      %v354 = vpop.f32.mrb[0].mxu0
      %v355 = vadd.f32 0.0, %v354
      %v356 = vpop.f32.mrb[0].mxu0
      %v357 = vadd.f32 0.0, %v356
      %v358 = vpop.f32.mrb[0].mxu0
      %v359 = vadd.f32 0.0, %v358
      %v360 = vpop.f32.mrb[0].mxu0
      %v361 = vadd.f32 0.0, %v360
      %362 = vdwg.mxu0
      %v375 = vunpack.c.l.b16 %v227
      %v376 = vunpack.c.h.b16 %v227
      %v377 = vunpack.c.l.b16 %v228
      %v378 = vunpack.c.h.b16 %v228
      %v379 = vunpack.c.l.b16 %v229
      %v380 = vunpack.c.h.b16 %v229
      %v381 = vunpack.c.l.b16 %v230
      %v382 = vunpack.c.h.b16 %v230
      %v383 = vunpack.c.l.b16 %v231
      %v384 = vunpack.c.h.b16 %v231
      %v385 = vunpack.c.l.b16 %v232
      %v386 = vunpack.c.h.b16 %v232
      %v387 = vunpack.c.l.b16 %v233
      %v388 = vunpack.c.h.b16 %v233
      %v389 = vunpack.c.l.b16 %v234
      %v390 = vunpack.c.h.b16 %v234
      %v391 = vunpack.c.l.b16 %v235
      %v392 = vunpack.c.h.b16 %v235
      %v393 = vunpack.c.l.b16 %v236
      %v394 = vunpack.c.h.b16 %v236
      %v395 = vunpack.c.l.b16 %v237
      %v396 = vunpack.c.h.b16 %v237
      %v397 = vunpack.c.l.b16 %v238
      %v398 = vunpack.c.h.b16 %v238
      %v399 = vpack.c.b16 %v377, %v375
      %v400 = vpack.c.b16 %v378, %v376
      %v401 = vpack.c.b16 %v381, %v379
      %v402 = vpack.c.b16 %v382, %v380
      %v403 = vpack.c.b16 %v385, %v383
      %v404 = vpack.c.b16 %v386, %v384
      %v405 = vpack.c.b16 %v389, %v387
      %v406 = vpack.c.b16 %v390, %v388
      %v407 = vpack.c.b16 %v393, %v391
      %v408 = vpack.c.b16 %v394, %v392
      %v409 = vpack.c.b16 %v397, %v395
      %v410 = vpack.c.b16 %v398, %v396
      %v424 = vsel %vm316, %v226, 0
      %426 = vmatprep.subr.bf16.mxu0 %v400
      %427 = vmatpush1.bf16.msra.mxu0 %v399
      %428 = vmatprep.subr.bf16.mxu0 %v402
      %429 = vmatpush1.bf16.msra.mxu0 %v401
      %430 = vmatprep.subr.bf16.mxu0 %v404
      %431 = vmatpush1.bf16.msra.mxu0 %v403
      %432 = vmatprep.subr.bf16.mxu0 %v406
      %433 = vmatpush1.bf16.msra.mxu0 %v405
      %434 = vmatprep.subr.bf16.mxu0 %v408
      %435 = vmatpush1.bf16.msra.mxu0 %v407
      %436 = vmatprep.subr.bf16.mxu0 %v410
      %437 = vmatpush1.bf16.msra.mxu0 %v409
      %438 = vmatprep.subr.bf16.mxu0 0
      %439 = vmatpush1.bf16.msra.mxu0 0
      %440 = vmatprep.subr.bf16.mxu0 0
      %441 = vmatpush1.bf16.msra.mxu0 0
      %442 = vmatprep.subr.bf16.mxu0 0
      %443 = vmatpush1.bf16.msra.mxu0 0
      %444 = vmatprep.subr.bf16.mxu0 0
      %445 = vmatpush1.bf16.msra.mxu0 0
      %446 = vmatprep.subr.bf16.mxu0 0
      %447 = vmatpush1.bf16.msra.mxu0 0
      %448 = vmatprep.subr.bf16.mxu0 0
      %449 = vmatpush1.bf16.msra.mxu0 0
      %450 = vmatprep.subr.bf16.mxu0 0
      %451 = vmatpush1.bf16.msra.mxu0 0
      %452 = vmatprep.subr.bf16.mxu0 0
      %453 = vmatpush1.bf16.msra.mxu0 0
      %454 = vmatprep.subr.bf16.mxu0 0
      %455 = vmatpush1.bf16.msra.mxu0 0
      %456 = vmatprep.subr.bf16.mxu0 0
      %457 = vmatpush1.bf16.msra.mxu0 0
      %458 = vmatprep.mubr.bf16.mxu0 0
      %459 = vmatmul.mubr.bf16.gmra.mrb[0].mxu0 %v424
      %v460 = vpop.f32.mrb[0].mxu0
      %v461 = vadd.f32 %v355, %v460
      %v462 = vpop.f32.mrb[0].mxu0
      %v463 = vadd.f32 %v357, %v462
      %v464 = vpop.f32.mrb[0].mxu0
      %v465 = vadd.f32 %v359, %v464
      %v466 = vpop.f32.mrb[0].mxu0
      %v467 = vadd.f32 %v361, %v466
      %468 = vdwg.mxu0
      %v469 = vld [vmem:[%s218 + $0x1] sm:$0xff]
      %v470 = vld [vmem:[%s218 + $0x9] sm:$0xff]
      %v471 = vpack.c.bf16 %v470, %v469
      %s472 = scalar_lea.vmem %s1, 192
      %v473 = vld [vmem:[%s472] sm:$0xff]
      %v474 = vld [vmem:[%s472 + $0x8] sm:$0xff]
      %v475 = vld [vmem:[%s472 + $0x10] sm:$0xff]
      %v476 = vld [vmem:[%s472 + $0x18] sm:$0xff]
      %v477 = vld [vmem:[%s472 + $0x20] sm:$0xff]
      %v478 = vld [vmem:[%s472 + $0x28] sm:$0xff]
      %v479 = vld [vmem:[%s472 + $0x30] sm:$0xff]
      %v480 = vld [vmem:[%s472 + $0x38] sm:$0xff]
      %v481 = vld [vmem:[%s472 + $0x40] sm:$0xff]
      %v482 = vld [vmem:[%s472 + $0x48] sm:$0xff]
      %v483 = vld [vmem:[%s472 + $0x50] sm:$0xff]
      %v484 = vld [vmem:[%s472 + $0x58] sm:$0xff]
      %v497 = vunpack.c.l.b16 %v473
      %v498 = vunpack.c.h.b16 %v473
      %v499 = vunpack.c.l.b16 %v474
      %v500 = vunpack.c.h.b16 %v474
      %v501 = vunpack.c.l.b16 %v475
      %v502 = vunpack.c.h.b16 %v475
      %v503 = vunpack.c.l.b16 %v476
      %v504 = vunpack.c.h.b16 %v476
      %v505 = vunpack.c.l.b16 %v477
      %v506 = vunpack.c.h.b16 %v477
      %v507 = vunpack.c.l.b16 %v478
      %v508 = vunpack.c.h.b16 %v478
      %v509 = vunpack.c.l.b16 %v479
      %v510 = vunpack.c.h.b16 %v479
      %v511 = vunpack.c.l.b16 %v480
      %v512 = vunpack.c.h.b16 %v480
      %v513 = vunpack.c.l.b16 %v481
      %v514 = vunpack.c.h.b16 %v481
      %v515 = vunpack.c.l.b16 %v482
      %v516 = vunpack.c.h.b16 %v482
      %v517 = vunpack.c.l.b16 %v483
      %v518 = vunpack.c.h.b16 %v483
      %v519 = vunpack.c.l.b16 %v484
      %v520 = vunpack.c.h.b16 %v484
      %v521 = vpack.c.b16 %v499, %v497
      %v522 = vpack.c.b16 %v500, %v498
      %v523 = vpack.c.b16 %v503, %v501
      %v524 = vpack.c.b16 %v504, %v502
      %v525 = vpack.c.b16 %v507, %v505
      %v526 = vpack.c.b16 %v508, %v506
      %v527 = vpack.c.b16 %v511, %v509
      %v528 = vpack.c.b16 %v512, %v510
      %v529 = vpack.c.b16 %v515, %v513
      %v530 = vpack.c.b16 %v516, %v514
      %v531 = vpack.c.b16 %v519, %v517
      %v532 = vpack.c.b16 %v520, %v518
      %v546 = vsel %vm316, %v471, 0
      %548 = vmatprep.subr.bf16.mxu0 %v522
      %549 = vmatpush1.bf16.msra.mxu0 %v521
      %550 = vmatprep.subr.bf16.mxu0 %v524
      %551 = vmatpush1.bf16.msra.mxu0 %v523
      %552 = vmatprep.subr.bf16.mxu0 %v526
      %553 = vmatpush1.bf16.msra.mxu0 %v525
      %554 = vmatprep.subr.bf16.mxu0 %v528
      %555 = vmatpush1.bf16.msra.mxu0 %v527
      %556 = vmatprep.subr.bf16.mxu0 %v530
      %557 = vmatpush1.bf16.msra.mxu0 %v529
      %558 = vmatprep.subr.bf16.mxu0 %v532
      %559 = vmatpush1.bf16.msra.mxu0 %v531
      %560 = vmatprep.subr.bf16.mxu0 0
      %561 = vmatpush1.bf16.msra.mxu0 0
      %562 = vmatprep.subr.bf16.mxu0 0
      %563 = vmatpush1.bf16.msra.mxu0 0
      %564 = vmatprep.subr.bf16.mxu0 0
      %565 = vmatpush1.bf16.msra.mxu0 0
      %566 = vmatprep.subr.bf16.mxu0 0
      %567 = vmatpush1.bf16.msra.mxu0 0
      %568 = vmatprep.subr.bf16.mxu0 0
      %569 = vmatpush1.bf16.msra.mxu0 0
      %570 = vmatprep.subr.bf16.mxu0 0
      %571 = vmatpush1.bf16.msra.mxu0 0
      %572 = vmatprep.subr.bf16.mxu0 0
      %573 = vmatpush1.bf16.msra.mxu0 0
      %574 = vmatprep.subr.bf16.mxu0 0
      %575 = vmatpush1.bf16.msra.mxu0 0
      %576 = vmatprep.subr.bf16.mxu0 0
      %577 = vmatpush1.bf16.msra.mxu0 0
      %578 = vmatprep.subr.bf16.mxu0 0
      %579 = vmatpush1.bf16.msra.mxu0 0
      %580 = vmatprep.mubr.bf16.mxu0 0
      %581 = vmatmul.mubr.bf16.gmra.mrb[0].mxu0 %v546
      %v582 = vpop.f32.mrb[0].mxu0
      %v583 = vadd.f32 0.0, %v582
      %v584 = vpop.f32.mrb[0].mxu0
      %v585 = vadd.f32 0.0, %v584
      %v586 = vpop.f32.mrb[0].mxu0
      %v587 = vadd.f32 0.0, %v586
      %v588 = vpop.f32.mrb[0].mxu0
      %v589 = vadd.f32 0.0, %v588
      %590 = vdwg.mxu0
      %v591 = vadd.f32 %v461, %v583
      %v592 = vadd.f32 %v463, %v585
      %v593 = vadd.f32 %v465, %v587
      %v594 = vadd.f32 %v467, %v589
      %v595 = vld [vmem:[%s239 + $0x1] sm:$0xff]
      %v596 = vld [vmem:[%s239 + $0x9] sm:$0xff]
      %v597 = vpack.c.bf16 %v596, %v595
      %s598 = scalar_lea.vmem %s1, 288
      %v599 = vld [vmem:[%s598] sm:$0xff]
      %v600 = vld [vmem:[%s598 + $0x8] sm:$0xff]
      %v601 = vld [vmem:[%s598 + $0x10] sm:$0xff]
      %v602 = vld [vmem:[%s598 + $0x18] sm:$0xff]
      %v603 = vld [vmem:[%s598 + $0x20] sm:$0xff]
      %v604 = vld [vmem:[%s598 + $0x28] sm:$0xff]
      %v605 = vld [vmem:[%s598 + $0x30] sm:$0xff]
      %v606 = vld [vmem:[%s598 + $0x38] sm:$0xff]
      %v607 = vld [vmem:[%s598 + $0x40] sm:$0xff]
      %v608 = vld [vmem:[%s598 + $0x48] sm:$0xff]
      %v609 = vld [vmem:[%s598 + $0x50] sm:$0xff]
      %v610 = vld [vmem:[%s598 + $0x58] sm:$0xff]
      %v623 = vunpack.c.l.b16 %v599
      %v624 = vunpack.c.h.b16 %v599
      %v625 = vunpack.c.l.b16 %v600
      %v626 = vunpack.c.h.b16 %v600
      %v627 = vunpack.c.l.b16 %v601
      %v628 = vunpack.c.h.b16 %v601
      %v629 = vunpack.c.l.b16 %v602
      %v630 = vunpack.c.h.b16 %v602
      %v631 = vunpack.c.l.b16 %v603
      %v632 = vunpack.c.h.b16 %v603
      %v633 = vunpack.c.l.b16 %v604
      %v634 = vunpack.c.h.b16 %v604
      %v635 = vunpack.c.l.b16 %v605
      %v636 = vunpack.c.h.b16 %v605
      %v637 = vunpack.c.l.b16 %v606
      %v638 = vunpack.c.h.b16 %v606
      %v639 = vunpack.c.l.b16 %v607
      %v640 = vunpack.c.h.b16 %v607
      %v641 = vunpack.c.l.b16 %v608
      %v642 = vunpack.c.h.b16 %v608
      %v643 = vunpack.c.l.b16 %v609
      %v644 = vunpack.c.h.b16 %v609
      %v645 = vunpack.c.l.b16 %v610
      %v646 = vunpack.c.h.b16 %v610
      %v647 = vpack.c.b16 %v625, %v623
      %v648 = vpack.c.b16 %v626, %v624
      %v649 = vpack.c.b16 %v629, %v627
      %v650 = vpack.c.b16 %v630, %v628
      %v651 = vpack.c.b16 %v633, %v631
      %v652 = vpack.c.b16 %v634, %v632
      %v653 = vpack.c.b16 %v637, %v635
      %v654 = vpack.c.b16 %v638, %v636
      %v655 = vpack.c.b16 %v641, %v639
      %v656 = vpack.c.b16 %v642, %v640
      %v657 = vpack.c.b16 %v645, %v643
      %v658 = vpack.c.b16 %v646, %v644
      %v672 = vsel %vm316, %v597, 0
      %674 = vmatprep.subr.bf16.mxu0 %v648
      %675 = vmatpush1.bf16.msra.mxu0 %v647
      %676 = vmatprep.subr.bf16.mxu0 %v650
      %677 = vmatpush1.bf16.msra.mxu0 %v649
      %678 = vmatprep.subr.bf16.mxu0 %v652
      %679 = vmatpush1.bf16.msra.mxu0 %v651
      %680 = vmatprep.subr.bf16.mxu0 %v654
      %681 = vmatpush1.bf16.msra.mxu0 %v653
      %682 = vmatprep.subr.bf16.mxu0 %v656
      %683 = vmatpush1.bf16.msra.mxu0 %v655
      %684 = vmatprep.subr.bf16.mxu0 %v658
      %685 = vmatpush1.bf16.msra.mxu0 %v657
      %686 = vmatprep.subr.bf16.mxu0 0
      %687 = vmatpush1.bf16.msra.mxu0 0
      %688 = vmatprep.subr.bf16.mxu0 0
      %689 = vmatpush1.bf16.msra.mxu0 0
      %690 = vmatprep.subr.bf16.mxu0 0
      %691 = vmatpush1.bf16.msra.mxu0 0
      %692 = vmatprep.subr.bf16.mxu0 0
      %693 = vmatpush1.bf16.msra.mxu0 0
      %694 = vmatprep.subr.bf16.mxu0 0
      %695 = vmatpush1.bf16.msra.mxu0 0
      %696 = vmatprep.subr.bf16.mxu0 0
      %697 = vmatpush1.bf16.msra.mxu0 0
      %698 = vmatprep.subr.bf16.mxu0 0
      %699 = vmatpush1.bf16.msra.mxu0 0
      %700 = vmatprep.subr.bf16.mxu0 0
      %701 = vmatpush1.bf16.msra.mxu0 0
      %702 = vmatprep.subr.bf16.mxu0 0
      %703 = vmatpush1.bf16.msra.mxu0 0
      %704 = vmatprep.subr.bf16.mxu0 0
      %705 = vmatpush1.bf16.msra.mxu0 0
      %706 = vmatprep.mubr.bf16.mxu0 0
      %707 = vmatmul.mubr.bf16.gmra.mrb[0].mxu0 %v672
      %v708 = vpop.f32.mrb[0].mxu0
      %v709 = vadd.f32 0.0, %v708
      %v710 = vpop.f32.mrb[0].mxu0
      %v711 = vadd.f32 0.0, %v710
      %v712 = vpop.f32.mrb[0].mxu0
      %v713 = vadd.f32 0.0, %v712
      %v714 = vpop.f32.mrb[0].mxu0
      %v715 = vadd.f32 0.0, %v714
      %716 = vdwg.mxu0
      %v717 = vadd.f32 %v591, %v709
      %v718 = vadd.f32 %v592, %v711
      %v719 = vadd.f32 %v593, %v713
      %v720 = vadd.f32 %v594, %v715
      %v721 = vld [vmem:[%s218 + $0x2] sm:$0xff]
      %v722 = vld [vmem:[%s218 + $0xa] sm:$0xff]
      %v723 = vpack.c.bf16 %v722, %v721
      %s724 = scalar_lea.vmem %s1, 384
      %v725 = vld [vmem:[%s724] sm:$0xff]
      %v726 = vld [vmem:[%s724 + $0x8] sm:$0xff]
      %v727 = vld [vmem:[%s724 + $0x10] sm:$0xff]
      %v728 = vld [vmem:[%s724 + $0x18] sm:$0xff]
      %v729 = vld [vmem:[%s724 + $0x20] sm:$0xff]
      %v730 = vld [vmem:[%s724 + $0x28] sm:$0xff]
      %v731 = vld [vmem:[%s724 + $0x30] sm:$0xff]
      %v732 = vld [vmem:[%s724 + $0x38] sm:$0xff]
      %v733 = vld [vmem:[%s724 + $0x40] sm:$0xff]
      %v734 = vld [vmem:[%s724 + $0x48] sm:$0xff]
      %v735 = vld [vmem:[%s724 + $0x50] sm:$0xff]
      %v736 = vld [vmem:[%s724 + $0x58] sm:$0xff]
      %v749 = vunpack.c.l.b16 %v725
      %v750 = vunpack.c.h.b16 %v725
      %v751 = vunpack.c.l.b16 %v726
      %v752 = vunpack.c.h.b16 %v726
      %v753 = vunpack.c.l.b16 %v727
      %v754 = vunpack.c.h.b16 %v727
      %v755 = vunpack.c.l.b16 %v728
      %v756 = vunpack.c.h.b16 %v728
      %v757 = vunpack.c.l.b16 %v729
      %v758 = vunpack.c.h.b16 %v729
      %v759 = vunpack.c.l.b16 %v730
      %v760 = vunpack.c.h.b16 %v730
      %v761 = vunpack.c.l.b16 %v731
      %v762 = vunpack.c.h.b16 %v731
      %v763 = vunpack.c.l.b16 %v732
      %v764 = vunpack.c.h.b16 %v732
      %v765 = vunpack.c.l.b16 %v733
      %v766 = vunpack.c.h.b16 %v733
      %v767 = vunpack.c.l.b16 %v734
      %v768 = vunpack.c.h.b16 %v734
      %v769 = vunpack.c.l.b16 %v735
      %v770 = vunpack.c.h.b16 %v735
      %v771 = vunpack.c.l.b16 %v736
      %v772 = vunpack.c.h.b16 %v736
      %v773 = vpack.c.b16 %v751, %v749
      %v774 = vpack.c.b16 %v752, %v750
      %v775 = vpack.c.b16 %v755, %v753
      %v776 = vpack.c.b16 %v756, %v754
      %v777 = vpack.c.b16 %v759, %v757
      %v778 = vpack.c.b16 %v760, %v758
      %v779 = vpack.c.b16 %v763, %v761
      %v780 = vpack.c.b16 %v764, %v762
      %v781 = vpack.c.b16 %v767, %v765
      %v782 = vpack.c.b16 %v768, %v766
      %v783 = vpack.c.b16 %v771, %v769
      %v784 = vpack.c.b16 %v772, %v770
      %v798 = vsel %vm316, %v723, 0
      %800 = vmatprep.subr.bf16.mxu0 %v774
      %801 = vmatpush1.bf16.msra.mxu0 %v773
      %802 = vmatprep.subr.bf16.mxu0 %v776
      %803 = vmatpush1.bf16.msra.mxu0 %v775
      %804 = vmatprep.subr.bf16.mxu0 %v778
      %805 = vmatpush1.bf16.msra.mxu0 %v777
      %806 = vmatprep.subr.bf16.mxu0 %v780
      %807 = vmatpush1.bf16.msra.mxu0 %v779
      %808 = vmatprep.subr.bf16.mxu0 %v782
      %809 = vmatpush1.bf16.msra.mxu0 %v781
      %810 = vmatprep.subr.bf16.mxu0 %v784
      %811 = vmatpush1.bf16.msra.mxu0 %v783
      %812 = vmatprep.subr.bf16.mxu0 0
      %813 = vmatpush1.bf16.msra.mxu0 0
      %814 = vmatprep.subr.bf16.mxu0 0
      %815 = vmatpush1.bf16.msra.mxu0 0
      %816 = vmatprep.subr.bf16.mxu0 0
      %817 = vmatpush1.bf16.msra.mxu0 0
      %818 = vmatprep.subr.bf16.mxu0 0
      %819 = vmatpush1.bf16.msra.mxu0 0
      %820 = vmatprep.subr.bf16.mxu0 0
      %821 = vmatpush1.bf16.msra.mxu0 0
      %822 = vmatprep.subr.bf16.mxu0 0
      %823 = vmatpush1.bf16.msra.mxu0 0
      %824 = vmatprep.subr.bf16.mxu0 0
      %825 = vmatpush1.bf16.msra.mxu0 0
      %826 = vmatprep.subr.bf16.mxu0 0
      %827 = vmatpush1.bf16.msra.mxu0 0
      %828 = vmatprep.subr.bf16.mxu0 0
      %829 = vmatpush1.bf16.msra.mxu0 0
      %830 = vmatprep.subr.bf16.mxu0 0
      %831 = vmatpush1.bf16.msra.mxu0 0
      %832 = vmatprep.mubr.bf16.mxu0 0
      %833 = vmatmul.mubr.bf16.gmra.mrb[0].mxu0 %v798
      %v834 = vpop.f32.mrb[0].mxu0
      %v835 = vadd.f32 0.0, %v834
      %v836 = vpop.f32.mrb[0].mxu0
      %v837 = vadd.f32 0.0, %v836
      %v838 = vpop.f32.mrb[0].mxu0
      %v839 = vadd.f32 0.0, %v838
      %v840 = vpop.f32.mrb[0].mxu0
      %v841 = vadd.f32 0.0, %v840
      %842 = vdwg.mxu0
      %v843 = vadd.f32 %v717, %v835
      %v844 = vadd.f32 %v718, %v837
      %v845 = vadd.f32 %v719, %v839
      %v846 = vadd.f32 %v720, %v841
      %v847 = vld [vmem:[%s239 + $0x2] sm:$0xff]
      %v848 = vld [vmem:[%s239 + $0xa] sm:$0xff]
      %v849 = vpack.c.bf16 %v848, %v847
      %s850 = scalar_lea.vmem %s1, 480
      %v851 = vld [vmem:[%s850] sm:$0xff]
      %v852 = vld [vmem:[%s850 + $0x8] sm:$0xff]
      %v853 = vld [vmem:[%s850 + $0x10] sm:$0xff]
      %v854 = vld [vmem:[%s850 + $0x18] sm:$0xff]
      %v855 = vld [vmem:[%s850 + $0x20] sm:$0xff]
      %v856 = vld [vmem:[%s850 + $0x28] sm:$0xff]
      %v857 = vld [vmem:[%s850 + $0x30] sm:$0xff]
      %v858 = vld [vmem:[%s850 + $0x38] sm:$0xff]
      %v859 = vld [vmem:[%s850 + $0x40] sm:$0xff]
      %v860 = vld [vmem:[%s850 + $0x48] sm:$0xff]
      %v861 = vld [vmem:[%s850 + $0x50] sm:$0xff]
      %v862 = vld [vmem:[%s850 + $0x58] sm:$0xff]
      %v875 = vunpack.c.l.b16 %v851
      %v876 = vunpack.c.h.b16 %v851
      %v877 = vunpack.c.l.b16 %v852
      %v878 = vunpack.c.h.b16 %v852
      %v879 = vunpack.c.l.b16 %v853
      %v880 = vunpack.c.h.b16 %v853
      %v881 = vunpack.c.l.b16 %v854
      %v882 = vunpack.c.h.b16 %v854
      %v883 = vunpack.c.l.b16 %v855
      %v884 = vunpack.c.h.b16 %v855
      %v885 = vunpack.c.l.b16 %v856
      %v886 = vunpack.c.h.b16 %v856
      %v887 = vunpack.c.l.b16 %v857
      %v888 = vunpack.c.h.b16 %v857
      %v889 = vunpack.c.l.b16 %v858
      %v890 = vunpack.c.h.b16 %v858
      %v891 = vunpack.c.l.b16 %v859
      %v892 = vunpack.c.h.b16 %v859
      %v893 = vunpack.c.l.b16 %v860
      %v894 = vunpack.c.h.b16 %v860
      %v895 = vunpack.c.l.b16 %v861
      %v896 = vunpack.c.h.b16 %v861
      %v897 = vunpack.c.l.b16 %v862
      %v898 = vunpack.c.h.b16 %v862
      %v899 = vpack.c.b16 %v877, %v875
      %v900 = vpack.c.b16 %v878, %v876
      %v901 = vpack.c.b16 %v881, %v879
      %v902 = vpack.c.b16 %v882, %v880
      %v903 = vpack.c.b16 %v885, %v883
      %v904 = vpack.c.b16 %v886, %v884
      %v905 = vpack.c.b16 %v889, %v887
      %v906 = vpack.c.b16 %v890, %v888
      %v907 = vpack.c.b16 %v893, %v891
      %v908 = vpack.c.b16 %v894, %v892
      %v909 = vpack.c.b16 %v897, %v895
      %v910 = vpack.c.b16 %v898, %v896
      %v924 = vsel %vm316, %v849, 0
      %926 = vmatprep.subr.bf16.mxu0 %v900
      %927 = vmatpush1.bf16.msra.mxu0 %v899
      %928 = vmatprep.subr.bf16.mxu0 %v902
      %929 = vmatpush1.bf16.msra.mxu0 %v901
      %930 = vmatprep.subr.bf16.mxu0 %v904
      %931 = vmatpush1.bf16.msra.mxu0 %v903
      %932 = vmatprep.subr.bf16.mxu0 %v906
      %933 = vmatpush1.bf16.msra.mxu0 %v905
      %934 = vmatprep.subr.bf16.mxu0 %v908
      %935 = vmatpush1.bf16.msra.mxu0 %v907
      %936 = vmatprep.subr.bf16.mxu0 %v910
      %937 = vmatpush1.bf16.msra.mxu0 %v909
      %938 = vmatprep.subr.bf16.mxu0 0
      %939 = vmatpush1.bf16.msra.mxu0 0
      %940 = vmatprep.subr.bf16.mxu0 0
      %941 = vmatpush1.bf16.msra.mxu0 0
      %942 = vmatprep.subr.bf16.mxu0 0
      %943 = vmatpush1.bf16.msra.mxu0 0
      %944 = vmatprep.subr.bf16.mxu0 0
      %945 = vmatpush1.bf16.msra.mxu0 0
      %946 = vmatprep.subr.bf16.mxu0 0
      %947 = vmatpush1.bf16.msra.mxu0 0
      %948 = vmatprep.subr.bf16.mxu0 0
      %949 = vmatpush1.bf16.msra.mxu0 0
      %950 = vmatprep.subr.bf16.mxu0 0
      %951 = vmatpush1.bf16.msra.mxu0 0
      %952 = vmatprep.subr.bf16.mxu0 0
      %953 = vmatpush1.bf16.msra.mxu0 0
      %954 = vmatprep.subr.bf16.mxu0 0
      %955 = vmatpush1.bf16.msra.mxu0 0
      %956 = vmatprep.subr.bf16.mxu0 0
      %957 = vmatpush1.bf16.msra.mxu0 0
      %958 = vmatprep.mubr.bf16.mxu0 0
      %959 = vmatmul.mubr.bf16.gmra.mrb[0].mxu0 %v924
      %v960 = vpop.f32.mrb[0].mxu0
      %v961 = vadd.f32 0.0, %v960
      %v962 = vpop.f32.mrb[0].mxu0
      %v963 = vadd.f32 0.0, %v962
      %v964 = vpop.f32.mrb[0].mxu0
      %v965 = vadd.f32 0.0, %v964
      %v966 = vpop.f32.mrb[0].mxu0
      %v967 = vadd.f32 0.0, %v966
      %968 = vdwg.mxu0
      %v969 = vadd.f32 %v843, %v961
      %v970 = vadd.f32 %v844, %v963
      %v971 = vadd.f32 %v845, %v965
      %v972 = vadd.f32 %v846, %v967
      %v973 = vld [vmem:[%s218 + $0x3] sm:$0xff]
      %v974 = vld [vmem:[%s218 + $0xb] sm:$0xff]
      %v975 = vpack.c.bf16 %v974, %v973
      %s976 = scalar_lea.vmem %s1, 576
      %v977 = vld [vmem:[%s976] sm:$0xff]
      %v978 = vld [vmem:[%s976 + $0x8] sm:$0xff]
      %v979 = vld [vmem:[%s976 + $0x10] sm:$0xff]
      %v980 = vld [vmem:[%s976 + $0x18] sm:$0xff]
      %v981 = vld [vmem:[%s976 + $0x20] sm:$0xff]
      %v982 = vld [vmem:[%s976 + $0x28] sm:$0xff]
      %v983 = vld [vmem:[%s976 + $0x30] sm:$0xff]
      %v984 = vld [vmem:[%s976 + $0x38] sm:$0xff]
      %v985 = vld [vmem:[%s976 + $0x40] sm:$0xff]
      %v986 = vld [vmem:[%s976 + $0x48] sm:$0xff]
      %v987 = vld [vmem:[%s976 + $0x50] sm:$0xff]
      %v988 = vld [vmem:[%s976 + $0x58] sm:$0xff]
      %v1001 = vunpack.c.l.b16 %v977
      %v1002 = vunpack.c.h.b16 %v977
      %v1003 = vunpack.c.l.b16 %v978
      %v1004 = vunpack.c.h.b16 %v978
      %v1005 = vunpack.c.l.b16 %v979
      %v1006 = vunpack.c.h.b16 %v979
      %v1007 = vunpack.c.l.b16 %v980
      %v1008 = vunpack.c.h.b16 %v980
      %v1009 = vunpack.c.l.b16 %v981
      %v1010 = vunpack.c.h.b16 %v981
      %v1011 = vunpack.c.l.b16 %v982
      %v1012 = vunpack.c.h.b16 %v982
      %v1013 = vunpack.c.l.b16 %v983
      %v1014 = vunpack.c.h.b16 %v983
      %v1015 = vunpack.c.l.b16 %v984
      %v1016 = vunpack.c.h.b16 %v984
      %v1017 = vunpack.c.l.b16 %v985
      %v1018 = vunpack.c.h.b16 %v985
      %v1019 = vunpack.c.l.b16 %v986
      %v1020 = vunpack.c.h.b16 %v986
      %v1021 = vunpack.c.l.b16 %v987
      %v1022 = vunpack.c.h.b16 %v987
      %v1023 = vunpack.c.l.b16 %v988
      %v1024 = vunpack.c.h.b16 %v988
      %v1025 = vpack.c.b16 %v1003, %v1001
      %v1026 = vpack.c.b16 %v1004, %v1002
      %v1027 = vpack.c.b16 %v1007, %v1005
      %v1028 = vpack.c.b16 %v1008, %v1006
      %v1029 = vpack.c.b16 %v1011, %v1009
      %v1030 = vpack.c.b16 %v1012, %v1010
      %v1031 = vpack.c.b16 %v1015, %v1013
      %v1032 = vpack.c.b16 %v1016, %v1014
      %v1033 = vpack.c.b16 %v1019, %v1017
      %v1034 = vpack.c.b16 %v1020, %v1018
      %v1035 = vpack.c.b16 %v1023, %v1021
      %v1036 = vpack.c.b16 %v1024, %v1022
      %v1050 = vsel %vm316, %v975, 0
      %1052 = vmatprep.subr.bf16.mxu0 %v1026
      %1053 = vmatpush1.bf16.msra.mxu0 %v1025
      %1054 = vmatprep.subr.bf16.mxu0 %v1028
      %1055 = vmatpush1.bf16.msra.mxu0 %v1027
      %1056 = vmatprep.subr.bf16.mxu0 %v1030
      %1057 = vmatpush1.bf16.msra.mxu0 %v1029
      %1058 = vmatprep.subr.bf16.mxu0 %v1032
      %1059 = vmatpush1.bf16.msra.mxu0 %v1031
      %1060 = vmatprep.subr.bf16.mxu0 %v1034
      %1061 = vmatpush1.bf16.msra.mxu0 %v1033
      %1062 = vmatprep.subr.bf16.mxu0 %v1036
      %1063 = vmatpush1.bf16.msra.mxu0 %v1035
      %1064 = vmatprep.subr.bf16.mxu0 0
      %1065 = vmatpush1.bf16.msra.mxu0 0
      %1066 = vmatprep.subr.bf16.mxu0 0
      %1067 = vmatpush1.bf16.msra.mxu0 0
      %1068 = vmatprep.subr.bf16.mxu0 0
      %1069 = vmatpush1.bf16.msra.mxu0 0
      %1070 = vmatprep.subr.bf16.mxu0 0
      %1071 = vmatpush1.bf16.msra.mxu0 0
      %1072 = vmatprep.subr.bf16.mxu0 0
      %1073 = vmatpush1.bf16.msra.mxu0 0
      %1074 = vmatprep.subr.bf16.mxu0 0
      %1075 = vmatpush1.bf16.msra.mxu0 0
      %1076 = vmatprep.subr.bf16.mxu0 0
      %1077 = vmatpush1.bf16.msra.mxu0 0
      %1078 = vmatprep.subr.bf16.mxu0 0
      %1079 = vmatpush1.bf16.msra.mxu0 0
      %1080 = vmatprep.subr.bf16.mxu0 0
      %1081 = vmatpush1.bf16.msra.mxu0 0
      %1082 = vmatprep.subr.bf16.mxu0 0
      %1083 = vmatpush1.bf16.msra.mxu0 0
      %1084 = vmatprep.mubr.bf16.mxu0 0
      %1085 = vmatmul.mubr.bf16.gmra.mrb[0].mxu0 %v1050
      %v1086 = vpop.f32.mrb[0].mxu0
      %v1087 = vadd.f32 0.0, %v1086
      %v1088 = vpop.f32.mrb[0].mxu0
      %v1089 = vadd.f32 0.0, %v1088
      %v1090 = vpop.f32.mrb[0].mxu0
      %v1091 = vadd.f32 0.0, %v1090
      %v1092 = vpop.f32.mrb[0].mxu0
      %v1093 = vadd.f32 0.0, %v1092
      %1094 = vdwg.mxu0
      %v1095 = vadd.f32 %v969, %v1087
      %v1096 = vadd.f32 %v970, %v1089
      %v1097 = vadd.f32 %v971, %v1091
      %v1098 = vadd.f32 %v972, %v1093
      %v1099 = vld [vmem:[%s2] sm:$0x3]
      %v1101 = vlaneseq
      %v1102 = vshrl.u32 %v1101, 7
      %v1103 = vsub.s32 0, %v1102
      %v1104 = vrot.slane %v1099, %v1103
      %v1105 = vlaneseq
      %v1106 = vshrl.u32 %v1105, 7
      %v1107 = vsub.s32 1, %v1106
      %v1108 = vrot.slane %v1099, %v1107
      %v1111 = vadd.f32 %v1095, %v1104
      %v1112 = vadd.f32 %v1096, %v1108
      %v1113 = vadd.f32 %v1097, %v1104
      %v1114 = vadd.f32 %v1098, %v1108
      %v1115 = vmax.f32 %v1111, 0.0
      %v1116 = vmax.f32 %v1112, 0.0
      %v1117 = vmax.f32 %v1113, 0.0
      %v1118 = vmax.f32 %v1114, 0.0
      %v1119 = vld [vmem:[%s3] sm:$0xff]
      %v1120 = vld [vmem:[%s3 + $0x8] sm:$0xff]
      %v1121 = vld [vmem:[%s3 + $0x10] sm:$0xff]
      %v1122 = vld [vmem:[%s3 + $0x18] sm:$0xff]
      %v1123 = vld [vmem:[%s3 + $0x20] sm:$0xff]
      %v1124 = vld [vmem:[%s3 + $0x28] sm:$0xff]
      %v1125 = vld [vmem:[%s3 + $0x30] sm:$0xff]
      %v1126 = vld [vmem:[%s3 + $0x38] sm:$0xff]
      %v1127 = vld [vmem:[%s3 + $0x40] sm:$0xff]
      %v1128 = vld [vmem:[%s3 + $0x48] sm:$0xff]
      %v1129 = vld [vmem:[%s3 + $0x50] sm:$0xff]
      %v1130 = vld [vmem:[%s3 + $0x58] sm:$0xff]
      %v1131 = vld [vmem:[%s3 + $0x60] sm:$0xff]
      %v1132 = vld [vmem:[%s3 + $0x68] sm:$0xff]
      %v1133 = vld [vmem:[%s3 + $0x70] sm:$0xff]
      %v1134 = vld [vmem:[%s3 + $0x78] sm:$0xff]
      %v1135 = vld [vmem:[%s3 + $0x80] sm:$0xff]
      %v1136 = vld [vmem:[%s3 + $0x88] sm:$0xff]
      %v1137 = vld [vmem:[%s3 + $0x90] sm:$0xff]
      %v1138 = vld [vmem:[%s3 + $0x98] sm:$0xff]
      %v1139 = vld [vmem:[%s3 + $0xa0] sm:$0xff]
      %v1140 = vld [vmem:[%s3 + $0xa8] sm:$0xff]
      %v1141 = vld [vmem:[%s3 + $0xb0] sm:$0xff]
      %v1142 = vld [vmem:[%s3 + $0xb8] sm:$0xff]
      %v1143 = vld [vmem:[%s3 + $0xc0] sm:$0xff]
      %v1144 = vld [vmem:[%s3 + $0xc8] sm:$0xff]
      %v1145 = vld [vmem:[%s3 + $0xd0] sm:$0xff]
      %v1146 = vld [vmem:[%s3 + $0xd8] sm:$0xff]
      %v1147 = vld [vmem:[%s3 + $0xe0] sm:$0xff]
      %v1148 = vld [vmem:[%s3 + $0xe8] sm:$0xff]
      %v1149 = vld [vmem:[%s3 + $0xf0] sm:$0xff]
      %v1150 = vld [vmem:[%s3 + $0xf8] sm:$0xff]
      %1151 = vmatprep.subr.mxu0 0.0
      %1152 = vmatpush1.msra.mxu0 %v1119
      %1153 = vmatprep.subr.mxu0 0.0
      %1154 = vmatpush1.msra.mxu0 %v1120
      %1155 = vmatprep.subr.mxu0 0.0
      %1156 = vmatpush1.msra.mxu0 %v1121
      %1157 = vmatprep.subr.mxu0 0.0
      %1158 = vmatpush1.msra.mxu0 %v1122
      %1159 = vmatprep.subr.mxu0 0.0
      %1160 = vmatpush1.msra.mxu0 %v1123
      %1161 = vmatprep.subr.mxu0 0.0
      %1162 = vmatpush1.msra.mxu0 %v1124
      %1163 = vmatprep.subr.mxu0 0.0
      %1164 = vmatpush1.msra.mxu0 %v1125
      %1165 = vmatprep.subr.mxu0 0.0
      %1166 = vmatpush1.msra.mxu0 %v1126
      %1167 = vmatprep.subr.mxu0 0.0
      %1168 = vmatpush1.msra.mxu0 %v1127
      %1169 = vmatprep.subr.mxu0 0.0
      %1170 = vmatpush1.msra.mxu0 %v1128
      %1171 = vmatprep.subr.mxu0 0.0
      %1172 = vmatpush1.msra.mxu0 %v1129
      %1173 = vmatprep.subr.mxu0 0.0
      %1174 = vmatpush1.msra.mxu0 %v1130
      %1175 = vmatprep.subr.mxu0 0.0
      %1176 = vmatpush1.msra.mxu0 %v1131
      %1177 = vmatprep.subr.mxu0 0.0
      %1178 = vmatpush1.msra.mxu0 %v1132
      %1179 = vmatprep.subr.mxu0 0.0
      %1180 = vmatpush1.msra.mxu0 %v1133
      %1181 = vmatprep.subr.mxu0 0.0
      %1182 = vmatpush1.msra.mxu0 %v1134
      %1183 = vmatprep.subr.mxu0 0.0
      %1184 = vmatpush1.msra.mxu0 %v1135
      %1185 = vmatprep.subr.mxu0 0.0
      %1186 = vmatpush1.msra.mxu0 %v1136
      %1187 = vmatprep.subr.mxu0 0.0
      %1188 = vmatpush1.msra.mxu0 %v1137
      %1189 = vmatprep.subr.mxu0 0.0
      %1190 = vmatpush1.msra.mxu0 %v1138
      %1191 = vmatprep.subr.mxu0 0.0
      %1192 = vmatpush1.msra.mxu0 %v1139
      %1193 = vmatprep.subr.mxu0 0.0
      %1194 = vmatpush1.msra.mxu0 %v1140
      %1195 = vmatprep.subr.mxu0 0.0
      %1196 = vmatpush1.msra.mxu0 %v1141
      %1197 = vmatprep.subr.mxu0 0.0
      %1198 = vmatpush1.msra.mxu0 %v1142
      %1199 = vmatprep.subr.mxu0 0.0
      %1200 = vmatpush1.msra.mxu0 %v1143
      %1201 = vmatprep.subr.mxu0 0.0
      %1202 = vmatpush1.msra.mxu0 %v1144
      %1203 = vmatprep.subr.mxu0 0.0
      %1204 = vmatpush1.msra.mxu0 %v1145
      %1205 = vmatprep.subr.mxu0 0.0
      %1206 = vmatpush1.msra.mxu0 %v1146
      %1207 = vmatprep.subr.mxu0 0.0
      %1208 = vmatpush1.msra.mxu0 %v1147
      %1209 = vmatprep.subr.mxu0 0.0
      %1210 = vmatpush1.msra.mxu0 %v1148
      %1211 = vmatprep.subr.mxu0 0.0
      %1212 = vmatpush1.msra.mxu0 %v1149
      %1213 = vmatprep.subr.mxu0 0.0
      %1214 = vmatpush1.msra.mxu0 %v1150
      %1215 = vmatprep.mubr.f32.mxu0 %v1116
      %1216 = vmatmul.mubr.f32.gmra.mrb[0].mxu0 %v1115
      %v1217 = vpop.f32.mrb[0].mxu0
      %v1218 = vadd.f32 0.0, %v1217
      %v1219 = vpop.f32.mrb[0].mxu0
      %1220 = vmatprep.mubr.f32.mxu0 %v1118
      %1221 = vmatmul.mubr.f32.gmra.mrb[0].mxu0 %v1117
      %v1222 = vpop.f32.mrb[0].mxu0
      %v1223 = vadd.f32 0.0, %v1222
      %v1224 = vpop.f32.mrb[0].mxu0
      %1225 = vdwg.mxu0
      %s1226 = scalar_lea.vmem %s3, 256
      %v1227 = vld [vmem:[%s1226] sm:$0xff]
      %v1228 = vld [vmem:[%s1226 + $0x8] sm:$0xff]
      %v1229 = vld [vmem:[%s1226 + $0x10] sm:$0xff]
      %v1230 = vld [vmem:[%s1226 + $0x18] sm:$0xff]
      %v1231 = vld [vmem:[%s1226 + $0x20] sm:$0xff]
      %v1232 = vld [vmem:[%s1226 + $0x28] sm:$0xff]
      %v1233 = vld [vmem:[%s1226 + $0x30] sm:$0xff]
      %v1234 = vld [vmem:[%s1226 + $0x38] sm:$0xff]
      %v1235 = vld [vmem:[%s1226 + $0x40] sm:$0xff]
      %v1236 = vld [vmem:[%s1226 + $0x48] sm:$0xff]
      %v1237 = vld [vmem:[%s1226 + $0x50] sm:$0xff]
      %v1238 = vld [vmem:[%s1226 + $0x58] sm:$0xff]
      %v1239 = vld [vmem:[%s1226 + $0x60] sm:$0xff]
      %v1240 = vld [vmem:[%s1226 + $0x68] sm:$0xff]
      %v1241 = vld [vmem:[%s1226 + $0x70] sm:$0xff]
      %v1242 = vld [vmem:[%s1226 + $0x78] sm:$0xff]
      %v1243 = vld [vmem:[%s1226 + $0x80] sm:$0xff]
      %v1244 = vld [vmem:[%s1226 + $0x88] sm:$0xff]
      %v1245 = vld [vmem:[%s1226 + $0x90] sm:$0xff]
      %v1246 = vld [vmem:[%s1226 + $0x98] sm:$0xff]
      %v1247 = vld [vmem:[%s1226 + $0xa0] sm:$0xff]
      %v1248 = vld [vmem:[%s1226 + $0xa8] sm:$0xff]
      %v1249 = vld [vmem:[%s1226 + $0xb0] sm:$0xff]
      %v1250 = vld [vmem:[%s1226 + $0xb8] sm:$0xff]
      %v1251 = vld [vmem:[%s1226 + $0xc0] sm:$0xff]
      %v1252 = vld [vmem:[%s1226 + $0xc8] sm:$0xff]
      %v1253 = vld [vmem:[%s1226 + $0xd0] sm:$0xff]
      %v1254 = vld [vmem:[%s1226 + $0xd8] sm:$0xff]
      %v1255 = vld [vmem:[%s1226 + $0xe0] sm:$0xff]
      %v1256 = vld [vmem:[%s1226 + $0xe8] sm:$0xff]
      %v1257 = vld [vmem:[%s1226 + $0xf0] sm:$0xff]
      %v1258 = vld [vmem:[%s1226 + $0xf8] sm:$0xff]
      %1259 = vmatprep.subr.mxu0 0.0
      %1260 = vmatpush1.msra.mxu0 %v1227
      %1261 = vmatprep.subr.mxu0 0.0
      %1262 = vmatpush1.msra.mxu0 %v1228
      %1263 = vmatprep.subr.mxu0 0.0
      %1264 = vmatpush1.msra.mxu0 %v1229
      %1265 = vmatprep.subr.mxu0 0.0
      %1266 = vmatpush1.msra.mxu0 %v1230
      %1267 = vmatprep.subr.mxu0 0.0
      %1268 = vmatpush1.msra.mxu0 %v1231
      %1269 = vmatprep.subr.mxu0 0.0
      %1270 = vmatpush1.msra.mxu0 %v1232
      %1271 = vmatprep.subr.mxu0 0.0
      %1272 = vmatpush1.msra.mxu0 %v1233
      %1273 = vmatprep.subr.mxu0 0.0
      %1274 = vmatpush1.msra.mxu0 %v1234
      %1275 = vmatprep.subr.mxu0 0.0
      %1276 = vmatpush1.msra.mxu0 %v1235
      %1277 = vmatprep.subr.mxu0 0.0
      %1278 = vmatpush1.msra.mxu0 %v1236
      %1279 = vmatprep.subr.mxu0 0.0
      %1280 = vmatpush1.msra.mxu0 %v1237
      %1281 = vmatprep.subr.mxu0 0.0
      %1282 = vmatpush1.msra.mxu0 %v1238
      %1283 = vmatprep.subr.mxu0 0.0
      %1284 = vmatpush1.msra.mxu0 %v1239
      %1285 = vmatprep.subr.mxu0 0.0
      %1286 = vmatpush1.msra.mxu0 %v1240
      %1287 = vmatprep.subr.mxu0 0.0
      %1288 = vmatpush1.msra.mxu0 %v1241
      %1289 = vmatprep.subr.mxu0 0.0
      %1290 = vmatpush1.msra.mxu0 %v1242
      %1291 = vmatprep.subr.mxu0 0.0
      %1292 = vmatpush1.msra.mxu0 %v1243
      %1293 = vmatprep.subr.mxu0 0.0
      %1294 = vmatpush1.msra.mxu0 %v1244
      %1295 = vmatprep.subr.mxu0 0.0
      %1296 = vmatpush1.msra.mxu0 %v1245
      %1297 = vmatprep.subr.mxu0 0.0
      %1298 = vmatpush1.msra.mxu0 %v1246
      %1299 = vmatprep.subr.mxu0 0.0
      %1300 = vmatpush1.msra.mxu0 %v1247
      %1301 = vmatprep.subr.mxu0 0.0
      %1302 = vmatpush1.msra.mxu0 %v1248
      %1303 = vmatprep.subr.mxu0 0.0
      %1304 = vmatpush1.msra.mxu0 %v1249
      %1305 = vmatprep.subr.mxu0 0.0
      %1306 = vmatpush1.msra.mxu0 %v1250
      %1307 = vmatprep.subr.mxu0 0.0
      %1308 = vmatpush1.msra.mxu0 %v1251
      %1309 = vmatprep.subr.mxu0 0.0
      %1310 = vmatpush1.msra.mxu0 %v1252
      %1311 = vmatprep.subr.mxu0 0.0
      %1312 = vmatpush1.msra.mxu0 %v1253
      %1313 = vmatprep.subr.mxu0 0.0
      %1314 = vmatpush1.msra.mxu0 %v1254
      %1315 = vmatprep.subr.mxu0 0.0
      %1316 = vmatpush1.msra.mxu0 %v1255
      %1317 = vmatprep.subr.mxu0 0.0
      %1318 = vmatpush1.msra.mxu0 %v1256
      %1319 = vmatprep.subr.mxu0 0.0
      %1320 = vmatpush1.msra.mxu0 %v1257
      %1321 = vmatprep.subr.mxu0 0.0
      %1322 = vmatpush1.msra.mxu0 %v1258
      %1323 = vmatprep.mubr.f32.mxu0 %v1116
      %1324 = vmatmul.mubr.f32.gmra.mrb[0].mxu0 %v1115
      %v1325 = vpop.f32.mrb[0].mxu0
      %v1326 = vadd.f32 0.0, %v1325
      %v1327 = vpop.f32.mrb[0].mxu0
      %1328 = vmatprep.mubr.f32.mxu0 %v1118
      %1329 = vmatmul.mubr.f32.gmra.mrb[0].mxu0 %v1117
      %v1330 = vpop.f32.mrb[0].mxu0
      %v1331 = vadd.f32 0.0, %v1330
      %v1332 = vpop.f32.mrb[0].mxu0
      %1333 = vdwg.mxu0
      %v1334 = vmax.f32 %v1218, %v1326
      %v1335 = vmax.f32 %v1223, %v1331
      %s1336 = scalar_lea.vmem %s3, 512
      %v1337 = vld [vmem:[%s1336] sm:$0xff]
      %v1338 = vld [vmem:[%s1336 + $0x8] sm:$0xff]
      %v1339 = vld [vmem:[%s1336 + $0x10] sm:$0xff]
      %v1340 = vld [vmem:[%s1336 + $0x18] sm:$0xff]
      %v1341 = vld [vmem:[%s1336 + $0x20] sm:$0xff]
      %v1342 = vld [vmem:[%s1336 + $0x28] sm:$0xff]
      %v1343 = vld [vmem:[%s1336 + $0x30] sm:$0xff]
      %v1344 = vld [vmem:[%s1336 + $0x38] sm:$0xff]
      %v1345 = vld [vmem:[%s1336 + $0x40] sm:$0xff]
      %v1346 = vld [vmem:[%s1336 + $0x48] sm:$0xff]
      %v1347 = vld [vmem:[%s1336 + $0x50] sm:$0xff]
      %v1348 = vld [vmem:[%s1336 + $0x58] sm:$0xff]
      %v1349 = vld [vmem:[%s1336 + $0x60] sm:$0xff]
      %v1350 = vld [vmem:[%s1336 + $0x68] sm:$0xff]
      %v1351 = vld [vmem:[%s1336 + $0x70] sm:$0xff]
      %v1352 = vld [vmem:[%s1336 + $0x78] sm:$0xff]
      %v1353 = vld [vmem:[%s1336 + $0x80] sm:$0xff]
      %v1354 = vld [vmem:[%s1336 + $0x88] sm:$0xff]
      %v1355 = vld [vmem:[%s1336 + $0x90] sm:$0xff]
      %v1356 = vld [vmem:[%s1336 + $0x98] sm:$0xff]
      %v1357 = vld [vmem:[%s1336 + $0xa0] sm:$0xff]
      %v1358 = vld [vmem:[%s1336 + $0xa8] sm:$0xff]
      %v1359 = vld [vmem:[%s1336 + $0xb0] sm:$0xff]
      %v1360 = vld [vmem:[%s1336 + $0xb8] sm:$0xff]
      %v1361 = vld [vmem:[%s1336 + $0xc0] sm:$0xff]
      %v1362 = vld [vmem:[%s1336 + $0xc8] sm:$0xff]
      %v1363 = vld [vmem:[%s1336 + $0xd0] sm:$0xff]
      %v1364 = vld [vmem:[%s1336 + $0xd8] sm:$0xff]
      %v1365 = vld [vmem:[%s1336 + $0xe0] sm:$0xff]
      %v1366 = vld [vmem:[%s1336 + $0xe8] sm:$0xff]
      %v1367 = vld [vmem:[%s1336 + $0xf0] sm:$0xff]
      %v1368 = vld [vmem:[%s1336 + $0xf8] sm:$0xff]
      %1369 = vmatprep.subr.mxu0 0.0
      %1370 = vmatpush1.msra.mxu0 %v1337
      %1371 = vmatprep.subr.mxu0 0.0
      %1372 = vmatpush1.msra.mxu0 %v1338
      %1373 = vmatprep.subr.mxu0 0.0
      %1374 = vmatpush1.msra.mxu0 %v1339
      %1375 = vmatprep.subr.mxu0 0.0
      %1376 = vmatpush1.msra.mxu0 %v1340
      %1377 = vmatprep.subr.mxu0 0.0
      %1378 = vmatpush1.msra.mxu0 %v1341
      %1379 = vmatprep.subr.mxu0 0.0
      %1380 = vmatpush1.msra.mxu0 %v1342
      %1381 = vmatprep.subr.mxu0 0.0
      %1382 = vmatpush1.msra.mxu0 %v1343
      %1383 = vmatprep.subr.mxu0 0.0
      %1384 = vmatpush1.msra.mxu0 %v1344
      %1385 = vmatprep.subr.mxu0 0.0
      %1386 = vmatpush1.msra.mxu0 %v1345
      %1387 = vmatprep.subr.mxu0 0.0
      %1388 = vmatpush1.msra.mxu0 %v1346
      %1389 = vmatprep.subr.mxu0 0.0
      %1390 = vmatpush1.msra.mxu0 %v1347
      %1391 = vmatprep.subr.mxu0 0.0
      %1392 = vmatpush1.msra.mxu0 %v1348
      %1393 = vmatprep.subr.mxu0 0.0
      %1394 = vmatpush1.msra.mxu0 %v1349
      %1395 = vmatprep.subr.mxu0 0.0
      %1396 = vmatpush1.msra.mxu0 %v1350
      %1397 = vmatprep.subr.mxu0 0.0
      %1398 = vmatpush1.msra.mxu0 %v1351
      %1399 = vmatprep.subr.mxu0 0.0
      %1400 = vmatpush1.msra.mxu0 %v1352
      %1401 = vmatprep.subr.mxu0 0.0
      %1402 = vmatpush1.msra.mxu0 %v1353
      %1403 = vmatprep.subr.mxu0 0.0
      %1404 = vmatpush1.msra.mxu0 %v1354
      %1405 = vmatprep.subr.mxu0 0.0
      %1406 = vmatpush1.msra.mxu0 %v1355
      %1407 = vmatprep.subr.mxu0 0.0
      %1408 = vmatpush1.msra.mxu0 %v1356
      %1409 = vmatprep.subr.mxu0 0.0
      %1410 = vmatpush1.msra.mxu0 %v1357
      %1411 = vmatprep.subr.mxu0 0.0
      %1412 = vmatpush1.msra.mxu0 %v1358
      %1413 = vmatprep.subr.mxu0 0.0
      %1414 = vmatpush1.msra.mxu0 %v1359
      %1415 = vmatprep.subr.mxu0 0.0
      %1416 = vmatpush1.msra.mxu0 %v1360
      %1417 = vmatprep.subr.mxu0 0.0
      %1418 = vmatpush1.msra.mxu0 %v1361
      %1419 = vmatprep.subr.mxu0 0.0
      %1420 = vmatpush1.msra.mxu0 %v1362
      %1421 = vmatprep.subr.mxu0 0.0
      %1422 = vmatpush1.msra.mxu0 %v1363
      %1423 = vmatprep.subr.mxu0 0.0
      %1424 = vmatpush1.msra.mxu0 %v1364
      %1425 = vmatprep.subr.mxu0 0.0
      %1426 = vmatpush1.msra.mxu0 %v1365
      %1427 = vmatprep.subr.mxu0 0.0
      %1428 = vmatpush1.msra.mxu0 %v1366
      %1429 = vmatprep.subr.mxu0 0.0
      %1430 = vmatpush1.msra.mxu0 %v1367
      %1431 = vmatprep.subr.mxu0 0.0
      %1432 = vmatpush1.msra.mxu0 %v1368
      %1433 = vmatprep.mubr.f32.mxu0 %v1116
      %1434 = vmatmul.mubr.f32.gmra.mrb[0].mxu0 %v1115
      %v1435 = vpop.f32.mrb[0].mxu0
      %v1436 = vadd.f32 0.0, %v1435
      %v1437 = vpop.f32.mrb[0].mxu0
      %1438 = vmatprep.mubr.f32.mxu0 %v1118
      %1439 = vmatmul.mubr.f32.gmra.mrb[0].mxu0 %v1117
      %v1440 = vpop.f32.mrb[0].mxu0
      %v1441 = vadd.f32 0.0, %v1440
      %v1442 = vpop.f32.mrb[0].mxu0
      %1443 = vdwg.mxu0
      %v1444 = vmax.f32 %v1334, %v1436
      %v1445 = vmax.f32 %v1335, %v1441
      %v1446 = vld [vmem:[%s4] sm:$0xff]
      %vm1447 = vcmask 130048
      %v1449 = vsel %vm1447, %v1446, 0
      %1451 = vmatprep.subr.mxu0 0.0
      %1452 = vmatpush1.msra.mxu0 %v1444
      %1453 = vmatprep.subr.mxu0 0.0
      %1454 = vmatpush1.msra.mxu0 %v1445
      %1455 = vmatprep.subr.mxu0 0.0
      %1456 = vmatpush1.msra.mxu0 0.0
      %1457 = vmatprep.subr.mxu0 0.0
      %1458 = vmatpush1.msra.mxu0 0.0
      %1459 = vmatprep.subr.mxu0 0.0
      %1460 = vmatpush1.msra.mxu0 0.0
      %1461 = vmatprep.subr.mxu0 0.0
      %1462 = vmatpush1.msra.mxu0 0.0
      %1463 = vmatprep.subr.mxu0 0.0
      %1464 = vmatpush1.msra.mxu0 0.0
      %1465 = vmatprep.subr.mxu0 0.0
      %1466 = vmatpush1.msra.mxu0 0.0
      %1467 = vmatprep.subr.mxu0 0.0
      %1468 = vmatpush1.msra.mxu0 0.0
      %1469 = vmatprep.subr.mxu0 0.0
      %1470 = vmatpush1.msra.mxu0 0.0
      %1471 = vmatprep.subr.mxu0 0.0
      %1472 = vmatpush1.msra.mxu0 0.0
      %1473 = vmatprep.subr.mxu0 0.0
      %1474 = vmatpush1.msra.mxu0 0.0
      %1475 = vmatprep.subr.mxu0 0.0
      %1476 = vmatpush1.msra.mxu0 0.0
      %1477 = vmatprep.subr.mxu0 0.0
      %1478 = vmatpush1.msra.mxu0 0.0
      %1479 = vmatprep.subr.mxu0 0.0
      %1480 = vmatpush1.msra.mxu0 0.0
      %1481 = vmatprep.subr.mxu0 0.0
      %1482 = vmatpush1.msra.mxu0 0.0
      %1483 = vmatprep.subr.mxu0 0.0
      %1484 = vmatpush1.msra.mxu0 0.0
      %1485 = vmatprep.subr.mxu0 0.0
      %1486 = vmatpush1.msra.mxu0 0.0
      %1487 = vmatprep.subr.mxu0 0.0
      %1488 = vmatpush1.msra.mxu0 0.0
      %1489 = vmatprep.subr.mxu0 0.0
      %1490 = vmatpush1.msra.mxu0 0.0
      %1491 = vmatprep.subr.mxu0 0.0
      %1492 = vmatpush1.msra.mxu0 0.0
      %1493 = vmatprep.subr.mxu0 0.0
      %1494 = vmatpush1.msra.mxu0 0.0
      %1495 = vmatprep.subr.mxu0 0.0
      %1496 = vmatpush1.msra.mxu0 0.0
      %1497 = vmatprep.subr.mxu0 0.0
      %1498 = vmatpush1.msra.mxu0 0.0
      %1499 = vmatprep.subr.mxu0 0.0
      %1500 = vmatpush1.msra.mxu0 0.0
      %1501 = vmatprep.subr.mxu0 0.0
      %1502 = vmatpush1.msra.mxu0 0.0
      %1503 = vmatprep.subr.mxu0 0.0
      %1504 = vmatpush1.msra.mxu0 0.0
      %1505 = vmatprep.subr.mxu0 0.0
      %1506 = vmatpush1.msra.mxu0 0.0
      %1507 = vmatprep.subr.mxu0 0.0
      %1508 = vmatpush1.msra.mxu0 0.0
      %1509 = vmatprep.subr.mxu0 0.0
      %1510 = vmatpush1.msra.mxu0 0.0
      %1511 = vmatprep.subr.mxu0 0.0
      %1512 = vmatpush1.msra.mxu0 0.0
      %1513 = vmatprep.subr.mxu0 0.0
      %1514 = vmatpush1.msra.mxu0 0.0
      %1515 = vmatprep.mubr.f32.mxu0 0.0
      %1516 = vmatmul.mubr.f32.gmra.mrb[0].mxu0 %v1449
      %v1517 = vpop.f32.mrb[0].mxu0
      %v1518 = vadd.f32 0.0, %v1517
      %v1519 = vpop.f32.mrb[0].mxu0
      %1520 = vdwg.mxu0
      %s1521 = scalar_lea.vmem %s4, 8
      %v1522 = vld [vmem:[%s1521] sm:$0xff]
      %v1524 = vsel %vm1447, %v1522, 0
      %1526 = vmatprep.subr.mxu0 0.0
      %1527 = vmatpush1.msra.mxu0 %v1444
      %1528 = vmatprep.subr.mxu0 0.0
      %1529 = vmatpush1.msra.mxu0 %v1445
      %1530 = vmatprep.subr.mxu0 0.0
      %1531 = vmatpush1.msra.mxu0 0.0
      %1532 = vmatprep.subr.mxu0 0.0
      %1533 = vmatpush1.msra.mxu0 0.0
      %1534 = vmatprep.subr.mxu0 0.0
      %1535 = vmatpush1.msra.mxu0 0.0
      %1536 = vmatprep.subr.mxu0 0.0
      %1537 = vmatpush1.msra.mxu0 0.0
      %1538 = vmatprep.subr.mxu0 0.0
      %1539 = vmatpush1.msra.mxu0 0.0
      %1540 = vmatprep.subr.mxu0 0.0
      %1541 = vmatpush1.msra.mxu0 0.0
      %1542 = vmatprep.subr.mxu0 0.0
      %1543 = vmatpush1.msra.mxu0 0.0
      %1544 = vmatprep.subr.mxu0 0.0
      %1545 = vmatpush1.msra.mxu0 0.0
      %1546 = vmatprep.subr.mxu0 0.0
      %1547 = vmatpush1.msra.mxu0 0.0
      %1548 = vmatprep.subr.mxu0 0.0
      %1549 = vmatpush1.msra.mxu0 0.0
      %1550 = vmatprep.subr.mxu0 0.0
      %1551 = vmatpush1.msra.mxu0 0.0
      %1552 = vmatprep.subr.mxu0 0.0
      %1553 = vmatpush1.msra.mxu0 0.0
      %1554 = vmatprep.subr.mxu0 0.0
      %1555 = vmatpush1.msra.mxu0 0.0
      %1556 = vmatprep.subr.mxu0 0.0
      %1557 = vmatpush1.msra.mxu0 0.0
      %1558 = vmatprep.subr.mxu0 0.0
      %1559 = vmatpush1.msra.mxu0 0.0
      %1560 = vmatprep.subr.mxu0 0.0
      %1561 = vmatpush1.msra.mxu0 0.0
      %1562 = vmatprep.subr.mxu0 0.0
      %1563 = vmatpush1.msra.mxu0 0.0
      %1564 = vmatprep.subr.mxu0 0.0
      %1565 = vmatpush1.msra.mxu0 0.0
      %1566 = vmatprep.subr.mxu0 0.0
      %1567 = vmatpush1.msra.mxu0 0.0
      %1568 = vmatprep.subr.mxu0 0.0
      %1569 = vmatpush1.msra.mxu0 0.0
      %1570 = vmatprep.subr.mxu0 0.0
      %1571 = vmatpush1.msra.mxu0 0.0
      %1572 = vmatprep.subr.mxu0 0.0
      %1573 = vmatpush1.msra.mxu0 0.0
      %1574 = vmatprep.subr.mxu0 0.0
      %1575 = vmatpush1.msra.mxu0 0.0
      %1576 = vmatprep.subr.mxu0 0.0
      %1577 = vmatpush1.msra.mxu0 0.0
      %1578 = vmatprep.subr.mxu0 0.0
      %1579 = vmatpush1.msra.mxu0 0.0
      %1580 = vmatprep.subr.mxu0 0.0
      %1581 = vmatpush1.msra.mxu0 0.0
      %1582 = vmatprep.subr.mxu0 0.0
      %1583 = vmatpush1.msra.mxu0 0.0
      %1584 = vmatprep.subr.mxu0 0.0
      %1585 = vmatpush1.msra.mxu0 0.0
      %1586 = vmatprep.subr.mxu0 0.0
      %1587 = vmatpush1.msra.mxu0 0.0
      %1588 = vmatprep.subr.mxu0 0.0
      %1589 = vmatpush1.msra.mxu0 0.0
      %1590 = vmatprep.mubr.f32.mxu0 0.0
      %1591 = vmatmul.mubr.f32.gmra.mrb[0].mxu0 %v1524
      %v1592 = vpop.f32.mrb[0].mxu0
      %v1593 = vadd.f32 0.0, %v1592
      %v1594 = vpop.f32.mrb[0].mxu0
      %1595 = vdwg.mxu0
      %v1596 = vmax.f32 %v1518, %v1593
      %s1597 = scalar_lea.vmem %s4, 16
      %v1598 = vld [vmem:[%s1597] sm:$0xff]
      %v1600 = vsel %vm1447, %v1598, 0
      %1602 = vmatprep.subr.mxu0 0.0
      %1603 = vmatpush1.msra.mxu0 %v1444
      %1604 = vmatprep.subr.mxu0 0.0
      %1605 = vmatpush1.msra.mxu0 %v1445
      %1606 = vmatprep.subr.mxu0 0.0
      %1607 = vmatpush1.msra.mxu0 0.0
      %1608 = vmatprep.subr.mxu0 0.0
      %1609 = vmatpush1.msra.mxu0 0.0
      %1610 = vmatprep.subr.mxu0 0.0
      %1611 = vmatpush1.msra.mxu0 0.0
      %1612 = vmatprep.subr.mxu0 0.0
      %1613 = vmatpush1.msra.mxu0 0.0
      %1614 = vmatprep.subr.mxu0 0.0
      %1615 = vmatpush1.msra.mxu0 0.0
      %1616 = vmatprep.subr.mxu0 0.0
      %1617 = vmatpush1.msra.mxu0 0.0
      %1618 = vmatprep.subr.mxu0 0.0
      %1619 = vmatpush1.msra.mxu0 0.0
      %1620 = vmatprep.subr.mxu0 0.0
      %1621 = vmatpush1.msra.mxu0 0.0
      %1622 = vmatprep.subr.mxu0 0.0
      %1623 = vmatpush1.msra.mxu0 0.0
      %1624 = vmatprep.subr.mxu0 0.0
      %1625 = vmatpush1.msra.mxu0 0.0
      %1626 = vmatprep.subr.mxu0 0.0
      %1627 = vmatpush1.msra.mxu0 0.0
      %1628 = vmatprep.subr.mxu0 0.0
      %1629 = vmatpush1.msra.mxu0 0.0
      %1630 = vmatprep.subr.mxu0 0.0
      %1631 = vmatpush1.msra.mxu0 0.0
      %1632 = vmatprep.subr.mxu0 0.0
      %1633 = vmatpush1.msra.mxu0 0.0
      %1634 = vmatprep.subr.mxu0 0.0
      %1635 = vmatpush1.msra.mxu0 0.0
      %1636 = vmatprep.subr.mxu0 0.0
      %1637 = vmatpush1.msra.mxu0 0.0
      %1638 = vmatprep.subr.mxu0 0.0
      %1639 = vmatpush1.msra.mxu0 0.0
      %1640 = vmatprep.subr.mxu0 0.0
      %1641 = vmatpush1.msra.mxu0 0.0
      %1642 = vmatprep.subr.mxu0 0.0
      %1643 = vmatpush1.msra.mxu0 0.0
      %1644 = vmatprep.subr.mxu0 0.0
      %1645 = vmatpush1.msra.mxu0 0.0
      %1646 = vmatprep.subr.mxu0 0.0
      %1647 = vmatpush1.msra.mxu0 0.0
      %1648 = vmatprep.subr.mxu0 0.0
      %1649 = vmatpush1.msra.mxu0 0.0
      %1650 = vmatprep.subr.mxu0 0.0
      %1651 = vmatpush1.msra.mxu0 0.0
      %1652 = vmatprep.subr.mxu0 0.0
      %1653 = vmatpush1.msra.mxu0 0.0
      %1654 = vmatprep.subr.mxu0 0.0
      %1655 = vmatpush1.msra.mxu0 0.0
      %1656 = vmatprep.subr.mxu0 0.0
      %1657 = vmatpush1.msra.mxu0 0.0
      %1658 = vmatprep.subr.mxu0 0.0
      %1659 = vmatpush1.msra.mxu0 0.0
      %1660 = vmatprep.subr.mxu0 0.0
      %1661 = vmatpush1.msra.mxu0 0.0
      %1662 = vmatprep.subr.mxu0 0.0
      %1663 = vmatpush1.msra.mxu0 0.0
      %1664 = vmatprep.subr.mxu0 0.0
      %1665 = vmatpush1.msra.mxu0 0.0
      %1666 = vmatprep.mubr.f32.mxu0 0.0
      %1667 = vmatmul.mubr.f32.gmra.mrb[0].mxu0 %v1600
      %v1668 = vpop.f32.mrb[0].mxu0
      %v1669 = vadd.f32 0.0, %v1668
      %v1670 = vpop.f32.mrb[0].mxu0
      %1671 = vdwg.mxu0
      %v1672 = vmax.f32 %v1596, %v1669
      %1673 = vst [vmem:[%s222] sm:$0xff] %v1672
      %p1674 = scmp.lt.s32.totalorder %s16, 1
      %s1675 = scalar_select %p1674, %s16, 1
      %s1676 = smul.addr %s1675, 8
      %s1677 = scalar_lea.vmem %s5, %s1676
      // Predicated region
      $region41: #{_lambda_.7} parent=39 // pred_check
        %p1678 = pneg %p144
      $region42: #{_lambda_.7} parent=39 // pred_check_branch
        %1680 = sbr.rel (%p1678) target = $region44
      $region43: #{_lambda_.7} parent=39 // pred_region
        _
      $region44: #{_lambda_.7} parent=39 // pred_fallthru
        _
    $region40: #{_lambda_.7} parent=5 // pred_fallthru
      _
    %p1681 = scmp.le.s32.totalorder 2, %s11
    // Predicated region
    $region45: #{_lambda_.7} parent=5 // pred_check
      %p1682 = pneg %p1681
    $region46: #{_lambda_.7} parent=5 // pred_check_branch
      %1684 = sbr.rel (%p1682) target = $region48
    $region47: #{_lambda_.7} parent=5 // pred_region
      %s1685 = ssub.s32 %s11, 2
      // Predicated region
      $region49: #{_lambda_.7} parent=47 // pred_check
        %p1686 = pneg %p150
      $region50: #{_lambda_.7} parent=47 // pred_check_branch
        %1688 = sbr.rel (%p1686) target = $region52
      $region51: #{_lambda_.7} parent=47 // pred_region
        %p1689 = scmp.lt.s32.totalorder %s17, 1
        %s1690 = scalar_select %p1689, %s17, 1
        %s1691 = smul.addr %s1690, 8
        %s1692 = scalar_lea.vmem %s5, %s1691
      $region52: #{_lambda_.7} parent=47 // pred_fallthru
        _
    $region48: #{_lambda_.7} parent=5 // pred_fallthru
      _
  $region6: #{_lambda_.7} parent=0 // loop_footer
    %s15 = sadd.s32 1, %s11
  $region7: #{_lambda_.7} parent=0 // loop_footer_branch
    %10 = sbr.rel target = $region3
  $region8: #{_lambda_.7} parent=0 // loop_exit
    _

// kernel: _lambda_.12
$region0: #{_lambda_.12}
  #allocation0 [shape = 'u32[]', space=smem, size = 0x4, offset = 0x4, fixed_abs, tag = 'smem constant byte address 0x4 - core index']
  #allocation1 [shape = 'u32[144,128]{1,0:T(1,128)}', space=vmem, size = 0x12000, scoped, tag = 'internal scratch']
  #allocation2 [shape = 'f32[4,128]{1,0:T(4,128)}', space=vmem, size = 0x800, scoped, tag = 'scratch operand']
  %s0 = inlined_call_operand.vmem [shape: f32[2,2,3,128], index: 0, kind: input, shape index: {}]
  %s1 = inlined_call_operand.vmem [shape: bf16[3,128,128], index: 1, kind: input, shape index: {}]
  %s2 = inlined_call_operand.vmem [shape: f32[1,128], index: 2, kind: input, shape index: {}]
  %s3 = inlined_call_operand.vmem [shape: bf16[3,128,128], index: 3, kind: input, shape index: {}]
  %s4 = inlined_call_operand.vmem [shape: f32[1,128], index: 4, kind: input, shape index: {}]
  %s5 = inlined_call_operand.vmem [shape: bf16[1,128,128], index: 5, kind: input, shape index: {}]
  %s6 = inlined_call_operand.vmem [shape: f32[1,128], index: 6, kind: input, shape index: {}]
  %s7 = inlined_call_operand.vmem [shape: f32[2,2,128], index: 7, kind: output, shape index: {}]
  %s8 = sld [smem:[#allocation0]]
  $region61: #{_lambda_.12} parent=0
    _
  %s10 = ssub.s32 1, %s8
  %s11 = scalar_select 0, %s10, %s8
  loop: start=0, step=1, limit=4
  $region2: #{_lambda_.12} parent=0 // loop_pre_header
    _
  $region3: #{_lambda_.12} parent=0 // loop_header
    %s13 = sphi 0, %s17
    %p14 = scmp.ge.s32.totalorder %s13, 4
    %s23 = sphi 0, %s25
    %s26 = sphi 0, %s23
    %s27 = sphi 0, %s26
    %s43 = sphi 0, %s27
    %s47 = sphi 0, %s47
    %s49 = sphi 0, %s47
    %s50 = sphi 0, %s49
    %s64 = sphi 0, %s50
    %s68 = sphi 0, %s68
    %s70 = sphi 0, %s68
    %s71 = sphi 0, %s70
    %s85 = sphi 0, %s71
    %s89 = sphi 0, %s89
    %s91 = sphi 0, %s89
    %s92 = sphi 0, %s91
    %s106 = sphi 0, %s92
    %s110 = sphi 0, %s110
    %s112 = sphi 0, %s110
    %s113 = sphi 0, %s112
    %s127 = sphi 0, %s113
    %s131 = sphi 0, %s131
    %s133 = sphi 0, %s131
    %s134 = sphi 0, %s133
    %s148 = sphi 0, %s134
    %s152 = sphi 0, %s152
    %s154 = sphi 0, %s152
    %s155 = sphi 0, %s154
    %s169 = sphi 0, %s155
    %s175 = sphi 0, %s177
    %s178 = sphi 0, %s175
    %s179 = sphi 0, %s178
    %s195 = sphi 0, %s179
  $region4: #{_lambda_.12} parent=0 // loop_header_branch
    %16 = sbr.rel (%p14) target = $region8
  $region5: #{_lambda_.12} parent=0 // loop_body
    %s18 = ssub.s32 %s13, 1
    %s19 = ssub.s32 %s13, 2
    %s20 = sadd.s32 %s13, 1
    %s21 = ssub.s32 %s13, %s20
    %p22 = scmp.eq.s32.totalorder %s21, 0
    %s24 = sadd.s32 %s23, 1
    %s25 = scalar_select %p22, %s23, %s24
    %p28 = pneg %p22
    %p29 = scmp.eq.s32.totalorder %s13, 1
    %p30 = por %p28, %p29
    %p31 = scmp.ne.s32.totalorder %s23, %s26
    %p32 = scmp.eq.s32.totalorder %s13, 0
    %p33 = por %p31, %p32
    %p34 = scmp.ne.s32.totalorder %s23, %s26
    %p35 = scmp.eq.s32.totalorder %s18, 1
    %p36 = por %p34, %p35
    %p37 = scmp.ne.s32.totalorder %s26, %s27
    %p38 = scmp.eq.s32.totalorder %s18, 0
    %p39 = por %p37, %p38
    %p40 = scmp.ne.s32.totalorder %s26, %s27
    %p41 = scmp.eq.s32.totalorder %s19, 1
    %p42 = por %p40, %p41
    %p44 = scmp.ne.s32.totalorder %s27, %s43
    %p45 = scmp.eq.s32.totalorder %s19, 0
    %p46 = por %p44, %p45
    %s48 = sadd.s32 %s47, 1
    %p51 = scmp.eq.s32.totalorder %s13, 1
    %p52 = scmp.ne.s32.totalorder %s47, %s49
    %p53 = scmp.eq.s32.totalorder %s13, 0
    %p54 = por %p52, %p53
    %p55 = scmp.ne.s32.totalorder %s47, %s49
    %p56 = scmp.eq.s32.totalorder %s18, 1
    %p57 = por %p55, %p56
    %p58 = scmp.ne.s32.totalorder %s49, %s50
    %p59 = scmp.eq.s32.totalorder %s18, 0
    %p60 = por %p58, %p59
    %p61 = scmp.ne.s32.totalorder %s49, %s50
    %p62 = scmp.eq.s32.totalorder %s19, 1
    %p63 = por %p61, %p62
    %p65 = scmp.ne.s32.totalorder %s50, %s64
    %p66 = scmp.eq.s32.totalorder %s19, 0
    %p67 = por %p65, %p66
    %s69 = sadd.s32 %s68, 1
    %p72 = scmp.eq.s32.totalorder %s13, 1
    %p73 = scmp.ne.s32.totalorder %s68, %s70
    %p74 = scmp.eq.s32.totalorder %s13, 0
    %p75 = por %p73, %p74
    %p76 = scmp.ne.s32.totalorder %s68, %s70
    %p77 = scmp.eq.s32.totalorder %s18, 1
    %p78 = por %p76, %p77
    %p79 = scmp.ne.s32.totalorder %s70, %s71
    %p80 = scmp.eq.s32.totalorder %s18, 0
    %p81 = por %p79, %p80
    %p82 = scmp.ne.s32.totalorder %s70, %s71
    %p83 = scmp.eq.s32.totalorder %s19, 1
    %p84 = por %p82, %p83
    %p86 = scmp.ne.s32.totalorder %s71, %s85
    %p87 = scmp.eq.s32.totalorder %s19, 0
    %p88 = por %p86, %p87
    %s90 = sadd.s32 %s89, 1
    %p93 = scmp.eq.s32.totalorder %s13, 1
    %p94 = scmp.ne.s32.totalorder %s89, %s91
    %p95 = scmp.eq.s32.totalorder %s13, 0
    %p96 = por %p94, %p95
    %p97 = scmp.ne.s32.totalorder %s89, %s91
    %p98 = scmp.eq.s32.totalorder %s18, 1
    %p99 = por %p97, %p98
    %p100 = scmp.ne.s32.totalorder %s91, %s92
    %p101 = scmp.eq.s32.totalorder %s18, 0
    %p102 = por %p100, %p101
    %p103 = scmp.ne.s32.totalorder %s91, %s92
    %p104 = scmp.eq.s32.totalorder %s19, 1
    %p105 = por %p103, %p104
    %p107 = scmp.ne.s32.totalorder %s92, %s106
    %p108 = scmp.eq.s32.totalorder %s19, 0
    %p109 = por %p107, %p108
    %s111 = sadd.s32 %s110, 1
    %p114 = scmp.eq.s32.totalorder %s13, 1
    %p115 = scmp.ne.s32.totalorder %s110, %s112
    %p116 = scmp.eq.s32.totalorder %s13, 0
    %p117 = por %p115, %p116
    %p118 = scmp.ne.s32.totalorder %s110, %s112
    %p119 = scmp.eq.s32.totalorder %s18, 1
    %p120 = por %p118, %p119
    %p121 = scmp.ne.s32.totalorder %s112, %s113
    %p122 = scmp.eq.s32.totalorder %s18, 0
    %p123 = por %p121, %p122
    %p124 = scmp.ne.s32.totalorder %s112, %s113
    %p125 = scmp.eq.s32.totalorder %s19, 1
    %p126 = por %p124, %p125
    %p128 = scmp.ne.s32.totalorder %s113, %s127
    %p129 = scmp.eq.s32.totalorder %s19, 0
    %p130 = por %p128, %p129
    %s132 = sadd.s32 %s131, 1
    %p135 = scmp.eq.s32.totalorder %s13, 1
    %p136 = scmp.ne.s32.totalorder %s131, %s133
    %p137 = scmp.eq.s32.totalorder %s13, 0
    %p138 = por %p136, %p137
    %p139 = scmp.ne.s32.totalorder %s131, %s133
    %p140 = scmp.eq.s32.totalorder %s18, 1
    %p141 = por %p139, %p140
    %p142 = scmp.ne.s32.totalorder %s133, %s134
    %p143 = scmp.eq.s32.totalorder %s18, 0
    %p144 = por %p142, %p143
    %p145 = scmp.ne.s32.totalorder %s133, %s134
    %p146 = scmp.eq.s32.totalorder %s19, 1
    %p147 = por %p145, %p146
    %p149 = scmp.ne.s32.totalorder %s134, %s148
    %p150 = scmp.eq.s32.totalorder %s19, 0
    %p151 = por %p149, %p150
    %s153 = sadd.s32 %s152, 1
    %p156 = scmp.eq.s32.totalorder %s13, 1
    %p157 = scmp.ne.s32.totalorder %s152, %s154
    %p158 = scmp.eq.s32.totalorder %s13, 0
    %p159 = por %p157, %p158
    %p160 = scmp.ne.s32.totalorder %s152, %s154
    %p161 = scmp.eq.s32.totalorder %s18, 1
    %p162 = por %p160, %p161
    %p163 = scmp.ne.s32.totalorder %s154, %s155
    %p164 = scmp.eq.s32.totalorder %s18, 0
    %p165 = por %p163, %p164
    %p166 = scmp.ne.s32.totalorder %s154, %s155
    %p167 = scmp.eq.s32.totalorder %s19, 1
    %p168 = por %p166, %p167
    %p170 = scmp.ne.s32.totalorder %s155, %s169
    %p171 = scmp.eq.s32.totalorder %s19, 0
    %p172 = por %p170, %p171
    %s173 = ssub.s32 %s13, %s20
    %p174 = scmp.eq.s32.totalorder %s173, 0
    %s176 = sadd.s32 %s175, 1
    %s177 = scalar_select %p174, %s175, %s176
    %p180 = pneg %p174
    %p181 = scmp.eq.s32.totalorder %s13, 1
    %p182 = por %p180, %p181
    %p183 = scmp.ne.s32.totalorder %s175, %s178
    %p184 = scmp.eq.s32.totalorder %s13, 0
    %p185 = por %p183, %p184
    %p186 = scmp.ne.s32.totalorder %s175, %s178
    %p187 = scmp.eq.s32.totalorder %s18, 1
    %p188 = por %p186, %p187
    %p189 = scmp.ne.s32.totalorder %s178, %s179
    %p190 = scmp.eq.s32.totalorder %s18, 0
    %p191 = por %p189, %p190
    %p192 = scmp.ne.s32.totalorder %s178, %s179
    %p193 = scmp.eq.s32.totalorder %s19, 1
    %p194 = por %p192, %p193
    %p196 = scmp.ne.s32.totalorder %s179, %s195
    %p197 = scmp.eq.s32.totalorder %s19, 0
    %p198 = por %p196, %p197
    %p199 = scmp.le.s32.totalorder 1, %s13
    %p200 = scmp.lt.s32.totalorder %s13, 3
    %p201 = pnand %p199, %p200
    %p202 = pneg %p201
    // Predicated region
    $region9: #{_lambda_.12} parent=5 // pred_check
      _
    $region10: #{_lambda_.12} parent=5 // pred_check_branch
      %204 = sbr.rel (%p201) target = $region12
    $region11: #{_lambda_.12} parent=5 // pred_region
      %s205 = ssub.s32 %s13, 1
      // Predicated region
      $region13: #{_lambda_.12} parent=11 // pred_check
        %p206 = pneg %p60
      $region14: #{_lambda_.12} parent=11 // pred_check_branch
        %208 = sbr.rel (%p206) target = $region16
      $region15: #{_lambda_.12} parent=11 // pred_region
        _
      $region16: #{_lambda_.12} parent=11 // pred_fallthru
        _
      // Predicated region
      $region17: #{_lambda_.12} parent=11 // pred_check
        %p209 = pneg %p81
      $region18: #{_lambda_.12} parent=11 // pred_check_branch
        %211 = sbr.rel (%p209) target = $region20
      $region19: #{_lambda_.12} parent=11 // pred_region
        _
      $region20: #{_lambda_.12} parent=11 // pred_fallthru
        _
      // Predicated region
      $region21: #{_lambda_.12} parent=11 // pred_check
        %p212 = pneg %p102
      $region22: #{_lambda_.12} parent=11 // pred_check_branch
        %214 = sbr.rel (%p212) target = $region24
      $region23: #{_lambda_.12} parent=11 // pred_region
        _
      $region24: #{_lambda_.12} parent=11 // pred_fallthru
        _
      // Predicated region
      $region25: #{_lambda_.12} parent=11 // pred_check
        %p215 = pneg %p123
      $region26: #{_lambda_.12} parent=11 // pred_check_branch
        %217 = sbr.rel (%p215) target = $region28
      $region27: #{_lambda_.12} parent=11 // pred_region
        _
      $region28: #{_lambda_.12} parent=11 // pred_fallthru
        _
      // Predicated region
      $region29: #{_lambda_.12} parent=11 // pred_check
        %p218 = pneg %p144
      $region30: #{_lambda_.12} parent=11 // pred_check_branch
        %220 = sbr.rel (%p218) target = $region32
      $region31: #{_lambda_.12} parent=11 // pred_region
        _
      $region32: #{_lambda_.12} parent=11 // pred_fallthru
        _
      // Predicated region
      $region33: #{_lambda_.12} parent=11 // pred_check
        %p221 = pneg %p165
      $region34: #{_lambda_.12} parent=11 // pred_check_branch
        %223 = sbr.rel (%p221) target = $region36
      $region35: #{_lambda_.12} parent=11 // pred_region
        _
      $region36: #{_lambda_.12} parent=11 // pred_fallthru
        _
    $region12: #{_lambda_.12} parent=5 // pred_fallthru
      _
    %p224 = scmp.lt.s32.totalorder %s13, 2
    // Predicated region
    $region37: #{_lambda_.12} parent=5 // pred_check
      %p225 = pneg %p224
    $region38: #{_lambda_.12} parent=5 // pred_check_branch
      %227 = sbr.rel (%p225) target = $region40
    $region39: #{_lambda_.12} parent=5 // pred_region
      // Predicated region
      $region41: #{_lambda_.12} parent=39 // pred_check
        %p228 = pneg %p33
      $region42: #{_lambda_.12} parent=39 // pred_check_branch
        %230 = sbr.rel (%p228) target = $region44
      $region43: #{_lambda_.12} parent=39 // pred_region
        %p231 = scmp.lt.s32.totalorder %s13, 1
        %s232 = scalar_select %p231, %s13, 1
        %s233 = smul.addr %s232, 2
        %s234 = smul.addr %s233, 4
        %s235 = scalar_lea.vmem %s0, %s234
      $region44: #{_lambda_.12} parent=39 // pred_fallthru
        _
    $region40: #{_lambda_.12} parent=5 // pred_fallthru
      _
    %p236 = scmp.le.s32.totalorder 1, %s13
    %p237 = scmp.lt.s32.totalorder %s13, 3
    %p238 = pnand %p236, %p237
    %p239 = pneg %p238
    // Predicated region
    $region45: #{_lambda_.12} parent=5 // pred_check
      _
    $region46: #{_lambda_.12} parent=5 // pred_check_branch
      %241 = sbr.rel (%p238) target = $region48
    $region47: #{_lambda_.12} parent=5 // pred_region
      %s242 = ssub.s32 %s13, 1
      %p243 = scmp.lt.s32.totalorder %s18, 1
      %s244 = scalar_select %p243, %s18, 1
      %s245 = smul.addr %s244, 2
      %s246 = smul.addr %s245, 4
      %s247 = scalar_lea.vmem %s0, %s246
      %p248 = pneg %p39
      %p249 = pneg %p36
      %p250 = pneg %p60
      %p251 = pneg %p57
      %p252 = pneg %p81
      %p253 = pneg %p78
      %p254 = pneg %p102
      %p255 = pneg %p99
      %p256 = pneg %p123
      %p257 = pneg %p120
      %p258 = pneg %p144
      %p259 = pneg %p141
      %p260 = pneg %p165
      %p261 = pneg %p162
      %p262 = pneg %p191
      %p263 = pneg %p188
      %p264 = scmp.lt.s32.totalorder %s18, 1
      %s265 = scalar_select %p264, %s18, 1
      %s266 = smul.addr %s265, 2
      %s267 = scalar_lea.vmem %s7, %s266
      %p268 = scmp.lt.s32.totalorder %s18, 1
      %s269 = scalar_select %p268, %s18, 1
      %s270 = smul.addr %s269, 2
      %s271 = smul.addr %s270, 4
      %s272 = scalar_lea.vmem %s0, %s271
      %p273 = scmp.lt.s32.totalorder %s18, 1
      %s274 = scalar_select %p273, %s18, 1
      %s275 = smul.addr %s274, 2
      %s276 = scalar_lea.vmem %s7, %s275
      %v278 = vld [vmem:[%s272] sm:$0x3]
      %v279 = vpack.c.bf16 %v278, %v278
      %v280 = vld [vmem:[%s1] sm:$0xf]
      %v281 = vld [vmem:[%s1 + $0x4] sm:$0xf]
      %v282 = vld [vmem:[%s1 + $0x8] sm:$0xf]
      %v283 = vld [vmem:[%s1 + $0xc] sm:$0xf]
      %v284 = vld [vmem:[%s1 + $0x10] sm:$0xf]
      %v285 = vld [vmem:[%s1 + $0x14] sm:$0xf]
      %v286 = vld [vmem:[%s1 + $0x18] sm:$0xf]
      %v287 = vld [vmem:[%s1 + $0x1c] sm:$0xf]
      %v288 = vld [vmem:[%s1 + $0x20] sm:$0xf]
      %v289 = vld [vmem:[%s1 + $0x24] sm:$0xf]
      %v290 = vld [vmem:[%s1 + $0x28] sm:$0xf]
      %v291 = vld [vmem:[%s1 + $0x2c] sm:$0xf]
      %v292 = vld [vmem:[%s1 + $0x30] sm:$0xf]
      %v293 = vld [vmem:[%s1 + $0x34] sm:$0xf]
      %v294 = vld [vmem:[%s1 + $0x38] sm:$0xf]
      %v295 = vld [vmem:[%s1 + $0x3c] sm:$0xf]
      %s296 = scalar_lea.vmem %s272, 4
      %v297 = vld [vmem:[%s296] sm:$0x3]
      %v298 = vpack.c.bf16 %v297, %v297
      %s299 = scalar_lea.vmem %s1, 64
      %v300 = vld [vmem:[%s299] sm:$0xf]
      %v301 = vld [vmem:[%s299 + $0x4] sm:$0xf]
      %v302 = vld [vmem:[%s299 + $0x8] sm:$0xf]
      %v303 = vld [vmem:[%s299 + $0xc] sm:$0xf]
      %v304 = vld [vmem:[%s299 + $0x10] sm:$0xf]
      %v305 = vld [vmem:[%s299 + $0x14] sm:$0xf]
      %v306 = vld [vmem:[%s299 + $0x18] sm:$0xf]
      %v307 = vld [vmem:[%s299 + $0x1c] sm:$0xf]
      %v308 = vld [vmem:[%s299 + $0x20] sm:$0xf]
      %v309 = vld [vmem:[%s299 + $0x24] sm:$0xf]
      %v310 = vld [vmem:[%s299 + $0x28] sm:$0xf]
      %v311 = vld [vmem:[%s299 + $0x2c] sm:$0xf]
      %v312 = vld [vmem:[%s299 + $0x30] sm:$0xf]
      %v313 = vld [vmem:[%s299 + $0x34] sm:$0xf]
      %v314 = vld [vmem:[%s299 + $0x38] sm:$0xf]
      %v315 = vld [vmem:[%s299 + $0x3c] sm:$0xf]
      %v332 = vunpack.c.l.b16 %v300
      %v333 = vunpack.c.l.b16 %v301
      %v334 = vunpack.c.l.b16 %v302
      %v335 = vunpack.c.l.b16 %v303
      %v336 = vunpack.c.l.b16 %v304
      %v337 = vunpack.c.l.b16 %v305
      %v338 = vunpack.c.l.b16 %v306
      %v339 = vunpack.c.l.b16 %v307
      %v340 = vunpack.c.l.b16 %v308
      %v341 = vunpack.c.l.b16 %v309
      %v342 = vunpack.c.l.b16 %v310
      %v343 = vunpack.c.l.b16 %v311
      %v344 = vunpack.c.l.b16 %v312
      %v345 = vunpack.c.l.b16 %v313
      %v346 = vunpack.c.l.b16 %v314
      %v347 = vunpack.c.l.b16 %v315
      %v348 = vpack.c.b16 %v333, %v332
      %v349 = vpack.c.b16 %v335, %v334
      %v350 = vpack.c.b16 %v337, %v336
      %v351 = vpack.c.b16 %v339, %v338
      %v352 = vpack.c.b16 %v341, %v340
      %v353 = vpack.c.b16 %v343, %v342
      %v354 = vpack.c.b16 %v345, %v344
      %v355 = vpack.c.b16 %v347, %v346
      %364 = vmatprep.subr.bf16.mxu0 0
      %365 = vmatpush1.bf16.msra.mxu0 %v348
      %366 = vmatprep.subr.bf16.mxu0 0
      %367 = vmatpush1.bf16.msra.mxu0 %v349
      %368 = vmatprep.subr.bf16.mxu0 0
      %369 = vmatpush1.bf16.msra.mxu0 %v350
      %370 = vmatprep.subr.bf16.mxu0 0
      %371 = vmatpush1.bf16.msra.mxu0 %v351
      %372 = vmatprep.subr.bf16.mxu0 0
      %373 = vmatpush1.bf16.msra.mxu0 %v352
      %374 = vmatprep.subr.bf16.mxu0 0
      %375 = vmatpush1.bf16.msra.mxu0 %v353
      %376 = vmatprep.subr.bf16.mxu0 0
      %377 = vmatpush1.bf16.msra.mxu0 %v354
      %378 = vmatprep.subr.bf16.mxu0 0
      %379 = vmatpush1.bf16.msra.mxu0 %v355
      %380 = vmatprep.subr.bf16.mxu0 0
      %381 = vmatpush1.bf16.msra.mxu0 0
      %382 = vmatprep.subr.bf16.mxu0 0
      %383 = vmatpush1.bf16.msra.mxu0 0
      %384 = vmatprep.subr.bf16.mxu0 0
      %385 = vmatpush1.bf16.msra.mxu0 0
      %386 = vmatprep.subr.bf16.mxu0 0
      %387 = vmatpush1.bf16.msra.mxu0 0
      %388 = vmatprep.subr.bf16.mxu0 0
      %389 = vmatpush1.bf16.msra.mxu0 0
      %390 = vmatprep.subr.bf16.mxu0 0
      %391 = vmatpush1.bf16.msra.mxu0 0
      %392 = vmatprep.subr.bf16.mxu0 0
      %393 = vmatpush1.bf16.msra.mxu0 0
      %394 = vmatprep.subr.bf16.mxu0 0
      %395 = vmatpush1.bf16.msra.mxu0 0
      %396 = vmatprep.mubr.bf16.mxu0 0
      %397 = vmatmul.mubr.bf16.gmra.mrb[0].mxu0 %v298
      %v398 = vpop.f32.mrb[0].mxu0
      %v399 = vadd.f32 0.0, %v398
      %v400 = vpop.f32.mrb[0].mxu0
      %v401 = vpop.f32.mrb[0].mxu0
      %v402 = vpop.f32.mrb[0].mxu0
      %403 = vdwg.mxu0
      %v420 = vunpack.c.l.b16 %v280
      %v421 = vunpack.c.l.b16 %v281
      %v422 = vunpack.c.l.b16 %v282
      %v423 = vunpack.c.l.b16 %v283
      %v424 = vunpack.c.l.b16 %v284
      %v425 = vunpack.c.l.b16 %v285
      %v426 = vunpack.c.l.b16 %v286
      %v427 = vunpack.c.l.b16 %v287
      %v428 = vunpack.c.l.b16 %v288
      %v429 = vunpack.c.l.b16 %v289
      %v430 = vunpack.c.l.b16 %v290
      %v431 = vunpack.c.l.b16 %v291
      %v432 = vunpack.c.l.b16 %v292
      %v433 = vunpack.c.l.b16 %v293
      %v434 = vunpack.c.l.b16 %v294
      %v435 = vunpack.c.l.b16 %v295
      %v436 = vpack.c.b16 %v421, %v420
      %v437 = vpack.c.b16 %v423, %v422
      %v438 = vpack.c.b16 %v425, %v424
      %v439 = vpack.c.b16 %v427, %v426
      %v440 = vpack.c.b16 %v429, %v428
      %v441 = vpack.c.b16 %v431, %v430
      %v442 = vpack.c.b16 %v433, %v432
      %v443 = vpack.c.b16 %v435, %v434
      %452 = vmatprep.subr.bf16.mxu0 0
      %453 = vmatpush1.bf16.msra.mxu0 %v436
      %454 = vmatprep.subr.bf16.mxu0 0
      %455 = vmatpush1.bf16.msra.mxu0 %v437
      %456 = vmatprep.subr.bf16.mxu0 0
      %457 = vmatpush1.bf16.msra.mxu0 %v438
      %458 = vmatprep.subr.bf16.mxu0 0
      %459 = vmatpush1.bf16.msra.mxu0 %v439
      %460 = vmatprep.subr.bf16.mxu0 0
      %461 = vmatpush1.bf16.msra.mxu0 %v440
      %462 = vmatprep.subr.bf16.mxu0 0
      %463 = vmatpush1.bf16.msra.mxu0 %v441
      %464 = vmatprep.subr.bf16.mxu0 0
      %465 = vmatpush1.bf16.msra.mxu0 %v442
      %466 = vmatprep.subr.bf16.mxu0 0
      %467 = vmatpush1.bf16.msra.mxu0 %v443
      %468 = vmatprep.subr.bf16.mxu0 0
      %469 = vmatpush1.bf16.msra.mxu0 0
      %470 = vmatprep.subr.bf16.mxu0 0
      %471 = vmatpush1.bf16.msra.mxu0 0
      %472 = vmatprep.subr.bf16.mxu0 0
      %473 = vmatpush1.bf16.msra.mxu0 0
      %474 = vmatprep.subr.bf16.mxu0 0
      %475 = vmatpush1.bf16.msra.mxu0 0
      %476 = vmatprep.subr.bf16.mxu0 0
      %477 = vmatpush1.bf16.msra.mxu0 0
      %478 = vmatprep.subr.bf16.mxu0 0
      %479 = vmatpush1.bf16.msra.mxu0 0
      %480 = vmatprep.subr.bf16.mxu0 0
      %481 = vmatpush1.bf16.msra.mxu0 0
      %482 = vmatprep.subr.bf16.mxu0 0
      %483 = vmatpush1.bf16.msra.mxu0 0
      %484 = vmatprep.mubr.bf16.mxu0 0
      %485 = vmatmul.mubr.bf16.gmra.mrb[0].mxu0 %v279
      %v486 = vpop.f32.mrb[0].mxu0
      %v487 = vadd.f32 %v399, %v486
      %v488 = vpop.f32.mrb[0].mxu0
      %v489 = vpop.f32.mrb[0].mxu0
      %v490 = vpop.f32.mrb[0].mxu0
      %491 = vdwg.mxu0
      %v492 = vld [vmem:[%s272 + $0x1] sm:$0x3]
      %v493 = vpack.c.bf16 %v492, %v492
      %s494 = scalar_lea.vmem %s1, 128
      %v495 = vld [vmem:[%s494] sm:$0xf]
      %v496 = vld [vmem:[%s494 + $0x4] sm:$0xf]
      %v497 = vld [vmem:[%s494 + $0x8] sm:$0xf]
      %v498 = vld [vmem:[%s494 + $0xc] sm:$0xf]
      %v499 = vld [vmem:[%s494 + $0x10] sm:$0xf]
      %v500 = vld [vmem:[%s494 + $0x14] sm:$0xf]
      %v501 = vld [vmem:[%s494 + $0x18] sm:$0xf]
      %v502 = vld [vmem:[%s494 + $0x1c] sm:$0xf]
      %v503 = vld [vmem:[%s494 + $0x20] sm:$0xf]
      %v504 = vld [vmem:[%s494 + $0x24] sm:$0xf]
      %v505 = vld [vmem:[%s494 + $0x28] sm:$0xf]
      %v506 = vld [vmem:[%s494 + $0x2c] sm:$0xf]
      %v507 = vld [vmem:[%s494 + $0x30] sm:$0xf]
      %v508 = vld [vmem:[%s494 + $0x34] sm:$0xf]
      %v509 = vld [vmem:[%s494 + $0x38] sm:$0xf]
      %v510 = vld [vmem:[%s494 + $0x3c] sm:$0xf]
      %v527 = vunpack.c.l.b16 %v495
      %v528 = vunpack.c.l.b16 %v496
      %v529 = vunpack.c.l.b16 %v497
      %v530 = vunpack.c.l.b16 %v498
      %v531 = vunpack.c.l.b16 %v499
      %v532 = vunpack.c.l.b16 %v500
      %v533 = vunpack.c.l.b16 %v501
      %v534 = vunpack.c.l.b16 %v502
      %v535 = vunpack.c.l.b16 %v503
      %v536 = vunpack.c.l.b16 %v504
      %v537 = vunpack.c.l.b16 %v505
      %v538 = vunpack.c.l.b16 %v506
      %v539 = vunpack.c.l.b16 %v507
      %v540 = vunpack.c.l.b16 %v508
      %v541 = vunpack.c.l.b16 %v509
      %v542 = vunpack.c.l.b16 %v510
      %v543 = vpack.c.b16 %v528, %v527
      %v544 = vpack.c.b16 %v530, %v529
      %v545 = vpack.c.b16 %v532, %v531
      %v546 = vpack.c.b16 %v534, %v533
      %v547 = vpack.c.b16 %v536, %v535
      %v548 = vpack.c.b16 %v538, %v537
      %v549 = vpack.c.b16 %v540, %v539
      %v550 = vpack.c.b16 %v542, %v541
      %559 = vmatprep.subr.bf16.mxu0 0
      %560 = vmatpush1.bf16.msra.mxu0 %v543
      %561 = vmatprep.subr.bf16.mxu0 0
      %562 = vmatpush1.bf16.msra.mxu0 %v544
      %563 = vmatprep.subr.bf16.mxu0 0
      %564 = vmatpush1.bf16.msra.mxu0 %v545
      %565 = vmatprep.subr.bf16.mxu0 0
      %566 = vmatpush1.bf16.msra.mxu0 %v546
      %567 = vmatprep.subr.bf16.mxu0 0
      %568 = vmatpush1.bf16.msra.mxu0 %v547
      %569 = vmatprep.subr.bf16.mxu0 0
      %570 = vmatpush1.bf16.msra.mxu0 %v548
      %571 = vmatprep.subr.bf16.mxu0 0
      %572 = vmatpush1.bf16.msra.mxu0 %v549
      %573 = vmatprep.subr.bf16.mxu0 0
      %574 = vmatpush1.bf16.msra.mxu0 %v550
      %575 = vmatprep.subr.bf16.mxu0 0
      %576 = vmatpush1.bf16.msra.mxu0 0
      %577 = vmatprep.subr.bf16.mxu0 0
      %578 = vmatpush1.bf16.msra.mxu0 0
      %579 = vmatprep.subr.bf16.mxu0 0
      %580 = vmatpush1.bf16.msra.mxu0 0
      %581 = vmatprep.subr.bf16.mxu0 0
      %582 = vmatpush1.bf16.msra.mxu0 0
      %583 = vmatprep.subr.bf16.mxu0 0
      %584 = vmatpush1.bf16.msra.mxu0 0
      %585 = vmatprep.subr.bf16.mxu0 0
      %586 = vmatpush1.bf16.msra.mxu0 0
      %587 = vmatprep.subr.bf16.mxu0 0
      %588 = vmatpush1.bf16.msra.mxu0 0
      %589 = vmatprep.subr.bf16.mxu0 0
      %590 = vmatpush1.bf16.msra.mxu0 0
      %591 = vmatprep.mubr.bf16.mxu0 0
      %592 = vmatmul.mubr.bf16.gmra.mrb[0].mxu0 %v493
      %v593 = vpop.f32.mrb[0].mxu0
      %v594 = vadd.f32 0.0, %v593
      %v595 = vpop.f32.mrb[0].mxu0
      %v596 = vpop.f32.mrb[0].mxu0
      %v597 = vpop.f32.mrb[0].mxu0
      %598 = vdwg.mxu0
      %v599 = vadd.f32 %v487, %v594
      %v600 = vld [vmem:[%s2] sm:$0x1]
      %v602 = vlaneseq
      %v603 = vshrl.u32 %v602, 7
      %v604 = vsub.s32 0, %v603
      %v605 = vrot.slane %v600, %v604
      %v607 = vadd.f32 %v599, %v605
      %v608 = vmax.f32 %v607, 0.0
      %v609 = vld [vmem:[%s5] sm:$0xf]
      %v610 = vld [vmem:[%s5 + $0x4] sm:$0xf]
      %v611 = vld [vmem:[%s5 + $0x8] sm:$0xf]
      %v612 = vld [vmem:[%s5 + $0xc] sm:$0xf]
      %v613 = vld [vmem:[%s5 + $0x10] sm:$0xf]
      %v614 = vld [vmem:[%s5 + $0x14] sm:$0xf]
      %v615 = vld [vmem:[%s5 + $0x18] sm:$0xf]
      %v616 = vld [vmem:[%s5 + $0x1c] sm:$0xf]
      %v617 = vld [vmem:[%s5 + $0x20] sm:$0xf]
      %v618 = vld [vmem:[%s5 + $0x24] sm:$0xf]
      %v619 = vld [vmem:[%s5 + $0x28] sm:$0xf]
      %v620 = vld [vmem:[%s5 + $0x2c] sm:$0xf]
      %v621 = vld [vmem:[%s5 + $0x30] sm:$0xf]
      %v622 = vld [vmem:[%s5 + $0x34] sm:$0xf]
      %v623 = vld [vmem:[%s5 + $0x38] sm:$0xf]
      %v624 = vld [vmem:[%s5 + $0x3c] sm:$0xf]
      %v625 = vld [vmem:[%s6] sm:$0x1]
      %v627 = vlaneseq
      %v628 = vshrl.u32 %v627, 7
      %v629 = vsub.s32 0, %v628
      %v630 = vrot.slane %v625, %v629
      %v648 = vunpack.c.l.b16 %v609
      %v649 = vunpack.c.l.b16 %v610
      %v650 = vunpack.c.l.b16 %v611
      %v651 = vunpack.c.l.b16 %v612
      %v652 = vunpack.c.l.b16 %v613
      %v653 = vunpack.c.l.b16 %v614
      %v654 = vunpack.c.l.b16 %v615
      %v655 = vunpack.c.l.b16 %v616
      %v656 = vunpack.c.l.b16 %v617
      %v657 = vunpack.c.l.b16 %v618
      %v658 = vunpack.c.l.b16 %v619
      %v659 = vunpack.c.l.b16 %v620
      %v660 = vunpack.c.l.b16 %v621
      %v661 = vunpack.c.l.b16 %v622
      %v662 = vunpack.c.l.b16 %v623
      %v663 = vunpack.c.l.b16 %v624
      %v664 = vpack.c.b16 %v649, %v648
      %v665 = vpack.c.b16 %v651, %v650
      %v666 = vpack.c.b16 %v653, %v652
      %v667 = vpack.c.b16 %v655, %v654
      %v668 = vpack.c.b16 %v657, %v656
      %v669 = vpack.c.b16 %v659, %v658
      %v670 = vpack.c.b16 %v661, %v660
      %v671 = vpack.c.b16 %v663, %v662
      %680 = vmatprep.subr.bf16.mxu0 0
      %681 = vmatpush1.bf16.msra.mxu0 %v664
      %682 = vmatprep.subr.bf16.mxu0 0
      %683 = vmatpush1.bf16.msra.mxu0 %v665
      %684 = vmatprep.subr.bf16.mxu0 0
      %685 = vmatpush1.bf16.msra.mxu0 %v666
      %686 = vmatprep.subr.bf16.mxu0 0
      %687 = vmatpush1.bf16.msra.mxu0 %v667
      %688 = vmatprep.subr.bf16.mxu0 0
      %689 = vmatpush1.bf16.msra.mxu0 %v668
      %690 = vmatprep.subr.bf16.mxu0 0
      %691 = vmatpush1.bf16.msra.mxu0 %v669
      %692 = vmatprep.subr.bf16.mxu0 0
      %693 = vmatpush1.bf16.msra.mxu0 %v670
      %694 = vmatprep.subr.bf16.mxu0 0
      %695 = vmatpush1.bf16.msra.mxu0 %v671
      %696 = vmatprep.subr.bf16.mxu0 0
      %697 = vmatpush1.bf16.msra.mxu0 0
      %698 = vmatprep.subr.bf16.mxu0 0
      %699 = vmatpush1.bf16.msra.mxu0 0
      %700 = vmatprep.subr.bf16.mxu0 0
      %701 = vmatpush1.bf16.msra.mxu0 0
      %702 = vmatprep.subr.bf16.mxu0 0
      %703 = vmatpush1.bf16.msra.mxu0 0
      %704 = vmatprep.subr.bf16.mxu0 0
      %705 = vmatpush1.bf16.msra.mxu0 0
      %706 = vmatprep.subr.bf16.mxu0 0
      %707 = vmatpush1.bf16.msra.mxu0 0
      %708 = vmatprep.subr.bf16.mxu0 0
      %709 = vmatpush1.bf16.msra.mxu0 0
      %710 = vmatprep.subr.bf16.mxu0 0
      %711 = vmatpush1.bf16.msra.mxu0 0
      %712 = vmatprep.mubr.bf16.mxu0 0
      %713 = vmatmul.mubr.bf16.gmra.mrb[0].mxu0 %v298
      %v714 = vpop.f32.mrb[0].mxu0
      %v715 = vadd.f32 %v630, %v714
      %v716 = vpop.f32.mrb[0].mxu0
      %v717 = vpop.f32.mrb[0].mxu0
      %v718 = vpop.f32.mrb[0].mxu0
      %719 = vdwg.mxu0
      %720 = vst [vmem:[#allocation2] sm:$0xf] 0.0
      %721 = vst [vmem:[#allocation2 + $0x1] sm:$0x3] %v608
      %v722 = vld [vmem:[#allocation2] sm:$0x3]
      %v723 = vpack.c.bf16 %v722, %v722
      %v724 = vld [vmem:[%s3] sm:$0xf]
      %v725 = vld [vmem:[%s3 + $0x4] sm:$0xf]
      %v726 = vld [vmem:[%s3 + $0x8] sm:$0xf]
      %v727 = vld [vmem:[%s3 + $0xc] sm:$0xf]
      %v728 = vld [vmem:[%s3 + $0x10] sm:$0xf]
      %v729 = vld [vmem:[%s3 + $0x14] sm:$0xf]
      %v730 = vld [vmem:[%s3 + $0x18] sm:$0xf]
      %v731 = vld [vmem:[%s3 + $0x1c] sm:$0xf]
      %v732 = vld [vmem:[%s3 + $0x20] sm:$0xf]
      %v733 = vld [vmem:[%s3 + $0x24] sm:$0xf]
      %v734 = vld [vmem:[%s3 + $0x28] sm:$0xf]
      %v735 = vld [vmem:[%s3 + $0x2c] sm:$0xf]
      %v736 = vld [vmem:[%s3 + $0x30] sm:$0xf]
      %v737 = vld [vmem:[%s3 + $0x34] sm:$0xf]
      %v738 = vld [vmem:[%s3 + $0x38] sm:$0xf]
      %v739 = vld [vmem:[%s3 + $0x3c] sm:$0xf]
      %v740 = vld [vmem:[#allocation2 + $0x1] sm:$0x3]
      %v741 = vpack.c.bf16 %v740, %v740
      %s742 = scalar_lea.vmem %s3, 64
      %v743 = vld [vmem:[%s742] sm:$0xf]
      %v744 = vld [vmem:[%s742 + $0x4] sm:$0xf]
      %v745 = vld [vmem:[%s742 + $0x8] sm:$0xf]
      %v746 = vld [vmem:[%s742 + $0xc] sm:$0xf]
      %v747 = vld [vmem:[%s742 + $0x10] sm:$0xf]
      %v748 = vld [vmem:[%s742 + $0x14] sm:$0xf]
      %v749 = vld [vmem:[%s742 + $0x18] sm:$0xf]
      %v750 = vld [vmem:[%s742 + $0x1c] sm:$0xf]
      %v751 = vld [vmem:[%s742 + $0x20] sm:$0xf]
      %v752 = vld [vmem:[%s742 + $0x24] sm:$0xf]
      %v753 = vld [vmem:[%s742 + $0x28] sm:$0xf]
      %v754 = vld [vmem:[%s742 + $0x2c] sm:$0xf]
      %v755 = vld [vmem:[%s742 + $0x30] sm:$0xf]
      %v756 = vld [vmem:[%s742 + $0x34] sm:$0xf]
      %v757 = vld [vmem:[%s742 + $0x38] sm:$0xf]
      %v758 = vld [vmem:[%s742 + $0x3c] sm:$0xf]
      %v775 = vunpack.c.l.b16 %v743
      %v776 = vunpack.c.l.b16 %v744
      %v777 = vunpack.c.l.b16 %v745
      %v778 = vunpack.c.l.b16 %v746
      %v779 = vunpack.c.l.b16 %v747
      %v780 = vunpack.c.l.b16 %v748
      %v781 = vunpack.c.l.b16 %v749
      %v782 = vunpack.c.l.b16 %v750
      %v783 = vunpack.c.l.b16 %v751
      %v784 = vunpack.c.l.b16 %v752
      %v785 = vunpack.c.l.b16 %v753
      %v786 = vunpack.c.l.b16 %v754
      %v787 = vunpack.c.l.b16 %v755
      %v788 = vunpack.c.l.b16 %v756
      %v789 = vunpack.c.l.b16 %v757
      %v790 = vunpack.c.l.b16 %v758
      %v791 = vpack.c.b16 %v776, %v775
      %v792 = vpack.c.b16 %v778, %v777
      %v793 = vpack.c.b16 %v780, %v779
      %v794 = vpack.c.b16 %v782, %v781
      %v795 = vpack.c.b16 %v784, %v783
      %v796 = vpack.c.b16 %v786, %v785
      %v797 = vpack.c.b16 %v788, %v787
      %v798 = vpack.c.b16 %v790, %v789
      %807 = vmatprep.subr.bf16.mxu0 0
      %808 = vmatpush1.bf16.msra.mxu0 %v791
      %809 = vmatprep.subr.bf16.mxu0 0
      %810 = vmatpush1.bf16.msra.mxu0 %v792
      %811 = vmatprep.subr.bf16.mxu0 0
      %812 = vmatpush1.bf16.msra.mxu0 %v793
      %813 = vmatprep.subr.bf16.mxu0 0
      %814 = vmatpush1.bf16.msra.mxu0 %v794
      %815 = vmatprep.subr.bf16.mxu0 0
      %816 = vmatpush1.bf16.msra.mxu0 %v795
      %817 = vmatprep.subr.bf16.mxu0 0
      %818 = vmatpush1.bf16.msra.mxu0 %v796
      %819 = vmatprep.subr.bf16.mxu0 0
      %820 = vmatpush1.bf16.msra.mxu0 %v797
      %821 = vmatprep.subr.bf16.mxu0 0
      %822 = vmatpush1.bf16.msra.mxu0 %v798
      %823 = vmatprep.subr.bf16.mxu0 0
      %824 = vmatpush1.bf16.msra.mxu0 0
      %825 = vmatprep.subr.bf16.mxu0 0
      %826 = vmatpush1.bf16.msra.mxu0 0
      %827 = vmatprep.subr.bf16.mxu0 0
      %828 = vmatpush1.bf16.msra.mxu0 0
      %829 = vmatprep.subr.bf16.mxu0 0
      %830 = vmatpush1.bf16.msra.mxu0 0
      %831 = vmatprep.subr.bf16.mxu0 0
      %832 = vmatpush1.bf16.msra.mxu0 0
      %833 = vmatprep.subr.bf16.mxu0 0
      %834 = vmatpush1.bf16.msra.mxu0 0
      %835 = vmatprep.subr.bf16.mxu0 0
      %836 = vmatpush1.bf16.msra.mxu0 0
      %837 = vmatprep.subr.bf16.mxu0 0
      %838 = vmatpush1.bf16.msra.mxu0 0
      %839 = vmatprep.mubr.bf16.mxu0 0
      %840 = vmatmul.mubr.bf16.gmra.mrb[0].mxu0 %v741
      %v841 = vpop.f32.mrb[0].mxu0
      %v842 = vadd.f32 0.0, %v841
      %v843 = vpop.f32.mrb[0].mxu0
      %v844 = vpop.f32.mrb[0].mxu0
      %v845 = vpop.f32.mrb[0].mxu0
      %846 = vdwg.mxu0
      %v863 = vunpack.c.l.b16 %v724
      %v864 = vunpack.c.l.b16 %v725
      %v865 = vunpack.c.l.b16 %v726
      %v866 = vunpack.c.l.b16 %v727
      %v867 = vunpack.c.l.b16 %v728
      %v868 = vunpack.c.l.b16 %v729
      %v869 = vunpack.c.l.b16 %v730
      %v870 = vunpack.c.l.b16 %v731
      %v871 = vunpack.c.l.b16 %v732
      %v872 = vunpack.c.l.b16 %v733
      %v873 = vunpack.c.l.b16 %v734
      %v874 = vunpack.c.l.b16 %v735
      %v875 = vunpack.c.l.b16 %v736
      %v876 = vunpack.c.l.b16 %v737
      %v877 = vunpack.c.l.b16 %v738
      %v878 = vunpack.c.l.b16 %v739
      %v879 = vpack.c.b16 %v864, %v863
      %v880 = vpack.c.b16 %v866, %v865
      %v881 = vpack.c.b16 %v868, %v867
      %v882 = vpack.c.b16 %v870, %v869
      %v883 = vpack.c.b16 %v872, %v871
      %v884 = vpack.c.b16 %v874, %v873
      %v885 = vpack.c.b16 %v876, %v875
      %v886 = vpack.c.b16 %v878, %v877
      %895 = vmatprep.subr.bf16.mxu0 0
      %896 = vmatpush1.bf16.msra.mxu0 %v879
      %897 = vmatprep.subr.bf16.mxu0 0
      %898 = vmatpush1.bf16.msra.mxu0 %v880
      %899 = vmatprep.subr.bf16.mxu0 0
      %900 = vmatpush1.bf16.msra.mxu0 %v881
      %901 = vmatprep.subr.bf16.mxu0 0
      %902 = vmatpush1.bf16.msra.mxu0 %v882
      %903 = vmatprep.subr.bf16.mxu0 0
      %904 = vmatpush1.bf16.msra.mxu0 %v883
      %905 = vmatprep.subr.bf16.mxu0 0
      %906 = vmatpush1.bf16.msra.mxu0 %v884
      %907 = vmatprep.subr.bf16.mxu0 0
      %908 = vmatpush1.bf16.msra.mxu0 %v885
      %909 = vmatprep.subr.bf16.mxu0 0
      %910 = vmatpush1.bf16.msra.mxu0 %v886
      %911 = vmatprep.subr.bf16.mxu0 0
      %912 = vmatpush1.bf16.msra.mxu0 0
      %913 = vmatprep.subr.bf16.mxu0 0
      %914 = vmatpush1.bf16.msra.mxu0 0
      %915 = vmatprep.subr.bf16.mxu0 0
      %916 = vmatpush1.bf16.msra.mxu0 0
      %917 = vmatprep.subr.bf16.mxu0 0
      %918 = vmatpush1.bf16.msra.mxu0 0
      %919 = vmatprep.subr.bf16.mxu0 0
      %920 = vmatpush1.bf16.msra.mxu0 0
      %921 = vmatprep.subr.bf16.mxu0 0
      %922 = vmatpush1.bf16.msra.mxu0 0
      %923 = vmatprep.subr.bf16.mxu0 0
      %924 = vmatpush1.bf16.msra.mxu0 0
      %925 = vmatprep.subr.bf16.mxu0 0
      %926 = vmatpush1.bf16.msra.mxu0 0
      %927 = vmatprep.mubr.bf16.mxu0 0
      %928 = vmatmul.mubr.bf16.gmra.mrb[0].mxu0 %v723
      %v929 = vpop.f32.mrb[0].mxu0
      %v930 = vadd.f32 %v842, %v929
      %v931 = vpop.f32.mrb[0].mxu0
      %v932 = vpop.f32.mrb[0].mxu0
      %v933 = vpop.f32.mrb[0].mxu0
      %934 = vdwg.mxu0
      %v935 = vld [vmem:[#allocation2 + $0x2] sm:$0x3]
      %v936 = vpack.c.bf16 %v935, %v935
      %s937 = scalar_lea.vmem %s3, 128
      %v938 = vld [vmem:[%s937] sm:$0xf]
      %v939 = vld [vmem:[%s937 + $0x4] sm:$0xf]
      %v940 = vld [vmem:[%s937 + $0x8] sm:$0xf]
      %v941 = vld [vmem:[%s937 + $0xc] sm:$0xf]
      %v942 = vld [vmem:[%s937 + $0x10] sm:$0xf]
      %v943 = vld [vmem:[%s937 + $0x14] sm:$0xf]
      %v944 = vld [vmem:[%s937 + $0x18] sm:$0xf]
      %v945 = vld [vmem:[%s937 + $0x1c] sm:$0xf]
      %v946 = vld [vmem:[%s937 + $0x20] sm:$0xf]
      %v947 = vld [vmem:[%s937 + $0x24] sm:$0xf]
      %v948 = vld [vmem:[%s937 + $0x28] sm:$0xf]
      %v949 = vld [vmem:[%s937 + $0x2c] sm:$0xf]
      %v950 = vld [vmem:[%s937 + $0x30] sm:$0xf]
      %v951 = vld [vmem:[%s937 + $0x34] sm:$0xf]
      %v952 = vld [vmem:[%s937 + $0x38] sm:$0xf]
      %v953 = vld [vmem:[%s937 + $0x3c] sm:$0xf]
      %v970 = vunpack.c.l.b16 %v938
      %v971 = vunpack.c.l.b16 %v939
      %v972 = vunpack.c.l.b16 %v940
      %v973 = vunpack.c.l.b16 %v941
      %v974 = vunpack.c.l.b16 %v942
      %v975 = vunpack.c.l.b16 %v943
      %v976 = vunpack.c.l.b16 %v944
      %v977 = vunpack.c.l.b16 %v945
      %v978 = vunpack.c.l.b16 %v946
      %v979 = vunpack.c.l.b16 %v947
      %v980 = vunpack.c.l.b16 %v948
      %v981 = vunpack.c.l.b16 %v949
      %v982 = vunpack.c.l.b16 %v950
      %v983 = vunpack.c.l.b16 %v951
      %v984 = vunpack.c.l.b16 %v952
      %v985 = vunpack.c.l.b16 %v953
      %v986 = vpack.c.b16 %v971, %v970
      %v987 = vpack.c.b16 %v973, %v972
      %v988 = vpack.c.b16 %v975, %v974
      %v989 = vpack.c.b16 %v977, %v976
      %v990 = vpack.c.b16 %v979, %v978
      %v991 = vpack.c.b16 %v981, %v980
      %v992 = vpack.c.b16 %v983, %v982
      %v993 = vpack.c.b16 %v985, %v984
      %1002 = vmatprep.subr.bf16.mxu0 0
      %1003 = vmatpush1.bf16.msra.mxu0 %v986
      %1004 = vmatprep.subr.bf16.mxu0 0
      %1005 = vmatpush1.bf16.msra.mxu0 %v987
      %1006 = vmatprep.subr.bf16.mxu0 0
      %1007 = vmatpush1.bf16.msra.mxu0 %v988
      %1008 = vmatprep.subr.bf16.mxu0 0
      %1009 = vmatpush1.bf16.msra.mxu0 %v989
      %1010 = vmatprep.subr.bf16.mxu0 0
      %1011 = vmatpush1.bf16.msra.mxu0 %v990
      %1012 = vmatprep.subr.bf16.mxu0 0
      %1013 = vmatpush1.bf16.msra.mxu0 %v991
      %1014 = vmatprep.subr.bf16.mxu0 0
      %1015 = vmatpush1.bf16.msra.mxu0 %v992
      %1016 = vmatprep.subr.bf16.mxu0 0
      %1017 = vmatpush1.bf16.msra.mxu0 %v993
      %1018 = vmatprep.subr.bf16.mxu0 0
      %1019 = vmatpush1.bf16.msra.mxu0 0
      %1020 = vmatprep.subr.bf16.mxu0 0
      %1021 = vmatpush1.bf16.msra.mxu0 0
      %1022 = vmatprep.subr.bf16.mxu0 0
      %1023 = vmatpush1.bf16.msra.mxu0 0
      %1024 = vmatprep.subr.bf16.mxu0 0
      %1025 = vmatpush1.bf16.msra.mxu0 0
      %1026 = vmatprep.subr.bf16.mxu0 0
      %1027 = vmatpush1.bf16.msra.mxu0 0
      %1028 = vmatprep.subr.bf16.mxu0 0
      %1029 = vmatpush1.bf16.msra.mxu0 0
      %1030 = vmatprep.subr.bf16.mxu0 0
      %1031 = vmatpush1.bf16.msra.mxu0 0
      %1032 = vmatprep.subr.bf16.mxu0 0
      %1033 = vmatpush1.bf16.msra.mxu0 0
      %1034 = vmatprep.mubr.bf16.mxu0 0
      %1035 = vmatmul.mubr.bf16.gmra.mrb[0].mxu0 %v936
      %v1036 = vpop.f32.mrb[0].mxu0
      %v1037 = vadd.f32 0.0, %v1036
      %v1038 = vpop.f32.mrb[0].mxu0
      %v1039 = vpop.f32.mrb[0].mxu0
      %v1040 = vpop.f32.mrb[0].mxu0
      %1041 = vdwg.mxu0
      %v1042 = vadd.f32 %v930, %v1037
      %v1043 = vld [vmem:[%s4] sm:$0x1]
      %v1045 = vlaneseq
      %v1046 = vshrl.u32 %v1045, 7
      %v1047 = vsub.s32 0, %v1046
      %v1048 = vrot.slane %v1043, %v1047
      %v1050 = vadd.f32 %v1042, %v1048
      %v1051 = vadd.f32 %v1050, %v715
      %v1052 = vmax.f32 %v1051, 0.0
      %1053 = vst [vmem:[%s276] sm:$0x3] %v1052
      %p1054 = scmp.lt.s32.totalorder %s18, 1
      %s1055 = scalar_select %p1054, %s18, 1
      %s1056 = smul.addr %s1055, 2
      %s1057 = scalar_lea.vmem %s7, %s1056
      // Predicated region
      $region49: #{_lambda_.12} parent=47 // pred_check
        %p1058 = pneg %p188
      $region50: #{_lambda_.12} parent=47 // pred_check_branch
        %1060 = sbr.rel (%p1058) target = $region52
      $region51: #{_lambda_.12} parent=47 // pred_region
        _
      $region52: #{_lambda_.12} parent=47 // pred_fallthru
        _
    $region48: #{_lambda_.12} parent=5 // pred_fallthru
      _
    %p1061 = scmp.le.s32.totalorder 2, %s13
    // Predicated region
    $region53: #{_lambda_.12} parent=5 // pred_check
      %p1062 = pneg %p1061
    $region54: #{_lambda_.12} parent=5 // pred_check_branch
      %1064 = sbr.rel (%p1062) target = $region56
    $region55: #{_lambda_.12} parent=5 // pred_region
      %s1065 = ssub.s32 %s13, 2
      // Predicated region
      $region57: #{_lambda_.12} parent=55 // pred_check
        %p1066 = pneg %p194
      $region58: #{_lambda_.12} parent=55 // pred_check_branch
        %1068 = sbr.rel (%p1066) target = $region60
      $region59: #{_lambda_.12} parent=55 // pred_region
        %p1069 = scmp.lt.s32.totalorder %s19, 1
        %s1070 = scalar_select %p1069, %s19, 1
        %s1071 = smul.addr %s1070, 2
        %s1072 = scalar_lea.vmem %s7, %s1071
      $region60: #{_lambda_.12} parent=55 // pred_fallthru
        _
    $region56: #{_lambda_.12} parent=5 // pred_fallthru
      _
  $region6: #{_lambda_.12} parent=0 // loop_footer
    %s17 = sadd.s32 1, %s13
  $region7: #{_lambda_.12} parent=0 // loop_footer_branch
    %12 = sbr.rel target = $region3
  $region8: #{_lambda_.12} parent=0 // loop_exit
    _

// kernel: _lambda_.13
$region0: #{_lambda_.13}
  #allocation0 [shape = 'u32[]', space=smem, size = 0x4, offset = 0x4, fixed_abs, tag = 'smem constant byte address 0x4 - core index']
  #allocation1 [shape = 'u32[144,128]{1,0:T(1,128)}', space=vmem, size = 0x12000, scoped, tag = 'internal scratch']
  #allocation2 [shape = 'f32[4,128]{1,0:T(4,128)}', space=vmem, size = 0x800, scoped, tag = 'scratch operand']
  %s0 = inlined_call_operand.vmem [shape: f32[2,1,4,128], index: 0, kind: input, shape index: {}]
  %s1 = inlined_call_operand.vmem [shape: bf16[3,128,128], index: 1, kind: input, shape index: {}]
  %s2 = inlined_call_operand.vmem [shape: f32[1,128], index: 2, kind: input, shape index: {}]
  %s3 = inlined_call_operand.vmem [shape: bf16[3,128,128], index: 3, kind: input, shape index: {}]
  %s4 = inlined_call_operand.vmem [shape: f32[1,128], index: 4, kind: input, shape index: {}]
  %s5 = inlined_call_operand.vmem [shape: f32[2,2,128], index: 5, kind: output, shape index: {}]
  %s6 = sld [smem:[#allocation0]]
  $region53: #{_lambda_.13} parent=0
    _
  %s8 = ssub.s32 1, %s6
  %s9 = scalar_select 0, %s8, %s6
  loop: start=0, step=1, limit=4
  $region2: #{_lambda_.13} parent=0 // loop_pre_header
    _
  $region3: #{_lambda_.13} parent=0 // loop_header
    %s11 = sphi 0, %s15
    %p12 = scmp.ge.s32.totalorder %s11, 4
    %s21 = sphi 0, %s23
    %s24 = sphi 0, %s21
    %s25 = sphi 0, %s24
    %s41 = sphi 0, %s25
    %s45 = sphi 0, %s45
    %s47 = sphi 0, %s45
    %s48 = sphi 0, %s47
    %s62 = sphi 0, %s48
    %s66 = sphi 0, %s66
    %s68 = sphi 0, %s66
    %s69 = sphi 0, %s68
    %s83 = sphi 0, %s69
    %s87 = sphi 0, %s87
    %s89 = sphi 0, %s87
    %s90 = sphi 0, %s89
    %s104 = sphi 0, %s90
    %s108 = sphi 0, %s108
    %s110 = sphi 0, %s108
    %s111 = sphi 0, %s110
    %s125 = sphi 0, %s111
    %s131 = sphi 0, %s133
    %s134 = sphi 0, %s131
    %s135 = sphi 0, %s134
    %s151 = sphi 0, %s135
  $region4: #{_lambda_.13} parent=0 // loop_header_branch
    %14 = sbr.rel (%p12) target = $region8
  $region5: #{_lambda_.13} parent=0 // loop_body
    %s16 = ssub.s32 %s11, 1
    %s17 = ssub.s32 %s11, 2
    %s18 = sadd.s32 %s11, 1
    %s19 = ssub.s32 %s11, %s18
    %p20 = scmp.eq.s32.totalorder %s19, 0
    %s22 = sadd.s32 %s21, 1
    %s23 = scalar_select %p20, %s21, %s22
    %p26 = pneg %p20
    %p27 = scmp.eq.s32.totalorder %s11, 1
    %p28 = por %p26, %p27
    %p29 = scmp.ne.s32.totalorder %s21, %s24
    %p30 = scmp.eq.s32.totalorder %s11, 0
    %p31 = por %p29, %p30
    %p32 = scmp.ne.s32.totalorder %s21, %s24
    %p33 = scmp.eq.s32.totalorder %s16, 1
    %p34 = por %p32, %p33
    %p35 = scmp.ne.s32.totalorder %s24, %s25
    %p36 = scmp.eq.s32.totalorder %s16, 0
    %p37 = por %p35, %p36
    %p38 = scmp.ne.s32.totalorder %s24, %s25
    %p39 = scmp.eq.s32.totalorder %s17, 1
    %p40 = por %p38, %p39
    %p42 = scmp.ne.s32.totalorder %s25, %s41
    %p43 = scmp.eq.s32.totalorder %s17, 0
    %p44 = por %p42, %p43
    %s46 = sadd.s32 %s45, 1
    %p49 = scmp.eq.s32.totalorder %s11, 1
    %p50 = scmp.ne.s32.totalorder %s45, %s47
    %p51 = scmp.eq.s32.totalorder %s11, 0
    %p52 = por %p50, %p51
    %p53 = scmp.ne.s32.totalorder %s45, %s47
    %p54 = scmp.eq.s32.totalorder %s16, 1
    %p55 = por %p53, %p54
    %p56 = scmp.ne.s32.totalorder %s47, %s48
    %p57 = scmp.eq.s32.totalorder %s16, 0
    %p58 = por %p56, %p57
    %p59 = scmp.ne.s32.totalorder %s47, %s48
    %p60 = scmp.eq.s32.totalorder %s17, 1
    %p61 = por %p59, %p60
    %p63 = scmp.ne.s32.totalorder %s48, %s62
    %p64 = scmp.eq.s32.totalorder %s17, 0
    %p65 = por %p63, %p64
    %s67 = sadd.s32 %s66, 1
    %p70 = scmp.eq.s32.totalorder %s11, 1
    %p71 = scmp.ne.s32.totalorder %s66, %s68
    %p72 = scmp.eq.s32.totalorder %s11, 0
    %p73 = por %p71, %p72
    %p74 = scmp.ne.s32.totalorder %s66, %s68
    %p75 = scmp.eq.s32.totalorder %s16, 1
    %p76 = por %p74, %p75
    %p77 = scmp.ne.s32.totalorder %s68, %s69
    %p78 = scmp.eq.s32.totalorder %s16, 0
    %p79 = por %p77, %p78
    %p80 = scmp.ne.s32.totalorder %s68, %s69
    %p81 = scmp.eq.s32.totalorder %s17, 1
    %p82 = por %p80, %p81
    %p84 = scmp.ne.s32.totalorder %s69, %s83
    %p85 = scmp.eq.s32.totalorder %s17, 0
    %p86 = por %p84, %p85
    %s88 = sadd.s32 %s87, 1
    %p91 = scmp.eq.s32.totalorder %s11, 1
    %p92 = scmp.ne.s32.totalorder %s87, %s89
    %p93 = scmp.eq.s32.totalorder %s11, 0
    %p94 = por %p92, %p93
    %p95 = scmp.ne.s32.totalorder %s87, %s89
    %p96 = scmp.eq.s32.totalorder %s16, 1
    %p97 = por %p95, %p96
    %p98 = scmp.ne.s32.totalorder %s89, %s90
    %p99 = scmp.eq.s32.totalorder %s16, 0
    %p100 = por %p98, %p99
    %p101 = scmp.ne.s32.totalorder %s89, %s90
    %p102 = scmp.eq.s32.totalorder %s17, 1
    %p103 = por %p101, %p102
    %p105 = scmp.ne.s32.totalorder %s90, %s104
    %p106 = scmp.eq.s32.totalorder %s17, 0
    %p107 = por %p105, %p106
    %s109 = sadd.s32 %s108, 1
    %p112 = scmp.eq.s32.totalorder %s11, 1
    %p113 = scmp.ne.s32.totalorder %s108, %s110
    %p114 = scmp.eq.s32.totalorder %s11, 0
    %p115 = por %p113, %p114
    %p116 = scmp.ne.s32.totalorder %s108, %s110
    %p117 = scmp.eq.s32.totalorder %s16, 1
    %p118 = por %p116, %p117
    %p119 = scmp.ne.s32.totalorder %s110, %s111
    %p120 = scmp.eq.s32.totalorder %s16, 0
    %p121 = por %p119, %p120
    %p122 = scmp.ne.s32.totalorder %s110, %s111
    %p123 = scmp.eq.s32.totalorder %s17, 1
    %p124 = por %p122, %p123
    %p126 = scmp.ne.s32.totalorder %s111, %s125
    %p127 = scmp.eq.s32.totalorder %s17, 0
    %p128 = por %p126, %p127
    %s129 = ssub.s32 %s11, %s18
    %p130 = scmp.eq.s32.totalorder %s129, 0
    %s132 = sadd.s32 %s131, 1
    %s133 = scalar_select %p130, %s131, %s132
    %p136 = pneg %p130
    %p137 = scmp.eq.s32.totalorder %s11, 1
    %p138 = por %p136, %p137
    %p139 = scmp.ne.s32.totalorder %s131, %s134
    %p140 = scmp.eq.s32.totalorder %s11, 0
    %p141 = por %p139, %p140
    %p142 = scmp.ne.s32.totalorder %s131, %s134
    %p143 = scmp.eq.s32.totalorder %s16, 1
    %p144 = por %p142, %p143
    %p145 = scmp.ne.s32.totalorder %s134, %s135
    %p146 = scmp.eq.s32.totalorder %s16, 0
    %p147 = por %p145, %p146
    %p148 = scmp.ne.s32.totalorder %s134, %s135
    %p149 = scmp.eq.s32.totalorder %s17, 1
    %p150 = por %p148, %p149
    %p152 = scmp.ne.s32.totalorder %s135, %s151
    %p153 = scmp.eq.s32.totalorder %s17, 0
    %p154 = por %p152, %p153
    %p155 = scmp.le.s32.totalorder 1, %s11
    %p156 = scmp.lt.s32.totalorder %s11, 3
    %p157 = pnand %p155, %p156
    %p158 = pneg %p157
    // Predicated region
    $region9: #{_lambda_.13} parent=5 // pred_check
      _
    $region10: #{_lambda_.13} parent=5 // pred_check_branch
      %160 = sbr.rel (%p157) target = $region12
    $region11: #{_lambda_.13} parent=5 // pred_region
      %s161 = ssub.s32 %s11, 1
      // Predicated region
      $region13: #{_lambda_.13} parent=11 // pred_check
        %p162 = pneg %p58
      $region14: #{_lambda_.13} parent=11 // pred_check_branch
        %164 = sbr.rel (%p162) target = $region16
      $region15: #{_lambda_.13} parent=11 // pred_region
        _
      $region16: #{_lambda_.13} parent=11 // pred_fallthru
        _
      // Predicated region
      $region17: #{_lambda_.13} parent=11 // pred_check
        %p165 = pneg %p79
      $region18: #{_lambda_.13} parent=11 // pred_check_branch
        %167 = sbr.rel (%p165) target = $region20
      $region19: #{_lambda_.13} parent=11 // pred_region
        _
      $region20: #{_lambda_.13} parent=11 // pred_fallthru
        _
      // Predicated region
      $region21: #{_lambda_.13} parent=11 // pred_check
        %p168 = pneg %p100
      $region22: #{_lambda_.13} parent=11 // pred_check_branch
        %170 = sbr.rel (%p168) target = $region24
      $region23: #{_lambda_.13} parent=11 // pred_region
        _
      $region24: #{_lambda_.13} parent=11 // pred_fallthru
        _
      // Predicated region
      $region25: #{_lambda_.13} parent=11 // pred_check
        %p171 = pneg %p121
      $region26: #{_lambda_.13} parent=11 // pred_check_branch
        %173 = sbr.rel (%p171) target = $region28
      $region27: #{_lambda_.13} parent=11 // pred_region
        _
      $region28: #{_lambda_.13} parent=11 // pred_fallthru
        _
    $region12: #{_lambda_.13} parent=5 // pred_fallthru
      _
    %p174 = scmp.lt.s32.totalorder %s11, 2
    // Predicated region
    $region29: #{_lambda_.13} parent=5 // pred_check
      %p175 = pneg %p174
    $region30: #{_lambda_.13} parent=5 // pred_check_branch
      %177 = sbr.rel (%p175) target = $region32
    $region31: #{_lambda_.13} parent=5 // pred_region
      // Predicated region
      $region33: #{_lambda_.13} parent=31 // pred_check
        %p178 = pneg %p31
      $region34: #{_lambda_.13} parent=31 // pred_check_branch
        %180 = sbr.rel (%p178) target = $region36
      $region35: #{_lambda_.13} parent=31 // pred_region
        %p181 = scmp.lt.s32.totalorder %s11, 1
        %s182 = scalar_select %p181, %s11, 1
        %s183 = smul.addr %s182, 4
        %s184 = scalar_lea.vmem %s0, %s183
      $region36: #{_lambda_.13} parent=31 // pred_fallthru
        _
    $region32: #{_lambda_.13} parent=5 // pred_fallthru
      _
    %p185 = scmp.le.s32.totalorder 1, %s11
    %p186 = scmp.lt.s32.totalorder %s11, 3
    %p187 = pnand %p185, %p186
    %p188 = pneg %p187
    // Predicated region
    $region37: #{_lambda_.13} parent=5 // pred_check
      _
    $region38: #{_lambda_.13} parent=5 // pred_check_branch
      %190 = sbr.rel (%p187) target = $region40
    $region39: #{_lambda_.13} parent=5 // pred_region
      %s191 = ssub.s32 %s11, 1
      %p192 = scmp.lt.s32.totalorder %s16, 1
      %s193 = scalar_select %p192, %s16, 1
      %s194 = smul.addr %s193, 4
      %s195 = scalar_lea.vmem %s0, %s194
      %p196 = pneg %p37
      %p197 = pneg %p34
      %p198 = pneg %p58
      %p199 = pneg %p55
      %p200 = pneg %p79
      %p201 = pneg %p76
      %p202 = pneg %p100
      %p203 = pneg %p97
      %p204 = pneg %p121
      %p205 = pneg %p118
      %p206 = pneg %p147
      %p207 = pneg %p144
      %p208 = scmp.lt.s32.totalorder %s16, 1
      %s209 = scalar_select %p208, %s16, 1
      %s210 = smul.addr %s209, 2
      %s211 = scalar_lea.vmem %s5, %s210
      %p212 = scmp.lt.s32.totalorder %s16, 1
      %s213 = scalar_select %p212, %s16, 1
      %s214 = smul.addr %s213, 4
      %s215 = scalar_lea.vmem %s0, %s214
      %p216 = scmp.lt.s32.totalorder %s16, 1
      %s217 = scalar_select %p216, %s16, 1
      %s218 = smul.addr %s217, 2
      %s219 = scalar_lea.vmem %s5, %s218
      %v221 = vld [vmem:[%s215] sm:$0x3]
      %v222 = vpack.c.bf16 %v221, %v221
      %v223 = vld [vmem:[%s1] sm:$0xf]
      %v224 = vld [vmem:[%s1 + $0x4] sm:$0xf]
      %v225 = vld [vmem:[%s1 + $0x8] sm:$0xf]
      %v226 = vld [vmem:[%s1 + $0xc] sm:$0xf]
      %v227 = vld [vmem:[%s1 + $0x10] sm:$0xf]
      %v228 = vld [vmem:[%s1 + $0x14] sm:$0xf]
      %v229 = vld [vmem:[%s1 + $0x18] sm:$0xf]
      %v230 = vld [vmem:[%s1 + $0x1c] sm:$0xf]
      %v231 = vld [vmem:[%s1 + $0x20] sm:$0xf]
      %v232 = vld [vmem:[%s1 + $0x24] sm:$0xf]
      %v233 = vld [vmem:[%s1 + $0x28] sm:$0xf]
      %v234 = vld [vmem:[%s1 + $0x2c] sm:$0xf]
      %v235 = vld [vmem:[%s1 + $0x30] sm:$0xf]
      %v236 = vld [vmem:[%s1 + $0x34] sm:$0xf]
      %v237 = vld [vmem:[%s1 + $0x38] sm:$0xf]
      %v238 = vld [vmem:[%s1 + $0x3c] sm:$0xf]
      %v239 = vld [vmem:[%s215 + $0x1] sm:$0x3]
      %v240 = vpack.c.bf16 %v239, %v239
      %s241 = scalar_lea.vmem %s1, 64
      %v242 = vld [vmem:[%s241] sm:$0xf]
      %v243 = vld [vmem:[%s241 + $0x4] sm:$0xf]
      %v244 = vld [vmem:[%s241 + $0x8] sm:$0xf]
      %v245 = vld [vmem:[%s241 + $0xc] sm:$0xf]
      %v246 = vld [vmem:[%s241 + $0x10] sm:$0xf]
      %v247 = vld [vmem:[%s241 + $0x14] sm:$0xf]
      %v248 = vld [vmem:[%s241 + $0x18] sm:$0xf]
      %v249 = vld [vmem:[%s241 + $0x1c] sm:$0xf]
      %v250 = vld [vmem:[%s241 + $0x20] sm:$0xf]
      %v251 = vld [vmem:[%s241 + $0x24] sm:$0xf]
      %v252 = vld [vmem:[%s241 + $0x28] sm:$0xf]
      %v253 = vld [vmem:[%s241 + $0x2c] sm:$0xf]
      %v254 = vld [vmem:[%s241 + $0x30] sm:$0xf]
      %v255 = vld [vmem:[%s241 + $0x34] sm:$0xf]
      %v256 = vld [vmem:[%s241 + $0x38] sm:$0xf]
      %v257 = vld [vmem:[%s241 + $0x3c] sm:$0xf]
      %v274 = vunpack.c.l.b16 %v242
      %v275 = vunpack.c.l.b16 %v243
      %v276 = vunpack.c.l.b16 %v244
      %v277 = vunpack.c.l.b16 %v245
      %v278 = vunpack.c.l.b16 %v246
      %v279 = vunpack.c.l.b16 %v247
      %v280 = vunpack.c.l.b16 %v248
      %v281 = vunpack.c.l.b16 %v249
      %v282 = vunpack.c.l.b16 %v250
      %v283 = vunpack.c.l.b16 %v251
      %v284 = vunpack.c.l.b16 %v252
      %v285 = vunpack.c.l.b16 %v253
      %v286 = vunpack.c.l.b16 %v254
      %v287 = vunpack.c.l.b16 %v255
      %v288 = vunpack.c.l.b16 %v256
      %v289 = vunpack.c.l.b16 %v257
      %v290 = vpack.c.b16 %v275, %v274
      %v291 = vpack.c.b16 %v277, %v276
      %v292 = vpack.c.b16 %v279, %v278
      %v293 = vpack.c.b16 %v281, %v280
      %v294 = vpack.c.b16 %v283, %v282
      %v295 = vpack.c.b16 %v285, %v284
      %v296 = vpack.c.b16 %v287, %v286
      %v297 = vpack.c.b16 %v289, %v288
      %306 = vmatprep.subr.bf16.mxu0 0
      %307 = vmatpush1.bf16.msra.mxu0 %v290
      %308 = vmatprep.subr.bf16.mxu0 0
      %309 = vmatpush1.bf16.msra.mxu0 %v291
      %310 = vmatprep.subr.bf16.mxu0 0
      %311 = vmatpush1.bf16.msra.mxu0 %v292
      %312 = vmatprep.subr.bf16.mxu0 0
      %313 = vmatpush1.bf16.msra.mxu0 %v293
      %314 = vmatprep.subr.bf16.mxu0 0
      %315 = vmatpush1.bf16.msra.mxu0 %v294
      %316 = vmatprep.subr.bf16.mxu0 0
      %317 = vmatpush1.bf16.msra.mxu0 %v295
      %318 = vmatprep.subr.bf16.mxu0 0
      %319 = vmatpush1.bf16.msra.mxu0 %v296
      %320 = vmatprep.subr.bf16.mxu0 0
      %321 = vmatpush1.bf16.msra.mxu0 %v297
      %322 = vmatprep.subr.bf16.mxu0 0
      %323 = vmatpush1.bf16.msra.mxu0 0
      %324 = vmatprep.subr.bf16.mxu0 0
      %325 = vmatpush1.bf16.msra.mxu0 0
      %326 = vmatprep.subr.bf16.mxu0 0
      %327 = vmatpush1.bf16.msra.mxu0 0
      %328 = vmatprep.subr.bf16.mxu0 0
      %329 = vmatpush1.bf16.msra.mxu0 0
      %330 = vmatprep.subr.bf16.mxu0 0
      %331 = vmatpush1.bf16.msra.mxu0 0
      %332 = vmatprep.subr.bf16.mxu0 0
      %333 = vmatpush1.bf16.msra.mxu0 0
      %334 = vmatprep.subr.bf16.mxu0 0
      %335 = vmatpush1.bf16.msra.mxu0 0
      %336 = vmatprep.subr.bf16.mxu0 0
      %337 = vmatpush1.bf16.msra.mxu0 0
      %338 = vmatprep.mubr.bf16.mxu0 0
      %339 = vmatmul.mubr.bf16.gmra.mrb[0].mxu0 %v240
      %v340 = vpop.f32.mrb[0].mxu0
      %v341 = vadd.f32 0.0, %v340
      %v342 = vpop.f32.mrb[0].mxu0
      %v343 = vpop.f32.mrb[0].mxu0
      %v344 = vpop.f32.mrb[0].mxu0
      %345 = vdwg.mxu0
      %v362 = vunpack.c.l.b16 %v223
      %v363 = vunpack.c.l.b16 %v224
      %v364 = vunpack.c.l.b16 %v225
      %v365 = vunpack.c.l.b16 %v226
      %v366 = vunpack.c.l.b16 %v227
      %v367 = vunpack.c.l.b16 %v228
      %v368 = vunpack.c.l.b16 %v229
      %v369 = vunpack.c.l.b16 %v230
      %v370 = vunpack.c.l.b16 %v231
      %v371 = vunpack.c.l.b16 %v232
      %v372 = vunpack.c.l.b16 %v233
      %v373 = vunpack.c.l.b16 %v234
      %v374 = vunpack.c.l.b16 %v235
      %v375 = vunpack.c.l.b16 %v236
      %v376 = vunpack.c.l.b16 %v237
      %v377 = vunpack.c.l.b16 %v238
      %v378 = vpack.c.b16 %v363, %v362
      %v379 = vpack.c.b16 %v365, %v364
      %v380 = vpack.c.b16 %v367, %v366
      %v381 = vpack.c.b16 %v369, %v368
      %v382 = vpack.c.b16 %v371, %v370
      %v383 = vpack.c.b16 %v373, %v372
      %v384 = vpack.c.b16 %v375, %v374
      %v385 = vpack.c.b16 %v377, %v376
      %394 = vmatprep.subr.bf16.mxu0 0
      %395 = vmatpush1.bf16.msra.mxu0 %v378
      %396 = vmatprep.subr.bf16.mxu0 0
      %397 = vmatpush1.bf16.msra.mxu0 %v379
      %398 = vmatprep.subr.bf16.mxu0 0
      %399 = vmatpush1.bf16.msra.mxu0 %v380
      %400 = vmatprep.subr.bf16.mxu0 0
      %401 = vmatpush1.bf16.msra.mxu0 %v381
      %402 = vmatprep.subr.bf16.mxu0 0
      %403 = vmatpush1.bf16.msra.mxu0 %v382
      %404 = vmatprep.subr.bf16.mxu0 0
      %405 = vmatpush1.bf16.msra.mxu0 %v383
      %406 = vmatprep.subr.bf16.mxu0 0
      %407 = vmatpush1.bf16.msra.mxu0 %v384
      %408 = vmatprep.subr.bf16.mxu0 0
      %409 = vmatpush1.bf16.msra.mxu0 %v385
      %410 = vmatprep.subr.bf16.mxu0 0
      %411 = vmatpush1.bf16.msra.mxu0 0
      %412 = vmatprep.subr.bf16.mxu0 0
      %413 = vmatpush1.bf16.msra.mxu0 0
      %414 = vmatprep.subr.bf16.mxu0 0
      %415 = vmatpush1.bf16.msra.mxu0 0
      %416 = vmatprep.subr.bf16.mxu0 0
      %417 = vmatpush1.bf16.msra.mxu0 0
      %418 = vmatprep.subr.bf16.mxu0 0
      %419 = vmatpush1.bf16.msra.mxu0 0
      %420 = vmatprep.subr.bf16.mxu0 0
      %421 = vmatpush1.bf16.msra.mxu0 0
      %422 = vmatprep.subr.bf16.mxu0 0
      %423 = vmatpush1.bf16.msra.mxu0 0
      %424 = vmatprep.subr.bf16.mxu0 0
      %425 = vmatpush1.bf16.msra.mxu0 0
      %426 = vmatprep.mubr.bf16.mxu0 0
      %427 = vmatmul.mubr.bf16.gmra.mrb[0].mxu0 %v222
      %v428 = vpop.f32.mrb[0].mxu0
      %v429 = vadd.f32 %v341, %v428
      %v430 = vpop.f32.mrb[0].mxu0
      %v431 = vpop.f32.mrb[0].mxu0
      %v432 = vpop.f32.mrb[0].mxu0
      %433 = vdwg.mxu0
      %v434 = vld [vmem:[%s215 + $0x2] sm:$0x3]
      %v435 = vpack.c.bf16 %v434, %v434
      %s436 = scalar_lea.vmem %s1, 128
      %v437 = vld [vmem:[%s436] sm:$0xf]
      %v438 = vld [vmem:[%s436 + $0x4] sm:$0xf]
      %v439 = vld [vmem:[%s436 + $0x8] sm:$0xf]
      %v440 = vld [vmem:[%s436 + $0xc] sm:$0xf]
      %v441 = vld [vmem:[%s436 + $0x10] sm:$0xf]
      %v442 = vld [vmem:[%s436 + $0x14] sm:$0xf]
      %v443 = vld [vmem:[%s436 + $0x18] sm:$0xf]
      %v444 = vld [vmem:[%s436 + $0x1c] sm:$0xf]
      %v445 = vld [vmem:[%s436 + $0x20] sm:$0xf]
      %v446 = vld [vmem:[%s436 + $0x24] sm:$0xf]
      %v447 = vld [vmem:[%s436 + $0x28] sm:$0xf]
      %v448 = vld [vmem:[%s436 + $0x2c] sm:$0xf]
      %v449 = vld [vmem:[%s436 + $0x30] sm:$0xf]
      %v450 = vld [vmem:[%s436 + $0x34] sm:$0xf]
      %v451 = vld [vmem:[%s436 + $0x38] sm:$0xf]
      %v452 = vld [vmem:[%s436 + $0x3c] sm:$0xf]
      %v469 = vunpack.c.l.b16 %v437
      %v470 = vunpack.c.l.b16 %v438
      %v471 = vunpack.c.l.b16 %v439
      %v472 = vunpack.c.l.b16 %v440
      %v473 = vunpack.c.l.b16 %v441
      %v474 = vunpack.c.l.b16 %v442
      %v475 = vunpack.c.l.b16 %v443
      %v476 = vunpack.c.l.b16 %v444
      %v477 = vunpack.c.l.b16 %v445
      %v478 = vunpack.c.l.b16 %v446
      %v479 = vunpack.c.l.b16 %v447
      %v480 = vunpack.c.l.b16 %v448
      %v481 = vunpack.c.l.b16 %v449
      %v482 = vunpack.c.l.b16 %v450
      %v483 = vunpack.c.l.b16 %v451
      %v484 = vunpack.c.l.b16 %v452
      %v485 = vpack.c.b16 %v470, %v469
      %v486 = vpack.c.b16 %v472, %v471
      %v487 = vpack.c.b16 %v474, %v473
      %v488 = vpack.c.b16 %v476, %v475
      %v489 = vpack.c.b16 %v478, %v477
      %v490 = vpack.c.b16 %v480, %v479
      %v491 = vpack.c.b16 %v482, %v481
      %v492 = vpack.c.b16 %v484, %v483
      %501 = vmatprep.subr.bf16.mxu0 0
      %502 = vmatpush1.bf16.msra.mxu0 %v485
      %503 = vmatprep.subr.bf16.mxu0 0
      %504 = vmatpush1.bf16.msra.mxu0 %v486
      %505 = vmatprep.subr.bf16.mxu0 0
      %506 = vmatpush1.bf16.msra.mxu0 %v487
      %507 = vmatprep.subr.bf16.mxu0 0
      %508 = vmatpush1.bf16.msra.mxu0 %v488
      %509 = vmatprep.subr.bf16.mxu0 0
      %510 = vmatpush1.bf16.msra.mxu0 %v489
      %511 = vmatprep.subr.bf16.mxu0 0
      %512 = vmatpush1.bf16.msra.mxu0 %v490
      %513 = vmatprep.subr.bf16.mxu0 0
      %514 = vmatpush1.bf16.msra.mxu0 %v491
      %515 = vmatprep.subr.bf16.mxu0 0
      %516 = vmatpush1.bf16.msra.mxu0 %v492
      %517 = vmatprep.subr.bf16.mxu0 0
      %518 = vmatpush1.bf16.msra.mxu0 0
      %519 = vmatprep.subr.bf16.mxu0 0
      %520 = vmatpush1.bf16.msra.mxu0 0
      %521 = vmatprep.subr.bf16.mxu0 0
      %522 = vmatpush1.bf16.msra.mxu0 0
      %523 = vmatprep.subr.bf16.mxu0 0
      %524 = vmatpush1.bf16.msra.mxu0 0
      %525 = vmatprep.subr.bf16.mxu0 0
      %526 = vmatpush1.bf16.msra.mxu0 0
      %527 = vmatprep.subr.bf16.mxu0 0
      %528 = vmatpush1.bf16.msra.mxu0 0
      %529 = vmatprep.subr.bf16.mxu0 0
      %530 = vmatpush1.bf16.msra.mxu0 0
      %531 = vmatprep.subr.bf16.mxu0 0
      %532 = vmatpush1.bf16.msra.mxu0 0
      %533 = vmatprep.mubr.bf16.mxu0 0
      %534 = vmatmul.mubr.bf16.gmra.mrb[0].mxu0 %v435
      %v535 = vpop.f32.mrb[0].mxu0
      %v536 = vadd.f32 0.0, %v535
      %v537 = vpop.f32.mrb[0].mxu0
      %v538 = vpop.f32.mrb[0].mxu0
      %v539 = vpop.f32.mrb[0].mxu0
      %540 = vdwg.mxu0
      %v541 = vadd.f32 %v429, %v536
      %v542 = vld [vmem:[%s2] sm:$0x1]
      %v544 = vlaneseq
      %v545 = vshrl.u32 %v544, 7
      %v546 = vsub.s32 0, %v545
      %v547 = vrot.slane %v542, %v546
      %v549 = vadd.f32 %v541, %v547
      %v550 = vmax.f32 %v549, 0.0
      %551 = vst [vmem:[#allocation2] sm:$0xf] 0.0
      %552 = vst [vmem:[#allocation2 + $0x1] sm:$0x3] %v550
      %v553 = vld [vmem:[#allocation2] sm:$0x3]
      %v554 = vpack.c.bf16 %v553, %v553
      %v555 = vld [vmem:[%s3] sm:$0xf]
      %v556 = vld [vmem:[%s3 + $0x4] sm:$0xf]
      %v557 = vld [vmem:[%s3 + $0x8] sm:$0xf]
      %v558 = vld [vmem:[%s3 + $0xc] sm:$0xf]
      %v559 = vld [vmem:[%s3 + $0x10] sm:$0xf]
      %v560 = vld [vmem:[%s3 + $0x14] sm:$0xf]
      %v561 = vld [vmem:[%s3 + $0x18] sm:$0xf]
      %v562 = vld [vmem:[%s3 + $0x1c] sm:$0xf]
      %v563 = vld [vmem:[%s3 + $0x20] sm:$0xf]
      %v564 = vld [vmem:[%s3 + $0x24] sm:$0xf]
      %v565 = vld [vmem:[%s3 + $0x28] sm:$0xf]
      %v566 = vld [vmem:[%s3 + $0x2c] sm:$0xf]
      %v567 = vld [vmem:[%s3 + $0x30] sm:$0xf]
      %v568 = vld [vmem:[%s3 + $0x34] sm:$0xf]
      %v569 = vld [vmem:[%s3 + $0x38] sm:$0xf]
      %v570 = vld [vmem:[%s3 + $0x3c] sm:$0xf]
      %v571 = vld [vmem:[#allocation2 + $0x1] sm:$0x3]
      %v572 = vpack.c.bf16 %v571, %v571
      %s573 = scalar_lea.vmem %s3, 64
      %v574 = vld [vmem:[%s573] sm:$0xf]
      %v575 = vld [vmem:[%s573 + $0x4] sm:$0xf]
      %v576 = vld [vmem:[%s573 + $0x8] sm:$0xf]
      %v577 = vld [vmem:[%s573 + $0xc] sm:$0xf]
      %v578 = vld [vmem:[%s573 + $0x10] sm:$0xf]
      %v579 = vld [vmem:[%s573 + $0x14] sm:$0xf]
      %v580 = vld [vmem:[%s573 + $0x18] sm:$0xf]
      %v581 = vld [vmem:[%s573 + $0x1c] sm:$0xf]
      %v582 = vld [vmem:[%s573 + $0x20] sm:$0xf]
      %v583 = vld [vmem:[%s573 + $0x24] sm:$0xf]
      %v584 = vld [vmem:[%s573 + $0x28] sm:$0xf]
      %v585 = vld [vmem:[%s573 + $0x2c] sm:$0xf]
      %v586 = vld [vmem:[%s573 + $0x30] sm:$0xf]
      %v587 = vld [vmem:[%s573 + $0x34] sm:$0xf]
      %v588 = vld [vmem:[%s573 + $0x38] sm:$0xf]
      %v589 = vld [vmem:[%s573 + $0x3c] sm:$0xf]
      %v606 = vunpack.c.l.b16 %v574
      %v607 = vunpack.c.l.b16 %v575
      %v608 = vunpack.c.l.b16 %v576
      %v609 = vunpack.c.l.b16 %v577
      %v610 = vunpack.c.l.b16 %v578
      %v611 = vunpack.c.l.b16 %v579
      %v612 = vunpack.c.l.b16 %v580
      %v613 = vunpack.c.l.b16 %v581
      %v614 = vunpack.c.l.b16 %v582
      %v615 = vunpack.c.l.b16 %v583
      %v616 = vunpack.c.l.b16 %v584
      %v617 = vunpack.c.l.b16 %v585
      %v618 = vunpack.c.l.b16 %v586
      %v619 = vunpack.c.l.b16 %v587
      %v620 = vunpack.c.l.b16 %v588
      %v621 = vunpack.c.l.b16 %v589
      %v622 = vpack.c.b16 %v607, %v606
      %v623 = vpack.c.b16 %v609, %v608
      %v624 = vpack.c.b16 %v611, %v610
      %v625 = vpack.c.b16 %v613, %v612
      %v626 = vpack.c.b16 %v615, %v614
      %v627 = vpack.c.b16 %v617, %v616
      %v628 = vpack.c.b16 %v619, %v618
      %v629 = vpack.c.b16 %v621, %v620
      %638 = vmatprep.subr.bf16.mxu0 0
      %639 = vmatpush1.bf16.msra.mxu0 %v622
      %640 = vmatprep.subr.bf16.mxu0 0
      %641 = vmatpush1.bf16.msra.mxu0 %v623
      %642 = vmatprep.subr.bf16.mxu0 0
      %643 = vmatpush1.bf16.msra.mxu0 %v624
      %644 = vmatprep.subr.bf16.mxu0 0
      %645 = vmatpush1.bf16.msra.mxu0 %v625
      %646 = vmatprep.subr.bf16.mxu0 0
      %647 = vmatpush1.bf16.msra.mxu0 %v626
      %648 = vmatprep.subr.bf16.mxu0 0
      %649 = vmatpush1.bf16.msra.mxu0 %v627
      %650 = vmatprep.subr.bf16.mxu0 0
      %651 = vmatpush1.bf16.msra.mxu0 %v628
      %652 = vmatprep.subr.bf16.mxu0 0
      %653 = vmatpush1.bf16.msra.mxu0 %v629
      %654 = vmatprep.subr.bf16.mxu0 0
      %655 = vmatpush1.bf16.msra.mxu0 0
      %656 = vmatprep.subr.bf16.mxu0 0
      %657 = vmatpush1.bf16.msra.mxu0 0
      %658 = vmatprep.subr.bf16.mxu0 0
      %659 = vmatpush1.bf16.msra.mxu0 0
      %660 = vmatprep.subr.bf16.mxu0 0
      %661 = vmatpush1.bf16.msra.mxu0 0
      %662 = vmatprep.subr.bf16.mxu0 0
      %663 = vmatpush1.bf16.msra.mxu0 0
      %664 = vmatprep.subr.bf16.mxu0 0
      %665 = vmatpush1.bf16.msra.mxu0 0
      %666 = vmatprep.subr.bf16.mxu0 0
      %667 = vmatpush1.bf16.msra.mxu0 0
      %668 = vmatprep.subr.bf16.mxu0 0
      %669 = vmatpush1.bf16.msra.mxu0 0
      %670 = vmatprep.mubr.bf16.mxu0 0
      %671 = vmatmul.mubr.bf16.gmra.mrb[0].mxu0 %v572
      %v672 = vpop.f32.mrb[0].mxu0
      %v673 = vadd.f32 0.0, %v672
      %v674 = vpop.f32.mrb[0].mxu0
      %v675 = vpop.f32.mrb[0].mxu0
      %v676 = vpop.f32.mrb[0].mxu0
      %677 = vdwg.mxu0
      %v694 = vunpack.c.l.b16 %v555
      %v695 = vunpack.c.l.b16 %v556
      %v696 = vunpack.c.l.b16 %v557
      %v697 = vunpack.c.l.b16 %v558
      %v698 = vunpack.c.l.b16 %v559
      %v699 = vunpack.c.l.b16 %v560
      %v700 = vunpack.c.l.b16 %v561
      %v701 = vunpack.c.l.b16 %v562
      %v702 = vunpack.c.l.b16 %v563
      %v703 = vunpack.c.l.b16 %v564
      %v704 = vunpack.c.l.b16 %v565
      %v705 = vunpack.c.l.b16 %v566
      %v706 = vunpack.c.l.b16 %v567
      %v707 = vunpack.c.l.b16 %v568
      %v708 = vunpack.c.l.b16 %v569
      %v709 = vunpack.c.l.b16 %v570
      %v710 = vpack.c.b16 %v695, %v694
      %v711 = vpack.c.b16 %v697, %v696
      %v712 = vpack.c.b16 %v699, %v698
      %v713 = vpack.c.b16 %v701, %v700
      %v714 = vpack.c.b16 %v703, %v702
      %v715 = vpack.c.b16 %v705, %v704
      %v716 = vpack.c.b16 %v707, %v706
      %v717 = vpack.c.b16 %v709, %v708
      %726 = vmatprep.subr.bf16.mxu0 0
      %727 = vmatpush1.bf16.msra.mxu0 %v710
      %728 = vmatprep.subr.bf16.mxu0 0
      %729 = vmatpush1.bf16.msra.mxu0 %v711
      %730 = vmatprep.subr.bf16.mxu0 0
      %731 = vmatpush1.bf16.msra.mxu0 %v712
      %732 = vmatprep.subr.bf16.mxu0 0
      %733 = vmatpush1.bf16.msra.mxu0 %v713
      %734 = vmatprep.subr.bf16.mxu0 0
      %735 = vmatpush1.bf16.msra.mxu0 %v714
      %736 = vmatprep.subr.bf16.mxu0 0
      %737 = vmatpush1.bf16.msra.mxu0 %v715
      %738 = vmatprep.subr.bf16.mxu0 0
      %739 = vmatpush1.bf16.msra.mxu0 %v716
      %740 = vmatprep.subr.bf16.mxu0 0
      %741 = vmatpush1.bf16.msra.mxu0 %v717
      %742 = vmatprep.subr.bf16.mxu0 0
      %743 = vmatpush1.bf16.msra.mxu0 0
      %744 = vmatprep.subr.bf16.mxu0 0
      %745 = vmatpush1.bf16.msra.mxu0 0
      %746 = vmatprep.subr.bf16.mxu0 0
      %747 = vmatpush1.bf16.msra.mxu0 0
      %748 = vmatprep.subr.bf16.mxu0 0
      %749 = vmatpush1.bf16.msra.mxu0 0
      %750 = vmatprep.subr.bf16.mxu0 0
      %751 = vmatpush1.bf16.msra.mxu0 0
      %752 = vmatprep.subr.bf16.mxu0 0
      %753 = vmatpush1.bf16.msra.mxu0 0
      %754 = vmatprep.subr.bf16.mxu0 0
      %755 = vmatpush1.bf16.msra.mxu0 0
      %756 = vmatprep.subr.bf16.mxu0 0
      %757 = vmatpush1.bf16.msra.mxu0 0
      %758 = vmatprep.mubr.bf16.mxu0 0
      %759 = vmatmul.mubr.bf16.gmra.mrb[0].mxu0 %v554
      %v760 = vpop.f32.mrb[0].mxu0
      %v761 = vadd.f32 %v673, %v760
      %v762 = vpop.f32.mrb[0].mxu0
      %v763 = vpop.f32.mrb[0].mxu0
      %v764 = vpop.f32.mrb[0].mxu0
      %765 = vdwg.mxu0
      %v766 = vld [vmem:[#allocation2 + $0x2] sm:$0x3]
      %v767 = vpack.c.bf16 %v766, %v766
      %s768 = scalar_lea.vmem %s3, 128
      %v769 = vld [vmem:[%s768] sm:$0xf]
      %v770 = vld [vmem:[%s768 + $0x4] sm:$0xf]
      %v771 = vld [vmem:[%s768 + $0x8] sm:$0xf]
      %v772 = vld [vmem:[%s768 + $0xc] sm:$0xf]
      %v773 = vld [vmem:[%s768 + $0x10] sm:$0xf]
      %v774 = vld [vmem:[%s768 + $0x14] sm:$0xf]
      %v775 = vld [vmem:[%s768 + $0x18] sm:$0xf]
      %v776 = vld [vmem:[%s768 + $0x1c] sm:$0xf]
      %v777 = vld [vmem:[%s768 + $0x20] sm:$0xf]
      %v778 = vld [vmem:[%s768 + $0x24] sm:$0xf]
      %v779 = vld [vmem:[%s768 + $0x28] sm:$0xf]
      %v780 = vld [vmem:[%s768 + $0x2c] sm:$0xf]
      %v781 = vld [vmem:[%s768 + $0x30] sm:$0xf]
      %v782 = vld [vmem:[%s768 + $0x34] sm:$0xf]
      %v783 = vld [vmem:[%s768 + $0x38] sm:$0xf]
      %v784 = vld [vmem:[%s768 + $0x3c] sm:$0xf]
      %v801 = vunpack.c.l.b16 %v769
      %v802 = vunpack.c.l.b16 %v770
      %v803 = vunpack.c.l.b16 %v771
      %v804 = vunpack.c.l.b16 %v772
      %v805 = vunpack.c.l.b16 %v773
      %v806 = vunpack.c.l.b16 %v774
      %v807 = vunpack.c.l.b16 %v775
      %v808 = vunpack.c.l.b16 %v776
      %v809 = vunpack.c.l.b16 %v777
      %v810 = vunpack.c.l.b16 %v778
      %v811 = vunpack.c.l.b16 %v779
      %v812 = vunpack.c.l.b16 %v780
      %v813 = vunpack.c.l.b16 %v781
      %v814 = vunpack.c.l.b16 %v782
      %v815 = vunpack.c.l.b16 %v783
      %v816 = vunpack.c.l.b16 %v784
      %v817 = vpack.c.b16 %v802, %v801
      %v818 = vpack.c.b16 %v804, %v803
      %v819 = vpack.c.b16 %v806, %v805
      %v820 = vpack.c.b16 %v808, %v807
      %v821 = vpack.c.b16 %v810, %v809
      %v822 = vpack.c.b16 %v812, %v811
      %v823 = vpack.c.b16 %v814, %v813
      %v824 = vpack.c.b16 %v816, %v815
      %833 = vmatprep.subr.bf16.mxu0 0
      %834 = vmatpush1.bf16.msra.mxu0 %v817
      %835 = vmatprep.subr.bf16.mxu0 0
      %836 = vmatpush1.bf16.msra.mxu0 %v818
      %837 = vmatprep.subr.bf16.mxu0 0
      %838 = vmatpush1.bf16.msra.mxu0 %v819
      %839 = vmatprep.subr.bf16.mxu0 0
      %840 = vmatpush1.bf16.msra.mxu0 %v820
      %841 = vmatprep.subr.bf16.mxu0 0
      %842 = vmatpush1.bf16.msra.mxu0 %v821
      %843 = vmatprep.subr.bf16.mxu0 0
      %844 = vmatpush1.bf16.msra.mxu0 %v822
      %845 = vmatprep.subr.bf16.mxu0 0
      %846 = vmatpush1.bf16.msra.mxu0 %v823
      %847 = vmatprep.subr.bf16.mxu0 0
      %848 = vmatpush1.bf16.msra.mxu0 %v824
      %849 = vmatprep.subr.bf16.mxu0 0
      %850 = vmatpush1.bf16.msra.mxu0 0
      %851 = vmatprep.subr.bf16.mxu0 0
      %852 = vmatpush1.bf16.msra.mxu0 0
      %853 = vmatprep.subr.bf16.mxu0 0
      %854 = vmatpush1.bf16.msra.mxu0 0
      %855 = vmatprep.subr.bf16.mxu0 0
      %856 = vmatpush1.bf16.msra.mxu0 0
      %857 = vmatprep.subr.bf16.mxu0 0
      %858 = vmatpush1.bf16.msra.mxu0 0
      %859 = vmatprep.subr.bf16.mxu0 0
      %860 = vmatpush1.bf16.msra.mxu0 0
      %861 = vmatprep.subr.bf16.mxu0 0
      %862 = vmatpush1.bf16.msra.mxu0 0
      %863 = vmatprep.subr.bf16.mxu0 0
      %864 = vmatpush1.bf16.msra.mxu0 0
      %865 = vmatprep.mubr.bf16.mxu0 0
      %866 = vmatmul.mubr.bf16.gmra.mrb[0].mxu0 %v767
      %v867 = vpop.f32.mrb[0].mxu0
      %v868 = vadd.f32 0.0, %v867
      %v869 = vpop.f32.mrb[0].mxu0
      %v870 = vpop.f32.mrb[0].mxu0
      %v871 = vpop.f32.mrb[0].mxu0
      %872 = vdwg.mxu0
      %v873 = vadd.f32 %v761, %v868
      %v874 = vld [vmem:[%s4] sm:$0x1]
      %v876 = vlaneseq
      %v877 = vshrl.u32 %v876, 7
      %v878 = vsub.s32 0, %v877
      %v879 = vrot.slane %v874, %v878
      %v881 = vadd.f32 %v873, %v879
      %v882 = vadd.f32 %v881, %v239
      %v883 = vmax.f32 %v882, 0.0
      %884 = vst [vmem:[%s219] sm:$0x3] %v883
      %p885 = scmp.lt.s32.totalorder %s16, 1
      %s886 = scalar_select %p885, %s16, 1
      %s887 = smul.addr %s886, 2
      %s888 = scalar_lea.vmem %s5, %s887
      // Predicated region
      $region41: #{_lambda_.13} parent=39 // pred_check
        %p889 = pneg %p144
      $region42: #{_lambda_.13} parent=39 // pred_check_branch
        %891 = sbr.rel (%p889) target = $region44
      $region43: #{_lambda_.13} parent=39 // pred_region
        _
      $region44: #{_lambda_.13} parent=39 // pred_fallthru
        _
    $region40: #{_lambda_.13} parent=5 // pred_fallthru
      _
    %p892 = scmp.le.s32.totalorder 2, %s11
    // Predicated region
    $region45: #{_lambda_.13} parent=5 // pred_check
      %p893 = pneg %p892
    $region46: #{_lambda_.13} parent=5 // pred_check_branch
      %895 = sbr.rel (%p893) target = $region48
    $region47: #{_lambda_.13} parent=5 // pred_region
      %s896 = ssub.s32 %s11, 2
      // Predicated region
      $region49: #{_lambda_.13} parent=47 // pred_check
        %p897 = pneg %p150
      $region50: #{_lambda_.13} parent=47 // pred_check_branch
        %899 = sbr.rel (%p897) target = $region52
      $region51: #{_lambda_.13} parent=47 // pred_region
        %p900 = scmp.lt.s32.totalorder %s17, 1
        %s901 = scalar_select %p900, %s17, 1
        %s902 = smul.addr %s901, 2
        %s903 = scalar_lea.vmem %s5, %s902
      $region52: #{_lambda_.13} parent=47 // pred_fallthru
        _
    $region48: #{_lambda_.13} parent=5 // pred_fallthru
      _
  $region6: #{_lambda_.13} parent=0 // loop_footer
    %s15 = sadd.s32 1, %s11
  $region7: #{_lambda_.13} parent=0 // loop_footer_branch
    %10 = sbr.rel target = $region3
  $region8: #{_lambda_.13} parent=0 // loop_exit
    _

</llo_original>
